<compile_context>
chip_gen: v5e
topology: v5e:2x2
jax: 0.10.0
libtpu: 0.0.40
codegen_flags: <defaults>
</compile_context>

<pallas_src>
import functools
import math

import jax
import jax.numpy as jnp
from jax import lax
from jax.experimental import pallas as pl
from jax.experimental.pallas import tpu as pltpu

GROUPS = 8          # GroupNorm(8, out_channels), as in the PyTorch module
EPS = 1e-5          # nn.GroupNorm default eps
COL_OFF = 8         # sublane-aligned start column of the valid image inside
                    # the spatially padded scratch buffers (left halo at col 7)


def _round_up(x, m):
    return (x + m - 1) // m * m


def _gn_relu(acc, mm_ref, g_ref, b_ref, eps):
    """GroupNorm(8) + ReLU on an (H*W, C) f32 pre-activation."""
    ch_sum = jnp.sum(acc, axis=0, keepdims=True)           # (1, C) XLU reduce
    ch_sq = jnp.sum(acc * acc, axis=0, keepdims=True)      # (1, C)
    # Per-channel group statistics via the (C, C) membership matrix (already
    # divided by the per-group element count).  Kept in f32 even though the
    # conv matmuls use bf16 operands (one-pass E[x^2]-mean^2 needs f32 sums).
    mean_c = jnp.dot(ch_sum, mm_ref[...], preferred_element_type=jnp.float32)
    ex2_c = jnp.dot(ch_sq, mm_ref[...], preferred_element_type=jnp.float32)
    inv_c = lax.rsqrt(ex2_c - mean_c * mean_c + eps)        # EUP rsqrt
    y = (acc - mean_c) * (inv_c * g_ref[...]) + b_ref[...]
    return jnp.maximum(y, 0.0)                              # ReLU


def _conv_gn_relu_from_buf(buf, w_ref, cb_ref, g_ref, b_ref, mm_ref, h, w, eps):
    """3x3 'same' conv from the spatially padded scratch buf (H+2, W+2*COL_OFF, C)
    with the 3 kx-taps of each ky packed along K (K = 3*C) -> 3 MXU pushes,
    followed by GroupNorm + ReLU.  Returns (H*W, C) f32."""
    hw = h * w
    c = buf.shape[-1]
    acc = jnp.zeros((hw, c), jnp.float32)
    for ky in range(3):                                      # 3 dots, K = 3*C
        pieces = [
            buf[ky:ky + h, COL_OFF - 1 + kx:COL_OFF - 1 + kx + w, :]
            .astype(jnp.bfloat16)
            for kx in range(3)
        ]
        lhs = jnp.concatenate(pieces, axis=-1)               # (H, W, 3C) lane concat
        acc += jnp.dot(lhs.reshape(hw, 3 * c), w_ref[ky],
                       preferred_element_type=jnp.float32)
    acc += cb_ref[...]                                       # conv bias (1, C)
    return _gn_relu(acc, mm_ref, g_ref, b_ref, eps)


def _conv3_kernel(x_ref, mm_ref,
                  w1_ref, cb1_ref, g1_ref, b1_ref,
                  w2_ref, cb2_ref, g2_ref, b2_ref,
                  w3_ref, cb3_ref, g3_ref, b3_ref,
                  o_ref, buf0, buf1, *, is_res, eps):
    _, h, w, c = o_ref.shape
    hw = h * w

    # Zero ONLY the halo ring of the scratch buffers that the shifted loads
    # touch (interior is fully overwritten every step).  Done every grid step
    # so it is also correct when the batch axis is sharded across TensorCores.
    z_row = jnp.zeros((1, w + 2, c), jnp.float32)
    z_col = jnp.zeros((h, 1, c), jnp.float32)
    for buf in (buf0, buf1):
        buf[0:1, COL_OFF - 1:COL_OFF + 1 + w, :] = z_row
        buf[h + 1:h + 2, COL_OFF - 1:COL_OFF + 1 + w, :] = z_row
        buf[1:1 + h, COL_OFF - 1:COL_OFF, :] = z_col
        buf[1:1 + h, COL_OFF + w:COL_OFF + w + 1, :] = z_col

    # Block 1 (self.main): one K=9*Cin matmul on the wrapper-built bf16 im2col.
    x2d = x_ref[0].reshape(hw, x_ref.shape[-1])
    acc1 = jnp.dot(x2d, w1_ref[...], preferred_element_type=jnp.float32)
    acc1 += cb1_ref[...]
    h1 = _gn_relu(acc1, mm_ref, g1_ref, b1_ref, eps)
    buf0[1:1 + h, COL_OFF:COL_OFF + w, :] = h1.reshape(h, w, c)   # aligned store

    # Block 2 (self.conv, first half)
    h2 = _conv_gn_relu_from_buf(buf0, w2_ref, cb2_ref, g2_ref, b2_ref,
                                mm_ref, h, w, eps)
    buf1[1:1 + h, COL_OFF:COL_OFF + w, :] = h2.reshape(h, w, c)

    # Block 3 (self.conv, second half)
    h3 = _conv_gn_relu_from_buf(buf1, w3_ref, cb3_ref, g3_ref, b3_ref,
                                mm_ref, h, w, eps)

    if is_res:  # compile-time flag
        h1_back = buf0[1:1 + h, COL_OFF:COL_OFF + w, :].reshape(hw, c)
        out = (h1_back + h3) * (1.0 / 1.414)
    else:
        out = h3

    o_ref[0] = out.reshape(h, w, c).astype(o_ref.dtype)


@functools.partial(jax.jit, static_argnames=("is_res",))
def conv3_pallas(x_nchw, params, is_res=False):
    """Forward pass of Conv3.  x_nchw: (N, Cin, H, W) -> (N, Cout, H, W).

    params: 'w{1,2,3}' as HWIO (3,3,Cin,Cout) conv weights (PyTorch OIHW fed as
    weight.permute(2,3,1,0)), 'cb*' conv biases, 'g*'/'b*' GroupNorm gamma/beta,
    each of shape (Cout,).
    """
    n, cin, h, w = x_nchw.shape
    cout = params["w1"].shape[-1]
    if cout % GROUPS != 0:
        raise ValueError("out_channels must be divisible by 8 for GroupNorm(8)")
    # NOTE: W should be a multiple of 8 for free in-kernel reshapes (it is here).
    k1 = 9 * cin
    k1p = _round_up(k1, 8)                 # sublane-friendly block-1 contraction

    # Input: NCHW -> NHWC, im2col the 3x3 neighborhood into the channel axis
    # (bf16).  Block 1 then needs a single matmul and no padded x in HBM.
    x_nhwc = jnp.transpose(x_nchw, (0, 2, 3, 1)).astype(jnp.float32)
    xpad = jnp.pad(x_nhwc, ((0, 0), (1, 1), (1, 1), (0, 0)))
    cols = [xpad[:, ky:ky + h, kx:kx + w, :]
            for ky in range(3) for kx in range(3)]
    x_i2c = jnp.concatenate(cols, axis=-1)                      # (N,H,W,9*Cin)
    x_i2c = jnp.pad(x_i2c, ((0, 0),) * 3 + ((0, k1p - k1),)).astype(jnp.bfloat16)

    # Weights as bf16 MXU operands.  w1 packed (9*Cin, Cout); w2/w3 packed
    # per-ky as (3, 3*Cout, Cout) matching the in-kernel lane concat order.
    w1p = params["w1"].reshape(k1, cout)
    w1p = jnp.pad(w1p, ((0, k1p - k1), (0, 0))).astype(jnp.bfloat16)

    def pack_w(wk):                                            # HWIO (3,3,C,C)
        return wk.reshape(3, 3 * cout, cout).astype(jnp.bfloat16)

    w2p, w3p = pack_w(params["w2"]), pack_w(params["w3"])

    def prep_v(v):
        return v.reshape(1, cout).astype(jnp.float32)

    cb1, g1, b1 = prep_v(params["cb1"]), prep_v(params["g1"]), prep_v(params["b1"])
    cb2, g2, b2 = prep_v(params["cb2"]), prep_v(params["g2"]), prep_v(params["b2"])
    cb3, g3, b3 = prep_v(params["cb3"]), prep_v(params["g3"]), prep_v(params["b3"])

    # Group-membership matrix, pre-divided by the per-group element count so a
    # single (1,C)@(C,C) matmul turns per-channel sums into group means.
    grp = jnp.arange(cout) // (cout // GROUPS)
    mm = (grp[:, None] == grp[None, :]).astype(jnp.float32)
    mm = mm / float((cout // GROUPS) * h * w)

    kernel = functools.partial(_conv3_kernel, is_res=is_res, eps=EPS)
    vec_spec = pl.BlockSpec((1, cout), lambda i: (0, 0))
    const3 = lambda i: (0, 0, 0)

    flops = 2 * n * h * w * 9 * cout * (cin + 2 * cout)
    bytes_accessed = (2 * x_i2c.size + 2 * (w1p.size + w2p.size + w3p.size)
                      + 4 * (mm.size + 9 * cout) + 4 * n * h * w * cout)
    cost = pl.CostEstimate(flops=flops, transcendentals=3 * n * cout,
                           bytes_accessed=bytes_accessed)

    out = pl.pallas_call(
        kernel,
        out_shape=jax.ShapeDtypeStruct((n, h, w, cout), jnp.float32),
        grid=(n,),
        in_specs=[
            pl.BlockSpec((1, h, w, k1p), lambda i: (i, 0, 0, 0)),   # im2col x
            pl.BlockSpec((cout, cout), lambda i: (0, 0)),           # membership
            pl.BlockSpec((k1p, cout), lambda i: (0, 0)),            # w1 packed
            vec_spec, vec_spec, vec_spec,
            pl.BlockSpec((3, 3 * cout, cout), const3),              # w2 packed
            vec_spec, vec_spec, vec_spec,
            pl.BlockSpec((3, 3 * cout, cout), const3),              # w3 packed
            vec_spec, vec_spec, vec_spec,
        ],
        out_specs=pl.BlockSpec((1, h, w, cout), lambda i: (i, 0, 0, 0)),
        scratch_shapes=[
            pltpu.VMEM((h + 2, w + 2 * COL_OFF, cout), jnp.float32),  # h1 padded
            pltpu.VMEM((h + 2, w + 2 * COL_OFF, cout), jnp.float32),  # h2 padded
        ],
        compiler_params=pltpu.CompilerParams(
            dimension_semantics=("parallel",)),
        cost_estimate=cost,
    )(x_i2c, mm, w1p, cb1, g1, b1, w2p, cb2, g2, b2, w3p, cb3, g3, b3)

    return jnp.transpose(out, (0, 3, 1, 2))     # NHWC -> NCHW (real channels)


def _ref_conv3(x_nchw, params, is_res=False):
    """Pure-JAX f32 reference matching the PyTorch Conv3 forward."""
    x = jnp.transpose(x_nchw, (0, 2, 3, 1)).astype(jnp.float32)

    def block(hh, wk, cb, g, b):
        y = lax.conv_general_dilated(
            hh, wk.astype(jnp.float32), (1, 1), "SAME",
            dimension_numbers=("NHWC", "HWIO", "NHWC"),
            precision=lax.Precision.HIGHEST)
        y = y + cb
        n_, h_, w_, c_ = y.shape
        yg = y.reshape(n_, h_, w_, GROUPS, c_ // GROUPS)
        mean = yg.mean(axis=(1, 2, 4), keepdims=True)
        var = yg.var(axis=(1, 2, 4), keepdims=True)
        yg = (yg - mean) * lax.rsqrt(var + EPS)
        y = yg.reshape(n_, h_, w_, c_) * g + b
        return jnp.maximum(y, 0.0)

    h1 = block(x, params["w1"], params["cb1"], params["g1"], params["b1"])
    h2 = block(h1, params["w2"], params["cb2"], params["g2"], params["b2"])
    h3 = block(h2, params["w3"], params["cb3"], params["g3"], params["b3"])
    out = (h1 + h3) / 1.414 if is_res else h3
    return jnp.transpose(out, (0, 3, 1, 2))


if __name__ == "__main__":
    n, cin, cout, h, w = 2, 4, 32, 16, 16

    key = jax.random.PRNGKey(0)
    ks = jax.random.split(key, 16)

    def conv_init(kk, kb, c_in, c_out):
        # nn.Conv2d default uniform(-1/sqrt(fan_in), 1/sqrt(fan_in)); HWIO layout.
        bound = 1.0 / math.sqrt(9 * c_in)
        wk = jax.random.uniform(kk, (3, 3, c_in, c_out), jnp.float32, -bound, bound)
        bk = jax.random.uniform(kb, (c_out,), jnp.float32, -bound, bound)
        return wk, bk

    x = jax.random.normal(ks[0], (n, cin, h, w), dtype=jnp.float32)

    w1, cb1 = conv_init(ks[1], ks[2], cin, cout)
    w2, cb2 = conv_init(ks[3], ks[4], cout, cout)
    w3, cb3 = conv_init(ks[5], ks[6], cout, cout)
    params = {
        "w1": w1, "cb1": cb1,
        "g1": jax.random.uniform(ks[7], (cout,), jnp.float32, 0.5, 1.5),
        "b1": jax.random.uniform(ks[8], (cout,), jnp.float32, -0.5, 0.5),
        "w2": w2, "cb2": cb2,
        "g2": jax.random.uniform(ks[9], (cout,), jnp.float32, 0.5, 1.5),
        "b2": jax.random.uniform(ks[10], (cout,), jnp.float32, -0.5, 0.5),
        "w3": w3, "cb3": cb3,
        "g3": jax.random.uniform(ks[11], (cout,), jnp.float32, 0.5, 1.5),
        "b3": jax.random.uniform(ks[12], (cout,), jnp.float32, -0.5, 0.5),
    }

    for is_res in (False, True):
        out = jax.block_until_ready(conv3_pallas(x, params, is_res=is_res))
        ref = _ref_conv3(x, params, is_res=is_res)
        assert out.shape == (n, cout, h, w)
        err = float(jnp.max(jnp.abs(out - ref)))
        # bf16 MXU operands (f32 accumulation / f32 GN stats): loose tolerance.
        assert err < 5e-2, f"is_res={is_res}: max abs err {err}"

    print("KERNEL_OK")
</pallas_src>

<mosaic_0001>
module attributes {stable_mosaic.version = 11 : i64} {
  func.func @_conv3_kernel(%arg0: i32, %arg1: memref<1x16x16x40xbf16, #tpu.memory_space<vmem>>, %arg2: memref<32x32xf32, #tpu.memory_space<vmem>>, %arg3: memref<40x32xbf16, #tpu.memory_space<vmem>>, %arg4: memref<1x32xf32, #tpu.memory_space<vmem>>, %arg5: memref<1x32xf32, #tpu.memory_space<vmem>>, %arg6: memref<1x32xf32, #tpu.memory_space<vmem>>, %arg7: memref<3x96x32xbf16, #tpu.memory_space<vmem>>, %arg8: memref<1x32xf32, #tpu.memory_space<vmem>>, %arg9: memref<1x32xf32, #tpu.memory_space<vmem>>, %arg10: memref<1x32xf32, #tpu.memory_space<vmem>>, %arg11: memref<3x96x32xbf16, #tpu.memory_space<vmem>>, %arg12: memref<1x32xf32, #tpu.memory_space<vmem>>, %arg13: memref<1x32xf32, #tpu.memory_space<vmem>>, %arg14: memref<1x32xf32, #tpu.memory_space<vmem>>, %arg15: memref<1x16x16x32xf32, #tpu.memory_space<vmem>>, %arg16: memref<18x32x32xf32, #tpu.memory_space<vmem>>, %arg17: memref<18x32x32xf32, #tpu.memory_space<vmem>>) attributes {dimension_semantics = [#tpu.dimension_semantics<parallel>], iteration_bounds = array<i64: 2>, scalar_prefetch = 0 : i64, scratch_operands = 2 : i64, tpu.core_type = #tpu.core_type<tc>, window_params = [{transform_indices = @transform_0, window_bounds = array<i64: 1, 16, 16, 40>}, {pipeline_mode = #tpu.pipeline_mode<synchronous>, transform_indices = @transform_1, window_bounds = array<i64: 32, 32>}, {pipeline_mode = #tpu.pipeline_mode<synchronous>, transform_indices = @transform_2, window_bounds = array<i64: 40, 32>}, {pipeline_mode = #tpu.pipeline_mode<synchronous>, transform_indices = @transform_3, window_bounds = array<i64: 1, 32>}, {pipeline_mode = #tpu.pipeline_mode<synchronous>, transform_indices = @transform_4, window_bounds = array<i64: 1, 32>}, {pipeline_mode = #tpu.pipeline_mode<synchronous>, transform_indices = @transform_5, window_bounds = array<i64: 1, 32>}, {pipeline_mode = #tpu.pipeline_mode<synchronous>, transform_indices = @transform_6, window_bounds = array<i64: 3, 96, 32>}, {pipeline_mode = #tpu.pipeline_mode<synchronous>, transform_indices = @transform_7, window_bounds = array<i64: 1, 32>}, {pipeline_mode = #tpu.pipeline_mode<synchronous>, transform_indices = @transform_8, window_bounds = array<i64: 1, 32>}, {pipeline_mode = #tpu.pipeline_mode<synchronous>, transform_indices = @transform_9, window_bounds = array<i64: 1, 32>}, {pipeline_mode = #tpu.pipeline_mode<synchronous>, transform_indices = @transform_10, window_bounds = array<i64: 3, 96, 32>}, {pipeline_mode = #tpu.pipeline_mode<synchronous>, transform_indices = @transform_11, window_bounds = array<i64: 1, 32>}, {pipeline_mode = #tpu.pipeline_mode<synchronous>, transform_indices = @transform_12, window_bounds = array<i64: 1, 32>}, {pipeline_mode = #tpu.pipeline_mode<synchronous>, transform_indices = @transform_13, window_bounds = array<i64: 1, 32>}, {transform_indices = @transform_14, window_bounds = array<i64: 1, 16, 16, 32>}]} {
    %cst = arith.constant 0.000000e+00 : f32
    %0 = vector.broadcast %cst : f32 to vector<1x18x32xf32>
    %cst_0 = arith.constant 0.000000e+00 : f32
    %1 = vector.broadcast %cst_0 : f32 to vector<16x1x32xf32>
    %c0 = arith.constant 0 : index
    %c7 = arith.constant 7 : index
    %c0_1 = arith.constant 0 : index
    %2 = vector.load %arg16[%c0, %c7, %c0_1] : memref<18x32x32xf32, #tpu.memory_space<vmem>>, vector<1x18x32xf32>
    tpu.vector_store %arg16[%c0, %c7, %c0_1], %0 {strides = array<i32>} : memref<18x32x32xf32, #tpu.memory_space<vmem>>, vector<1x18x32xf32>,
    %c17 = arith.constant 17 : index
    %c7_2 = arith.constant 7 : index
    %c0_3 = arith.constant 0 : index
    %3 = vector.load %arg16[%c17, %c7_2, %c0_3] : memref<18x32x32xf32, #tpu.memory_space<vmem>>, vector<1x18x32xf32>
    tpu.vector_store %arg16[%c17, %c7_2, %c0_3], %0 {strides = array<i32>} : memref<18x32x32xf32, #tpu.memory_space<vmem>>, vector<1x18x32xf32>,
    %c1 = arith.constant 1 : index
    %c7_4 = arith.constant 7 : index
    %c0_5 = arith.constant 0 : index
    %4 = vector.load %arg16[%c1, %c7_4, %c0_5] : memref<18x32x32xf32, #tpu.memory_space<vmem>>, vector<16x1x32xf32>
    tpu.vector_store %arg16[%c1, %c7_4, %c0_5], %1 {strides = array<i32>} : memref<18x32x32xf32, #tpu.memory_space<vmem>>, vector<16x1x32xf32>,
    %c1_6 = arith.constant 1 : index
    %c24 = arith.constant 24 : index
    %c0_7 = arith.constant 0 : index
    %5 = vector.load %arg16[%c1_6, %c24, %c0_7] : memref<18x32x32xf32, #tpu.memory_space<vmem>>, vector<16x1x32xf32>
    tpu.vector_store %arg16[%c1_6, %c24, %c0_7], %1 {strides = array<i32>} : memref<18x32x32xf32, #tpu.memory_space<vmem>>, vector<16x1x32xf32>,
    %c0_8 = arith.constant 0 : index
    %c7_9 = arith.constant 7 : index
    %c0_10 = arith.constant 0 : index
    %6 = vector.load %arg17[%c0_8, %c7_9, %c0_10] : memref<18x32x32xf32, #tpu.memory_space<vmem>>, vector<1x18x32xf32>
    tpu.vector_store %arg17[%c0_8, %c7_9, %c0_10], %0 {strides = array<i32>} : memref<18x32x32xf32, #tpu.memory_space<vmem>>, vector<1x18x32xf32>,
    %c17_11 = arith.constant 17 : index
    %c7_12 = arith.constant 7 : index
    %c0_13 = arith.constant 0 : index
    %7 = vector.load %arg17[%c17_11, %c7_12, %c0_13] : memref<18x32x32xf32, #tpu.memory_space<vmem>>, vector<1x18x32xf32>
    tpu.vector_store %arg17[%c17_11, %c7_12, %c0_13], %0 {strides = array<i32>} : memref<18x32x32xf32, #tpu.memory_space<vmem>>, vector<1x18x32xf32>,
    %c1_14 = arith.constant 1 : index
    %c7_15 = arith.constant 7 : index
    %c0_16 = arith.constant 0 : index
    %8 = vector.load %arg17[%c1_14, %c7_15, %c0_16] : memref<18x32x32xf32, #tpu.memory_space<vmem>>, vector<16x1x32xf32>
    tpu.vector_store %arg17[%c1_14, %c7_15, %c0_16], %1 {strides = array<i32>} : memref<18x32x32xf32, #tpu.memory_space<vmem>>, vector<16x1x32xf32>,
    %c1_17 = arith.constant 1 : index
    %c24_18 = arith.constant 24 : index
    %c0_19 = arith.constant 0 : index
    %9 = vector.load %arg17[%c1_17, %c24_18, %c0_19] : memref<18x32x32xf32, #tpu.memory_space<vmem>>, vector<16x1x32xf32>
    tpu.vector_store %arg17[%c1_17, %c24_18, %c0_19], %1 {strides = array<i32>} : memref<18x32x32xf32, #tpu.memory_space<vmem>>, vector<16x1x32xf32>,
    %c0_20 = arith.constant 0 : index
    %c0_21 = arith.constant 0 : index
    %c0_22 = arith.constant 0 : index
    %c0_23 = arith.constant 0 : index
    %10 = vector.load %arg1[%c0_20, %c0_21, %c0_22, %c0_23] : memref<1x16x16x40xbf16, #tpu.memory_space<vmem>>, vector<1x16x16x40xbf16>
    %11 = vector.shape_cast %10 : vector<1x16x16x40xbf16> to vector<16x16x40xbf16>
    %12 = vector.shape_cast %11 : vector<16x16x40xbf16> to vector<256x40xbf16>
    %c0_24 = arith.constant 0 : index
    %c0_25 = arith.constant 0 : index
    %13 = vector.load %arg3[%c0_24, %c0_25] : memref<40x32xbf16, #tpu.memory_space<vmem>>, vector<40x32xbf16>
    %cst_26 = arith.constant dense<0.000000e+00> : vector<256x32xf32>
    %14 = tpu.matmul %12, %13, %cst_26 {dimension_numbers = #tpu.dot_dimension_numbers<[1], [0], [0], [1], [0, 0, 1, 1], [], []>} : vector<256x40xbf16>, vector<40x32xbf16>, vector<256x32xf32> -> vector<256x32xf32>
    %c0_27 = arith.constant 0 : index
    %c0_28 = arith.constant 0 : index
    %15 = vector.load %arg4[%c0_27, %c0_28] : memref<1x32xf32, #tpu.memory_space<vmem>>, vector<1x32xf32>
    %16 = vector.broadcast %15 : vector<1x32xf32> to vector<256x32xf32>
    %17 = arith.addf %14, %16 : vector<256x32xf32>
    %cst_29 = arith.constant dense<0.000000e+00> : vector<32xf32>
    %18 = vector.multi_reduction <add>, %17, %cst_29 [0] : vector<256x32xf32> to vector<32xf32>
    %19 = vector.shape_cast %18 : vector<32xf32> to vector<1x32xf32>
    %20 = arith.mulf %17, %17 : vector<256x32xf32>
    %cst_30 = arith.constant dense<0.000000e+00> : vector<32xf32>
    %21 = vector.multi_reduction <add>, %20, %cst_30 [0] : vector<256x32xf32> to vector<32xf32>
    %22 = vector.shape_cast %21 : vector<32xf32> to vector<1x32xf32>
    %c0_31 = arith.constant 0 : index
    %c0_32 = arith.constant 0 : index
    %23 = vector.load %arg2[%c0_31, %c0_32] : memref<32x32xf32, #tpu.memory_space<vmem>>, vector<32x32xf32>
    %cst_33 = arith.constant dense<0.000000e+00> : vector<1x32xf32>
    %24 = tpu.matmul %19, %23, %cst_33 {dimension_numbers = #tpu.dot_dimension_numbers<[1], [0], [0], [1], [0, 0, 1, 1], [], []>} : vector<1x32xf32>, vector<32x32xf32>, vector<1x32xf32> -> vector<1x32xf32>
    %c0_34 = arith.constant 0 : index
    %c0_35 = arith.constant 0 : index
    %25 = vector.load %arg2[%c0_34, %c0_35] : memref<32x32xf32, #tpu.memory_space<vmem>>, vector<32x32xf32>
    %cst_36 = arith.constant dense<0.000000e+00> : vector<1x32xf32>
    %26 = tpu.matmul %22, %25, %cst_36 {dimension_numbers = #tpu.dot_dimension_numbers<[1], [0], [0], [1], [0, 0, 1, 1], [], []>} : vector<1x32xf32>, vector<32x32xf32>, vector<1x32xf32> -> vector<1x32xf32>
    %27 = arith.mulf %24, %24 : vector<1x32xf32>
    %28 = arith.subf %26, %27 : vector<1x32xf32>
    %cst_37 = arith.constant 9.99999974E-6 : f32
    %29 = vector.broadcast %cst_37 : f32 to vector<1x32xf32>
    %30 = arith.addf %28, %29 : vector<1x32xf32>
    %31 = math.rsqrt %30 : vector<1x32xf32>
    %32 = vector.broadcast %24 : vector<1x32xf32> to vector<256x32xf32>
    %33 = arith.subf %17, %32 : vector<256x32xf32>
    %c0_38 = arith.constant 0 : index
    %c0_39 = arith.constant 0 : index
    %34 = vector.load %arg5[%c0_38, %c0_39] : memref<1x32xf32, #tpu.memory_space<vmem>>, vector<1x32xf32>
    %35 = arith.mulf %31, %34 : vector<1x32xf32>
    %36 = vector.broadcast %35 : vector<1x32xf32> to vector<256x32xf32>
    %37 = arith.mulf %33, %36 : vector<256x32xf32>
    %c0_40 = arith.constant 0 : index
    %c0_41 = arith.constant 0 : index
    %38 = vector.load %arg6[%c0_40, %c0_41] : memref<1x32xf32, #tpu.memory_space<vmem>>, vector<1x32xf32>
    %39 = vector.broadcast %38 : vector<1x32xf32> to vector<256x32xf32>
    %40 = arith.addf %37, %39 : vector<256x32xf32>
    %cst_42 = arith.constant 0.000000e+00 : f32
    %41 = vector.broadcast %cst_42 : f32 to vector<256x32xf32>
    %42 = arith.maximumf %40, %41 : vector<256x32xf32>
    %43 = vector.shape_cast %42 : vector<256x32xf32> to vector<16x16x32xf32>
    %c1_43 = arith.constant 1 : index
    %c8 = arith.constant 8 : index
    %c0_44 = arith.constant 0 : index
    %44 = vector.load %arg16[%c1_43, %c8, %c0_44] : memref<18x32x32xf32, #tpu.memory_space<vmem>>, vector<16x16x32xf32>
    tpu.vector_store %arg16[%c1_43, %c8, %c0_44], %43 {strides = array<i32>} : memref<18x32x32xf32, #tpu.memory_space<vmem>>, vector<16x16x32xf32>,
    %cst_45 = arith.constant 0.000000e+00 : f32
    %45 = vector.broadcast %cst_45 : f32 to vector<256x32xf32>
    %c0_46 = arith.constant 0 : index
    %c7_47 = arith.constant 7 : index
    %c0_48 = arith.constant 0 : index
    %46 = vector.load %arg16[%c0_46, %c7_47, %c0_48] : memref<18x32x32xf32, #tpu.memory_space<vmem>>, vector<16x16x32xf32>
    %47 = arith.truncf %46 : vector<16x16x32xf32> to vector<16x16x32xbf16>
    %c0_49 = arith.constant 0 : index
    %c8_50 = arith.constant 8 : index
    %c0_51 = arith.constant 0 : index
    %48 = vector.load %arg16[%c0_49, %c8_50, %c0_51] : memref<18x32x32xf32, #tpu.memory_space<vmem>>, vector<16x16x32xf32>
    %49 = arith.truncf %48 : vector<16x16x32xf32> to vector<16x16x32xbf16>
    %c0_52 = arith.constant 0 : index
    %c9 = arith.constant 9 : index
    %c0_53 = arith.constant 0 : index
    %50 = vector.load %arg16[%c0_52, %c9, %c0_53] : memref<18x32x32xf32, #tpu.memory_space<vmem>>, vector<16x16x32xf32>
    %51 = arith.truncf %50 : vector<16x16x32xf32> to vector<16x16x32xbf16>
    %52 = tpu.concatenate %47, %49, %51 in 2 : vector<16x16x32xbf16>, vector<16x16x32xbf16>, vector<16x16x32xbf16> -> vector<16x16x96xbf16>
    %53 = vector.shape_cast %52 : vector<16x16x96xbf16> to vector<256x96xbf16>
    %c0_54 = arith.constant 0 : index
    %c0_55 = arith.constant 0 : index
    %c0_56 = arith.constant 0 : index
    %54 = vector.load %arg7[%c0_54, %c0_55, %c0_56] : memref<3x96x32xbf16, #tpu.memory_space<vmem>>, vector<1x96x32xbf16>
    %55 = vector.shape_cast %54 : vector<1x96x32xbf16> to vector<96x32xbf16>
    %cst_57 = arith.constant dense<0.000000e+00> : vector<256x32xf32>
    %56 = tpu.matmul %53, %55, %cst_57 {dimension_numbers = #tpu.dot_dimension_numbers<[1], [0], [0], [1], [0, 0, 1, 1], [], []>} : vector<256x96xbf16>, vector<96x32xbf16>, vector<256x32xf32> -> vector<256x32xf32>
    %57 = arith.addf %45, %56 : vector<256x32xf32>
    %c1_58 = arith.constant 1 : index
    %c7_59 = arith.constant 7 : index
    %c0_60 = arith.constant 0 : index
    %58 = vector.load %arg16[%c1_58, %c7_59, %c0_60] : memref<18x32x32xf32, #tpu.memory_space<vmem>>, vector<16x16x32xf32>
    %59 = arith.truncf %58 : vector<16x16x32xf32> to vector<16x16x32xbf16>
    %c1_61 = arith.constant 1 : index
    %c8_62 = arith.constant 8 : index
    %c0_63 = arith.constant 0 : index
    %60 = vector.load %arg16[%c1_61, %c8_62, %c0_63] : memref<18x32x32xf32, #tpu.memory_space<vmem>>, vector<16x16x32xf32>
    %61 = arith.truncf %60 : vector<16x16x32xf32> to vector<16x16x32xbf16>
    %c1_64 = arith.constant 1 : index
    %c9_65 = arith.constant 9 : index
    %c0_66 = arith.constant 0 : index
    %62 = vector.load %arg16[%c1_64, %c9_65, %c0_66] : memref<18x32x32xf32, #tpu.memory_space<vmem>>, vector<16x16x32xf32>
    %63 = arith.truncf %62 : vector<16x16x32xf32> to vector<16x16x32xbf16>
    %64 = tpu.concatenate %59, %61, %63 in 2 : vector<16x16x32xbf16>, vector<16x16x32xbf16>, vector<16x16x32xbf16> -> vector<16x16x96xbf16>
    %65 = vector.shape_cast %64 : vector<16x16x96xbf16> to vector<256x96xbf16>
    %c1_67 = arith.constant 1 : index
    %c0_68 = arith.constant 0 : index
    %c0_69 = arith.constant 0 : index
    %66 = vector.load %arg7[%c1_67, %c0_68, %c0_69] : memref<3x96x32xbf16, #tpu.memory_space<vmem>>, vector<1x96x32xbf16>
    %67 = vector.shape_cast %66 : vector<1x96x32xbf16> to vector<96x32xbf16>
    %cst_70 = arith.constant dense<0.000000e+00> : vector<256x32xf32>
    %68 = tpu.matmul %65, %67, %cst_70 {dimension_numbers = #tpu.dot_dimension_numbers<[1], [0], [0], [1], [0, 0, 1, 1], [], []>} : vector<256x96xbf16>, vector<96x32xbf16>, vector<256x32xf32> -> vector<256x32xf32>
    %69 = arith.addf %57, %68 : vector<256x32xf32>
    %c2 = arith.constant 2 : index
    %c7_71 = arith.constant 7 : index
    %c0_72 = arith.constant 0 : index
    %70 = vector.load %arg16[%c2, %c7_71, %c0_72] : memref<18x32x32xf32, #tpu.memory_space<vmem>>, vector<16x16x32xf32>
    %71 = arith.truncf %70 : vector<16x16x32xf32> to vector<16x16x32xbf16>
    %c2_73 = arith.constant 2 : index
    %c8_74 = arith.constant 8 : index
    %c0_75 = arith.constant 0 : index
    %72 = vector.load %arg16[%c2_73, %c8_74, %c0_75] : memref<18x32x32xf32, #tpu.memory_space<vmem>>, vector<16x16x32xf32>
    %73 = arith.truncf %72 : vector<16x16x32xf32> to vector<16x16x32xbf16>
    %c2_76 = arith.constant 2 : index
    %c9_77 = arith.constant 9 : index
    %c0_78 = arith.constant 0 : index
    %74 = vector.load %arg16[%c2_76, %c9_77, %c0_78] : memref<18x32x32xf32, #tpu.memory_space<vmem>>, vector<16x16x32xf32>
    %75 = arith.truncf %74 : vector<16x16x32xf32> to vector<16x16x32xbf16>
    %76 = tpu.concatenate %71, %73, %75 in 2 : vector<16x16x32xbf16>, vector<16x16x32xbf16>, vector<16x16x32xbf16> -> vector<16x16x96xbf16>
    %77 = vector.shape_cast %76 : vector<16x16x96xbf16> to vector<256x96xbf16>
    %c2_79 = arith.constant 2 : index
    %c0_80 = arith.constant 0 : index
    %c0_81 = arith.constant 0 : index
    %78 = vector.load %arg7[%c2_79, %c0_80, %c0_81] : memref<3x96x32xbf16, #tpu.memory_space<vmem>>, vector<1x96x32xbf16>
    %79 = vector.shape_cast %78 : vector<1x96x32xbf16> to vector<96x32xbf16>
    %cst_82 = arith.constant dense<0.000000e+00> : vector<256x32xf32>
    %80 = tpu.matmul %77, %79, %cst_82 {dimension_numbers = #tpu.dot_dimension_numbers<[1], [0], [0], [1], [0, 0, 1, 1], [], []>} : vector<256x96xbf16>, vector<96x32xbf16>, vector<256x32xf32> -> vector<256x32xf32>
    %81 = arith.addf %69, %80 : vector<256x32xf32>
    %c0_83 = arith.constant 0 : index
    %c0_84 = arith.constant 0 : index
    %82 = vector.load %arg8[%c0_83, %c0_84] : memref<1x32xf32, #tpu.memory_space<vmem>>, vector<1x32xf32>
    %83 = vector.broadcast %82 : vector<1x32xf32> to vector<256x32xf32>
    %84 = arith.addf %81, %83 : vector<256x32xf32>
    %cst_85 = arith.constant dense<0.000000e+00> : vector<32xf32>
    %85 = vector.multi_reduction <add>, %84, %cst_85 [0] : vector<256x32xf32> to vector<32xf32>
    %86 = vector.shape_cast %85 : vector<32xf32> to vector<1x32xf32>
    %87 = arith.mulf %84, %84 : vector<256x32xf32>
    %cst_86 = arith.constant dense<0.000000e+00> : vector<32xf32>
    %88 = vector.multi_reduction <add>, %87, %cst_86 [0] : vector<256x32xf32> to vector<32xf32>
    %89 = vector.shape_cast %88 : vector<32xf32> to vector<1x32xf32>
    %c0_87 = arith.constant 0 : index
    %c0_88 = arith.constant 0 : index
    %90 = vector.load %arg2[%c0_87, %c0_88] : memref<32x32xf32, #tpu.memory_space<vmem>>, vector<32x32xf32>
    %cst_89 = arith.constant dense<0.000000e+00> : vector<1x32xf32>
    %91 = tpu.matmul %86, %90, %cst_89 {dimension_numbers = #tpu.dot_dimension_numbers<[1], [0], [0], [1], [0, 0, 1, 1], [], []>} : vector<1x32xf32>, vector<32x32xf32>, vector<1x32xf32> -> vector<1x32xf32>
    %c0_90 = arith.constant 0 : index
    %c0_91 = arith.constant 0 : index
    %92 = vector.load %arg2[%c0_90, %c0_91] : memref<32x32xf32, #tpu.memory_space<vmem>>, vector<32x32xf32>
    %cst_92 = arith.constant dense<0.000000e+00> : vector<1x32xf32>
    %93 = tpu.matmul %89, %92, %cst_92 {dimension_numbers = #tpu.dot_dimension_numbers<[1], [0], [0], [1], [0, 0, 1, 1], [], []>} : vector<1x32xf32>, vector<32x32xf32>, vector<1x32xf32> -> vector<1x32xf32>
    %94 = arith.mulf %91, %91 : vector<1x32xf32>
    %95 = arith.subf %93, %94 : vector<1x32xf32>
    %cst_93 = arith.constant 9.99999974E-6 : f32
    %96 = vector.broadcast %cst_93 : f32 to vector<1x32xf32>
    %97 = arith.addf %95, %96 : vector<1x32xf32>
    %98 = math.rsqrt %97 : vector<1x32xf32>
    %99 = vector.broadcast %91 : vector<1x32xf32> to vector<256x32xf32>
    %100 = arith.subf %84, %99 : vector<256x32xf32>
    %c0_94 = arith.constant 0 : index
    %c0_95 = arith.constant 0 : index
    %101 = vector.load %arg9[%c0_94, %c0_95] : memref<1x32xf32, #tpu.memory_space<vmem>>, vector<1x32xf32>
    %102 = arith.mulf %98, %101 : vector<1x32xf32>
    %103 = vector.broadcast %102 : vector<1x32xf32> to vector<256x32xf32>
    %104 = arith.mulf %100, %103 : vector<256x32xf32>
    %c0_96 = arith.constant 0 : index
    %c0_97 = arith.constant 0 : index
    %105 = vector.load %arg10[%c0_96, %c0_97] : memref<1x32xf32, #tpu.memory_space<vmem>>, vector<1x32xf32>
    %106 = vector.broadcast %105 : vector<1x32xf32> to vector<256x32xf32>
    %107 = arith.addf %104, %106 : vector<256x32xf32>
    %cst_98 = arith.constant 0.000000e+00 : f32
    %108 = vector.broadcast %cst_98 : f32 to vector<256x32xf32>
    %109 = arith.maximumf %107, %108 : vector<256x32xf32>
    %110 = vector.shape_cast %109 : vector<256x32xf32> to vector<16x16x32xf32>
    %c1_99 = arith.constant 1 : index
    %c8_100 = arith.constant 8 : index
    %c0_101 = arith.constant 0 : index
    %111 = vector.load %arg17[%c1_99, %c8_100, %c0_101] : memref<18x32x32xf32, #tpu.memory_space<vmem>>, vector<16x16x32xf32>
    tpu.vector_store %arg17[%c1_99, %c8_100, %c0_101], %110 {strides = array<i32>} : memref<18x32x32xf32, #tpu.memory_space<vmem>>, vector<16x16x32xf32>,
    %cst_102 = arith.constant 0.000000e+00 : f32
    %112 = vector.broadcast %cst_102 : f32 to vector<256x32xf32>
    %c0_103 = arith.constant 0 : index
    %c7_104 = arith.constant 7 : index
    %c0_105 = arith.constant 0 : index
    %113 = vector.load %arg17[%c0_103, %c7_104, %c0_105] : memref<18x32x32xf32, #tpu.memory_space<vmem>>, vector<16x16x32xf32>
    %114 = arith.truncf %113 : vector<16x16x32xf32> to vector<16x16x32xbf16>
    %c0_106 = arith.constant 0 : index
    %c8_107 = arith.constant 8 : index
    %c0_108 = arith.constant 0 : index
    %115 = vector.load %arg17[%c0_106, %c8_107, %c0_108] : memref<18x32x32xf32, #tpu.memory_space<vmem>>, vector<16x16x32xf32>
    %116 = arith.truncf %115 : vector<16x16x32xf32> to vector<16x16x32xbf16>
    %c0_109 = arith.constant 0 : index
    %c9_110 = arith.constant 9 : index
    %c0_111 = arith.constant 0 : index
    %117 = vector.load %arg17[%c0_109, %c9_110, %c0_111] : memref<18x32x32xf32, #tpu.memory_space<vmem>>, vector<16x16x32xf32>
    %118 = arith.truncf %117 : vector<16x16x32xf32> to vector<16x16x32xbf16>
    %119 = tpu.concatenate %114, %116, %118 in 2 : vector<16x16x32xbf16>, vector<16x16x32xbf16>, vector<16x16x32xbf16> -> vector<16x16x96xbf16>
    %120 = vector.shape_cast %119 : vector<16x16x96xbf16> to vector<256x96xbf16>
    %c0_112 = arith.constant 0 : index
    %c0_113 = arith.constant 0 : index
    %c0_114 = arith.constant 0 : index
    %121 = vector.load %arg11[%c0_112, %c0_113, %c0_114] : memref<3x96x32xbf16, #tpu.memory_space<vmem>>, vector<1x96x32xbf16>
    %122 = vector.shape_cast %121 : vector<1x96x32xbf16> to vector<96x32xbf16>
    %cst_115 = arith.constant dense<0.000000e+00> : vector<256x32xf32>
    %123 = tpu.matmul %120, %122, %cst_115 {dimension_numbers = #tpu.dot_dimension_numbers<[1], [0], [0], [1], [0, 0, 1, 1], [], []>} : vector<256x96xbf16>, vector<96x32xbf16>, vector<256x32xf32> -> vector<256x32xf32>
    %124 = arith.addf %112, %123 : vector<256x32xf32>
    %c1_116 = arith.constant 1 : index
    %c7_117 = arith.constant 7 : index
    %c0_118 = arith.constant 0 : index
    %125 = vector.load %arg17[%c1_116, %c7_117, %c0_118] : memref<18x32x32xf32, #tpu.memory_space<vmem>>, vector<16x16x32xf32>
    %126 = arith.truncf %125 : vector<16x16x32xf32> to vector<16x16x32xbf16>
    %c1_119 = arith.constant 1 : index
    %c8_120 = arith.constant 8 : index
    %c0_121 = arith.constant 0 : index
    %127 = vector.load %arg17[%c1_119, %c8_120, %c0_121] : memref<18x32x32xf32, #tpu.memory_space<vmem>>, vector<16x16x32xf32>
    %128 = arith.truncf %127 : vector<16x16x32xf32> to vector<16x16x32xbf16>
    %c1_122 = arith.constant 1 : index
    %c9_123 = arith.constant 9 : index
    %c0_124 = arith.constant 0 : index
    %129 = vector.load %arg17[%c1_122, %c9_123, %c0_124] : memref<18x32x32xf32, #tpu.memory_space<vmem>>, vector<16x16x32xf32>
    %130 = arith.truncf %129 : vector<16x16x32xf32> to vector<16x16x32xbf16>
    %131 = tpu.concatenate %126, %128, %130 in 2 : vector<16x16x32xbf16>, vector<16x16x32xbf16>, vector<16x16x32xbf16> -> vector<16x16x96xbf16>
    %132 = vector.shape_cast %131 : vector<16x16x96xbf16> to vector<256x96xbf16>
    %c1_125 = arith.constant 1 : index
    %c0_126 = arith.constant 0 : index
    %c0_127 = arith.constant 0 : index
    %133 = vector.load %arg11[%c1_125, %c0_126, %c0_127] : memref<3x96x32xbf16, #tpu.memory_space<vmem>>, vector<1x96x32xbf16>
    %134 = vector.shape_cast %133 : vector<1x96x32xbf16> to vector<96x32xbf16>
    %cst_128 = arith.constant dense<0.000000e+00> : vector<256x32xf32>
    %135 = tpu.matmul %132, %134, %cst_128 {dimension_numbers = #tpu.dot_dimension_numbers<[1], [0], [0], [1], [0, 0, 1, 1], [], []>} : vector<256x96xbf16>, vector<96x32xbf16>, vector<256x32xf32> -> vector<256x32xf32>
    %136 = arith.addf %124, %135 : vector<256x32xf32>
    %c2_129 = arith.constant 2 : index
    %c7_130 = arith.constant 7 : index
    %c0_131 = arith.constant 0 : index
    %137 = vector.load %arg17[%c2_129, %c7_130, %c0_131] : memref<18x32x32xf32, #tpu.memory_space<vmem>>, vector<16x16x32xf32>
    %138 = arith.truncf %137 : vector<16x16x32xf32> to vector<16x16x32xbf16>
    %c2_132 = arith.constant 2 : index
    %c8_133 = arith.constant 8 : index
    %c0_134 = arith.constant 0 : index
    %139 = vector.load %arg17[%c2_132, %c8_133, %c0_134] : memref<18x32x32xf32, #tpu.memory_space<vmem>>, vector<16x16x32xf32>
    %140 = arith.truncf %139 : vector<16x16x32xf32> to vector<16x16x32xbf16>
    %c2_135 = arith.constant 2 : index
    %c9_136 = arith.constant 9 : index
    %c0_137 = arith.constant 0 : index
    %141 = vector.load %arg17[%c2_135, %c9_136, %c0_137] : memref<18x32x32xf32, #tpu.memory_space<vmem>>, vector<16x16x32xf32>
    %142 = arith.truncf %141 : vector<16x16x32xf32> to vector<16x16x32xbf16>
    %143 = tpu.concatenate %138, %140, %142 in 2 : vector<16x16x32xbf16>, vector<16x16x32xbf16>, vector<16x16x32xbf16> -> vector<16x16x96xbf16>
    %144 = vector.shape_cast %143 : vector<16x16x96xbf16> to vector<256x96xbf16>
    %c2_138 = arith.constant 2 : index
    %c0_139 = arith.constant 0 : index
    %c0_140 = arith.constant 0 : index
    %145 = vector.load %arg11[%c2_138, %c0_139, %c0_140] : memref<3x96x32xbf16, #tpu.memory_space<vmem>>, vector<1x96x32xbf16>
    %146 = vector.shape_cast %145 : vector<1x96x32xbf16> to vector<96x32xbf16>
    %cst_141 = arith.constant dense<0.000000e+00> : vector<256x32xf32>
    %147 = tpu.matmul %144, %146, %cst_141 {dimension_numbers = #tpu.dot_dimension_numbers<[1], [0], [0], [1], [0, 0, 1, 1], [], []>} : vector<256x96xbf16>, vector<96x32xbf16>, vector<256x32xf32> -> vector<256x32xf32>
    %148 = arith.addf %136, %147 : vector<256x32xf32>
    %c0_142 = arith.constant 0 : index
    %c0_143 = arith.constant 0 : index
    %149 = vector.load %arg12[%c0_142, %c0_143] : memref<1x32xf32, #tpu.memory_space<vmem>>, vector<1x32xf32>
    %150 = vector.broadcast %149 : vector<1x32xf32> to vector<256x32xf32>
    %151 = arith.addf %148, %150 : vector<256x32xf32>
    %cst_144 = arith.constant dense<0.000000e+00> : vector<32xf32>
    %152 = vector.multi_reduction <add>, %151, %cst_144 [0] : vector<256x32xf32> to vector<32xf32>
    %153 = vector.shape_cast %152 : vector<32xf32> to vector<1x32xf32>
    %154 = arith.mulf %151, %151 : vector<256x32xf32>
    %cst_145 = arith.constant dense<0.000000e+00> : vector<32xf32>
    %155 = vector.multi_reduction <add>, %154, %cst_145 [0] : vector<256x32xf32> to vector<32xf32>
    %156 = vector.shape_cast %155 : vector<32xf32> to vector<1x32xf32>
    %c0_146 = arith.constant 0 : index
    %c0_147 = arith.constant 0 : index
    %157 = vector.load %arg2[%c0_146, %c0_147] : memref<32x32xf32, #tpu.memory_space<vmem>>, vector<32x32xf32>
    %cst_148 = arith.constant dense<0.000000e+00> : vector<1x32xf32>
    %158 = tpu.matmul %153, %157, %cst_148 {dimension_numbers = #tpu.dot_dimension_numbers<[1], [0], [0], [1], [0, 0, 1, 1], [], []>} : vector<1x32xf32>, vector<32x32xf32>, vector<1x32xf32> -> vector<1x32xf32>
    %c0_149 = arith.constant 0 : index
    %c0_150 = arith.constant 0 : index
    %159 = vector.load %arg2[%c0_149, %c0_150] : memref<32x32xf32, #tpu.memory_space<vmem>>, vector<32x32xf32>
    %cst_151 = arith.constant dense<0.000000e+00> : vector<1x32xf32>
    %160 = tpu.matmul %156, %159, %cst_151 {dimension_numbers = #tpu.dot_dimension_numbers<[1], [0], [0], [1], [0, 0, 1, 1], [], []>} : vector<1x32xf32>, vector<32x32xf32>, vector<1x32xf32> -> vector<1x32xf32>
    %161 = arith.mulf %158, %158 : vector<1x32xf32>
    %162 = arith.subf %160, %161 : vector<1x32xf32>
    %cst_152 = arith.constant 9.99999974E-6 : f32
    %163 = vector.broadcast %cst_152 : f32 to vector<1x32xf32>
    %164 = arith.addf %162, %163 : vector<1x32xf32>
    %165 = math.rsqrt %164 : vector<1x32xf32>
    %166 = vector.broadcast %158 : vector<1x32xf32> to vector<256x32xf32>
    %167 = arith.subf %151, %166 : vector<256x32xf32>
    %c0_153 = arith.constant 0 : index
    %c0_154 = arith.constant 0 : index
    %168 = vector.load %arg13[%c0_153, %c0_154] : memref<1x32xf32, #tpu.memory_space<vmem>>, vector<1x32xf32>
    %169 = arith.mulf %165, %168 : vector<1x32xf32>
    %170 = vector.broadcast %169 : vector<1x32xf32> to vector<256x32xf32>
    %171 = arith.mulf %167, %170 : vector<256x32xf32>
    %c0_155 = arith.constant 0 : index
    %c0_156 = arith.constant 0 : index
    %172 = vector.load %arg14[%c0_155, %c0_156] : memref<1x32xf32, #tpu.memory_space<vmem>>, vector<1x32xf32>
    %173 = vector.broadcast %172 : vector<1x32xf32> to vector<256x32xf32>
    %174 = arith.addf %171, %173 : vector<256x32xf32>
    %cst_157 = arith.constant 0.000000e+00 : f32
    %175 = vector.broadcast %cst_157 : f32 to vector<256x32xf32>
    %176 = arith.maximumf %174, %175 : vector<256x32xf32>
    %177 = vector.shape_cast %176 : vector<256x32xf32> to vector<16x16x32xf32>
    %c0_158 = arith.constant 0 : index
    %c0_159 = arith.constant 0 : index
    %c0_160 = arith.constant 0 : index
    %c0_161 = arith.constant 0 : index
    %178 = vector.load %arg15[%c0_158, %c0_159, %c0_160, %c0_161] : memref<1x16x16x32xf32, #tpu.memory_space<vmem>>, vector<1x16x16x32xf32>
    %179 = vector.shape_cast %178 : vector<1x16x16x32xf32> to vector<16x16x32xf32>
    %180 = vector.shape_cast %177 : vector<16x16x32xf32> to vector<1x16x16x32xf32>
    tpu.vector_store %arg15[%c0_158, %c0_159, %c0_160, %c0_161], %180 {strides = array<i32>} : memref<1x16x16x32xf32, #tpu.memory_space<vmem>>, vector<1x16x16x32xf32>,
    return
  }
  func.func @transform_0(%arg0: i32) -> (i32, i32, i32, i32) {
    %c0_i32 = arith.constant 0 : i32
    %c0_i32_0 = arith.constant 0 : i32
    %c0_i32_1 = arith.constant 0 : i32
    %c0_i32_2 = arith.constant 0 : i32
    return %arg0, %c0_i32, %c0_i32_0, %c0_i32_1 : i32, i32, i32, i32
  }
  func.func @transform_1(%arg0: i32) -> (i32, i32) {
    %c0_i32 = arith.constant 0 : i32
    %c0_i32_0 = arith.constant 0 : i32
    %c0_i32_1 = arith.constant 0 : i32
    return %c0_i32, %c0_i32_0 : i32, i32
  }
  func.func @transform_2(%arg0: i32) -> (i32, i32) {
    %c0_i32 = arith.constant 0 : i32
    %c0_i32_0 = arith.constant 0 : i32
    %c0_i32_1 = arith.constant 0 : i32
    return %c0_i32, %c0_i32_0 : i32, i32
  }
  func.func @transform_3(%arg0: i32) -> (i32, i32) {
    %c0_i32 = arith.constant 0 : i32
    %c0_i32_0 = arith.constant 0 : i32
    %c0_i32_1 = arith.constant 0 : i32
    return %c0_i32, %c0_i32_0 : i32, i32
  }
  func.func @transform_4(%arg0: i32) -> (i32, i32) {
    %c0_i32 = arith.constant 0 : i32
    %c0_i32_0 = arith.constant 0 : i32
    %c0_i32_1 = arith.constant 0 : i32
    return %c0_i32, %c0_i32_0 : i32, i32
  }
  func.func @transform_5(%arg0: i32) -> (i32, i32) {
    %c0_i32 = arith.constant 0 : i32
    %c0_i32_0 = arith.constant 0 : i32
    %c0_i32_1 = arith.constant 0 : i32
    return %c0_i32, %c0_i32_0 : i32, i32
  }
  func.func @transform_6(%arg0: i32) -> (i32, i32, i32) {
    %c0_i32 = arith.constant 0 : i32
    %c0_i32_0 = arith.constant 0 : i32
    %c0_i32_1 = arith.constant 0 : i32
    %c0_i32_2 = arith.constant 0 : i32
    return %c0_i32, %c0_i32_0, %c0_i32_1 : i32, i32, i32
  }
  func.func @transform_7(%arg0: i32) -> (i32, i32) {
    %c0_i32 = arith.constant 0 : i32
    %c0_i32_0 = arith.constant 0 : i32
    %c0_i32_1 = arith.constant 0 : i32
    return %c0_i32, %c0_i32_0 : i32, i32
  }
  func.func @transform_8(%arg0: i32) -> (i32, i32) {
    %c0_i32 = arith.constant 0 : i32
    %c0_i32_0 = arith.constant 0 : i32
    %c0_i32_1 = arith.constant 0 : i32
    return %c0_i32, %c0_i32_0 : i32, i32
  }
  func.func @transform_9(%arg0: i32) -> (i32, i32) {
    %c0_i32 = arith.constant 0 : i32
    %c0_i32_0 = arith.constant 0 : i32
    %c0_i32_1 = arith.constant 0 : i32
    return %c0_i32, %c0_i32_0 : i32, i32
  }
  func.func @transform_10(%arg0: i32) -> (i32, i32, i32) {
    %c0_i32 = arith.constant 0 : i32
    %c0_i32_0 = arith.constant 0 : i32
    %c0_i32_1 = arith.constant 0 : i32
    %c0_i32_2 = arith.constant 0 : i32
    return %c0_i32, %c0_i32_0, %c0_i32_1 : i32, i32, i32
  }
  func.func @transform_11(%arg0: i32) -> (i32, i32) {
    %c0_i32 = arith.constant 0 : i32
    %c0_i32_0 = arith.constant 0 : i32
    %c0_i32_1 = arith.constant 0 : i32
    return %c0_i32, %c0_i32_0 : i32, i32
  }
  func.func @transform_12(%arg0: i32) -> (i32, i32) {
    %c0_i32 = arith.constant 0 : i32
    %c0_i32_0 = arith.constant 0 : i32
    %c0_i32_1 = arith.constant 0 : i32
    return %c0_i32, %c0_i32_0 : i32, i32
  }
  func.func @transform_13(%arg0: i32) -> (i32, i32) {
    %c0_i32 = arith.constant 0 : i32
    %c0_i32_0 = arith.constant 0 : i32
    %c0_i32_1 = arith.constant 0 : i32
    return %c0_i32, %c0_i32_0 : i32, i32
  }
  func.func @transform_14(%arg0: i32) -> (i32, i32, i32, i32) {
    %c0_i32 = arith.constant 0 : i32
    %c0_i32_0 = arith.constant 0 : i32
    %c0_i32_1 = arith.constant 0 : i32
    %c0_i32_2 = arith.constant 0 : i32
    return %arg0, %c0_i32, %c0_i32_0, %c0_i32_1 : i32, i32, i32, i32
  }
}

</mosaic_0001>

<llo_original>
// kernel: conv3_pallas.1
$region0: #{conv3_pallas.1}
  #allocation0 [shape = 'u32[]', space=smem, size = 0x4, offset = 0x4, fixed_abs, tag = 'smem constant byte address 0x4 - core index']
  #allocation1 [shape = 'u32[72,128]{1,0:T(1,128)}', space=vmem, size = 0x9000, scoped, tag = 'internal scratch']
  #allocation2 [shape = 'f32[18,32,32]{2,1,0:T(8,128)}', space=vmem, size = 0x48000, scoped, tag = 'scratch operand']
  #allocation3 [shape = 'f32[18,32,32]{2,1,0:T(8,128)}', space=vmem, size = 0x48000, scoped, tag = 'scratch operand']
  %s0 = inlined_call_operand.vmem [shape: bf16[2,16,16,40], index: 0, kind: input, shape index: {}]
  %s1 = inlined_call_operand.vmem [shape: f32[32,32], index: 1, kind: input, shape index: {}]
  %s2 = inlined_call_operand.vmem [shape: bf16[40,32], index: 2, kind: input, shape index: {}]
  %s3 = inlined_call_operand.vmem [shape: f32[1,32], index: 3, kind: input, shape index: {}]
  %s4 = inlined_call_operand.vmem [shape: f32[1,32], index: 4, kind: input, shape index: {}]
  %s5 = inlined_call_operand.vmem [shape: f32[1,32], index: 5, kind: input, shape index: {}]
  %s6 = inlined_call_operand.vmem [shape: bf16[3,96,32], index: 6, kind: input, shape index: {}]
  %s7 = inlined_call_operand.vmem [shape: f32[1,32], index: 7, kind: input, shape index: {}]
  %s8 = inlined_call_operand.vmem [shape: f32[1,32], index: 8, kind: input, shape index: {}]
  %s9 = inlined_call_operand.vmem [shape: f32[1,32], index: 9, kind: input, shape index: {}]
  %s10 = inlined_call_operand.vmem [shape: bf16[3,96,32], index: 10, kind: input, shape index: {}]
  %s11 = inlined_call_operand.vmem [shape: f32[1,32], index: 11, kind: input, shape index: {}]
  %s12 = inlined_call_operand.vmem [shape: f32[1,32], index: 12, kind: input, shape index: {}]
  %s13 = inlined_call_operand.vmem [shape: f32[1,32], index: 13, kind: input, shape index: {}]
  %s14 = inlined_call_operand.hbm [shape: f32[2,16,16,32], index: 14, kind: output, shape index: {}]
  %s15 = sld [smem:[#allocation0]]
  $region89: #{conv3_pallas.1} parent=0
    _
  %s17 = ssub.s32 1, %s15
  %s18 = scalar_select 0, %s17, %s15
  $region1: #{conv3_pallas.1} parent=0
    #allocation4 [shape = 'u8[262144]{0}', space=vmem, size = 0x40000, scoped, tag = 'output window, operand 0']
    #allocation5 [shape = 's32[2]{0}', space=sflag, size = 0x8, scoped, tag = 'scoped memory for conv3_pallas.1']
    %19 = vsyncpa [#allocation5], 0
    %s20 = scalar_lea.sflag [#allocation5], 1
    %21 = vsyncpa %s20, 0
    loop: start=0, step=1, limit=4
    $region2: #{conv3_pallas.1} parent=1 // loop_pre_header
      _
    $region3: #{conv3_pallas.1} parent=1 // loop_header
      %s23 = sphi 0, %s27
      %p24 = scmp.ge.s32.totalorder %s23, 4
      %s33 = sphi 0, %s35
      %s36 = sphi 0, %s33
      %s37 = sphi 0, %s36
      %s53 = sphi 0, %s37
      %s57 = sphi 0, %s57
      %s59 = sphi 0, %s57
      %s60 = sphi 0, %s59
      %s74 = sphi 0, %s60
      %s78 = sphi 0, %s78
      %s80 = sphi 0, %s78
      %s81 = sphi 0, %s80
      %s95 = sphi 0, %s81
      %s99 = sphi 0, %s99
      %s101 = sphi 0, %s99
      %s102 = sphi 0, %s101
      %s116 = sphi 0, %s102
      %s120 = sphi 0, %s120
      %s122 = sphi 0, %s120
      %s123 = sphi 0, %s122
      %s137 = sphi 0, %s123
      %s141 = sphi 0, %s141
      %s143 = sphi 0, %s141
      %s144 = sphi 0, %s143
      %s158 = sphi 0, %s144
      %s162 = sphi 0, %s162
      %s164 = sphi 0, %s162
      %s165 = sphi 0, %s164
      %s179 = sphi 0, %s165
      %s183 = sphi 0, %s183
      %s185 = sphi 0, %s183
      %s186 = sphi 0, %s185
      %s200 = sphi 0, %s186
      %s204 = sphi 0, %s204
      %s206 = sphi 0, %s204
      %s207 = sphi 0, %s206
      %s221 = sphi 0, %s207
      %s225 = sphi 0, %s225
      %s227 = sphi 0, %s225
      %s228 = sphi 0, %s227
      %s242 = sphi 0, %s228
      %s246 = sphi 0, %s246
      %s248 = sphi 0, %s246
      %s249 = sphi 0, %s248
      %s263 = sphi 0, %s249
      %s267 = sphi 0, %s267
      %s269 = sphi 0, %s267
      %s270 = sphi 0, %s269
      %s284 = sphi 0, %s270
      %s288 = sphi 0, %s288
      %s290 = sphi 0, %s288
      %s291 = sphi 0, %s290
      %s305 = sphi 0, %s291
      %s309 = sphi 0, %s309
      %s311 = sphi 0, %s309
      %s312 = sphi 0, %s311
      %s326 = sphi 0, %s312
      %s332 = sphi 0, %s334
      %s335 = sphi 0, %s332
      %s336 = sphi 0, %s335
      %s352 = sphi 0, %s336
    $region4: #{conv3_pallas.1} parent=1 // loop_header_branch
      %26 = sbr.rel (%p24) target = $region8
    $region5: #{conv3_pallas.1} parent=1 // loop_body
      %s28 = ssub.s32 %s23, 1
      %s29 = ssub.s32 %s23, 2
      %s30 = sadd.s32 %s23, 1
      %s31 = ssub.s32 %s23, %s30
      %p32 = scmp.eq.s32.totalorder %s31, 0
      %s34 = sadd.s32 %s33, 1
      %s35 = scalar_select %p32, %s33, %s34
      %p38 = pneg %p32
      %p39 = scmp.eq.s32.totalorder %s23, 1
      %p40 = por %p38, %p39
      %p41 = scmp.ne.s32.totalorder %s33, %s36
      %p42 = scmp.eq.s32.totalorder %s23, 0
      %p43 = por %p41, %p42
      %p44 = scmp.ne.s32.totalorder %s33, %s36
      %p45 = scmp.eq.s32.totalorder %s28, 1
      %p46 = por %p44, %p45
      %p47 = scmp.ne.s32.totalorder %s36, %s37
      %p48 = scmp.eq.s32.totalorder %s28, 0
      %p49 = por %p47, %p48
      %p50 = scmp.ne.s32.totalorder %s36, %s37
      %p51 = scmp.eq.s32.totalorder %s29, 1
      %p52 = por %p50, %p51
      %p54 = scmp.ne.s32.totalorder %s37, %s53
      %p55 = scmp.eq.s32.totalorder %s29, 0
      %p56 = por %p54, %p55
      %s58 = sadd.s32 %s57, 1
      %p61 = scmp.eq.s32.totalorder %s23, 1
      %p62 = scmp.ne.s32.totalorder %s57, %s59
      %p63 = scmp.eq.s32.totalorder %s23, 0
      %p64 = por %p62, %p63
      %p65 = scmp.ne.s32.totalorder %s57, %s59
      %p66 = scmp.eq.s32.totalorder %s28, 1
      %p67 = por %p65, %p66
      %p68 = scmp.ne.s32.totalorder %s59, %s60
      %p69 = scmp.eq.s32.totalorder %s28, 0
      %p70 = por %p68, %p69
      %p71 = scmp.ne.s32.totalorder %s59, %s60
      %p72 = scmp.eq.s32.totalorder %s29, 1
      %p73 = por %p71, %p72
      %p75 = scmp.ne.s32.totalorder %s60, %s74
      %p76 = scmp.eq.s32.totalorder %s29, 0
      %p77 = por %p75, %p76
      %s79 = sadd.s32 %s78, 1
      %p82 = scmp.eq.s32.totalorder %s23, 1
      %p83 = scmp.ne.s32.totalorder %s78, %s80
      %p84 = scmp.eq.s32.totalorder %s23, 0
      %p85 = por %p83, %p84
      %p86 = scmp.ne.s32.totalorder %s78, %s80
      %p87 = scmp.eq.s32.totalorder %s28, 1
      %p88 = por %p86, %p87
      %p89 = scmp.ne.s32.totalorder %s80, %s81
      %p90 = scmp.eq.s32.totalorder %s28, 0
      %p91 = por %p89, %p90
      %p92 = scmp.ne.s32.totalorder %s80, %s81
      %p93 = scmp.eq.s32.totalorder %s29, 1
      %p94 = por %p92, %p93
      %p96 = scmp.ne.s32.totalorder %s81, %s95
      %p97 = scmp.eq.s32.totalorder %s29, 0
      %p98 = por %p96, %p97
      %s100 = sadd.s32 %s99, 1
      %p103 = scmp.eq.s32.totalorder %s23, 1
      %p104 = scmp.ne.s32.totalorder %s99, %s101
      %p105 = scmp.eq.s32.totalorder %s23, 0
      %p106 = por %p104, %p105
      %p107 = scmp.ne.s32.totalorder %s99, %s101
      %p108 = scmp.eq.s32.totalorder %s28, 1
      %p109 = por %p107, %p108
      %p110 = scmp.ne.s32.totalorder %s101, %s102
      %p111 = scmp.eq.s32.totalorder %s28, 0
      %p112 = por %p110, %p111
      %p113 = scmp.ne.s32.totalorder %s101, %s102
      %p114 = scmp.eq.s32.totalorder %s29, 1
      %p115 = por %p113, %p114
      %p117 = scmp.ne.s32.totalorder %s102, %s116
      %p118 = scmp.eq.s32.totalorder %s29, 0
      %p119 = por %p117, %p118
      %s121 = sadd.s32 %s120, 1
      %p124 = scmp.eq.s32.totalorder %s23, 1
      %p125 = scmp.ne.s32.totalorder %s120, %s122
      %p126 = scmp.eq.s32.totalorder %s23, 0
      %p127 = por %p125, %p126
      %p128 = scmp.ne.s32.totalorder %s120, %s122
      %p129 = scmp.eq.s32.totalorder %s28, 1
      %p130 = por %p128, %p129
      %p131 = scmp.ne.s32.totalorder %s122, %s123
      %p132 = scmp.eq.s32.totalorder %s28, 0
      %p133 = por %p131, %p132
      %p134 = scmp.ne.s32.totalorder %s122, %s123
      %p135 = scmp.eq.s32.totalorder %s29, 1
      %p136 = por %p134, %p135
      %p138 = scmp.ne.s32.totalorder %s123, %s137
      %p139 = scmp.eq.s32.totalorder %s29, 0
      %p140 = por %p138, %p139
      %s142 = sadd.s32 %s141, 1
      %p145 = scmp.eq.s32.totalorder %s23, 1
      %p146 = scmp.ne.s32.totalorder %s141, %s143
      %p147 = scmp.eq.s32.totalorder %s23, 0
      %p148 = por %p146, %p147
      %p149 = scmp.ne.s32.totalorder %s141, %s143
      %p150 = scmp.eq.s32.totalorder %s28, 1
      %p151 = por %p149, %p150
      %p152 = scmp.ne.s32.totalorder %s143, %s144
      %p153 = scmp.eq.s32.totalorder %s28, 0
      %p154 = por %p152, %p153
      %p155 = scmp.ne.s32.totalorder %s143, %s144
      %p156 = scmp.eq.s32.totalorder %s29, 1
      %p157 = por %p155, %p156
      %p159 = scmp.ne.s32.totalorder %s144, %s158
      %p160 = scmp.eq.s32.totalorder %s29, 0
      %p161 = por %p159, %p160
      %s163 = sadd.s32 %s162, 1
      %p166 = scmp.eq.s32.totalorder %s23, 1
      %p167 = scmp.ne.s32.totalorder %s162, %s164
      %p168 = scmp.eq.s32.totalorder %s23, 0
      %p169 = por %p167, %p168
      %p170 = scmp.ne.s32.totalorder %s162, %s164
      %p171 = scmp.eq.s32.totalorder %s28, 1
      %p172 = por %p170, %p171
      %p173 = scmp.ne.s32.totalorder %s164, %s165
      %p174 = scmp.eq.s32.totalorder %s28, 0
      %p175 = por %p173, %p174
      %p176 = scmp.ne.s32.totalorder %s164, %s165
      %p177 = scmp.eq.s32.totalorder %s29, 1
      %p178 = por %p176, %p177
      %p180 = scmp.ne.s32.totalorder %s165, %s179
      %p181 = scmp.eq.s32.totalorder %s29, 0
      %p182 = por %p180, %p181
      %s184 = sadd.s32 %s183, 1
      %p187 = scmp.eq.s32.totalorder %s23, 1
      %p188 = scmp.ne.s32.totalorder %s183, %s185
      %p189 = scmp.eq.s32.totalorder %s23, 0
      %p190 = por %p188, %p189
      %p191 = scmp.ne.s32.totalorder %s183, %s185
      %p192 = scmp.eq.s32.totalorder %s28, 1
      %p193 = por %p191, %p192
      %p194 = scmp.ne.s32.totalorder %s185, %s186
      %p195 = scmp.eq.s32.totalorder %s28, 0
      %p196 = por %p194, %p195
      %p197 = scmp.ne.s32.totalorder %s185, %s186
      %p198 = scmp.eq.s32.totalorder %s29, 1
      %p199 = por %p197, %p198
      %p201 = scmp.ne.s32.totalorder %s186, %s200
      %p202 = scmp.eq.s32.totalorder %s29, 0
      %p203 = por %p201, %p202
      %s205 = sadd.s32 %s204, 1
      %p208 = scmp.eq.s32.totalorder %s23, 1
      %p209 = scmp.ne.s32.totalorder %s204, %s206
      %p210 = scmp.eq.s32.totalorder %s23, 0
      %p211 = por %p209, %p210
      %p212 = scmp.ne.s32.totalorder %s204, %s206
      %p213 = scmp.eq.s32.totalorder %s28, 1
      %p214 = por %p212, %p213
      %p215 = scmp.ne.s32.totalorder %s206, %s207
      %p216 = scmp.eq.s32.totalorder %s28, 0
      %p217 = por %p215, %p216
      %p218 = scmp.ne.s32.totalorder %s206, %s207
      %p219 = scmp.eq.s32.totalorder %s29, 1
      %p220 = por %p218, %p219
      %p222 = scmp.ne.s32.totalorder %s207, %s221
      %p223 = scmp.eq.s32.totalorder %s29, 0
      %p224 = por %p222, %p223
      %s226 = sadd.s32 %s225, 1
      %p229 = scmp.eq.s32.totalorder %s23, 1
      %p230 = scmp.ne.s32.totalorder %s225, %s227
      %p231 = scmp.eq.s32.totalorder %s23, 0
      %p232 = por %p230, %p231
      %p233 = scmp.ne.s32.totalorder %s225, %s227
      %p234 = scmp.eq.s32.totalorder %s28, 1
      %p235 = por %p233, %p234
      %p236 = scmp.ne.s32.totalorder %s227, %s228
      %p237 = scmp.eq.s32.totalorder %s28, 0
      %p238 = por %p236, %p237
      %p239 = scmp.ne.s32.totalorder %s227, %s228
      %p240 = scmp.eq.s32.totalorder %s29, 1
      %p241 = por %p239, %p240
      %p243 = scmp.ne.s32.totalorder %s228, %s242
      %p244 = scmp.eq.s32.totalorder %s29, 0
      %p245 = por %p243, %p244
      %s247 = sadd.s32 %s246, 1
      %p250 = scmp.eq.s32.totalorder %s23, 1
      %p251 = scmp.ne.s32.totalorder %s246, %s248
      %p252 = scmp.eq.s32.totalorder %s23, 0
      %p253 = por %p251, %p252
      %p254 = scmp.ne.s32.totalorder %s246, %s248
      %p255 = scmp.eq.s32.totalorder %s28, 1
      %p256 = por %p254, %p255
      %p257 = scmp.ne.s32.totalorder %s248, %s249
      %p258 = scmp.eq.s32.totalorder %s28, 0
      %p259 = por %p257, %p258
      %p260 = scmp.ne.s32.totalorder %s248, %s249
      %p261 = scmp.eq.s32.totalorder %s29, 1
      %p262 = por %p260, %p261
      %p264 = scmp.ne.s32.totalorder %s249, %s263
      %p265 = scmp.eq.s32.totalorder %s29, 0
      %p266 = por %p264, %p265
      %s268 = sadd.s32 %s267, 1
      %p271 = scmp.eq.s32.totalorder %s23, 1
      %p272 = scmp.ne.s32.totalorder %s267, %s269
      %p273 = scmp.eq.s32.totalorder %s23, 0
      %p274 = por %p272, %p273
      %p275 = scmp.ne.s32.totalorder %s267, %s269
      %p276 = scmp.eq.s32.totalorder %s28, 1
      %p277 = por %p275, %p276
      %p278 = scmp.ne.s32.totalorder %s269, %s270
      %p279 = scmp.eq.s32.totalorder %s28, 0
      %p280 = por %p278, %p279
      %p281 = scmp.ne.s32.totalorder %s269, %s270
      %p282 = scmp.eq.s32.totalorder %s29, 1
      %p283 = por %p281, %p282
      %p285 = scmp.ne.s32.totalorder %s270, %s284
      %p286 = scmp.eq.s32.totalorder %s29, 0
      %p287 = por %p285, %p286
      %s289 = sadd.s32 %s288, 1
      %p292 = scmp.eq.s32.totalorder %s23, 1
      %p293 = scmp.ne.s32.totalorder %s288, %s290
      %p294 = scmp.eq.s32.totalorder %s23, 0
      %p295 = por %p293, %p294
      %p296 = scmp.ne.s32.totalorder %s288, %s290
      %p297 = scmp.eq.s32.totalorder %s28, 1
      %p298 = por %p296, %p297
      %p299 = scmp.ne.s32.totalorder %s290, %s291
      %p300 = scmp.eq.s32.totalorder %s28, 0
      %p301 = por %p299, %p300
      %p302 = scmp.ne.s32.totalorder %s290, %s291
      %p303 = scmp.eq.s32.totalorder %s29, 1
      %p304 = por %p302, %p303
      %p306 = scmp.ne.s32.totalorder %s291, %s305
      %p307 = scmp.eq.s32.totalorder %s29, 0
      %p308 = por %p306, %p307
      %s310 = sadd.s32 %s309, 1
      %p313 = scmp.eq.s32.totalorder %s23, 1
      %p314 = scmp.ne.s32.totalorder %s309, %s311
      %p315 = scmp.eq.s32.totalorder %s23, 0
      %p316 = por %p314, %p315
      %p317 = scmp.ne.s32.totalorder %s309, %s311
      %p318 = scmp.eq.s32.totalorder %s28, 1
      %p319 = por %p317, %p318
      %p320 = scmp.ne.s32.totalorder %s311, %s312
      %p321 = scmp.eq.s32.totalorder %s28, 0
      %p322 = por %p320, %p321
      %p323 = scmp.ne.s32.totalorder %s311, %s312
      %p324 = scmp.eq.s32.totalorder %s29, 1
      %p325 = por %p323, %p324
      %p327 = scmp.ne.s32.totalorder %s312, %s326
      %p328 = scmp.eq.s32.totalorder %s29, 0
      %p329 = por %p327, %p328
      %s330 = ssub.s32 %s23, %s30
      %p331 = scmp.eq.s32.totalorder %s330, 0
      %s333 = sadd.s32 %s332, 1
      %s334 = scalar_select %p331, %s332, %s333
      %p337 = pneg %p331
      %p338 = scmp.eq.s32.totalorder %s23, 1
      %p339 = por %p337, %p338
      %p340 = scmp.ne.s32.totalorder %s332, %s335
      %p341 = scmp.eq.s32.totalorder %s23, 0
      %p342 = por %p340, %p341
      %p343 = scmp.ne.s32.totalorder %s332, %s335
      %p344 = scmp.eq.s32.totalorder %s28, 1
      %p345 = por %p343, %p344
      %p346 = scmp.ne.s32.totalorder %s335, %s336
      %p347 = scmp.eq.s32.totalorder %s28, 0
      %p348 = por %p346, %p347
      %p349 = scmp.ne.s32.totalorder %s335, %s336
      %p350 = scmp.eq.s32.totalorder %s29, 1
      %p351 = por %p349, %p350
      %p353 = scmp.ne.s32.totalorder %s336, %s352
      %p354 = scmp.eq.s32.totalorder %s29, 0
      %p355 = por %p353, %p354
      %p356 = scmp.le.s32.totalorder 1, %s23
      %p357 = scmp.lt.s32.totalorder %s23, 3
      %p358 = pnand %p356, %p357
      %p359 = pneg %p358
      // Predicated region
      $region9: #{conv3_pallas.1} parent=5 // pred_check
        _
      $region10: #{conv3_pallas.1} parent=5 // pred_check_branch
        %361 = sbr.rel (%p358) target = $region12
      $region11: #{conv3_pallas.1} parent=5 // pred_region
        %s362 = ssub.s32 %s23, 1
        // Predicated region
        $region13: #{conv3_pallas.1} parent=11 // pred_check
          %p363 = pneg %p70
        $region14: #{conv3_pallas.1} parent=11 // pred_check_branch
          %365 = sbr.rel (%p363) target = $region16
        $region15: #{conv3_pallas.1} parent=11 // pred_region
          _
        $region16: #{conv3_pallas.1} parent=11 // pred_fallthru
          _
        // Predicated region
        $region17: #{conv3_pallas.1} parent=11 // pred_check
          %p366 = pneg %p91
        $region18: #{conv3_pallas.1} parent=11 // pred_check_branch
          %368 = sbr.rel (%p366) target = $region20
        $region19: #{conv3_pallas.1} parent=11 // pred_region
          _
        $region20: #{conv3_pallas.1} parent=11 // pred_fallthru
          _
        // Predicated region
        $region21: #{conv3_pallas.1} parent=11 // pred_check
          %p369 = pneg %p112
        $region22: #{conv3_pallas.1} parent=11 // pred_check_branch
          %371 = sbr.rel (%p369) target = $region24
        $region23: #{conv3_pallas.1} parent=11 // pred_region
          _
        $region24: #{conv3_pallas.1} parent=11 // pred_fallthru
          _
        // Predicated region
        $region25: #{conv3_pallas.1} parent=11 // pred_check
          %p372 = pneg %p133
        $region26: #{conv3_pallas.1} parent=11 // pred_check_branch
          %374 = sbr.rel (%p372) target = $region28
        $region27: #{conv3_pallas.1} parent=11 // pred_region
          _
        $region28: #{conv3_pallas.1} parent=11 // pred_fallthru
          _
        // Predicated region
        $region29: #{conv3_pallas.1} parent=11 // pred_check
          %p375 = pneg %p154
        $region30: #{conv3_pallas.1} parent=11 // pred_check_branch
          %377 = sbr.rel (%p375) target = $region32
        $region31: #{conv3_pallas.1} parent=11 // pred_region
          _
        $region32: #{conv3_pallas.1} parent=11 // pred_fallthru
          _
        // Predicated region
        $region33: #{conv3_pallas.1} parent=11 // pred_check
          %p378 = pneg %p175
        $region34: #{conv3_pallas.1} parent=11 // pred_check_branch
          %380 = sbr.rel (%p378) target = $region36
        $region35: #{conv3_pallas.1} parent=11 // pred_region
          _
        $region36: #{conv3_pallas.1} parent=11 // pred_fallthru
          _
        // Predicated region
        $region37: #{conv3_pallas.1} parent=11 // pred_check
          %p381 = pneg %p196
        $region38: #{conv3_pallas.1} parent=11 // pred_check_branch
          %383 = sbr.rel (%p381) target = $region40
        $region39: #{conv3_pallas.1} parent=11 // pred_region
          _
        $region40: #{conv3_pallas.1} parent=11 // pred_fallthru
          _
        // Predicated region
        $region41: #{conv3_pallas.1} parent=11 // pred_check
          %p384 = pneg %p217
        $region42: #{conv3_pallas.1} parent=11 // pred_check_branch
          %386 = sbr.rel (%p384) target = $region44
        $region43: #{conv3_pallas.1} parent=11 // pred_region
          _
        $region44: #{conv3_pallas.1} parent=11 // pred_fallthru
          _
        // Predicated region
        $region45: #{conv3_pallas.1} parent=11 // pred_check
          %p387 = pneg %p238
        $region46: #{conv3_pallas.1} parent=11 // pred_check_branch
          %389 = sbr.rel (%p387) target = $region48
        $region47: #{conv3_pallas.1} parent=11 // pred_region
          _
        $region48: #{conv3_pallas.1} parent=11 // pred_fallthru
          _
        // Predicated region
        $region49: #{conv3_pallas.1} parent=11 // pred_check
          %p390 = pneg %p259
        $region50: #{conv3_pallas.1} parent=11 // pred_check_branch
          %392 = sbr.rel (%p390) target = $region52
        $region51: #{conv3_pallas.1} parent=11 // pred_region
          _
        $region52: #{conv3_pallas.1} parent=11 // pred_fallthru
          _
        // Predicated region
        $region53: #{conv3_pallas.1} parent=11 // pred_check
          %p393 = pneg %p280
        $region54: #{conv3_pallas.1} parent=11 // pred_check_branch
          %395 = sbr.rel (%p393) target = $region56
        $region55: #{conv3_pallas.1} parent=11 // pred_region
          _
        $region56: #{conv3_pallas.1} parent=11 // pred_fallthru
          _
        // Predicated region
        $region57: #{conv3_pallas.1} parent=11 // pred_check
          %p396 = pneg %p301
        $region58: #{conv3_pallas.1} parent=11 // pred_check_branch
          %398 = sbr.rel (%p396) target = $region60
        $region59: #{conv3_pallas.1} parent=11 // pred_region
          _
        $region60: #{conv3_pallas.1} parent=11 // pred_fallthru
          _
        // Predicated region
        $region61: #{conv3_pallas.1} parent=11 // pred_check
          %p399 = pneg %p322
        $region62: #{conv3_pallas.1} parent=11 // pred_check_branch
          %401 = sbr.rel (%p399) target = $region64
        $region63: #{conv3_pallas.1} parent=11 // pred_region
          _
        $region64: #{conv3_pallas.1} parent=11 // pred_fallthru
          _
      $region12: #{conv3_pallas.1} parent=5 // pred_fallthru
        _
      %p402 = scmp.lt.s32.totalorder %s23, 2
      // Predicated region
      $region65: #{conv3_pallas.1} parent=5 // pred_check
        %p403 = pneg %p402
      $region66: #{conv3_pallas.1} parent=5 // pred_check_branch
        %405 = sbr.rel (%p403) target = $region68
      $region67: #{conv3_pallas.1} parent=5 // pred_region
        // Predicated region
        $region69: #{conv3_pallas.1} parent=67 // pred_check
          %p406 = pneg %p43
        $region70: #{conv3_pallas.1} parent=67 // pred_check_branch
          %408 = sbr.rel (%p406) target = $region72
        $region71: #{conv3_pallas.1} parent=67 // pred_region
          %p409 = scmp.lt.s32.totalorder %s23, 1
          %s410 = scalar_select %p409, %s23, 1
          %s411 = smul.addr %s410, 32
          %s412 = smul.addr %s411, 4
          %s413 = scalar_lea.vmem %s0, %s412
        $region72: #{conv3_pallas.1} parent=67 // pred_fallthru
          _
      $region68: #{conv3_pallas.1} parent=5 // pred_fallthru
        _
      %p414 = scmp.le.s32.totalorder 1, %s23
      %p415 = scmp.lt.s32.totalorder %s23, 3
      %p416 = pnand %p414, %p415
      %p417 = pneg %p416
      // Predicated region
      $region73: #{conv3_pallas.1} parent=5 // pred_check
        _
      $region74: #{conv3_pallas.1} parent=5 // pred_check_branch
        %419 = sbr.rel (%p416) target = $region76
      $region75: #{conv3_pallas.1} parent=5 // pred_region
        %s420 = ssub.s32 %s23, 1
        %p421 = scmp.lt.s32.totalorder %s28, 1
        %s422 = scalar_select %p421, %s28, 1
        %s423 = smul.addr %s422, 32
        %s424 = smul.addr %s423, 4
        %s425 = scalar_lea.vmem %s0, %s424
        %p426 = pneg %p49
        %p427 = pneg %p46
        %p428 = pneg %p70
        %p429 = pneg %p67
        %p430 = pneg %p91
        %p431 = pneg %p88
        %p432 = pneg %p112
        %p433 = pneg %p109
        %p434 = pneg %p133
        %p435 = pneg %p130
        %p436 = pneg %p154
        %p437 = pneg %p151
        %p438 = pneg %p175
        %p439 = pneg %p172
        %p440 = pneg %p196
        %p441 = pneg %p193
        %p442 = pneg %p217
        %p443 = pneg %p214
        %p444 = pneg %p238
        %p445 = pneg %p235
        %p446 = pneg %p259
        %p447 = pneg %p256
        %p448 = pneg %p280
        %p449 = pneg %p277
        %p450 = pneg %p301
        %p451 = pneg %p298
        %p452 = pneg %p322
        %p453 = pneg %p319
        %p454 = pneg %p348
        %p455 = pneg %p345
        %s456 = sand.u32 %s335, 1
        %s457 = scalar_lea.sflag [#allocation5], %s456
        %s458 = sand.u32 %s335, 1
        %s459 = smul.addr %s458, 256
        %s460 = scalar_lea.vmem [#allocation4], %s459
        %p461 = scmp.lt.s32.totalorder %s28, 1
        %s462 = scalar_select %p461, %s28, 1
        %s463 = smul.addr %s462, 32
        %s464 = smul.addr %s463, 4
        %s465 = scalar_lea.vmem %s0, %s464
        %vm467 = vcmask 261120
        %468 = vst.msk [vmem:[#allocation2 + $0x7] sm:$0xff] %vm467, 0.0
        %469 = vst.msk [vmem:[#allocation2 + $0xf] sm:$0xff] %vm467, 0.0
        %vm470 = vcmask 254976
        %471 = vst.msk [vmem:[#allocation2 + $0x17] sm:$0x3] %vm470, 0.0
        %s472 = scalar_lea.vmem [#allocation2], 544
        %473 = vst.msk [vmem:[%s472 + $0x7] sm:$0xff] %vm467, 0.0
        %474 = vst.msk [vmem:[%s472 + $0xf] sm:$0xff] %vm467, 0.0
        %475 = vst.msk [vmem:[%s472 + $0x17] sm:$0x3] %vm470, 0.0
        %s476 = scalar_lea.vmem [#allocation2], 32
        %vm477 = vcmask 253952
        %478 = vst.msk [vmem:[%s476 + $0x7] sm:$0x1] %vm477, 0.0
        %479 = vst.msk [vmem:[%s476 + $0x27] sm:$0x1] %vm477, 0.0
        %480 = vst.msk [vmem:[%s476 + $0x47] sm:$0x1] %vm477, 0.0
        %481 = vst.msk [vmem:[%s476 + $0x67] sm:$0x1] %vm477, 0.0
        %482 = vst.msk [vmem:[%s476 + $0x87] sm:$0x1] %vm477, 0.0
        %483 = vst.msk [vmem:[%s476 + $0xa7] sm:$0x1] %vm477, 0.0
        %484 = vst.msk [vmem:[%s476 + $0xc7] sm:$0x1] %vm477, 0.0
        %485 = vst.msk [vmem:[%s476 + $0xe7] sm:$0x1] %vm477, 0.0
        %486 = vst.msk [vmem:[%s476 + $0x107] sm:$0x1] %vm477, 0.0
        %487 = vst.msk [vmem:[%s476 + $0x127] sm:$0x1] %vm477, 0.0
        %488 = vst.msk [vmem:[%s476 + $0x147] sm:$0x1] %vm477, 0.0
        %489 = vst.msk [vmem:[%s476 + $0x167] sm:$0x1] %vm477, 0.0
        %490 = vst.msk [vmem:[%s476 + $0x187] sm:$0x1] %vm477, 0.0
        %491 = vst.msk [vmem:[%s476 + $0x1a7] sm:$0x1] %vm477, 0.0
        %492 = vst.msk [vmem:[%s476 + $0x1c7] sm:$0x1] %vm477, 0.0
        %493 = vst.msk [vmem:[%s476 + $0x1e7] sm:$0x1] %vm477, 0.0
        %494 = vst.msk [vmem:[%s476 + $0x18] sm:$0x1] %vm477, 0.0
        %495 = vst.msk [vmem:[%s476 + $0x38] sm:$0x1] %vm477, 0.0
        %496 = vst.msk [vmem:[%s476 + $0x58] sm:$0x1] %vm477, 0.0
        %497 = vst.msk [vmem:[%s476 + $0x78] sm:$0x1] %vm477, 0.0
        %498 = vst.msk [vmem:[%s476 + $0x98] sm:$0x1] %vm477, 0.0
        %499 = vst.msk [vmem:[%s476 + $0xb8] sm:$0x1] %vm477, 0.0
        %500 = vst.msk [vmem:[%s476 + $0xd8] sm:$0x1] %vm477, 0.0
        %501 = vst.msk [vmem:[%s476 + $0xf8] sm:$0x1] %vm477, 0.0
        %502 = vst.msk [vmem:[%s476 + $0x118] sm:$0x1] %vm477, 0.0
        %503 = vst.msk [vmem:[%s476 + $0x138] sm:$0x1] %vm477, 0.0
        %504 = vst.msk [vmem:[%s476 + $0x158] sm:$0x1] %vm477, 0.0
        %505 = vst.msk [vmem:[%s476 + $0x178] sm:$0x1] %vm477, 0.0
        %506 = vst.msk [vmem:[%s476 + $0x198] sm:$0x1] %vm477, 0.0
        %507 = vst.msk [vmem:[%s476 + $0x1b8] sm:$0x1] %vm477, 0.0
        %508 = vst.msk [vmem:[%s476 + $0x1d8] sm:$0x1] %vm477, 0.0
        %509 = vst.msk [vmem:[%s476 + $0x1f8] sm:$0x1] %vm477, 0.0
        %510 = vst.msk [vmem:[#allocation3 + $0x7] sm:$0xff] %vm467, 0.0
        %511 = vst.msk [vmem:[#allocation3 + $0xf] sm:$0xff] %vm467, 0.0
        %512 = vst.msk [vmem:[#allocation3 + $0x17] sm:$0x3] %vm470, 0.0
        %s513 = scalar_lea.vmem [#allocation3], 544
        %514 = vst.msk [vmem:[%s513 + $0x7] sm:$0xff] %vm467, 0.0
        %515 = vst.msk [vmem:[%s513 + $0xf] sm:$0xff] %vm467, 0.0
        %516 = vst.msk [vmem:[%s513 + $0x17] sm:$0x3] %vm470, 0.0
        %s517 = scalar_lea.vmem [#allocation3], 32
        %518 = vst.msk [vmem:[%s517 + $0x7] sm:$0x1] %vm477, 0.0
        %519 = vst.msk [vmem:[%s517 + $0x27] sm:$0x1] %vm477, 0.0
        %520 = vst.msk [vmem:[%s517 + $0x47] sm:$0x1] %vm477, 0.0
        %521 = vst.msk [vmem:[%s517 + $0x67] sm:$0x1] %vm477, 0.0
        %522 = vst.msk [vmem:[%s517 + $0x87] sm:$0x1] %vm477, 0.0
        %523 = vst.msk [vmem:[%s517 + $0xa7] sm:$0x1] %vm477, 0.0
        %524 = vst.msk [vmem:[%s517 + $0xc7] sm:$0x1] %vm477, 0.0
        %525 = vst.msk [vmem:[%s517 + $0xe7] sm:$0x1] %vm477, 0.0
        %526 = vst.msk [vmem:[%s517 + $0x107] sm:$0x1] %vm477, 0.0
        %527 = vst.msk [vmem:[%s517 + $0x127] sm:$0x1] %vm477, 0.0
        %528 = vst.msk [vmem:[%s517 + $0x147] sm:$0x1] %vm477, 0.0
        %529 = vst.msk [vmem:[%s517 + $0x167] sm:$0x1] %vm477, 0.0
        %530 = vst.msk [vmem:[%s517 + $0x187] sm:$0x1] %vm477, 0.0
        %531 = vst.msk [vmem:[%s517 + $0x1a7] sm:$0x1] %vm477, 0.0
        %532 = vst.msk [vmem:[%s517 + $0x1c7] sm:$0x1] %vm477, 0.0
        %533 = vst.msk [vmem:[%s517 + $0x1e7] sm:$0x1] %vm477, 0.0
        %534 = vst.msk [vmem:[%s517 + $0x18] sm:$0x1] %vm477, 0.0
        %535 = vst.msk [vmem:[%s517 + $0x38] sm:$0x1] %vm477, 0.0
        %536 = vst.msk [vmem:[%s517 + $0x58] sm:$0x1] %vm477, 0.0
        %537 = vst.msk [vmem:[%s517 + $0x78] sm:$0x1] %vm477, 0.0
        %538 = vst.msk [vmem:[%s517 + $0x98] sm:$0x1] %vm477, 0.0
        %539 = vst.msk [vmem:[%s517 + $0xb8] sm:$0x1] %vm477, 0.0
        %540 = vst.msk [vmem:[%s517 + $0xd8] sm:$0x1] %vm477, 0.0
        %541 = vst.msk [vmem:[%s517 + $0xf8] sm:$0x1] %vm477, 0.0
        %542 = vst.msk [vmem:[%s517 + $0x118] sm:$0x1] %vm477, 0.0
        %543 = vst.msk [vmem:[%s517 + $0x138] sm:$0x1] %vm477, 0.0
        %544 = vst.msk [vmem:[%s517 + $0x158] sm:$0x1] %vm477, 0.0
        %545 = vst.msk [vmem:[%s517 + $0x178] sm:$0x1] %vm477, 0.0
        %546 = vst.msk [vmem:[%s517 + $0x198] sm:$0x1] %vm477, 0.0
        %547 = vst.msk [vmem:[%s517 + $0x1b8] sm:$0x1] %vm477, 0.0
        %548 = vst.msk [vmem:[%s517 + $0x1d8] sm:$0x1] %vm477, 0.0
        %549 = vst.msk [vmem:[%s517 + $0x1f8] sm:$0x1] %vm477, 0.0
        %v550 = vld [vmem:[%s465] sm:$0xf]
        %v551 = vld [vmem:[%s465 + $0x4] sm:$0xf]
        %v552 = vld [vmem:[%s465 + $0x8] sm:$0xf]
        %v553 = vld [vmem:[%s465 + $0xc] sm:$0xf]
        %v554 = vld [vmem:[%s465 + $0x10] sm:$0xf]
        %v555 = vld [vmem:[%s465 + $0x14] sm:$0xf]
        %v556 = vld [vmem:[%s465 + $0x18] sm:$0xf]
        %v557 = vld [vmem:[%s465 + $0x1c] sm:$0xf]
        %v558 = vld [vmem:[%s465 + $0x20] sm:$0xf]
        %v559 = vld [vmem:[%s465 + $0x24] sm:$0xf]
        %v560 = vld [vmem:[%s465 + $0x28] sm:$0xf]
        %v561 = vld [vmem:[%s465 + $0x2c] sm:$0xf]
        %v562 = vld [vmem:[%s465 + $0x30] sm:$0xf]
        %v563 = vld [vmem:[%s465 + $0x34] sm:$0xf]
        %v564 = vld [vmem:[%s465 + $0x38] sm:$0xf]
        %v565 = vld [vmem:[%s465 + $0x3c] sm:$0xf]
        %v566 = vld [vmem:[%s465 + $0x40] sm:$0xf]
        %v567 = vld [vmem:[%s465 + $0x44] sm:$0xf]
        %v568 = vld [vmem:[%s465 + $0x48] sm:$0xf]
        %v569 = vld [vmem:[%s465 + $0x4c] sm:$0xf]
        %v570 = vld [vmem:[%s465 + $0x50] sm:$0xf]
        %v571 = vld [vmem:[%s465 + $0x54] sm:$0xf]
        %v572 = vld [vmem:[%s465 + $0x58] sm:$0xf]
        %v573 = vld [vmem:[%s465 + $0x5c] sm:$0xf]
        %v574 = vld [vmem:[%s465 + $0x60] sm:$0xf]
        %v575 = vld [vmem:[%s465 + $0x64] sm:$0xf]
        %v576 = vld [vmem:[%s465 + $0x68] sm:$0xf]
        %v577 = vld [vmem:[%s465 + $0x6c] sm:$0xf]
        %v578 = vld [vmem:[%s465 + $0x70] sm:$0xf]
        %v579 = vld [vmem:[%s465 + $0x74] sm:$0xf]
        %v580 = vld [vmem:[%s465 + $0x78] sm:$0xf]
        %v581 = vld [vmem:[%s465 + $0x7c] sm:$0xf]
        %v582 = vld [vmem:[%s2] sm:$0xf]
        %v583 = vld [vmem:[%s2 + $0x4] sm:$0xf]
        %v584 = vld [vmem:[%s2 + $0x8] sm:$0xf]
        %v585 = vld [vmem:[%s2 + $0xc] sm:$0xf]
        %v586 = vld [vmem:[%s2 + $0x10] sm:$0xf]
        %v587 = vld [vmem:[%s3] sm:$0x1]
        %v589 = vperm.slane %v587, 0
        %v623 = vunpack.c.l.b16 %v550
        %v624 = vunpack.c.l.b16 %v551
        %v625 = vunpack.c.l.b16 %v552
        %v626 = vunpack.c.l.b16 %v553
        %v627 = vunpack.c.l.b16 %v554
        %v628 = vunpack.c.l.b16 %v555
        %v629 = vunpack.c.l.b16 %v556
        %v630 = vunpack.c.l.b16 %v557
        %v631 = vunpack.c.l.b16 %v558
        %v632 = vunpack.c.l.b16 %v559
        %v633 = vunpack.c.l.b16 %v560
        %v634 = vunpack.c.l.b16 %v561
        %v635 = vunpack.c.l.b16 %v562
        %v636 = vunpack.c.l.b16 %v563
        %v637 = vunpack.c.l.b16 %v564
        %v638 = vunpack.c.l.b16 %v565
        %v639 = vunpack.c.l.b16 %v566
        %v640 = vunpack.c.l.b16 %v567
        %v641 = vunpack.c.l.b16 %v568
        %v642 = vunpack.c.l.b16 %v569
        %v643 = vunpack.c.l.b16 %v570
        %v644 = vunpack.c.l.b16 %v571
        %v645 = vunpack.c.l.b16 %v572
        %v646 = vunpack.c.l.b16 %v573
        %v647 = vunpack.c.l.b16 %v574
        %v648 = vunpack.c.l.b16 %v575
        %v649 = vunpack.c.l.b16 %v576
        %v650 = vunpack.c.l.b16 %v577
        %v651 = vunpack.c.l.b16 %v578
        %v652 = vunpack.c.l.b16 %v579
        %v653 = vunpack.c.l.b16 %v580
        %v654 = vunpack.c.l.b16 %v581
        %v655 = vpack.c.b16 %v624, %v623
        %v656 = vpack.c.b16 %v626, %v625
        %v657 = vpack.c.b16 %v628, %v627
        %v658 = vpack.c.b16 %v630, %v629
        %v659 = vpack.c.b16 %v632, %v631
        %v660 = vpack.c.b16 %v634, %v633
        %v661 = vpack.c.b16 %v636, %v635
        %v662 = vpack.c.b16 %v638, %v637
        %v663 = vpack.c.b16 %v640, %v639
        %v664 = vpack.c.b16 %v642, %v641
        %v665 = vpack.c.b16 %v644, %v643
        %v666 = vpack.c.b16 %v646, %v645
        %v667 = vpack.c.b16 %v648, %v647
        %v668 = vpack.c.b16 %v650, %v649
        %v669 = vpack.c.b16 %v652, %v651
        %v670 = vpack.c.b16 %v654, %v653
        %v676 = vunpack.c.l.b16 %v582
        %v677 = vunpack.c.l.b16 %v583
        %v678 = vunpack.c.l.b16 %v584
        %v679 = vunpack.c.l.b16 %v585
        %v680 = vunpack.c.l.b16 %v586
        %v681 = vpack.c.b16 %v677, %v676
        %v682 = vpack.c.b16 %v679, %v678
        %v683 = vpack.c.b16 %v680, %v680
        %vm686 = vcmask 326656
        %v688 = vsel %vm686, %v655, 0
        %v691 = vsel %vm686, %v656, 0
        %v694 = vsel %vm686, %v657, 0
        %v697 = vsel %vm686, %v658, 0
        %v700 = vsel %vm686, %v659, 0
        %v703 = vsel %vm686, %v660, 0
        %v706 = vsel %vm686, %v661, 0
        %v709 = vsel %vm686, %v662, 0
        %v712 = vsel %vm686, %v663, 0
        %v715 = vsel %vm686, %v664, 0
        %v718 = vsel %vm686, %v665, 0
        %v721 = vsel %vm686, %v666, 0
        %v724 = vsel %vm686, %v667, 0
        %v727 = vsel %vm686, %v668, 0
        %v730 = vsel %vm686, %v669, 0
        %v733 = vsel %vm686, %v670, 0
        %vm735 = vcmask 1043456
        %v737 = vsel %vm735, %v683, 0
        %739 = vmatpush.bf16.msra.mxu0 0
        %740 = vmatpush.bf16.msra.mxu0 0
        %741 = vmatpush.bf16.msra.mxu0 0
        %742 = vmatpush.bf16.msra.mxu0 0
        %743 = vmatpush.bf16.msra.mxu0 0
        %744 = vmatpush.bf16.msra.mxu0 %v737
        %745 = vmatpush.bf16.msra.mxu0 %v682
        %746 = vmatpush.bf16.msra.mxu0 %v681
        %747 = vmatmul.bf16.gmra.mxu0 %v688
        %v748 = vpop.f32.mrf.mxu0
        %v749 = vadd.f32 %v589, %v748
        %v750 = vpop.f32.mrf.mxu0
        %v751 = vadd.f32 %v589, %v750
        %752 = vmatmul.bf16.gmra.mxu0 %v691
        %v753 = vpop.f32.mrf.mxu0
        %v754 = vadd.f32 %v589, %v753
        %v755 = vpop.f32.mrf.mxu0
        %v756 = vadd.f32 %v589, %v755
        %757 = vmatmul.bf16.gmra.mxu0 %v694
        %v758 = vpop.f32.mrf.mxu0
        %v759 = vadd.f32 %v589, %v758
        %v760 = vpop.f32.mrf.mxu0
        %v761 = vadd.f32 %v589, %v760
        %762 = vmatmul.bf16.gmra.mxu0 %v697
        %v763 = vpop.f32.mrf.mxu0
        %v764 = vadd.f32 %v589, %v763
        %v765 = vpop.f32.mrf.mxu0
        %v766 = vadd.f32 %v589, %v765
        %767 = vmatmul.bf16.gmra.mxu0 %v700
        %v768 = vpop.f32.mrf.mxu0
        %v769 = vadd.f32 %v589, %v768
        %v770 = vpop.f32.mrf.mxu0
        %v771 = vadd.f32 %v589, %v770
        %772 = vmatmul.bf16.gmra.mxu0 %v703
        %v773 = vpop.f32.mrf.mxu0
        %v774 = vadd.f32 %v589, %v773
        %v775 = vpop.f32.mrf.mxu0
        %v776 = vadd.f32 %v589, %v775
        %777 = vmatmul.bf16.gmra.mxu0 %v706
        %v778 = vpop.f32.mrf.mxu0
        %v779 = vadd.f32 %v589, %v778
        %v780 = vpop.f32.mrf.mxu0
        %v781 = vadd.f32 %v589, %v780
        %782 = vmatmul.bf16.gmra.mxu0 %v709
        %v783 = vpop.f32.mrf.mxu0
        %v784 = vadd.f32 %v589, %v783
        %v785 = vpop.f32.mrf.mxu0
        %v786 = vadd.f32 %v589, %v785
        %787 = vmatmul.bf16.gmra.mxu0 %v712
        %v788 = vpop.f32.mrf.mxu0
        %v789 = vadd.f32 %v589, %v788
        %v790 = vpop.f32.mrf.mxu0
        %v791 = vadd.f32 %v589, %v790
        %792 = vmatmul.bf16.gmra.mxu0 %v715
        %v793 = vpop.f32.mrf.mxu0
        %v794 = vadd.f32 %v589, %v793
        %v795 = vpop.f32.mrf.mxu0
        %v796 = vadd.f32 %v589, %v795
        %797 = vmatmul.bf16.gmra.mxu0 %v718
        %v798 = vpop.f32.mrf.mxu0
        %v799 = vadd.f32 %v589, %v798
        %v800 = vpop.f32.mrf.mxu0
        %v801 = vadd.f32 %v589, %v800
        %802 = vmatmul.bf16.gmra.mxu0 %v721
        %v803 = vpop.f32.mrf.mxu0
        %v804 = vadd.f32 %v589, %v803
        %v805 = vpop.f32.mrf.mxu0
        %v806 = vadd.f32 %v589, %v805
        %807 = vmatmul.bf16.gmra.mxu0 %v724
        %v808 = vpop.f32.mrf.mxu0
        %v809 = vadd.f32 %v589, %v808
        %v810 = vpop.f32.mrf.mxu0
        %v811 = vadd.f32 %v589, %v810
        %812 = vmatmul.bf16.gmra.mxu0 %v727
        %v813 = vpop.f32.mrf.mxu0
        %v814 = vadd.f32 %v589, %v813
        %v815 = vpop.f32.mrf.mxu0
        %v816 = vadd.f32 %v589, %v815
        %817 = vmatmul.bf16.gmra.mxu0 %v730
        %v818 = vpop.f32.mrf.mxu0
        %v819 = vadd.f32 %v589, %v818
        %v820 = vpop.f32.mrf.mxu0
        %v821 = vadd.f32 %v589, %v820
        %822 = vmatmul.bf16.gmra.mxu0 %v733
        %v823 = vpop.f32.mrf.mxu0
        %v824 = vadd.f32 %v589, %v823
        %v825 = vpop.f32.mrf.mxu0
        %v826 = vadd.f32 %v589, %v825
        %827 = vdwg.mxu0
        %v828 = vsel %vm467, %v749, 0.0
        %v829 = vsel %vm467, %v751, 0.0
        %v830 = vadd.f32 %v828, %v829
        %v831 = vsel %vm467, %v754, 0.0
        %v832 = vadd.f32 %v830, %v831
        %v833 = vsel %vm467, %v756, 0.0
        %v834 = vadd.f32 %v832, %v833
        %v835 = vsel %vm467, %v759, 0.0
        %v836 = vadd.f32 %v834, %v835
        %v837 = vsel %vm467, %v761, 0.0
        %v838 = vadd.f32 %v836, %v837
        %v839 = vsel %vm467, %v764, 0.0
        %v840 = vadd.f32 %v838, %v839
        %v841 = vsel %vm467, %v766, 0.0
        %v842 = vadd.f32 %v840, %v841
        %v843 = vsel %vm467, %v769, 0.0
        %v844 = vadd.f32 %v842, %v843
        %v845 = vsel %vm467, %v771, 0.0
        %v846 = vadd.f32 %v844, %v845
        %v847 = vsel %vm467, %v774, 0.0
        %v848 = vadd.f32 %v846, %v847
        %v849 = vsel %vm467, %v776, 0.0
        %v850 = vadd.f32 %v848, %v849
        %v851 = vsel %vm467, %v779, 0.0
        %v852 = vadd.f32 %v850, %v851
        %v853 = vsel %vm467, %v781, 0.0
        %v854 = vadd.f32 %v852, %v853
        %v855 = vsel %vm467, %v784, 0.0
        %v856 = vadd.f32 %v854, %v855
        %v857 = vsel %vm467, %v786, 0.0
        %v858 = vadd.f32 %v856, %v857
        %v859 = vsel %vm467, %v789, 0.0
        %v860 = vadd.f32 %v858, %v859
        %v861 = vsel %vm467, %v791, 0.0
        %v862 = vadd.f32 %v860, %v861
        %v863 = vsel %vm467, %v794, 0.0
        %v864 = vadd.f32 %v862, %v863
        %v865 = vsel %vm467, %v796, 0.0
        %v866 = vadd.f32 %v864, %v865
        %v867 = vsel %vm467, %v799, 0.0
        %v868 = vadd.f32 %v866, %v867
        %v869 = vsel %vm467, %v801, 0.0
        %v870 = vadd.f32 %v868, %v869
        %v871 = vsel %vm467, %v804, 0.0
        %v872 = vadd.f32 %v870, %v871
        %v873 = vsel %vm467, %v806, 0.0
        %v874 = vadd.f32 %v872, %v873
        %v875 = vsel %vm467, %v809, 0.0
        %v876 = vadd.f32 %v874, %v875
        %v877 = vsel %vm467, %v811, 0.0
        %v878 = vadd.f32 %v876, %v877
        %v879 = vsel %vm467, %v814, 0.0
        %v880 = vadd.f32 %v878, %v879
        %v881 = vsel %vm467, %v816, 0.0
        %v882 = vadd.f32 %v880, %v881
        %v883 = vsel %vm467, %v819, 0.0
        %v884 = vadd.f32 %v882, %v883
        %v885 = vsel %vm467, %v821, 0.0
        %v886 = vadd.f32 %v884, %v885
        %v887 = vsel %vm467, %v824, 0.0
        %v888 = vadd.f32 %v886, %v887
        %v889 = vsel %vm467, %v826, 0.0
        %v890 = vadd.f32 %v888, %v889
        %v891 = vrot.slane %v890, 4
        %v892 = vadd.f32 %v890, %v891
        %v893 = vrot.slane %v892, 2
        %v894 = vadd.f32 %v892, %v893
        %v895 = vrot.slane %v894, 1
        %v896 = vadd.f32 %v894, %v895
        %v897 = vmul.f32 %v749, %v749
        %v898 = vmul.f32 %v751, %v751
        %v899 = vmul.f32 %v754, %v754
        %v900 = vmul.f32 %v756, %v756
        %v901 = vmul.f32 %v759, %v759
        %v902 = vmul.f32 %v761, %v761
        %v903 = vmul.f32 %v764, %v764
        %v904 = vmul.f32 %v766, %v766
        %v905 = vmul.f32 %v769, %v769
        %v906 = vmul.f32 %v771, %v771
        %v907 = vmul.f32 %v774, %v774
        %v908 = vmul.f32 %v776, %v776
        %v909 = vmul.f32 %v779, %v779
        %v910 = vmul.f32 %v781, %v781
        %v911 = vmul.f32 %v784, %v784
        %v912 = vmul.f32 %v786, %v786
        %v913 = vmul.f32 %v789, %v789
        %v914 = vmul.f32 %v791, %v791
        %v915 = vmul.f32 %v794, %v794
        %v916 = vmul.f32 %v796, %v796
        %v917 = vmul.f32 %v799, %v799
        %v918 = vmul.f32 %v801, %v801
        %v919 = vmul.f32 %v804, %v804
        %v920 = vmul.f32 %v806, %v806
        %v921 = vmul.f32 %v809, %v809
        %v922 = vmul.f32 %v811, %v811
        %v923 = vmul.f32 %v814, %v814
        %v924 = vmul.f32 %v816, %v816
        %v925 = vmul.f32 %v819, %v819
        %v926 = vmul.f32 %v821, %v821
        %v927 = vmul.f32 %v824, %v824
        %v928 = vmul.f32 %v826, %v826
        %v929 = vsel %vm467, %v897, 0.0
        %v930 = vsel %vm467, %v898, 0.0
        %v931 = vadd.f32 %v929, %v930
        %v932 = vsel %vm467, %v899, 0.0
        %v933 = vadd.f32 %v931, %v932
        %v934 = vsel %vm467, %v900, 0.0
        %v935 = vadd.f32 %v933, %v934
        %v936 = vsel %vm467, %v901, 0.0
        %v937 = vadd.f32 %v935, %v936
        %v938 = vsel %vm467, %v902, 0.0
        %v939 = vadd.f32 %v937, %v938
        %v940 = vsel %vm467, %v903, 0.0
        %v941 = vadd.f32 %v939, %v940
        %v942 = vsel %vm467, %v904, 0.0
        %v943 = vadd.f32 %v941, %v942
        %v944 = vsel %vm467, %v905, 0.0
        %v945 = vadd.f32 %v943, %v944
        %v946 = vsel %vm467, %v906, 0.0
        %v947 = vadd.f32 %v945, %v946
        %v948 = vsel %vm467, %v907, 0.0
        %v949 = vadd.f32 %v947, %v948
        %v950 = vsel %vm467, %v908, 0.0
        %v951 = vadd.f32 %v949, %v950
        %v952 = vsel %vm467, %v909, 0.0
        %v953 = vadd.f32 %v951, %v952
        %v954 = vsel %vm467, %v910, 0.0
        %v955 = vadd.f32 %v953, %v954
        %v956 = vsel %vm467, %v911, 0.0
        %v957 = vadd.f32 %v955, %v956
        %v958 = vsel %vm467, %v912, 0.0
        %v959 = vadd.f32 %v957, %v958
        %v960 = vsel %vm467, %v913, 0.0
        %v961 = vadd.f32 %v959, %v960
        %v962 = vsel %vm467, %v914, 0.0
        %v963 = vadd.f32 %v961, %v962
        %v964 = vsel %vm467, %v915, 0.0
        %v965 = vadd.f32 %v963, %v964
        %v966 = vsel %vm467, %v916, 0.0
        %v967 = vadd.f32 %v965, %v966
        %v968 = vsel %vm467, %v917, 0.0
        %v969 = vadd.f32 %v967, %v968
        %v970 = vsel %vm467, %v918, 0.0
        %v971 = vadd.f32 %v969, %v970
        %v972 = vsel %vm467, %v919, 0.0
        %v973 = vadd.f32 %v971, %v972
        %v974 = vsel %vm467, %v920, 0.0
        %v975 = vadd.f32 %v973, %v974
        %v976 = vsel %vm467, %v921, 0.0
        %v977 = vadd.f32 %v975, %v976
        %v978 = vsel %vm467, %v922, 0.0
        %v979 = vadd.f32 %v977, %v978
        %v980 = vsel %vm467, %v923, 0.0
        %v981 = vadd.f32 %v979, %v980
        %v982 = vsel %vm467, %v924, 0.0
        %v983 = vadd.f32 %v981, %v982
        %v984 = vsel %vm467, %v925, 0.0
        %v985 = vadd.f32 %v983, %v984
        %v986 = vsel %vm467, %v926, 0.0
        %v987 = vadd.f32 %v985, %v986
        %v988 = vsel %vm467, %v927, 0.0
        %v989 = vadd.f32 %v987, %v988
        %v990 = vsel %vm467, %v928, 0.0
        %v991 = vadd.f32 %v989, %v990
        %v992 = vrot.slane %v991, 4
        %v993 = vadd.f32 %v991, %v992
        %v994 = vrot.slane %v993, 2
        %v995 = vadd.f32 %v993, %v994
        %v996 = vrot.slane %v995, 1
        %v997 = vadd.f32 %v995, %v996
        %v998 = vld [vmem:[%s1] sm:$0xff]
        %v999 = vld [vmem:[%s1 + $0x8] sm:$0xff]
        %v1000 = vld [vmem:[%s1 + $0x10] sm:$0xff]
        %v1001 = vld [vmem:[%s1 + $0x18] sm:$0xff]
        %v1003 = vsel %vm467, %v896, 0
        %1005 = vmatpush.msra.mxu0 0.0
        %1006 = vmatpush.msra.mxu0 0.0
        %1007 = vmatpush.msra.mxu0 0.0
        %1008 = vmatpush.msra.mxu0 0.0
        %1009 = vmatpush.msra.mxu0 0.0
        %1010 = vmatpush.msra.mxu0 0.0
        %1011 = vmatpush.msra.mxu0 0.0
        %1012 = vmatpush.msra.mxu0 0.0
        %1013 = vmatpush.msra.mxu0 0.0
        %1014 = vmatpush.msra.mxu0 0.0
        %1015 = vmatpush.msra.mxu0 0.0
        %1016 = vmatpush.msra.mxu0 0.0
        %1017 = vmatpush.msra.mxu0 %v1001
        %1018 = vmatpush.msra.mxu0 %v1000
        %1019 = vmatpush.msra.mxu0 %v999
        %1020 = vmatpush.msra.mxu0 %v998
        %1021 = vmatmul.f32.gmra.mxu0 %v1003
        %v1022 = vpop.f32.mrf.mxu0
        %v1023 = vadd.f32 0.0, %v1022
        %1024 = vdwg.mxu0
        %v1026 = vsel %vm467, %v997, 0
        %1028 = vmatpush.msra.mxu0 0.0
        %1029 = vmatpush.msra.mxu0 0.0
        %1030 = vmatpush.msra.mxu0 0.0
        %1031 = vmatpush.msra.mxu0 0.0
        %1032 = vmatpush.msra.mxu0 0.0
        %1033 = vmatpush.msra.mxu0 0.0
        %1034 = vmatpush.msra.mxu0 0.0
        %1035 = vmatpush.msra.mxu0 0.0
        %1036 = vmatpush.msra.mxu0 0.0
        %1037 = vmatpush.msra.mxu0 0.0
        %1038 = vmatpush.msra.mxu0 0.0
        %1039 = vmatpush.msra.mxu0 0.0
        %1040 = vmatpush.msra.mxu0 %v1001
        %1041 = vmatpush.msra.mxu0 %v1000
        %1042 = vmatpush.msra.mxu0 %v999
        %1043 = vmatpush.msra.mxu0 %v998
        %1044 = vmatmul.f32.gmra.mxu0 %v1026
        %v1045 = vpop.f32.mrf.mxu0
        %v1046 = vadd.f32 0.0, %v1045
        %1047 = vdwg.mxu0
        %v1048 = vmul.f32 %v1023, %v1023
        %v1049 = vsub.f32 %v1046, %v1048
        %v1050 = vadd.f32 %v1049, 1e-05
        %v1051 = vrsqrt.pop %v1050
        %v1052 = vmul.f32 %v1051, %v1050
        %v1053 = vmul.f32 %v1052, %v1051
        %v1054 = vmul.f32 0.5, %v1053
        %v1055 = vsub.f32 1.5, %v1054
        %v1056 = vmul.f32 %v1051, %v1055
        %vm1057 = vweird.f32 %v1050
        %vm1058 = vweird.f32 %v1051
        %vm1059 = vmor %vm1057, %vm1058
        %v1060 = vsel %vm1059, %v1051, %v1056
        %v1061 = vperm.slane %v1023, 0
        %v1062 = vsub.f32 %v749, %v1061
        %v1063 = vsub.f32 %v751, %v1061
        %v1064 = vsub.f32 %v754, %v1061
        %v1065 = vsub.f32 %v756, %v1061
        %v1066 = vsub.f32 %v759, %v1061
        %v1067 = vsub.f32 %v761, %v1061
        %v1068 = vsub.f32 %v764, %v1061
        %v1069 = vsub.f32 %v766, %v1061
        %v1070 = vsub.f32 %v769, %v1061
        %v1071 = vsub.f32 %v771, %v1061
        %v1072 = vsub.f32 %v774, %v1061
        %v1073 = vsub.f32 %v776, %v1061
        %v1074 = vsub.f32 %v779, %v1061
        %v1075 = vsub.f32 %v781, %v1061
        %v1076 = vsub.f32 %v784, %v1061
        %v1077 = vsub.f32 %v786, %v1061
        %v1078 = vsub.f32 %v789, %v1061
        %v1079 = vsub.f32 %v791, %v1061
        %v1080 = vsub.f32 %v794, %v1061
        %v1081 = vsub.f32 %v796, %v1061
        %v1082 = vsub.f32 %v799, %v1061
        %v1083 = vsub.f32 %v801, %v1061
        %v1084 = vsub.f32 %v804, %v1061
        %v1085 = vsub.f32 %v806, %v1061
        %v1086 = vsub.f32 %v809, %v1061
        %v1087 = vsub.f32 %v811, %v1061
        %v1088 = vsub.f32 %v814, %v1061
        %v1089 = vsub.f32 %v816, %v1061
        %v1090 = vsub.f32 %v819, %v1061
        %v1091 = vsub.f32 %v821, %v1061
        %v1092 = vsub.f32 %v824, %v1061
        %v1093 = vsub.f32 %v826, %v1061
        %v1094 = vld [vmem:[%s4] sm:$0x1]
        %v1095 = vmul.f32 %v1060, %v1094
        %v1096 = vperm.slane %v1095, 0
        %v1097 = vmul.f32 %v1062, %v1096
        %v1098 = vmul.f32 %v1063, %v1096
        %v1099 = vmul.f32 %v1064, %v1096
        %v1100 = vmul.f32 %v1065, %v1096
        %v1101 = vmul.f32 %v1066, %v1096
        %v1102 = vmul.f32 %v1067, %v1096
        %v1103 = vmul.f32 %v1068, %v1096
        %v1104 = vmul.f32 %v1069, %v1096
        %v1105 = vmul.f32 %v1070, %v1096
        %v1106 = vmul.f32 %v1071, %v1096
        %v1107 = vmul.f32 %v1072, %v1096
        %v1108 = vmul.f32 %v1073, %v1096
        %v1109 = vmul.f32 %v1074, %v1096
        %v1110 = vmul.f32 %v1075, %v1096
        %v1111 = vmul.f32 %v1076, %v1096
        %v1112 = vmul.f32 %v1077, %v1096
        %v1113 = vmul.f32 %v1078, %v1096
        %v1114 = vmul.f32 %v1079, %v1096
        %v1115 = vmul.f32 %v1080, %v1096
        %v1116 = vmul.f32 %v1081, %v1096
        %v1117 = vmul.f32 %v1082, %v1096
        %v1118 = vmul.f32 %v1083, %v1096
        %v1119 = vmul.f32 %v1084, %v1096
        %v1120 = vmul.f32 %v1085, %v1096
        %v1121 = vmul.f32 %v1086, %v1096
        %v1122 = vmul.f32 %v1087, %v1096
        %v1123 = vmul.f32 %v1088, %v1096
        %v1124 = vmul.f32 %v1089, %v1096
        %v1125 = vmul.f32 %v1090, %v1096
        %v1126 = vmul.f32 %v1091, %v1096
        %v1127 = vmul.f32 %v1092, %v1096
        %v1128 = vmul.f32 %v1093, %v1096
        %v1129 = vld [vmem:[%s5] sm:$0x1]
        %v1131 = vperm.slane %v1129, 0
        %v1133 = vadd.f32 %v1097, %v1131
        %v1134 = vadd.f32 %v1098, %v1131
        %v1135 = vadd.f32 %v1099, %v1131
        %v1136 = vadd.f32 %v1100, %v1131
        %v1137 = vadd.f32 %v1101, %v1131
        %v1138 = vadd.f32 %v1102, %v1131
        %v1139 = vadd.f32 %v1103, %v1131
        %v1140 = vadd.f32 %v1104, %v1131
        %v1141 = vadd.f32 %v1105, %v1131
        %v1142 = vadd.f32 %v1106, %v1131
        %v1143 = vadd.f32 %v1107, %v1131
        %v1144 = vadd.f32 %v1108, %v1131
        %v1145 = vadd.f32 %v1109, %v1131
        %v1146 = vadd.f32 %v1110, %v1131
        %v1147 = vadd.f32 %v1111, %v1131
        %v1148 = vadd.f32 %v1112, %v1131
        %v1149 = vadd.f32 %v1113, %v1131
        %v1150 = vadd.f32 %v1114, %v1131
        %v1151 = vadd.f32 %v1115, %v1131
        %v1152 = vadd.f32 %v1116, %v1131
        %v1153 = vadd.f32 %v1117, %v1131
        %v1154 = vadd.f32 %v1118, %v1131
        %v1155 = vadd.f32 %v1119, %v1131
        %v1156 = vadd.f32 %v1120, %v1131
        %v1157 = vadd.f32 %v1121, %v1131
        %v1158 = vadd.f32 %v1122, %v1131
        %v1159 = vadd.f32 %v1123, %v1131
        %v1160 = vadd.f32 %v1124, %v1131
        %v1161 = vadd.f32 %v1125, %v1131
        %v1162 = vadd.f32 %v1126, %v1131
        %v1163 = vadd.f32 %v1127, %v1131
        %v1164 = vadd.f32 %v1128, %v1131
        %v1165 = vmax.f32 %v1133, 0.0
        %v1166 = vmax.f32 %v1134, 0.0
        %v1167 = vmax.f32 %v1135, 0.0
        %v1168 = vmax.f32 %v1136, 0.0
        %v1169 = vmax.f32 %v1137, 0.0
        %v1170 = vmax.f32 %v1138, 0.0
        %v1171 = vmax.f32 %v1139, 0.0
        %v1172 = vmax.f32 %v1140, 0.0
        %v1173 = vmax.f32 %v1141, 0.0
        %v1174 = vmax.f32 %v1142, 0.0
        %v1175 = vmax.f32 %v1143, 0.0
        %v1176 = vmax.f32 %v1144, 0.0
        %v1177 = vmax.f32 %v1145, 0.0
        %v1178 = vmax.f32 %v1146, 0.0
        %v1179 = vmax.f32 %v1147, 0.0
        %v1180 = vmax.f32 %v1148, 0.0
        %v1181 = vmax.f32 %v1149, 0.0
        %v1182 = vmax.f32 %v1150, 0.0
        %v1183 = vmax.f32 %v1151, 0.0
        %v1184 = vmax.f32 %v1152, 0.0
        %v1185 = vmax.f32 %v1153, 0.0
        %v1186 = vmax.f32 %v1154, 0.0
        %v1187 = vmax.f32 %v1155, 0.0
        %v1188 = vmax.f32 %v1156, 0.0
        %v1189 = vmax.f32 %v1157, 0.0
        %v1190 = vmax.f32 %v1158, 0.0
        %v1191 = vmax.f32 %v1159, 0.0
        %v1192 = vmax.f32 %v1160, 0.0
        %v1193 = vmax.f32 %v1161, 0.0
        %v1194 = vmax.f32 %v1162, 0.0
        %v1195 = vmax.f32 %v1163, 0.0
        %v1196 = vmax.f32 %v1164, 0.0
        %1197 = vst.msk [vmem:[%s476 + $0x8] sm:$0xff] %vm467, %v1165
        %1198 = vst.msk [vmem:[%s476 + $0x10] sm:$0xff] %vm467, %v1166
        %1199 = vst.msk [vmem:[%s476 + $0x28] sm:$0xff] %vm467, %v1167
        %1200 = vst.msk [vmem:[%s476 + $0x30] sm:$0xff] %vm467, %v1168
        %1201 = vst.msk [vmem:[%s476 + $0x48] sm:$0xff] %vm467, %v1169
        %1202 = vst.msk [vmem:[%s476 + $0x50] sm:$0xff] %vm467, %v1170
        %1203 = vst.msk [vmem:[%s476 + $0x68] sm:$0xff] %vm467, %v1171
        %1204 = vst.msk [vmem:[%s476 + $0x70] sm:$0xff] %vm467, %v1172
        %1205 = vst.msk [vmem:[%s476 + $0x88] sm:$0xff] %vm467, %v1173
        %1206 = vst.msk [vmem:[%s476 + $0x90] sm:$0xff] %vm467, %v1174
        %1207 = vst.msk [vmem:[%s476 + $0xa8] sm:$0xff] %vm467, %v1175
        %1208 = vst.msk [vmem:[%s476 + $0xb0] sm:$0xff] %vm467, %v1176
        %1209 = vst.msk [vmem:[%s476 + $0xc8] sm:$0xff] %vm467, %v1177
        %1210 = vst.msk [vmem:[%s476 + $0xd0] sm:$0xff] %vm467, %v1178
        %1211 = vst.msk [vmem:[%s476 + $0xe8] sm:$0xff] %vm467, %v1179
        %1212 = vst.msk [vmem:[%s476 + $0xf0] sm:$0xff] %vm467, %v1180
        %1213 = vst.msk [vmem:[%s476 + $0x108] sm:$0xff] %vm467, %v1181
        %1214 = vst.msk [vmem:[%s476 + $0x110] sm:$0xff] %vm467, %v1182
        %1215 = vst.msk [vmem:[%s476 + $0x128] sm:$0xff] %vm467, %v1183
        %1216 = vst.msk [vmem:[%s476 + $0x130] sm:$0xff] %vm467, %v1184
        %1217 = vst.msk [vmem:[%s476 + $0x148] sm:$0xff] %vm467, %v1185
        %1218 = vst.msk [vmem:[%s476 + $0x150] sm:$0xff] %vm467, %v1186
        %1219 = vst.msk [vmem:[%s476 + $0x168] sm:$0xff] %vm467, %v1187
        %1220 = vst.msk [vmem:[%s476 + $0x170] sm:$0xff] %vm467, %v1188
        %1221 = vst.msk [vmem:[%s476 + $0x188] sm:$0xff] %vm467, %v1189
        %1222 = vst.msk [vmem:[%s476 + $0x190] sm:$0xff] %vm467, %v1190
        %1223 = vst.msk [vmem:[%s476 + $0x1a8] sm:$0xff] %vm467, %v1191
        %1224 = vst.msk [vmem:[%s476 + $0x1b0] sm:$0xff] %vm467, %v1192
        %1225 = vst.msk [vmem:[%s476 + $0x1c8] sm:$0xff] %vm467, %v1193
        %1226 = vst.msk [vmem:[%s476 + $0x1d0] sm:$0xff] %vm467, %v1194
        %1227 = vst.msk [vmem:[%s476 + $0x1e8] sm:$0xff] %vm467, %v1195
        %1228 = vst.msk [vmem:[%s476 + $0x1f0] sm:$0xff] %vm467, %v1196
        %v1229 = vld [vmem:[#allocation2 + $0x7] sm:$0xff]
        %v1230 = vld [vmem:[#allocation2 + $0xf] sm:$0xff]
        %v1231 = vld [vmem:[#allocation2 + $0x27] sm:$0xff]
        %v1232 = vld [vmem:[#allocation2 + $0x2f] sm:$0xff]
        %v1233 = vld [vmem:[#allocation2 + $0x47] sm:$0xff]
        %v1234 = vld [vmem:[#allocation2 + $0x4f] sm:$0xff]
        %v1235 = vld [vmem:[#allocation2 + $0x67] sm:$0xff]
        %v1236 = vld [vmem:[#allocation2 + $0x6f] sm:$0xff]
        %v1237 = vld [vmem:[#allocation2 + $0x87] sm:$0xff]
        %v1238 = vld [vmem:[#allocation2 + $0x8f] sm:$0xff]
        %v1239 = vld [vmem:[#allocation2 + $0xa7] sm:$0xff]
        %v1240 = vld [vmem:[#allocation2 + $0xaf] sm:$0xff]
        %v1241 = vld [vmem:[#allocation2 + $0xc7] sm:$0xff]
        %v1242 = vld [vmem:[#allocation2 + $0xcf] sm:$0xff]
        %v1243 = vld [vmem:[#allocation2 + $0xe7] sm:$0xff]
        %v1244 = vld [vmem:[#allocation2 + $0xef] sm:$0xff]
        %v1245 = vld [vmem:[#allocation2 + $0x107] sm:$0xff]
        %v1246 = vld [vmem:[#allocation2 + $0x10f] sm:$0xff]
        %v1247 = vld [vmem:[#allocation2 + $0x127] sm:$0xff]
        %v1248 = vld [vmem:[#allocation2 + $0x12f] sm:$0xff]
        %v1249 = vld [vmem:[#allocation2 + $0x147] sm:$0xff]
        %v1250 = vld [vmem:[#allocation2 + $0x14f] sm:$0xff]
        %v1251 = vld [vmem:[#allocation2 + $0x167] sm:$0xff]
        %v1252 = vld [vmem:[#allocation2 + $0x16f] sm:$0xff]
        %v1253 = vld [vmem:[#allocation2 + $0x187] sm:$0xff]
        %v1254 = vld [vmem:[#allocation2 + $0x18f] sm:$0xff]
        %v1255 = vld [vmem:[#allocation2 + $0x1a7] sm:$0xff]
        %v1256 = vld [vmem:[#allocation2 + $0x1af] sm:$0xff]
        %v1257 = vld [vmem:[#allocation2 + $0x1c7] sm:$0xff]
        %v1258 = vld [vmem:[#allocation2 + $0x1cf] sm:$0xff]
        %v1259 = vld [vmem:[#allocation2 + $0x1e7] sm:$0xff]
        %v1260 = vld [vmem:[#allocation2 + $0x1ef] sm:$0xff]
        %v1261 = vpack.c.bf16 %v1229, %v1229
        %v1262 = vpack.c.bf16 %v1230, %v1230
        %v1263 = vpack.c.bf16 %v1231, %v1231
        %v1264 = vpack.c.bf16 %v1232, %v1232
        %v1265 = vpack.c.bf16 %v1233, %v1233
        %v1266 = vpack.c.bf16 %v1234, %v1234
        %v1267 = vpack.c.bf16 %v1235, %v1235
        %v1268 = vpack.c.bf16 %v1236, %v1236
        %v1269 = vpack.c.bf16 %v1237, %v1237
        %v1270 = vpack.c.bf16 %v1238, %v1238
        %v1271 = vpack.c.bf16 %v1239, %v1239
        %v1272 = vpack.c.bf16 %v1240, %v1240
        %v1273 = vpack.c.bf16 %v1241, %v1241
        %v1274 = vpack.c.bf16 %v1242, %v1242
        %v1275 = vpack.c.bf16 %v1243, %v1243
        %v1276 = vpack.c.bf16 %v1244, %v1244
        %v1277 = vpack.c.bf16 %v1245, %v1245
        %v1278 = vpack.c.bf16 %v1246, %v1246
        %v1279 = vpack.c.bf16 %v1247, %v1247
        %v1280 = vpack.c.bf16 %v1248, %v1248
        %v1281 = vpack.c.bf16 %v1249, %v1249
        %v1282 = vpack.c.bf16 %v1250, %v1250
        %v1283 = vpack.c.bf16 %v1251, %v1251
        %v1284 = vpack.c.bf16 %v1252, %v1252
        %v1285 = vpack.c.bf16 %v1253, %v1253
        %v1286 = vpack.c.bf16 %v1254, %v1254
        %v1287 = vpack.c.bf16 %v1255, %v1255
        %v1288 = vpack.c.bf16 %v1256, %v1256
        %v1289 = vpack.c.bf16 %v1257, %v1257
        %v1290 = vpack.c.bf16 %v1258, %v1258
        %v1291 = vpack.c.bf16 %v1259, %v1259
        %v1292 = vpack.c.bf16 %v1260, %v1260
        %v1293 = vld [vmem:[#allocation2 + $0x8] sm:$0xff]
        %v1294 = vld [vmem:[#allocation2 + $0x10] sm:$0xff]
        %v1295 = vld [vmem:[#allocation2 + $0x28] sm:$0xff]
        %v1296 = vld [vmem:[#allocation2 + $0x30] sm:$0xff]
        %v1297 = vld [vmem:[#allocation2 + $0x48] sm:$0xff]
        %v1298 = vld [vmem:[#allocation2 + $0x50] sm:$0xff]
        %v1299 = vld [vmem:[#allocation2 + $0x68] sm:$0xff]
        %v1300 = vld [vmem:[#allocation2 + $0x70] sm:$0xff]
        %v1301 = vld [vmem:[#allocation2 + $0x88] sm:$0xff]
        %v1302 = vld [vmem:[#allocation2 + $0x90] sm:$0xff]
        %v1303 = vld [vmem:[#allocation2 + $0xa8] sm:$0xff]
        %v1304 = vld [vmem:[#allocation2 + $0xb0] sm:$0xff]
        %v1305 = vld [vmem:[#allocation2 + $0xc8] sm:$0xff]
        %v1306 = vld [vmem:[#allocation2 + $0xd0] sm:$0xff]
        %v1307 = vld [vmem:[#allocation2 + $0xe8] sm:$0xff]
        %v1308 = vld [vmem:[#allocation2 + $0xf0] sm:$0xff]
        %v1309 = vld [vmem:[#allocation2 + $0x108] sm:$0xff]
        %v1310 = vld [vmem:[#allocation2 + $0x110] sm:$0xff]
        %v1311 = vld [vmem:[#allocation2 + $0x128] sm:$0xff]
        %v1312 = vld [vmem:[#allocation2 + $0x130] sm:$0xff]
        %v1313 = vld [vmem:[#allocation2 + $0x148] sm:$0xff]
        %v1314 = vld [vmem:[#allocation2 + $0x150] sm:$0xff]
        %v1315 = vld [vmem:[#allocation2 + $0x168] sm:$0xff]
        %v1316 = vld [vmem:[#allocation2 + $0x170] sm:$0xff]
        %v1317 = vld [vmem:[#allocation2 + $0x188] sm:$0xff]
        %v1318 = vld [vmem:[#allocation2 + $0x190] sm:$0xff]
        %v1319 = vld [vmem:[#allocation2 + $0x1a8] sm:$0xff]
        %v1320 = vld [vmem:[#allocation2 + $0x1b0] sm:$0xff]
        %v1321 = vld [vmem:[#allocation2 + $0x1c8] sm:$0xff]
        %v1322 = vld [vmem:[#allocation2 + $0x1d0] sm:$0xff]
        %v1323 = vld [vmem:[#allocation2 + $0x1e8] sm:$0xff]
        %v1324 = vld [vmem:[#allocation2 + $0x1f0] sm:$0xff]
        %v1325 = vpack.c.bf16 %v1293, %v1293
        %v1326 = vpack.c.bf16 %v1294, %v1294
        %v1327 = vpack.c.bf16 %v1295, %v1295
        %v1328 = vpack.c.bf16 %v1296, %v1296
        %v1329 = vpack.c.bf16 %v1297, %v1297
        %v1330 = vpack.c.bf16 %v1298, %v1298
        %v1331 = vpack.c.bf16 %v1299, %v1299
        %v1332 = vpack.c.bf16 %v1300, %v1300
        %v1333 = vpack.c.bf16 %v1301, %v1301
        %v1334 = vpack.c.bf16 %v1302, %v1302
        %v1335 = vpack.c.bf16 %v1303, %v1303
        %v1336 = vpack.c.bf16 %v1304, %v1304
        %v1337 = vpack.c.bf16 %v1305, %v1305
        %v1338 = vpack.c.bf16 %v1306, %v1306
        %v1339 = vpack.c.bf16 %v1307, %v1307
        %v1340 = vpack.c.bf16 %v1308, %v1308
        %v1341 = vpack.c.bf16 %v1309, %v1309
        %v1342 = vpack.c.bf16 %v1310, %v1310
        %v1343 = vpack.c.bf16 %v1311, %v1311
        %v1344 = vpack.c.bf16 %v1312, %v1312
        %v1345 = vpack.c.bf16 %v1313, %v1313
        %v1346 = vpack.c.bf16 %v1314, %v1314
        %v1347 = vpack.c.bf16 %v1315, %v1315
        %v1348 = vpack.c.bf16 %v1316, %v1316
        %v1349 = vpack.c.bf16 %v1317, %v1317
        %v1350 = vpack.c.bf16 %v1318, %v1318
        %v1351 = vpack.c.bf16 %v1319, %v1319
        %v1352 = vpack.c.bf16 %v1320, %v1320
        %v1353 = vpack.c.bf16 %v1321, %v1321
        %v1354 = vpack.c.bf16 %v1322, %v1322
        %v1355 = vpack.c.bf16 %v1323, %v1323
        %v1356 = vpack.c.bf16 %v1324, %v1324
        %v1357 = vld [vmem:[#allocation2 + $0x9] sm:$0xff]
        %v1358 = vld [vmem:[#allocation2 + $0x11] sm:$0xff]
        %v1359 = vld [vmem:[#allocation2 + $0x29] sm:$0xff]
        %v1360 = vld [vmem:[#allocation2 + $0x31] sm:$0xff]
        %v1361 = vld [vmem:[#allocation2 + $0x49] sm:$0xff]
        %v1362 = vld [vmem:[#allocation2 + $0x51] sm:$0xff]
        %v1363 = vld [vmem:[#allocation2 + $0x69] sm:$0xff]
        %v1364 = vld [vmem:[#allocation2 + $0x71] sm:$0xff]
        %v1365 = vld [vmem:[#allocation2 + $0x89] sm:$0xff]
        %v1366 = vld [vmem:[#allocation2 + $0x91] sm:$0xff]
        %v1367 = vld [vmem:[#allocation2 + $0xa9] sm:$0xff]
        %v1368 = vld [vmem:[#allocation2 + $0xb1] sm:$0xff]
        %v1369 = vld [vmem:[#allocation2 + $0xc9] sm:$0xff]
        %v1370 = vld [vmem:[#allocation2 + $0xd1] sm:$0xff]
        %v1371 = vld [vmem:[#allocation2 + $0xe9] sm:$0xff]
        %v1372 = vld [vmem:[#allocation2 + $0xf1] sm:$0xff]
        %v1373 = vld [vmem:[#allocation2 + $0x109] sm:$0xff]
        %v1374 = vld [vmem:[#allocation2 + $0x111] sm:$0xff]
        %v1375 = vld [vmem:[#allocation2 + $0x129] sm:$0xff]
        %v1376 = vld [vmem:[#allocation2 + $0x131] sm:$0xff]
        %v1377 = vld [vmem:[#allocation2 + $0x149] sm:$0xff]
        %v1378 = vld [vmem:[#allocation2 + $0x151] sm:$0xff]
        %v1379 = vld [vmem:[#allocation2 + $0x169] sm:$0xff]
        %v1380 = vld [vmem:[#allocation2 + $0x171] sm:$0xff]
        %v1381 = vld [vmem:[#allocation2 + $0x189] sm:$0xff]
        %v1382 = vld [vmem:[#allocation2 + $0x191] sm:$0xff]
        %v1383 = vld [vmem:[#allocation2 + $0x1a9] sm:$0xff]
        %v1384 = vld [vmem:[#allocation2 + $0x1b1] sm:$0xff]
        %v1385 = vld [vmem:[#allocation2 + $0x1c9] sm:$0xff]
        %v1386 = vld [vmem:[#allocation2 + $0x1d1] sm:$0xff]
        %v1387 = vld [vmem:[#allocation2 + $0x1e9] sm:$0xff]
        %v1388 = vld [vmem:[#allocation2 + $0x1f1] sm:$0xff]
        %v1389 = vpack.c.bf16 %v1357, %v1357
        %v1390 = vpack.c.bf16 %v1358, %v1358
        %v1391 = vpack.c.bf16 %v1359, %v1359
        %v1392 = vpack.c.bf16 %v1360, %v1360
        %v1393 = vpack.c.bf16 %v1361, %v1361
        %v1394 = vpack.c.bf16 %v1362, %v1362
        %v1395 = vpack.c.bf16 %v1363, %v1363
        %v1396 = vpack.c.bf16 %v1364, %v1364
        %v1397 = vpack.c.bf16 %v1365, %v1365
        %v1398 = vpack.c.bf16 %v1366, %v1366
        %v1399 = vpack.c.bf16 %v1367, %v1367
        %v1400 = vpack.c.bf16 %v1368, %v1368
        %v1401 = vpack.c.bf16 %v1369, %v1369
        %v1402 = vpack.c.bf16 %v1370, %v1370
        %v1403 = vpack.c.bf16 %v1371, %v1371
        %v1404 = vpack.c.bf16 %v1372, %v1372
        %v1405 = vpack.c.bf16 %v1373, %v1373
        %v1406 = vpack.c.bf16 %v1374, %v1374
        %v1407 = vpack.c.bf16 %v1375, %v1375
        %v1408 = vpack.c.bf16 %v1376, %v1376
        %v1409 = vpack.c.bf16 %v1377, %v1377
        %v1410 = vpack.c.bf16 %v1378, %v1378
        %v1411 = vpack.c.bf16 %v1379, %v1379
        %v1412 = vpack.c.bf16 %v1380, %v1380
        %v1413 = vpack.c.bf16 %v1381, %v1381
        %v1414 = vpack.c.bf16 %v1382, %v1382
        %v1415 = vpack.c.bf16 %v1383, %v1383
        %v1416 = vpack.c.bf16 %v1384, %v1384
        %v1417 = vpack.c.bf16 %v1385, %v1385
        %v1418 = vpack.c.bf16 %v1386, %v1386
        %v1419 = vpack.c.bf16 %v1387, %v1387
        %v1420 = vpack.c.bf16 %v1388, %v1388
        %v1453 = vunpack.c.l.b16 %v1261
        %v1454 = vunpack.c.l.b16 %v1262
        %v1455 = vunpack.c.l.b16 %v1263
        %v1456 = vunpack.c.l.b16 %v1264
        %v1457 = vunpack.c.l.b16 %v1265
        %v1458 = vunpack.c.l.b16 %v1266
        %v1459 = vunpack.c.l.b16 %v1267
        %v1460 = vunpack.c.l.b16 %v1268
        %v1461 = vunpack.c.l.b16 %v1269
        %v1462 = vunpack.c.l.b16 %v1270
        %v1463 = vunpack.c.l.b16 %v1271
        %v1464 = vunpack.c.l.b16 %v1272
        %v1465 = vunpack.c.l.b16 %v1273
        %v1466 = vunpack.c.l.b16 %v1274
        %v1467 = vunpack.c.l.b16 %v1275
        %v1468 = vunpack.c.l.b16 %v1276
        %v1469 = vunpack.c.l.b16 %v1277
        %v1470 = vunpack.c.l.b16 %v1278
        %v1471 = vunpack.c.l.b16 %v1279
        %v1472 = vunpack.c.l.b16 %v1280
        %v1473 = vunpack.c.l.b16 %v1281
        %v1474 = vunpack.c.l.b16 %v1282
        %v1475 = vunpack.c.l.b16 %v1283
        %v1476 = vunpack.c.l.b16 %v1284
        %v1477 = vunpack.c.l.b16 %v1285
        %v1478 = vunpack.c.l.b16 %v1286
        %v1479 = vunpack.c.l.b16 %v1287
        %v1480 = vunpack.c.l.b16 %v1288
        %v1481 = vunpack.c.l.b16 %v1289
        %v1482 = vunpack.c.l.b16 %v1290
        %v1483 = vunpack.c.l.b16 %v1291
        %v1484 = vunpack.c.l.b16 %v1292
        %v1485 = vpack.c.b16 %v1454, %v1453
        %v1486 = vpack.c.b16 %v1456, %v1455
        %v1487 = vpack.c.b16 %v1458, %v1457
        %v1488 = vpack.c.b16 %v1460, %v1459
        %v1489 = vpack.c.b16 %v1462, %v1461
        %v1490 = vpack.c.b16 %v1464, %v1463
        %v1491 = vpack.c.b16 %v1466, %v1465
        %v1492 = vpack.c.b16 %v1468, %v1467
        %v1493 = vpack.c.b16 %v1470, %v1469
        %v1494 = vpack.c.b16 %v1472, %v1471
        %v1495 = vpack.c.b16 %v1474, %v1473
        %v1496 = vpack.c.b16 %v1476, %v1475
        %v1497 = vpack.c.b16 %v1478, %v1477
        %v1498 = vpack.c.b16 %v1480, %v1479
        %v1499 = vpack.c.b16 %v1482, %v1481
        %v1500 = vpack.c.b16 %v1484, %v1483
        %v1533 = vunpack.c.l.b16 %v1325
        %v1534 = vunpack.c.l.b16 %v1326
        %v1535 = vunpack.c.l.b16 %v1327
        %v1536 = vunpack.c.l.b16 %v1328
        %v1537 = vunpack.c.l.b16 %v1329
        %v1538 = vunpack.c.l.b16 %v1330
        %v1539 = vunpack.c.l.b16 %v1331
        %v1540 = vunpack.c.l.b16 %v1332
        %v1541 = vunpack.c.l.b16 %v1333
        %v1542 = vunpack.c.l.b16 %v1334
        %v1543 = vunpack.c.l.b16 %v1335
        %v1544 = vunpack.c.l.b16 %v1336
        %v1545 = vunpack.c.l.b16 %v1337
        %v1546 = vunpack.c.l.b16 %v1338
        %v1547 = vunpack.c.l.b16 %v1339
        %v1548 = vunpack.c.l.b16 %v1340
        %v1549 = vunpack.c.l.b16 %v1341
        %v1550 = vunpack.c.l.b16 %v1342
        %v1551 = vunpack.c.l.b16 %v1343
        %v1552 = vunpack.c.l.b16 %v1344
        %v1553 = vunpack.c.l.b16 %v1345
        %v1554 = vunpack.c.l.b16 %v1346
        %v1555 = vunpack.c.l.b16 %v1347
        %v1556 = vunpack.c.l.b16 %v1348
        %v1557 = vunpack.c.l.b16 %v1349
        %v1558 = vunpack.c.l.b16 %v1350
        %v1559 = vunpack.c.l.b16 %v1351
        %v1560 = vunpack.c.l.b16 %v1352
        %v1561 = vunpack.c.l.b16 %v1353
        %v1562 = vunpack.c.l.b16 %v1354
        %v1563 = vunpack.c.l.b16 %v1355
        %v1564 = vunpack.c.l.b16 %v1356
        %v1565 = vpack.c.b16 %v1534, %v1533
        %v1566 = vpack.c.b16 %v1536, %v1535
        %v1567 = vpack.c.b16 %v1538, %v1537
        %v1568 = vpack.c.b16 %v1540, %v1539
        %v1569 = vpack.c.b16 %v1542, %v1541
        %v1570 = vpack.c.b16 %v1544, %v1543
        %v1571 = vpack.c.b16 %v1546, %v1545
        %v1572 = vpack.c.b16 %v1548, %v1547
        %v1573 = vpack.c.b16 %v1550, %v1549
        %v1574 = vpack.c.b16 %v1552, %v1551
        %v1575 = vpack.c.b16 %v1554, %v1553
        %v1576 = vpack.c.b16 %v1556, %v1555
        %v1577 = vpack.c.b16 %v1558, %v1557
        %v1578 = vpack.c.b16 %v1560, %v1559
        %v1579 = vpack.c.b16 %v1562, %v1561
        %v1580 = vpack.c.b16 %v1564, %v1563
        %1581 = vrot.lane.b32.xlu0 %v1565, 32
        %v1582 = vpop.permute.xlu0 %1581
        %1583 = vrot.lane.b32.xlu0 %v1566, 32
        %v1584 = vpop.permute.xlu0 %1583
        %1585 = vrot.lane.b32.xlu0 %v1567, 32
        %v1586 = vpop.permute.xlu0 %1585
        %1587 = vrot.lane.b32.xlu0 %v1568, 32
        %v1588 = vpop.permute.xlu0 %1587
        %1589 = vrot.lane.b32.xlu0 %v1569, 32
        %v1590 = vpop.permute.xlu0 %1589
        %1591 = vrot.lane.b32.xlu0 %v1570, 32
        %v1592 = vpop.permute.xlu0 %1591
        %1593 = vrot.lane.b32.xlu0 %v1571, 32
        %v1594 = vpop.permute.xlu0 %1593
        %1595 = vrot.lane.b32.xlu0 %v1572, 32
        %v1596 = vpop.permute.xlu0 %1595
        %1597 = vrot.lane.b32.xlu0 %v1573, 32
        %v1598 = vpop.permute.xlu0 %1597
        %1599 = vrot.lane.b32.xlu0 %v1574, 32
        %v1600 = vpop.permute.xlu0 %1599
        %1601 = vrot.lane.b32.xlu0 %v1575, 32
        %v1602 = vpop.permute.xlu0 %1601
        %1603 = vrot.lane.b32.xlu0 %v1576, 32
        %v1604 = vpop.permute.xlu0 %1603
        %1605 = vrot.lane.b32.xlu0 %v1577, 32
        %v1606 = vpop.permute.xlu0 %1605
        %1607 = vrot.lane.b32.xlu0 %v1578, 32
        %v1608 = vpop.permute.xlu0 %1607
        %1609 = vrot.lane.b32.xlu0 %v1579, 32
        %v1610 = vpop.permute.xlu0 %1609
        %1611 = vrot.lane.b32.xlu0 %v1580, 32
        %v1612 = vpop.permute.xlu0 %1611
        %v1645 = vunpack.c.l.b16 %v1389
        %v1646 = vunpack.c.l.b16 %v1390
        %v1647 = vunpack.c.l.b16 %v1391
        %v1648 = vunpack.c.l.b16 %v1392
        %v1649 = vunpack.c.l.b16 %v1393
        %v1650 = vunpack.c.l.b16 %v1394
        %v1651 = vunpack.c.l.b16 %v1395
        %v1652 = vunpack.c.l.b16 %v1396
        %v1653 = vunpack.c.l.b16 %v1397
        %v1654 = vunpack.c.l.b16 %v1398
        %v1655 = vunpack.c.l.b16 %v1399
        %v1656 = vunpack.c.l.b16 %v1400
        %v1657 = vunpack.c.l.b16 %v1401
        %v1658 = vunpack.c.l.b16 %v1402
        %v1659 = vunpack.c.l.b16 %v1403
        %v1660 = vunpack.c.l.b16 %v1404
        %v1661 = vunpack.c.l.b16 %v1405
        %v1662 = vunpack.c.l.b16 %v1406
        %v1663 = vunpack.c.l.b16 %v1407
        %v1664 = vunpack.c.l.b16 %v1408
        %v1665 = vunpack.c.l.b16 %v1409
        %v1666 = vunpack.c.l.b16 %v1410
        %v1667 = vunpack.c.l.b16 %v1411
        %v1668 = vunpack.c.l.b16 %v1412
        %v1669 = vunpack.c.l.b16 %v1413
        %v1670 = vunpack.c.l.b16 %v1414
        %v1671 = vunpack.c.l.b16 %v1415
        %v1672 = vunpack.c.l.b16 %v1416
        %v1673 = vunpack.c.l.b16 %v1417
        %v1674 = vunpack.c.l.b16 %v1418
        %v1675 = vunpack.c.l.b16 %v1419
        %v1676 = vunpack.c.l.b16 %v1420
        %v1677 = vpack.c.b16 %v1646, %v1645
        %v1678 = vpack.c.b16 %v1648, %v1647
        %v1679 = vpack.c.b16 %v1650, %v1649
        %v1680 = vpack.c.b16 %v1652, %v1651
        %v1681 = vpack.c.b16 %v1654, %v1653
        %v1682 = vpack.c.b16 %v1656, %v1655
        %v1683 = vpack.c.b16 %v1658, %v1657
        %v1684 = vpack.c.b16 %v1660, %v1659
        %v1685 = vpack.c.b16 %v1662, %v1661
        %v1686 = vpack.c.b16 %v1664, %v1663
        %v1687 = vpack.c.b16 %v1666, %v1665
        %v1688 = vpack.c.b16 %v1668, %v1667
        %v1689 = vpack.c.b16 %v1670, %v1669
        %v1690 = vpack.c.b16 %v1672, %v1671
        %v1691 = vpack.c.b16 %v1674, %v1673
        %v1692 = vpack.c.b16 %v1676, %v1675
        %1693 = vrot.lane.b32.xlu0 %v1677, 64
        %v1694 = vpop.permute.xlu0 %1693
        %1695 = vrot.lane.b32.xlu0 %v1678, 64
        %v1696 = vpop.permute.xlu0 %1695
        %1697 = vrot.lane.b32.xlu0 %v1679, 64
        %v1698 = vpop.permute.xlu0 %1697
        %1699 = vrot.lane.b32.xlu0 %v1680, 64
        %v1700 = vpop.permute.xlu0 %1699
        %1701 = vrot.lane.b32.xlu0 %v1681, 64
        %v1702 = vpop.permute.xlu0 %1701
        %1703 = vrot.lane.b32.xlu0 %v1682, 64
        %v1704 = vpop.permute.xlu0 %1703
        %1705 = vrot.lane.b32.xlu0 %v1683, 64
        %v1706 = vpop.permute.xlu0 %1705
        %1707 = vrot.lane.b32.xlu0 %v1684, 64
        %v1708 = vpop.permute.xlu0 %1707
        %1709 = vrot.lane.b32.xlu0 %v1685, 64
        %v1710 = vpop.permute.xlu0 %1709
        %1711 = vrot.lane.b32.xlu0 %v1686, 64
        %v1712 = vpop.permute.xlu0 %1711
        %1713 = vrot.lane.b32.xlu0 %v1687, 64
        %v1714 = vpop.permute.xlu0 %1713
        %1715 = vrot.lane.b32.xlu0 %v1688, 64
        %v1716 = vpop.permute.xlu0 %1715
        %1717 = vrot.lane.b32.xlu0 %v1689, 64
        %v1718 = vpop.permute.xlu0 %1717
        %1719 = vrot.lane.b32.xlu0 %v1690, 64
        %v1720 = vpop.permute.xlu0 %1719
        %1721 = vrot.lane.b32.xlu0 %v1691, 64
        %v1722 = vpop.permute.xlu0 %1721
        %1723 = vrot.lane.b32.xlu0 %v1692, 64
        %v1724 = vpop.permute.xlu0 %1723
        %v1727 = vsel %vm467, %v1485, %v1582
        %v1730 = vsel %vm467, %v1486, %v1584
        %v1733 = vsel %vm467, %v1487, %v1586
        %v1736 = vsel %vm467, %v1488, %v1588
        %v1739 = vsel %vm467, %v1489, %v1590
        %v1742 = vsel %vm467, %v1490, %v1592
        %v1745 = vsel %vm467, %v1491, %v1594
        %v1748 = vsel %vm467, %v1492, %v1596
        %v1751 = vsel %vm467, %v1493, %v1598
        %v1754 = vsel %vm467, %v1494, %v1600
        %v1757 = vsel %vm467, %v1495, %v1602
        %v1760 = vsel %vm467, %v1496, %v1604
        %v1763 = vsel %vm467, %v1497, %v1606
        %v1766 = vsel %vm467, %v1498, %v1608
        %v1769 = vsel %vm467, %v1499, %v1610
        %v1772 = vsel %vm467, %v1500, %v1612
        %vm1773 = vcmask 523264
        %v1775 = vsel %vm1773, %v1727, %v1694
        %v1777 = vsel %vm1773, %v1730, %v1696
        %v1779 = vsel %vm1773, %v1733, %v1698
        %v1781 = vsel %vm1773, %v1736, %v1700
        %v1783 = vsel %vm1773, %v1739, %v1702
        %v1785 = vsel %vm1773, %v1742, %v1704
        %v1787 = vsel %vm1773, %v1745, %v1706
        %v1789 = vsel %vm1773, %v1748, %v1708
        %v1791 = vsel %vm1773, %v1751, %v1710
        %v1793 = vsel %vm1773, %v1754, %v1712
        %v1795 = vsel %vm1773, %v1757, %v1714
        %v1797 = vsel %vm1773, %v1760, %v1716
        %v1799 = vsel %vm1773, %v1763, %v1718
        %v1801 = vsel %vm1773, %v1766, %v1720
        %v1803 = vsel %vm1773, %v1769, %v1722
        %v1805 = vsel %vm1773, %v1772, %v1724
        %v1806 = vld [vmem:[%s6] sm:$0xf]
        %v1807 = vld [vmem:[%s6 + $0x4] sm:$0xf]
        %v1808 = vld [vmem:[%s6 + $0x8] sm:$0xf]
        %v1809 = vld [vmem:[%s6 + $0xc] sm:$0xf]
        %v1810 = vld [vmem:[%s6 + $0x10] sm:$0xf]
        %v1811 = vld [vmem:[%s6 + $0x14] sm:$0xf]
        %v1812 = vld [vmem:[%s6 + $0x18] sm:$0xf]
        %v1813 = vld [vmem:[%s6 + $0x1c] sm:$0xf]
        %v1814 = vld [vmem:[%s6 + $0x20] sm:$0xf]
        %v1815 = vld [vmem:[%s6 + $0x24] sm:$0xf]
        %v1816 = vld [vmem:[%s6 + $0x28] sm:$0xf]
        %v1817 = vld [vmem:[%s6 + $0x2c] sm:$0xf]
        %v1818 = vld [vmem:[%s476 + $0x7] sm:$0xff]
        %v1819 = vld [vmem:[%s476 + $0xf] sm:$0xff]
        %v1820 = vld [vmem:[%s476 + $0x27] sm:$0xff]
        %v1821 = vld [vmem:[%s476 + $0x2f] sm:$0xff]
        %v1822 = vld [vmem:[%s476 + $0x47] sm:$0xff]
        %v1823 = vld [vmem:[%s476 + $0x4f] sm:$0xff]
        %v1824 = vld [vmem:[%s476 + $0x67] sm:$0xff]
        %v1825 = vld [vmem:[%s476 + $0x6f] sm:$0xff]
        %v1826 = vld [vmem:[%s476 + $0x87] sm:$0xff]
        %v1827 = vld [vmem:[%s476 + $0x8f] sm:$0xff]
        %v1828 = vld [vmem:[%s476 + $0xa7] sm:$0xff]
        %v1829 = vld [vmem:[%s476 + $0xaf] sm:$0xff]
        %v1830 = vld [vmem:[%s476 + $0xc7] sm:$0xff]
        %v1831 = vld [vmem:[%s476 + $0xcf] sm:$0xff]
        %v1832 = vld [vmem:[%s476 + $0xe7] sm:$0xff]
        %v1833 = vld [vmem:[%s476 + $0xef] sm:$0xff]
        %v1834 = vld [vmem:[%s476 + $0x107] sm:$0xff]
        %v1835 = vld [vmem:[%s476 + $0x10f] sm:$0xff]
        %v1836 = vld [vmem:[%s476 + $0x127] sm:$0xff]
        %v1837 = vld [vmem:[%s476 + $0x12f] sm:$0xff]
        %v1838 = vld [vmem:[%s476 + $0x147] sm:$0xff]
        %v1839 = vld [vmem:[%s476 + $0x14f] sm:$0xff]
        %v1840 = vld [vmem:[%s476 + $0x167] sm:$0xff]
        %v1841 = vld [vmem:[%s476 + $0x16f] sm:$0xff]
        %v1842 = vld [vmem:[%s476 + $0x187] sm:$0xff]
        %v1843 = vld [vmem:[%s476 + $0x18f] sm:$0xff]
        %v1844 = vld [vmem:[%s476 + $0x1a7] sm:$0xff]
        %v1845 = vld [vmem:[%s476 + $0x1af] sm:$0xff]
        %v1846 = vld [vmem:[%s476 + $0x1c7] sm:$0xff]
        %v1847 = vld [vmem:[%s476 + $0x1cf] sm:$0xff]
        %v1848 = vld [vmem:[%s476 + $0x1e7] sm:$0xff]
        %v1849 = vld [vmem:[%s476 + $0x1ef] sm:$0xff]
        %v1850 = vpack.c.bf16 %v1818, %v1818
        %v1851 = vpack.c.bf16 %v1819, %v1819
        %v1852 = vpack.c.bf16 %v1820, %v1820
        %v1853 = vpack.c.bf16 %v1821, %v1821
        %v1854 = vpack.c.bf16 %v1822, %v1822
        %v1855 = vpack.c.bf16 %v1823, %v1823
        %v1856 = vpack.c.bf16 %v1824, %v1824
        %v1857 = vpack.c.bf16 %v1825, %v1825
        %v1858 = vpack.c.bf16 %v1826, %v1826
        %v1859 = vpack.c.bf16 %v1827, %v1827
        %v1860 = vpack.c.bf16 %v1828, %v1828
        %v1861 = vpack.c.bf16 %v1829, %v1829
        %v1862 = vpack.c.bf16 %v1830, %v1830
        %v1863 = vpack.c.bf16 %v1831, %v1831
        %v1864 = vpack.c.bf16 %v1832, %v1832
        %v1865 = vpack.c.bf16 %v1833, %v1833
        %v1866 = vpack.c.bf16 %v1834, %v1834
        %v1867 = vpack.c.bf16 %v1835, %v1835
        %v1868 = vpack.c.bf16 %v1836, %v1836
        %v1869 = vpack.c.bf16 %v1837, %v1837
        %v1870 = vpack.c.bf16 %v1838, %v1838
        %v1871 = vpack.c.bf16 %v1839, %v1839
        %v1872 = vpack.c.bf16 %v1840, %v1840
        %v1873 = vpack.c.bf16 %v1841, %v1841
        %v1874 = vpack.c.bf16 %v1842, %v1842
        %v1875 = vpack.c.bf16 %v1843, %v1843
        %v1876 = vpack.c.bf16 %v1844, %v1844
        %v1877 = vpack.c.bf16 %v1845, %v1845
        %v1878 = vpack.c.bf16 %v1846, %v1846
        %v1879 = vpack.c.bf16 %v1847, %v1847
        %v1880 = vpack.c.bf16 %v1848, %v1848
        %v1881 = vpack.c.bf16 %v1849, %v1849
        %v1882 = vld [vmem:[%s476 + $0x8] sm:$0xff]
        %v1883 = vld [vmem:[%s476 + $0x10] sm:$0xff]
        %v1884 = vld [vmem:[%s476 + $0x28] sm:$0xff]
        %v1885 = vld [vmem:[%s476 + $0x30] sm:$0xff]
        %v1886 = vld [vmem:[%s476 + $0x48] sm:$0xff]
        %v1887 = vld [vmem:[%s476 + $0x50] sm:$0xff]
        %v1888 = vld [vmem:[%s476 + $0x68] sm:$0xff]
        %v1889 = vld [vmem:[%s476 + $0x70] sm:$0xff]
        %v1890 = vld [vmem:[%s476 + $0x88] sm:$0xff]
        %v1891 = vld [vmem:[%s476 + $0x90] sm:$0xff]
        %v1892 = vld [vmem:[%s476 + $0xa8] sm:$0xff]
        %v1893 = vld [vmem:[%s476 + $0xb0] sm:$0xff]
        %v1894 = vld [vmem:[%s476 + $0xc8] sm:$0xff]
        %v1895 = vld [vmem:[%s476 + $0xd0] sm:$0xff]
        %v1896 = vld [vmem:[%s476 + $0xe8] sm:$0xff]
        %v1897 = vld [vmem:[%s476 + $0xf0] sm:$0xff]
        %v1898 = vld [vmem:[%s476 + $0x108] sm:$0xff]
        %v1899 = vld [vmem:[%s476 + $0x110] sm:$0xff]
        %v1900 = vld [vmem:[%s476 + $0x128] sm:$0xff]
        %v1901 = vld [vmem:[%s476 + $0x130] sm:$0xff]
        %v1902 = vld [vmem:[%s476 + $0x148] sm:$0xff]
        %v1903 = vld [vmem:[%s476 + $0x150] sm:$0xff]
        %v1904 = vld [vmem:[%s476 + $0x168] sm:$0xff]
        %v1905 = vld [vmem:[%s476 + $0x170] sm:$0xff]
        %v1906 = vld [vmem:[%s476 + $0x188] sm:$0xff]
        %v1907 = vld [vmem:[%s476 + $0x190] sm:$0xff]
        %v1908 = vld [vmem:[%s476 + $0x1a8] sm:$0xff]
        %v1909 = vld [vmem:[%s476 + $0x1b0] sm:$0xff]
        %v1910 = vld [vmem:[%s476 + $0x1c8] sm:$0xff]
        %v1911 = vld [vmem:[%s476 + $0x1d0] sm:$0xff]
        %v1912 = vld [vmem:[%s476 + $0x1e8] sm:$0xff]
        %v1913 = vld [vmem:[%s476 + $0x1f0] sm:$0xff]
        %v1914 = vpack.c.bf16 %v1882, %v1882
        %v1915 = vpack.c.bf16 %v1883, %v1883
        %v1916 = vpack.c.bf16 %v1884, %v1884
        %v1917 = vpack.c.bf16 %v1885, %v1885
        %v1918 = vpack.c.bf16 %v1886, %v1886
        %v1919 = vpack.c.bf16 %v1887, %v1887
        %v1920 = vpack.c.bf16 %v1888, %v1888
        %v1921 = vpack.c.bf16 %v1889, %v1889
        %v1922 = vpack.c.bf16 %v1890, %v1890
        %v1923 = vpack.c.bf16 %v1891, %v1891
        %v1924 = vpack.c.bf16 %v1892, %v1892
        %v1925 = vpack.c.bf16 %v1893, %v1893
        %v1926 = vpack.c.bf16 %v1894, %v1894
        %v1927 = vpack.c.bf16 %v1895, %v1895
        %v1928 = vpack.c.bf16 %v1896, %v1896
        %v1929 = vpack.c.bf16 %v1897, %v1897
        %v1930 = vpack.c.bf16 %v1898, %v1898
        %v1931 = vpack.c.bf16 %v1899, %v1899
        %v1932 = vpack.c.bf16 %v1900, %v1900
        %v1933 = vpack.c.bf16 %v1901, %v1901
        %v1934 = vpack.c.bf16 %v1902, %v1902
        %v1935 = vpack.c.bf16 %v1903, %v1903
        %v1936 = vpack.c.bf16 %v1904, %v1904
        %v1937 = vpack.c.bf16 %v1905, %v1905
        %v1938 = vpack.c.bf16 %v1906, %v1906
        %v1939 = vpack.c.bf16 %v1907, %v1907
        %v1940 = vpack.c.bf16 %v1908, %v1908
        %v1941 = vpack.c.bf16 %v1909, %v1909
        %v1942 = vpack.c.bf16 %v1910, %v1910
        %v1943 = vpack.c.bf16 %v1911, %v1911
        %v1944 = vpack.c.bf16 %v1912, %v1912
        %v1945 = vpack.c.bf16 %v1913, %v1913
        %v1946 = vld [vmem:[%s476 + $0x9] sm:$0xff]
        %v1947 = vld [vmem:[%s476 + $0x11] sm:$0xff]
        %v1948 = vld [vmem:[%s476 + $0x29] sm:$0xff]
        %v1949 = vld [vmem:[%s476 + $0x31] sm:$0xff]
        %v1950 = vld [vmem:[%s476 + $0x49] sm:$0xff]
        %v1951 = vld [vmem:[%s476 + $0x51] sm:$0xff]
        %v1952 = vld [vmem:[%s476 + $0x69] sm:$0xff]
        %v1953 = vld [vmem:[%s476 + $0x71] sm:$0xff]
        %v1954 = vld [vmem:[%s476 + $0x89] sm:$0xff]
        %v1955 = vld [vmem:[%s476 + $0x91] sm:$0xff]
        %v1956 = vld [vmem:[%s476 + $0xa9] sm:$0xff]
        %v1957 = vld [vmem:[%s476 + $0xb1] sm:$0xff]
        %v1958 = vld [vmem:[%s476 + $0xc9] sm:$0xff]
        %v1959 = vld [vmem:[%s476 + $0xd1] sm:$0xff]
        %v1960 = vld [vmem:[%s476 + $0xe9] sm:$0xff]
        %v1961 = vld [vmem:[%s476 + $0xf1] sm:$0xff]
        %v1962 = vld [vmem:[%s476 + $0x109] sm:$0xff]
        %v1963 = vld [vmem:[%s476 + $0x111] sm:$0xff]
        %v1964 = vld [vmem:[%s476 + $0x129] sm:$0xff]
        %v1965 = vld [vmem:[%s476 + $0x131] sm:$0xff]
        %v1966 = vld [vmem:[%s476 + $0x149] sm:$0xff]
        %v1967 = vld [vmem:[%s476 + $0x151] sm:$0xff]
        %v1968 = vld [vmem:[%s476 + $0x169] sm:$0xff]
        %v1969 = vld [vmem:[%s476 + $0x171] sm:$0xff]
        %v1970 = vld [vmem:[%s476 + $0x189] sm:$0xff]
        %v1971 = vld [vmem:[%s476 + $0x191] sm:$0xff]
        %v1972 = vld [vmem:[%s476 + $0x1a9] sm:$0xff]
        %v1973 = vld [vmem:[%s476 + $0x1b1] sm:$0xff]
        %v1974 = vld [vmem:[%s476 + $0x1c9] sm:$0xff]
        %v1975 = vld [vmem:[%s476 + $0x1d1] sm:$0xff]
        %v1976 = vld [vmem:[%s476 + $0x1e9] sm:$0xff]
        %v1977 = vld [vmem:[%s476 + $0x1f1] sm:$0xff]
        %v1978 = vpack.c.bf16 %v1946, %v1946
        %v1979 = vpack.c.bf16 %v1947, %v1947
        %v1980 = vpack.c.bf16 %v1948, %v1948
        %v1981 = vpack.c.bf16 %v1949, %v1949
        %v1982 = vpack.c.bf16 %v1950, %v1950
        %v1983 = vpack.c.bf16 %v1951, %v1951
        %v1984 = vpack.c.bf16 %v1952, %v1952
        %v1985 = vpack.c.bf16 %v1953, %v1953
        %v1986 = vpack.c.bf16 %v1954, %v1954
        %v1987 = vpack.c.bf16 %v1955, %v1955
        %v1988 = vpack.c.bf16 %v1956, %v1956
        %v1989 = vpack.c.bf16 %v1957, %v1957
        %v1990 = vpack.c.bf16 %v1958, %v1958
        %v1991 = vpack.c.bf16 %v1959, %v1959
        %v1992 = vpack.c.bf16 %v1960, %v1960
        %v1993 = vpack.c.bf16 %v1961, %v1961
        %v1994 = vpack.c.bf16 %v1962, %v1962
        %v1995 = vpack.c.bf16 %v1963, %v1963
        %v1996 = vpack.c.bf16 %v1964, %v1964
        %v1997 = vpack.c.bf16 %v1965, %v1965
        %v1998 = vpack.c.bf16 %v1966, %v1966
        %v1999 = vpack.c.bf16 %v1967, %v1967
        %v2000 = vpack.c.bf16 %v1968, %v1968
        %v2001 = vpack.c.bf16 %v1969, %v1969
        %v2002 = vpack.c.bf16 %v1970, %v1970
        %v2003 = vpack.c.bf16 %v1971, %v1971
        %v2004 = vpack.c.bf16 %v1972, %v1972
        %v2005 = vpack.c.bf16 %v1973, %v1973
        %v2006 = vpack.c.bf16 %v1974, %v1974
        %v2007 = vpack.c.bf16 %v1975, %v1975
        %v2008 = vpack.c.bf16 %v1976, %v1976
        %v2009 = vpack.c.bf16 %v1977, %v1977
        %v2042 = vunpack.c.l.b16 %v1850
        %v2043 = vunpack.c.l.b16 %v1851
        %v2044 = vunpack.c.l.b16 %v1852
        %v2045 = vunpack.c.l.b16 %v1853
        %v2046 = vunpack.c.l.b16 %v1854
        %v2047 = vunpack.c.l.b16 %v1855
        %v2048 = vunpack.c.l.b16 %v1856
        %v2049 = vunpack.c.l.b16 %v1857
        %v2050 = vunpack.c.l.b16 %v1858
        %v2051 = vunpack.c.l.b16 %v1859
        %v2052 = vunpack.c.l.b16 %v1860
        %v2053 = vunpack.c.l.b16 %v1861
        %v2054 = vunpack.c.l.b16 %v1862
        %v2055 = vunpack.c.l.b16 %v1863
        %v2056 = vunpack.c.l.b16 %v1864
        %v2057 = vunpack.c.l.b16 %v1865
        %v2058 = vunpack.c.l.b16 %v1866
        %v2059 = vunpack.c.l.b16 %v1867
        %v2060 = vunpack.c.l.b16 %v1868
        %v2061 = vunpack.c.l.b16 %v1869
        %v2062 = vunpack.c.l.b16 %v1870
        %v2063 = vunpack.c.l.b16 %v1871
        %v2064 = vunpack.c.l.b16 %v1872
        %v2065 = vunpack.c.l.b16 %v1873
        %v2066 = vunpack.c.l.b16 %v1874
        %v2067 = vunpack.c.l.b16 %v1875
        %v2068 = vunpack.c.l.b16 %v1876
        %v2069 = vunpack.c.l.b16 %v1877
        %v2070 = vunpack.c.l.b16 %v1878
        %v2071 = vunpack.c.l.b16 %v1879
        %v2072 = vunpack.c.l.b16 %v1880
        %v2073 = vunpack.c.l.b16 %v1881
        %v2074 = vpack.c.b16 %v2043, %v2042
        %v2075 = vpack.c.b16 %v2045, %v2044
        %v2076 = vpack.c.b16 %v2047, %v2046
        %v2077 = vpack.c.b16 %v2049, %v2048
        %v2078 = vpack.c.b16 %v2051, %v2050
        %v2079 = vpack.c.b16 %v2053, %v2052
        %v2080 = vpack.c.b16 %v2055, %v2054
        %v2081 = vpack.c.b16 %v2057, %v2056
        %v2082 = vpack.c.b16 %v2059, %v2058
        %v2083 = vpack.c.b16 %v2061, %v2060
        %v2084 = vpack.c.b16 %v2063, %v2062
        %v2085 = vpack.c.b16 %v2065, %v2064
        %v2086 = vpack.c.b16 %v2067, %v2066
        %v2087 = vpack.c.b16 %v2069, %v2068
        %v2088 = vpack.c.b16 %v2071, %v2070
        %v2089 = vpack.c.b16 %v2073, %v2072
        %v2122 = vunpack.c.l.b16 %v1914
        %v2123 = vunpack.c.l.b16 %v1915
        %v2124 = vunpack.c.l.b16 %v1916
        %v2125 = vunpack.c.l.b16 %v1917
        %v2126 = vunpack.c.l.b16 %v1918
        %v2127 = vunpack.c.l.b16 %v1919
        %v2128 = vunpack.c.l.b16 %v1920
        %v2129 = vunpack.c.l.b16 %v1921
        %v2130 = vunpack.c.l.b16 %v1922
        %v2131 = vunpack.c.l.b16 %v1923
        %v2132 = vunpack.c.l.b16 %v1924
        %v2133 = vunpack.c.l.b16 %v1925
        %v2134 = vunpack.c.l.b16 %v1926
        %v2135 = vunpack.c.l.b16 %v1927
        %v2136 = vunpack.c.l.b16 %v1928
        %v2137 = vunpack.c.l.b16 %v1929
        %v2138 = vunpack.c.l.b16 %v1930
        %v2139 = vunpack.c.l.b16 %v1931
        %v2140 = vunpack.c.l.b16 %v1932
        %v2141 = vunpack.c.l.b16 %v1933
        %v2142 = vunpack.c.l.b16 %v1934
        %v2143 = vunpack.c.l.b16 %v1935
        %v2144 = vunpack.c.l.b16 %v1936
        %v2145 = vunpack.c.l.b16 %v1937
        %v2146 = vunpack.c.l.b16 %v1938
        %v2147 = vunpack.c.l.b16 %v1939
        %v2148 = vunpack.c.l.b16 %v1940
        %v2149 = vunpack.c.l.b16 %v1941
        %v2150 = vunpack.c.l.b16 %v1942
        %v2151 = vunpack.c.l.b16 %v1943
        %v2152 = vunpack.c.l.b16 %v1944
        %v2153 = vunpack.c.l.b16 %v1945
        %v2154 = vpack.c.b16 %v2123, %v2122
        %v2155 = vpack.c.b16 %v2125, %v2124
        %v2156 = vpack.c.b16 %v2127, %v2126
        %v2157 = vpack.c.b16 %v2129, %v2128
        %v2158 = vpack.c.b16 %v2131, %v2130
        %v2159 = vpack.c.b16 %v2133, %v2132
        %v2160 = vpack.c.b16 %v2135, %v2134
        %v2161 = vpack.c.b16 %v2137, %v2136
        %v2162 = vpack.c.b16 %v2139, %v2138
        %v2163 = vpack.c.b16 %v2141, %v2140
        %v2164 = vpack.c.b16 %v2143, %v2142
        %v2165 = vpack.c.b16 %v2145, %v2144
        %v2166 = vpack.c.b16 %v2147, %v2146
        %v2167 = vpack.c.b16 %v2149, %v2148
        %v2168 = vpack.c.b16 %v2151, %v2150
        %v2169 = vpack.c.b16 %v2153, %v2152
        %2170 = vrot.lane.b32.xlu0 %v2154, 32
        %v2171 = vpop.permute.xlu0 %2170
        %2172 = vrot.lane.b32.xlu0 %v2155, 32
        %v2173 = vpop.permute.xlu0 %2172
        %2174 = vrot.lane.b32.xlu0 %v2156, 32
        %v2175 = vpop.permute.xlu0 %2174
        %2176 = vrot.lane.b32.xlu0 %v2157, 32
        %v2177 = vpop.permute.xlu0 %2176
        %2178 = vrot.lane.b32.xlu0 %v2158, 32
        %v2179 = vpop.permute.xlu0 %2178
        %2180 = vrot.lane.b32.xlu0 %v2159, 32
        %v2181 = vpop.permute.xlu0 %2180
        %2182 = vrot.lane.b32.xlu0 %v2160, 32
        %v2183 = vpop.permute.xlu0 %2182
        %2184 = vrot.lane.b32.xlu0 %v2161, 32
        %v2185 = vpop.permute.xlu0 %2184
        %2186 = vrot.lane.b32.xlu0 %v2162, 32
        %v2187 = vpop.permute.xlu0 %2186
        %2188 = vrot.lane.b32.xlu0 %v2163, 32
        %v2189 = vpop.permute.xlu0 %2188
        %2190 = vrot.lane.b32.xlu0 %v2164, 32
        %v2191 = vpop.permute.xlu0 %2190
        %2192 = vrot.lane.b32.xlu0 %v2165, 32
        %v2193 = vpop.permute.xlu0 %2192
        %2194 = vrot.lane.b32.xlu0 %v2166, 32
        %v2195 = vpop.permute.xlu0 %2194
        %2196 = vrot.lane.b32.xlu0 %v2167, 32
        %v2197 = vpop.permute.xlu0 %2196
        %2198 = vrot.lane.b32.xlu0 %v2168, 32
        %v2199 = vpop.permute.xlu0 %2198
        %2200 = vrot.lane.b32.xlu0 %v2169, 32
        %v2201 = vpop.permute.xlu0 %2200
        %v2234 = vunpack.c.l.b16 %v1978
        %v2235 = vunpack.c.l.b16 %v1979
        %v2236 = vunpack.c.l.b16 %v1980
        %v2237 = vunpack.c.l.b16 %v1981
        %v2238 = vunpack.c.l.b16 %v1982
        %v2239 = vunpack.c.l.b16 %v1983
        %v2240 = vunpack.c.l.b16 %v1984
        %v2241 = vunpack.c.l.b16 %v1985
        %v2242 = vunpack.c.l.b16 %v1986
        %v2243 = vunpack.c.l.b16 %v1987
        %v2244 = vunpack.c.l.b16 %v1988
        %v2245 = vunpack.c.l.b16 %v1989
        %v2246 = vunpack.c.l.b16 %v1990
        %v2247 = vunpack.c.l.b16 %v1991
        %v2248 = vunpack.c.l.b16 %v1992
        %v2249 = vunpack.c.l.b16 %v1993
        %v2250 = vunpack.c.l.b16 %v1994
        %v2251 = vunpack.c.l.b16 %v1995
        %v2252 = vunpack.c.l.b16 %v1996
        %v2253 = vunpack.c.l.b16 %v1997
        %v2254 = vunpack.c.l.b16 %v1998
        %v2255 = vunpack.c.l.b16 %v1999
        %v2256 = vunpack.c.l.b16 %v2000
        %v2257 = vunpack.c.l.b16 %v2001
        %v2258 = vunpack.c.l.b16 %v2002
        %v2259 = vunpack.c.l.b16 %v2003
        %v2260 = vunpack.c.l.b16 %v2004
        %v2261 = vunpack.c.l.b16 %v2005
        %v2262 = vunpack.c.l.b16 %v2006
        %v2263 = vunpack.c.l.b16 %v2007
        %v2264 = vunpack.c.l.b16 %v2008
        %v2265 = vunpack.c.l.b16 %v2009
        %v2266 = vpack.c.b16 %v2235, %v2234
        %v2267 = vpack.c.b16 %v2237, %v2236
        %v2268 = vpack.c.b16 %v2239, %v2238
        %v2269 = vpack.c.b16 %v2241, %v2240
        %v2270 = vpack.c.b16 %v2243, %v2242
        %v2271 = vpack.c.b16 %v2245, %v2244
        %v2272 = vpack.c.b16 %v2247, %v2246
        %v2273 = vpack.c.b16 %v2249, %v2248
        %v2274 = vpack.c.b16 %v2251, %v2250
        %v2275 = vpack.c.b16 %v2253, %v2252
        %v2276 = vpack.c.b16 %v2255, %v2254
        %v2277 = vpack.c.b16 %v2257, %v2256
        %v2278 = vpack.c.b16 %v2259, %v2258
        %v2279 = vpack.c.b16 %v2261, %v2260
        %v2280 = vpack.c.b16 %v2263, %v2262
        %v2281 = vpack.c.b16 %v2265, %v2264
        %2282 = vrot.lane.b32.xlu0 %v2266, 64
        %v2283 = vpop.permute.xlu0 %2282
        %2284 = vrot.lane.b32.xlu0 %v2267, 64
        %v2285 = vpop.permute.xlu0 %2284
        %2286 = vrot.lane.b32.xlu0 %v2268, 64
        %v2287 = vpop.permute.xlu0 %2286
        %2288 = vrot.lane.b32.xlu0 %v2269, 64
        %v2289 = vpop.permute.xlu0 %2288
        %2290 = vrot.lane.b32.xlu0 %v2270, 64
        %v2291 = vpop.permute.xlu0 %2290
        %2292 = vrot.lane.b32.xlu0 %v2271, 64
        %v2293 = vpop.permute.xlu0 %2292
        %2294 = vrot.lane.b32.xlu0 %v2272, 64
        %v2295 = vpop.permute.xlu0 %2294
        %2296 = vrot.lane.b32.xlu0 %v2273, 64
        %v2297 = vpop.permute.xlu0 %2296
        %2298 = vrot.lane.b32.xlu0 %v2274, 64
        %v2299 = vpop.permute.xlu0 %2298
        %2300 = vrot.lane.b32.xlu0 %v2275, 64
        %v2301 = vpop.permute.xlu0 %2300
        %2302 = vrot.lane.b32.xlu0 %v2276, 64
        %v2303 = vpop.permute.xlu0 %2302
        %2304 = vrot.lane.b32.xlu0 %v2277, 64
        %v2305 = vpop.permute.xlu0 %2304
        %2306 = vrot.lane.b32.xlu0 %v2278, 64
        %v2307 = vpop.permute.xlu0 %2306
        %2308 = vrot.lane.b32.xlu0 %v2279, 64
        %v2309 = vpop.permute.xlu0 %2308
        %2310 = vrot.lane.b32.xlu0 %v2280, 64
        %v2311 = vpop.permute.xlu0 %2310
        %2312 = vrot.lane.b32.xlu0 %v2281, 64
        %v2313 = vpop.permute.xlu0 %2312
        %v2316 = vsel %vm467, %v2074, %v2171
        %v2319 = vsel %vm467, %v2075, %v2173
        %v2322 = vsel %vm467, %v2076, %v2175
        %v2325 = vsel %vm467, %v2077, %v2177
        %v2328 = vsel %vm467, %v2078, %v2179
        %v2331 = vsel %vm467, %v2079, %v2181
        %v2334 = vsel %vm467, %v2080, %v2183
        %v2337 = vsel %vm467, %v2081, %v2185
        %v2340 = vsel %vm467, %v2082, %v2187
        %v2343 = vsel %vm467, %v2083, %v2189
        %v2346 = vsel %vm467, %v2084, %v2191
        %v2349 = vsel %vm467, %v2085, %v2193
        %v2352 = vsel %vm467, %v2086, %v2195
        %v2355 = vsel %vm467, %v2087, %v2197
        %v2358 = vsel %vm467, %v2088, %v2199
        %v2361 = vsel %vm467, %v2089, %v2201
        %v2363 = vsel %vm1773, %v2316, %v2283
        %v2365 = vsel %vm1773, %v2319, %v2285
        %v2367 = vsel %vm1773, %v2322, %v2287
        %v2369 = vsel %vm1773, %v2325, %v2289
        %v2371 = vsel %vm1773, %v2328, %v2291
        %v2373 = vsel %vm1773, %v2331, %v2293
        %v2375 = vsel %vm1773, %v2334, %v2295
        %v2377 = vsel %vm1773, %v2337, %v2297
        %v2379 = vsel %vm1773, %v2340, %v2299
        %v2381 = vsel %vm1773, %v2343, %v2301
        %v2383 = vsel %vm1773, %v2346, %v2303
        %v2385 = vsel %vm1773, %v2349, %v2305
        %v2387 = vsel %vm1773, %v2352, %v2307
        %v2389 = vsel %vm1773, %v2355, %v2309
        %v2391 = vsel %vm1773, %v2358, %v2311
        %v2393 = vsel %vm1773, %v2361, %v2313
        %s2394 = scalar_lea.vmem %s6, 48
        %v2395 = vld [vmem:[%s2394] sm:$0xf]
        %v2396 = vld [vmem:[%s2394 + $0x4] sm:$0xf]
        %v2397 = vld [vmem:[%s2394 + $0x8] sm:$0xf]
        %v2398 = vld [vmem:[%s2394 + $0xc] sm:$0xf]
        %v2399 = vld [vmem:[%s2394 + $0x10] sm:$0xf]
        %v2400 = vld [vmem:[%s2394 + $0x14] sm:$0xf]
        %v2401 = vld [vmem:[%s2394 + $0x18] sm:$0xf]
        %v2402 = vld [vmem:[%s2394 + $0x1c] sm:$0xf]
        %v2403 = vld [vmem:[%s2394 + $0x20] sm:$0xf]
        %v2404 = vld [vmem:[%s2394 + $0x24] sm:$0xf]
        %v2405 = vld [vmem:[%s2394 + $0x28] sm:$0xf]
        %v2406 = vld [vmem:[%s2394 + $0x2c] sm:$0xf]
        %v2419 = vunpack.c.l.b16 %v2395
        %v2420 = vunpack.c.l.b16 %v2396
        %v2421 = vunpack.c.l.b16 %v2397
        %v2422 = vunpack.c.l.b16 %v2398
        %v2423 = vunpack.c.l.b16 %v2399
        %v2424 = vunpack.c.l.b16 %v2400
        %v2425 = vunpack.c.l.b16 %v2401
        %v2426 = vunpack.c.l.b16 %v2402
        %v2427 = vunpack.c.l.b16 %v2403
        %v2428 = vunpack.c.l.b16 %v2404
        %v2429 = vunpack.c.l.b16 %v2405
        %v2430 = vunpack.c.l.b16 %v2406
        %v2431 = vpack.c.b16 %v2420, %v2419
        %v2432 = vpack.c.b16 %v2422, %v2421
        %v2433 = vpack.c.b16 %v2424, %v2423
        %v2434 = vpack.c.b16 %v2426, %v2425
        %v2435 = vpack.c.b16 %v2428, %v2427
        %v2436 = vpack.c.b16 %v2430, %v2429
        %vm2443 = vcmask 785408
        %v2444 = vsel %vm2443, %v2363, 0
        %v2446 = vsel %vm2443, %v2365, 0
        %v2448 = vsel %vm2443, %v2367, 0
        %v2450 = vsel %vm2443, %v2369, 0
        %v2452 = vsel %vm2443, %v2371, 0
        %v2454 = vsel %vm2443, %v2373, 0
        %v2456 = vsel %vm2443, %v2375, 0
        %v2458 = vsel %vm2443, %v2377, 0
        %v2460 = vsel %vm2443, %v2379, 0
        %v2462 = vsel %vm2443, %v2381, 0
        %v2464 = vsel %vm2443, %v2383, 0
        %v2466 = vsel %vm2443, %v2385, 0
        %v2468 = vsel %vm2443, %v2387, 0
        %v2470 = vsel %vm2443, %v2389, 0
        %v2472 = vsel %vm2443, %v2391, 0
        %v2474 = vsel %vm2443, %v2393, 0
        %2476 = vmatpush.bf16.msra.mxu0 0
        %2477 = vmatpush.bf16.msra.mxu0 0
        %2478 = vmatpush.bf16.msra.mxu0 %v2436
        %2479 = vmatpush.bf16.msra.mxu0 %v2435
        %2480 = vmatpush.bf16.msra.mxu0 %v2434
        %2481 = vmatpush.bf16.msra.mxu0 %v2433
        %2482 = vmatpush.bf16.msra.mxu0 %v2432
        %2483 = vmatpush.bf16.msra.mxu0 %v2431
        %2484 = vmatmul.bf16.gmra.mxu0 %v2444
        %v2485 = vpop.f32.mrf.mxu0
        %v2486 = vadd.f32 0.0, %v2485
        %v2487 = vpop.f32.mrf.mxu0
        %v2488 = vadd.f32 0.0, %v2487
        %2489 = vmatmul.bf16.gmra.mxu0 %v2446
        %v2490 = vpop.f32.mrf.mxu0
        %v2491 = vadd.f32 0.0, %v2490
        %v2492 = vpop.f32.mrf.mxu0
        %v2493 = vadd.f32 0.0, %v2492
        %2494 = vmatmul.bf16.gmra.mxu0 %v2448
        %v2495 = vpop.f32.mrf.mxu0
        %v2496 = vadd.f32 0.0, %v2495
        %v2497 = vpop.f32.mrf.mxu0
        %v2498 = vadd.f32 0.0, %v2497
        %2499 = vmatmul.bf16.gmra.mxu0 %v2450
        %v2500 = vpop.f32.mrf.mxu0
        %v2501 = vadd.f32 0.0, %v2500
        %v2502 = vpop.f32.mrf.mxu0
        %v2503 = vadd.f32 0.0, %v2502
        %2504 = vmatmul.bf16.gmra.mxu0 %v2452
        %v2505 = vpop.f32.mrf.mxu0
        %v2506 = vadd.f32 0.0, %v2505
        %v2507 = vpop.f32.mrf.mxu0
        %v2508 = vadd.f32 0.0, %v2507
        %2509 = vmatmul.bf16.gmra.mxu0 %v2454
        %v2510 = vpop.f32.mrf.mxu0
        %v2511 = vadd.f32 0.0, %v2510
        %v2512 = vpop.f32.mrf.mxu0
        %v2513 = vadd.f32 0.0, %v2512
        %2514 = vmatmul.bf16.gmra.mxu0 %v2456
        %v2515 = vpop.f32.mrf.mxu0
        %v2516 = vadd.f32 0.0, %v2515
        %v2517 = vpop.f32.mrf.mxu0
        %v2518 = vadd.f32 0.0, %v2517
        %2519 = vmatmul.bf16.gmra.mxu0 %v2458
        %v2520 = vpop.f32.mrf.mxu0
        %v2521 = vadd.f32 0.0, %v2520
        %v2522 = vpop.f32.mrf.mxu0
        %v2523 = vadd.f32 0.0, %v2522
        %2524 = vmatmul.bf16.gmra.mxu0 %v2460
        %v2525 = vpop.f32.mrf.mxu0
        %v2526 = vadd.f32 0.0, %v2525
        %v2527 = vpop.f32.mrf.mxu0
        %v2528 = vadd.f32 0.0, %v2527
        %2529 = vmatmul.bf16.gmra.mxu0 %v2462
        %v2530 = vpop.f32.mrf.mxu0
        %v2531 = vadd.f32 0.0, %v2530
        %v2532 = vpop.f32.mrf.mxu0
        %v2533 = vadd.f32 0.0, %v2532
        %2534 = vmatmul.bf16.gmra.mxu0 %v2464
        %v2535 = vpop.f32.mrf.mxu0
        %v2536 = vadd.f32 0.0, %v2535
        %v2537 = vpop.f32.mrf.mxu0
        %v2538 = vadd.f32 0.0, %v2537
        %2539 = vmatmul.bf16.gmra.mxu0 %v2466
        %v2540 = vpop.f32.mrf.mxu0
        %v2541 = vadd.f32 0.0, %v2540
        %v2542 = vpop.f32.mrf.mxu0
        %v2543 = vadd.f32 0.0, %v2542
        %2544 = vmatmul.bf16.gmra.mxu0 %v2468
        %v2545 = vpop.f32.mrf.mxu0
        %v2546 = vadd.f32 0.0, %v2545
        %v2547 = vpop.f32.mrf.mxu0
        %v2548 = vadd.f32 0.0, %v2547
        %2549 = vmatmul.bf16.gmra.mxu0 %v2470
        %v2550 = vpop.f32.mrf.mxu0
        %v2551 = vadd.f32 0.0, %v2550
        %v2552 = vpop.f32.mrf.mxu0
        %v2553 = vadd.f32 0.0, %v2552
        %2554 = vmatmul.bf16.gmra.mxu0 %v2472
        %v2555 = vpop.f32.mrf.mxu0
        %v2556 = vadd.f32 0.0, %v2555
        %v2557 = vpop.f32.mrf.mxu0
        %v2558 = vadd.f32 0.0, %v2557
        %2559 = vmatmul.bf16.gmra.mxu0 %v2474
        %v2560 = vpop.f32.mrf.mxu0
        %v2561 = vadd.f32 0.0, %v2560
        %v2562 = vpop.f32.mrf.mxu0
        %v2563 = vadd.f32 0.0, %v2562
        %2564 = vdwg.mxu0
        %v2577 = vunpack.c.l.b16 %v1806
        %v2578 = vunpack.c.l.b16 %v1807
        %v2579 = vunpack.c.l.b16 %v1808
        %v2580 = vunpack.c.l.b16 %v1809
        %v2581 = vunpack.c.l.b16 %v1810
        %v2582 = vunpack.c.l.b16 %v1811
        %v2583 = vunpack.c.l.b16 %v1812
        %v2584 = vunpack.c.l.b16 %v1813
        %v2585 = vunpack.c.l.b16 %v1814
        %v2586 = vunpack.c.l.b16 %v1815
        %v2587 = vunpack.c.l.b16 %v1816
        %v2588 = vunpack.c.l.b16 %v1817
        %v2589 = vpack.c.b16 %v2578, %v2577
        %v2590 = vpack.c.b16 %v2580, %v2579
        %v2591 = vpack.c.b16 %v2582, %v2581
        %v2592 = vpack.c.b16 %v2584, %v2583
        %v2593 = vpack.c.b16 %v2586, %v2585
        %v2594 = vpack.c.b16 %v2588, %v2587
        %v2601 = vsel %vm2443, %v1775, 0
        %v2603 = vsel %vm2443, %v1777, 0
        %v2605 = vsel %vm2443, %v1779, 0
        %v2607 = vsel %vm2443, %v1781, 0
        %v2609 = vsel %vm2443, %v1783, 0
        %v2611 = vsel %vm2443, %v1785, 0
        %v2613 = vsel %vm2443, %v1787, 0
        %v2615 = vsel %vm2443, %v1789, 0
        %v2617 = vsel %vm2443, %v1791, 0
        %v2619 = vsel %vm2443, %v1793, 0
        %v2621 = vsel %vm2443, %v1795, 0
        %v2623 = vsel %vm2443, %v1797, 0
        %v2625 = vsel %vm2443, %v1799, 0
        %v2627 = vsel %vm2443, %v1801, 0
        %v2629 = vsel %vm2443, %v1803, 0
        %v2631 = vsel %vm2443, %v1805, 0
        %2633 = vmatpush.bf16.msra.mxu0 0
        %2634 = vmatpush.bf16.msra.mxu0 0
        %2635 = vmatpush.bf16.msra.mxu0 %v2594
        %2636 = vmatpush.bf16.msra.mxu0 %v2593
        %2637 = vmatpush.bf16.msra.mxu0 %v2592
        %2638 = vmatpush.bf16.msra.mxu0 %v2591
        %2639 = vmatpush.bf16.msra.mxu0 %v2590
        %2640 = vmatpush.bf16.msra.mxu0 %v2589
        %2641 = vmatmul.bf16.gmra.mxu0 %v2601
        %v2642 = vpop.f32.mrf.mxu0
        %v2643 = vadd.f32 %v2486, %v2642
        %v2644 = vpop.f32.mrf.mxu0
        %v2645 = vadd.f32 %v2488, %v2644
        %2646 = vmatmul.bf16.gmra.mxu0 %v2603
        %v2647 = vpop.f32.mrf.mxu0
        %v2648 = vadd.f32 %v2491, %v2647
        %v2649 = vpop.f32.mrf.mxu0
        %v2650 = vadd.f32 %v2493, %v2649
        %2651 = vmatmul.bf16.gmra.mxu0 %v2605
        %v2652 = vpop.f32.mrf.mxu0
        %v2653 = vadd.f32 %v2496, %v2652
        %v2654 = vpop.f32.mrf.mxu0
        %v2655 = vadd.f32 %v2498, %v2654
        %2656 = vmatmul.bf16.gmra.mxu0 %v2607
        %v2657 = vpop.f32.mrf.mxu0
        %v2658 = vadd.f32 %v2501, %v2657
        %v2659 = vpop.f32.mrf.mxu0
        %v2660 = vadd.f32 %v2503, %v2659
        %2661 = vmatmul.bf16.gmra.mxu0 %v2609
        %v2662 = vpop.f32.mrf.mxu0
        %v2663 = vadd.f32 %v2506, %v2662
        %v2664 = vpop.f32.mrf.mxu0
        %v2665 = vadd.f32 %v2508, %v2664
        %2666 = vmatmul.bf16.gmra.mxu0 %v2611
        %v2667 = vpop.f32.mrf.mxu0
        %v2668 = vadd.f32 %v2511, %v2667
        %v2669 = vpop.f32.mrf.mxu0
        %v2670 = vadd.f32 %v2513, %v2669
        %2671 = vmatmul.bf16.gmra.mxu0 %v2613
        %v2672 = vpop.f32.mrf.mxu0
        %v2673 = vadd.f32 %v2516, %v2672
        %v2674 = vpop.f32.mrf.mxu0
        %v2675 = vadd.f32 %v2518, %v2674
        %2676 = vmatmul.bf16.gmra.mxu0 %v2615
        %v2677 = vpop.f32.mrf.mxu0
        %v2678 = vadd.f32 %v2521, %v2677
        %v2679 = vpop.f32.mrf.mxu0
        %v2680 = vadd.f32 %v2523, %v2679
        %2681 = vmatmul.bf16.gmra.mxu0 %v2617
        %v2682 = vpop.f32.mrf.mxu0
        %v2683 = vadd.f32 %v2526, %v2682
        %v2684 = vpop.f32.mrf.mxu0
        %v2685 = vadd.f32 %v2528, %v2684
        %2686 = vmatmul.bf16.gmra.mxu0 %v2619
        %v2687 = vpop.f32.mrf.mxu0
        %v2688 = vadd.f32 %v2531, %v2687
        %v2689 = vpop.f32.mrf.mxu0
        %v2690 = vadd.f32 %v2533, %v2689
        %2691 = vmatmul.bf16.gmra.mxu0 %v2621
        %v2692 = vpop.f32.mrf.mxu0
        %v2693 = vadd.f32 %v2536, %v2692
        %v2694 = vpop.f32.mrf.mxu0
        %v2695 = vadd.f32 %v2538, %v2694
        %2696 = vmatmul.bf16.gmra.mxu0 %v2623
        %v2697 = vpop.f32.mrf.mxu0
        %v2698 = vadd.f32 %v2541, %v2697
        %v2699 = vpop.f32.mrf.mxu0
        %v2700 = vadd.f32 %v2543, %v2699
        %2701 = vmatmul.bf16.gmra.mxu0 %v2625
        %v2702 = vpop.f32.mrf.mxu0
        %v2703 = vadd.f32 %v2546, %v2702
        %v2704 = vpop.f32.mrf.mxu0
        %v2705 = vadd.f32 %v2548, %v2704
        %2706 = vmatmul.bf16.gmra.mxu0 %v2627
        %v2707 = vpop.f32.mrf.mxu0
        %v2708 = vadd.f32 %v2551, %v2707
        %v2709 = vpop.f32.mrf.mxu0
        %v2710 = vadd.f32 %v2553, %v2709
        %2711 = vmatmul.bf16.gmra.mxu0 %v2629
        %v2712 = vpop.f32.mrf.mxu0
        %v2713 = vadd.f32 %v2556, %v2712
        %v2714 = vpop.f32.mrf.mxu0
        %v2715 = vadd.f32 %v2558, %v2714
        %2716 = vmatmul.bf16.gmra.mxu0 %v2631
        %v2717 = vpop.f32.mrf.mxu0
        %v2718 = vadd.f32 %v2561, %v2717
        %v2719 = vpop.f32.mrf.mxu0
        %v2720 = vadd.f32 %v2563, %v2719
        %2721 = vdwg.mxu0
        %s2722 = scalar_lea.vmem [#allocation2], 64
        %v2723 = vld [vmem:[%s2722 + $0x7] sm:$0xff]
        %v2724 = vld [vmem:[%s2722 + $0xf] sm:$0xff]
        %v2725 = vld [vmem:[%s2722 + $0x27] sm:$0xff]
        %v2726 = vld [vmem:[%s2722 + $0x2f] sm:$0xff]
        %v2727 = vld [vmem:[%s2722 + $0x47] sm:$0xff]
        %v2728 = vld [vmem:[%s2722 + $0x4f] sm:$0xff]
        %v2729 = vld [vmem:[%s2722 + $0x67] sm:$0xff]
        %v2730 = vld [vmem:[%s2722 + $0x6f] sm:$0xff]
        %v2731 = vld [vmem:[%s2722 + $0x87] sm:$0xff]
        %v2732 = vld [vmem:[%s2722 + $0x8f] sm:$0xff]
        %v2733 = vld [vmem:[%s2722 + $0xa7] sm:$0xff]
        %v2734 = vld [vmem:[%s2722 + $0xaf] sm:$0xff]
        %v2735 = vld [vmem:[%s2722 + $0xc7] sm:$0xff]
        %v2736 = vld [vmem:[%s2722 + $0xcf] sm:$0xff]
        %v2737 = vld [vmem:[%s2722 + $0xe7] sm:$0xff]
        %v2738 = vld [vmem:[%s2722 + $0xef] sm:$0xff]
        %v2739 = vld [vmem:[%s2722 + $0x107] sm:$0xff]
        %v2740 = vld [vmem:[%s2722 + $0x10f] sm:$0xff]
        %v2741 = vld [vmem:[%s2722 + $0x127] sm:$0xff]
        %v2742 = vld [vmem:[%s2722 + $0x12f] sm:$0xff]
        %v2743 = vld [vmem:[%s2722 + $0x147] sm:$0xff]
        %v2744 = vld [vmem:[%s2722 + $0x14f] sm:$0xff]
        %v2745 = vld [vmem:[%s2722 + $0x167] sm:$0xff]
        %v2746 = vld [vmem:[%s2722 + $0x16f] sm:$0xff]
        %v2747 = vld [vmem:[%s2722 + $0x187] sm:$0xff]
        %v2748 = vld [vmem:[%s2722 + $0x18f] sm:$0xff]
        %v2749 = vld [vmem:[%s2722 + $0x1a7] sm:$0xff]
        %v2750 = vld [vmem:[%s2722 + $0x1af] sm:$0xff]
        %v2751 = vld [vmem:[%s2722 + $0x1c7] sm:$0xff]
        %v2752 = vld [vmem:[%s2722 + $0x1cf] sm:$0xff]
        %v2753 = vld [vmem:[%s2722 + $0x1e7] sm:$0xff]
        %v2754 = vld [vmem:[%s2722 + $0x1ef] sm:$0xff]
        %v2755 = vpack.c.bf16 %v2723, %v2723
        %v2756 = vpack.c.bf16 %v2724, %v2724
        %v2757 = vpack.c.bf16 %v2725, %v2725
        %v2758 = vpack.c.bf16 %v2726, %v2726
        %v2759 = vpack.c.bf16 %v2727, %v2727
        %v2760 = vpack.c.bf16 %v2728, %v2728
        %v2761 = vpack.c.bf16 %v2729, %v2729
        %v2762 = vpack.c.bf16 %v2730, %v2730
        %v2763 = vpack.c.bf16 %v2731, %v2731
        %v2764 = vpack.c.bf16 %v2732, %v2732
        %v2765 = vpack.c.bf16 %v2733, %v2733
        %v2766 = vpack.c.bf16 %v2734, %v2734
        %v2767 = vpack.c.bf16 %v2735, %v2735
        %v2768 = vpack.c.bf16 %v2736, %v2736
        %v2769 = vpack.c.bf16 %v2737, %v2737
        %v2770 = vpack.c.bf16 %v2738, %v2738
        %v2771 = vpack.c.bf16 %v2739, %v2739
        %v2772 = vpack.c.bf16 %v2740, %v2740
        %v2773 = vpack.c.bf16 %v2741, %v2741
        %v2774 = vpack.c.bf16 %v2742, %v2742
        %v2775 = vpack.c.bf16 %v2743, %v2743
        %v2776 = vpack.c.bf16 %v2744, %v2744
        %v2777 = vpack.c.bf16 %v2745, %v2745
        %v2778 = vpack.c.bf16 %v2746, %v2746
        %v2779 = vpack.c.bf16 %v2747, %v2747
        %v2780 = vpack.c.bf16 %v2748, %v2748
        %v2781 = vpack.c.bf16 %v2749, %v2749
        %v2782 = vpack.c.bf16 %v2750, %v2750
        %v2783 = vpack.c.bf16 %v2751, %v2751
        %v2784 = vpack.c.bf16 %v2752, %v2752
        %v2785 = vpack.c.bf16 %v2753, %v2753
        %v2786 = vpack.c.bf16 %v2754, %v2754
        %v2787 = vld [vmem:[%s2722 + $0x8] sm:$0xff]
        %v2788 = vld [vmem:[%s2722 + $0x10] sm:$0xff]
        %v2789 = vld [vmem:[%s2722 + $0x28] sm:$0xff]
        %v2790 = vld [vmem:[%s2722 + $0x30] sm:$0xff]
        %v2791 = vld [vmem:[%s2722 + $0x48] sm:$0xff]
        %v2792 = vld [vmem:[%s2722 + $0x50] sm:$0xff]
        %v2793 = vld [vmem:[%s2722 + $0x68] sm:$0xff]
        %v2794 = vld [vmem:[%s2722 + $0x70] sm:$0xff]
        %v2795 = vld [vmem:[%s2722 + $0x88] sm:$0xff]
        %v2796 = vld [vmem:[%s2722 + $0x90] sm:$0xff]
        %v2797 = vld [vmem:[%s2722 + $0xa8] sm:$0xff]
        %v2798 = vld [vmem:[%s2722 + $0xb0] sm:$0xff]
        %v2799 = vld [vmem:[%s2722 + $0xc8] sm:$0xff]
        %v2800 = vld [vmem:[%s2722 + $0xd0] sm:$0xff]
        %v2801 = vld [vmem:[%s2722 + $0xe8] sm:$0xff]
        %v2802 = vld [vmem:[%s2722 + $0xf0] sm:$0xff]
        %v2803 = vld [vmem:[%s2722 + $0x108] sm:$0xff]
        %v2804 = vld [vmem:[%s2722 + $0x110] sm:$0xff]
        %v2805 = vld [vmem:[%s2722 + $0x128] sm:$0xff]
        %v2806 = vld [vmem:[%s2722 + $0x130] sm:$0xff]
        %v2807 = vld [vmem:[%s2722 + $0x148] sm:$0xff]
        %v2808 = vld [vmem:[%s2722 + $0x150] sm:$0xff]
        %v2809 = vld [vmem:[%s2722 + $0x168] sm:$0xff]
        %v2810 = vld [vmem:[%s2722 + $0x170] sm:$0xff]
        %v2811 = vld [vmem:[%s2722 + $0x188] sm:$0xff]
        %v2812 = vld [vmem:[%s2722 + $0x190] sm:$0xff]
        %v2813 = vld [vmem:[%s2722 + $0x1a8] sm:$0xff]
        %v2814 = vld [vmem:[%s2722 + $0x1b0] sm:$0xff]
        %v2815 = vld [vmem:[%s2722 + $0x1c8] sm:$0xff]
        %v2816 = vld [vmem:[%s2722 + $0x1d0] sm:$0xff]
        %v2817 = vld [vmem:[%s2722 + $0x1e8] sm:$0xff]
        %v2818 = vld [vmem:[%s2722 + $0x1f0] sm:$0xff]
        %v2819 = vpack.c.bf16 %v2787, %v2787
        %v2820 = vpack.c.bf16 %v2788, %v2788
        %v2821 = vpack.c.bf16 %v2789, %v2789
        %v2822 = vpack.c.bf16 %v2790, %v2790
        %v2823 = vpack.c.bf16 %v2791, %v2791
        %v2824 = vpack.c.bf16 %v2792, %v2792
        %v2825 = vpack.c.bf16 %v2793, %v2793
        %v2826 = vpack.c.bf16 %v2794, %v2794
        %v2827 = vpack.c.bf16 %v2795, %v2795
        %v2828 = vpack.c.bf16 %v2796, %v2796
        %v2829 = vpack.c.bf16 %v2797, %v2797
        %v2830 = vpack.c.bf16 %v2798, %v2798
        %v2831 = vpack.c.bf16 %v2799, %v2799
        %v2832 = vpack.c.bf16 %v2800, %v2800
        %v2833 = vpack.c.bf16 %v2801, %v2801
        %v2834 = vpack.c.bf16 %v2802, %v2802
        %v2835 = vpack.c.bf16 %v2803, %v2803
        %v2836 = vpack.c.bf16 %v2804, %v2804
        %v2837 = vpack.c.bf16 %v2805, %v2805
        %v2838 = vpack.c.bf16 %v2806, %v2806
        %v2839 = vpack.c.bf16 %v2807, %v2807
        %v2840 = vpack.c.bf16 %v2808, %v2808
        %v2841 = vpack.c.bf16 %v2809, %v2809
        %v2842 = vpack.c.bf16 %v2810, %v2810
        %v2843 = vpack.c.bf16 %v2811, %v2811
        %v2844 = vpack.c.bf16 %v2812, %v2812
        %v2845 = vpack.c.bf16 %v2813, %v2813
        %v2846 = vpack.c.bf16 %v2814, %v2814
        %v2847 = vpack.c.bf16 %v2815, %v2815
        %v2848 = vpack.c.bf16 %v2816, %v2816
        %v2849 = vpack.c.bf16 %v2817, %v2817
        %v2850 = vpack.c.bf16 %v2818, %v2818
        %v2851 = vld [vmem:[%s2722 + $0x9] sm:$0xff]
        %v2852 = vld [vmem:[%s2722 + $0x11] sm:$0xff]
        %v2853 = vld [vmem:[%s2722 + $0x29] sm:$0xff]
        %v2854 = vld [vmem:[%s2722 + $0x31] sm:$0xff]
        %v2855 = vld [vmem:[%s2722 + $0x49] sm:$0xff]
        %v2856 = vld [vmem:[%s2722 + $0x51] sm:$0xff]
        %v2857 = vld [vmem:[%s2722 + $0x69] sm:$0xff]
        %v2858 = vld [vmem:[%s2722 + $0x71] sm:$0xff]
        %v2859 = vld [vmem:[%s2722 + $0x89] sm:$0xff]
        %v2860 = vld [vmem:[%s2722 + $0x91] sm:$0xff]
        %v2861 = vld [vmem:[%s2722 + $0xa9] sm:$0xff]
        %v2862 = vld [vmem:[%s2722 + $0xb1] sm:$0xff]
        %v2863 = vld [vmem:[%s2722 + $0xc9] sm:$0xff]
        %v2864 = vld [vmem:[%s2722 + $0xd1] sm:$0xff]
        %v2865 = vld [vmem:[%s2722 + $0xe9] sm:$0xff]
        %v2866 = vld [vmem:[%s2722 + $0xf1] sm:$0xff]
        %v2867 = vld [vmem:[%s2722 + $0x109] sm:$0xff]
        %v2868 = vld [vmem:[%s2722 + $0x111] sm:$0xff]
        %v2869 = vld [vmem:[%s2722 + $0x129] sm:$0xff]
        %v2870 = vld [vmem:[%s2722 + $0x131] sm:$0xff]
        %v2871 = vld [vmem:[%s2722 + $0x149] sm:$0xff]
        %v2872 = vld [vmem:[%s2722 + $0x151] sm:$0xff]
        %v2873 = vld [vmem:[%s2722 + $0x169] sm:$0xff]
        %v2874 = vld [vmem:[%s2722 + $0x171] sm:$0xff]
        %v2875 = vld [vmem:[%s2722 + $0x189] sm:$0xff]
        %v2876 = vld [vmem:[%s2722 + $0x191] sm:$0xff]
        %v2877 = vld [vmem:[%s2722 + $0x1a9] sm:$0xff]
        %v2878 = vld [vmem:[%s2722 + $0x1b1] sm:$0xff]
        %v2879 = vld [vmem:[%s2722 + $0x1c9] sm:$0xff]
        %v2880 = vld [vmem:[%s2722 + $0x1d1] sm:$0xff]
        %v2881 = vld [vmem:[%s2722 + $0x1e9] sm:$0xff]
        %v2882 = vld [vmem:[%s2722 + $0x1f1] sm:$0xff]
        %v2883 = vpack.c.bf16 %v2851, %v2851
        %v2884 = vpack.c.bf16 %v2852, %v2852
        %v2885 = vpack.c.bf16 %v2853, %v2853
        %v2886 = vpack.c.bf16 %v2854, %v2854
        %v2887 = vpack.c.bf16 %v2855, %v2855
        %v2888 = vpack.c.bf16 %v2856, %v2856
        %v2889 = vpack.c.bf16 %v2857, %v2857
        %v2890 = vpack.c.bf16 %v2858, %v2858
        %v2891 = vpack.c.bf16 %v2859, %v2859
        %v2892 = vpack.c.bf16 %v2860, %v2860
        %v2893 = vpack.c.bf16 %v2861, %v2861
        %v2894 = vpack.c.bf16 %v2862, %v2862
        %v2895 = vpack.c.bf16 %v2863, %v2863
        %v2896 = vpack.c.bf16 %v2864, %v2864
        %v2897 = vpack.c.bf16 %v2865, %v2865
        %v2898 = vpack.c.bf16 %v2866, %v2866
        %v2899 = vpack.c.bf16 %v2867, %v2867
        %v2900 = vpack.c.bf16 %v2868, %v2868
        %v2901 = vpack.c.bf16 %v2869, %v2869
        %v2902 = vpack.c.bf16 %v2870, %v2870
        %v2903 = vpack.c.bf16 %v2871, %v2871
        %v2904 = vpack.c.bf16 %v2872, %v2872
        %v2905 = vpack.c.bf16 %v2873, %v2873
        %v2906 = vpack.c.bf16 %v2874, %v2874
        %v2907 = vpack.c.bf16 %v2875, %v2875
        %v2908 = vpack.c.bf16 %v2876, %v2876
        %v2909 = vpack.c.bf16 %v2877, %v2877
        %v2910 = vpack.c.bf16 %v2878, %v2878
        %v2911 = vpack.c.bf16 %v2879, %v2879
        %v2912 = vpack.c.bf16 %v2880, %v2880
        %v2913 = vpack.c.bf16 %v2881, %v2881
        %v2914 = vpack.c.bf16 %v2882, %v2882
        %v2947 = vunpack.c.l.b16 %v2755
        %v2948 = vunpack.c.l.b16 %v2756
        %v2949 = vunpack.c.l.b16 %v2757
        %v2950 = vunpack.c.l.b16 %v2758
        %v2951 = vunpack.c.l.b16 %v2759
        %v2952 = vunpack.c.l.b16 %v2760
        %v2953 = vunpack.c.l.b16 %v2761
        %v2954 = vunpack.c.l.b16 %v2762
        %v2955 = vunpack.c.l.b16 %v2763
        %v2956 = vunpack.c.l.b16 %v2764
        %v2957 = vunpack.c.l.b16 %v2765
        %v2958 = vunpack.c.l.b16 %v2766
        %v2959 = vunpack.c.l.b16 %v2767
        %v2960 = vunpack.c.l.b16 %v2768
        %v2961 = vunpack.c.l.b16 %v2769
        %v2962 = vunpack.c.l.b16 %v2770
        %v2963 = vunpack.c.l.b16 %v2771
        %v2964 = vunpack.c.l.b16 %v2772
        %v2965 = vunpack.c.l.b16 %v2773
        %v2966 = vunpack.c.l.b16 %v2774
        %v2967 = vunpack.c.l.b16 %v2775
        %v2968 = vunpack.c.l.b16 %v2776
        %v2969 = vunpack.c.l.b16 %v2777
        %v2970 = vunpack.c.l.b16 %v2778
        %v2971 = vunpack.c.l.b16 %v2779
        %v2972 = vunpack.c.l.b16 %v2780
        %v2973 = vunpack.c.l.b16 %v2781
        %v2974 = vunpack.c.l.b16 %v2782
        %v2975 = vunpack.c.l.b16 %v2783
        %v2976 = vunpack.c.l.b16 %v2784
        %v2977 = vunpack.c.l.b16 %v2785
        %v2978 = vunpack.c.l.b16 %v2786
        %v2979 = vpack.c.b16 %v2948, %v2947
        %v2980 = vpack.c.b16 %v2950, %v2949
        %v2981 = vpack.c.b16 %v2952, %v2951
        %v2982 = vpack.c.b16 %v2954, %v2953
        %v2983 = vpack.c.b16 %v2956, %v2955
        %v2984 = vpack.c.b16 %v2958, %v2957
        %v2985 = vpack.c.b16 %v2960, %v2959
        %v2986 = vpack.c.b16 %v2962, %v2961
        %v2987 = vpack.c.b16 %v2964, %v2963
        %v2988 = vpack.c.b16 %v2966, %v2965
        %v2989 = vpack.c.b16 %v2968, %v2967
        %v2990 = vpack.c.b16 %v2970, %v2969
        %v2991 = vpack.c.b16 %v2972, %v2971
        %v2992 = vpack.c.b16 %v2974, %v2973
        %v2993 = vpack.c.b16 %v2976, %v2975
        %v2994 = vpack.c.b16 %v2978, %v2977
        %v3027 = vunpack.c.l.b16 %v2819
        %v3028 = vunpack.c.l.b16 %v2820
        %v3029 = vunpack.c.l.b16 %v2821
        %v3030 = vunpack.c.l.b16 %v2822
        %v3031 = vunpack.c.l.b16 %v2823
        %v3032 = vunpack.c.l.b16 %v2824
        %v3033 = vunpack.c.l.b16 %v2825
        %v3034 = vunpack.c.l.b16 %v2826
        %v3035 = vunpack.c.l.b16 %v2827
        %v3036 = vunpack.c.l.b16 %v2828
        %v3037 = vunpack.c.l.b16 %v2829
        %v3038 = vunpack.c.l.b16 %v2830
        %v3039 = vunpack.c.l.b16 %v2831
        %v3040 = vunpack.c.l.b16 %v2832
        %v3041 = vunpack.c.l.b16 %v2833
        %v3042 = vunpack.c.l.b16 %v2834
        %v3043 = vunpack.c.l.b16 %v2835
        %v3044 = vunpack.c.l.b16 %v2836
        %v3045 = vunpack.c.l.b16 %v2837
        %v3046 = vunpack.c.l.b16 %v2838
        %v3047 = vunpack.c.l.b16 %v2839
        %v3048 = vunpack.c.l.b16 %v2840
        %v3049 = vunpack.c.l.b16 %v2841
        %v3050 = vunpack.c.l.b16 %v2842
        %v3051 = vunpack.c.l.b16 %v2843
        %v3052 = vunpack.c.l.b16 %v2844
        %v3053 = vunpack.c.l.b16 %v2845
        %v3054 = vunpack.c.l.b16 %v2846
        %v3055 = vunpack.c.l.b16 %v2847
        %v3056 = vunpack.c.l.b16 %v2848
        %v3057 = vunpack.c.l.b16 %v2849
        %v3058 = vunpack.c.l.b16 %v2850
        %v3059 = vpack.c.b16 %v3028, %v3027
        %v3060 = vpack.c.b16 %v3030, %v3029
        %v3061 = vpack.c.b16 %v3032, %v3031
        %v3062 = vpack.c.b16 %v3034, %v3033
        %v3063 = vpack.c.b16 %v3036, %v3035
        %v3064 = vpack.c.b16 %v3038, %v3037
        %v3065 = vpack.c.b16 %v3040, %v3039
        %v3066 = vpack.c.b16 %v3042, %v3041
        %v3067 = vpack.c.b16 %v3044, %v3043
        %v3068 = vpack.c.b16 %v3046, %v3045
        %v3069 = vpack.c.b16 %v3048, %v3047
        %v3070 = vpack.c.b16 %v3050, %v3049
        %v3071 = vpack.c.b16 %v3052, %v3051
        %v3072 = vpack.c.b16 %v3054, %v3053
        %v3073 = vpack.c.b16 %v3056, %v3055
        %v3074 = vpack.c.b16 %v3058, %v3057
        %3075 = vrot.lane.b32.xlu0 %v3059, 32
        %v3076 = vpop.permute.xlu0 %3075
        %3077 = vrot.lane.b32.xlu0 %v3060, 32
        %v3078 = vpop.permute.xlu0 %3077
        %3079 = vrot.lane.b32.xlu0 %v3061, 32
        %v3080 = vpop.permute.xlu0 %3079
        %3081 = vrot.lane.b32.xlu0 %v3062, 32
        %v3082 = vpop.permute.xlu0 %3081
        %3083 = vrot.lane.b32.xlu0 %v3063, 32
        %v3084 = vpop.permute.xlu0 %3083
        %3085 = vrot.lane.b32.xlu0 %v3064, 32
        %v3086 = vpop.permute.xlu0 %3085
        %3087 = vrot.lane.b32.xlu0 %v3065, 32
        %v3088 = vpop.permute.xlu0 %3087
        %3089 = vrot.lane.b32.xlu0 %v3066, 32
        %v3090 = vpop.permute.xlu0 %3089
        %3091 = vrot.lane.b32.xlu0 %v3067, 32
        %v3092 = vpop.permute.xlu0 %3091
        %3093 = vrot.lane.b32.xlu0 %v3068, 32
        %v3094 = vpop.permute.xlu0 %3093
        %3095 = vrot.lane.b32.xlu0 %v3069, 32
        %v3096 = vpop.permute.xlu0 %3095
        %3097 = vrot.lane.b32.xlu0 %v3070, 32
        %v3098 = vpop.permute.xlu0 %3097
        %3099 = vrot.lane.b32.xlu0 %v3071, 32
        %v3100 = vpop.permute.xlu0 %3099
        %3101 = vrot.lane.b32.xlu0 %v3072, 32
        %v3102 = vpop.permute.xlu0 %3101
        %3103 = vrot.lane.b32.xlu0 %v3073, 32
        %v3104 = vpop.permute.xlu0 %3103
        %3105 = vrot.lane.b32.xlu0 %v3074, 32
        %v3106 = vpop.permute.xlu0 %3105
        %v3139 = vunpack.c.l.b16 %v2883
        %v3140 = vunpack.c.l.b16 %v2884
        %v3141 = vunpack.c.l.b16 %v2885
        %v3142 = vunpack.c.l.b16 %v2886
        %v3143 = vunpack.c.l.b16 %v2887
        %v3144 = vunpack.c.l.b16 %v2888
        %v3145 = vunpack.c.l.b16 %v2889
        %v3146 = vunpack.c.l.b16 %v2890
        %v3147 = vunpack.c.l.b16 %v2891
        %v3148 = vunpack.c.l.b16 %v2892
        %v3149 = vunpack.c.l.b16 %v2893
        %v3150 = vunpack.c.l.b16 %v2894
        %v3151 = vunpack.c.l.b16 %v2895
        %v3152 = vunpack.c.l.b16 %v2896
        %v3153 = vunpack.c.l.b16 %v2897
        %v3154 = vunpack.c.l.b16 %v2898
        %v3155 = vunpack.c.l.b16 %v2899
        %v3156 = vunpack.c.l.b16 %v2900
        %v3157 = vunpack.c.l.b16 %v2901
        %v3158 = vunpack.c.l.b16 %v2902
        %v3159 = vunpack.c.l.b16 %v2903
        %v3160 = vunpack.c.l.b16 %v2904
        %v3161 = vunpack.c.l.b16 %v2905
        %v3162 = vunpack.c.l.b16 %v2906
        %v3163 = vunpack.c.l.b16 %v2907
        %v3164 = vunpack.c.l.b16 %v2908
        %v3165 = vunpack.c.l.b16 %v2909
        %v3166 = vunpack.c.l.b16 %v2910
        %v3167 = vunpack.c.l.b16 %v2911
        %v3168 = vunpack.c.l.b16 %v2912
        %v3169 = vunpack.c.l.b16 %v2913
        %v3170 = vunpack.c.l.b16 %v2914
        %v3171 = vpack.c.b16 %v3140, %v3139
        %v3172 = vpack.c.b16 %v3142, %v3141
        %v3173 = vpack.c.b16 %v3144, %v3143
        %v3174 = vpack.c.b16 %v3146, %v3145
        %v3175 = vpack.c.b16 %v3148, %v3147
        %v3176 = vpack.c.b16 %v3150, %v3149
        %v3177 = vpack.c.b16 %v3152, %v3151
        %v3178 = vpack.c.b16 %v3154, %v3153
        %v3179 = vpack.c.b16 %v3156, %v3155
        %v3180 = vpack.c.b16 %v3158, %v3157
        %v3181 = vpack.c.b16 %v3160, %v3159
        %v3182 = vpack.c.b16 %v3162, %v3161
        %v3183 = vpack.c.b16 %v3164, %v3163
        %v3184 = vpack.c.b16 %v3166, %v3165
        %v3185 = vpack.c.b16 %v3168, %v3167
        %v3186 = vpack.c.b16 %v3170, %v3169
        %3187 = vrot.lane.b32.xlu0 %v3171, 64
        %v3188 = vpop.permute.xlu0 %3187
        %3189 = vrot.lane.b32.xlu0 %v3172, 64
        %v3190 = vpop.permute.xlu0 %3189
        %3191 = vrot.lane.b32.xlu0 %v3173, 64
        %v3192 = vpop.permute.xlu0 %3191
        %3193 = vrot.lane.b32.xlu0 %v3174, 64
        %v3194 = vpop.permute.xlu0 %3193
        %3195 = vrot.lane.b32.xlu0 %v3175, 64
        %v3196 = vpop.permute.xlu0 %3195
        %3197 = vrot.lane.b32.xlu0 %v3176, 64
        %v3198 = vpop.permute.xlu0 %3197
        %3199 = vrot.lane.b32.xlu0 %v3177, 64
        %v3200 = vpop.permute.xlu0 %3199
        %3201 = vrot.lane.b32.xlu0 %v3178, 64
        %v3202 = vpop.permute.xlu0 %3201
        %3203 = vrot.lane.b32.xlu0 %v3179, 64
        %v3204 = vpop.permute.xlu0 %3203
        %3205 = vrot.lane.b32.xlu0 %v3180, 64
        %v3206 = vpop.permute.xlu0 %3205
        %3207 = vrot.lane.b32.xlu0 %v3181, 64
        %v3208 = vpop.permute.xlu0 %3207
        %3209 = vrot.lane.b32.xlu0 %v3182, 64
        %v3210 = vpop.permute.xlu0 %3209
        %3211 = vrot.lane.b32.xlu0 %v3183, 64
        %v3212 = vpop.permute.xlu0 %3211
        %3213 = vrot.lane.b32.xlu0 %v3184, 64
        %v3214 = vpop.permute.xlu0 %3213
        %3215 = vrot.lane.b32.xlu0 %v3185, 64
        %v3216 = vpop.permute.xlu0 %3215
        %3217 = vrot.lane.b32.xlu0 %v3186, 64
        %v3218 = vpop.permute.xlu0 %3217
        %v3221 = vsel %vm467, %v2979, %v3076
        %v3224 = vsel %vm467, %v2980, %v3078
        %v3227 = vsel %vm467, %v2981, %v3080
        %v3230 = vsel %vm467, %v2982, %v3082
        %v3233 = vsel %vm467, %v2983, %v3084
        %v3236 = vsel %vm467, %v2984, %v3086
        %v3239 = vsel %vm467, %v2985, %v3088
        %v3242 = vsel %vm467, %v2986, %v3090
        %v3245 = vsel %vm467, %v2987, %v3092
        %v3248 = vsel %vm467, %v2988, %v3094
        %v3251 = vsel %vm467, %v2989, %v3096
        %v3254 = vsel %vm467, %v2990, %v3098
        %v3257 = vsel %vm467, %v2991, %v3100
        %v3260 = vsel %vm467, %v2992, %v3102
        %v3263 = vsel %vm467, %v2993, %v3104
        %v3266 = vsel %vm467, %v2994, %v3106
        %v3268 = vsel %vm1773, %v3221, %v3188
        %v3270 = vsel %vm1773, %v3224, %v3190
        %v3272 = vsel %vm1773, %v3227, %v3192
        %v3274 = vsel %vm1773, %v3230, %v3194
        %v3276 = vsel %vm1773, %v3233, %v3196
        %v3278 = vsel %vm1773, %v3236, %v3198
        %v3280 = vsel %vm1773, %v3239, %v3200
        %v3282 = vsel %vm1773, %v3242, %v3202
        %v3284 = vsel %vm1773, %v3245, %v3204
        %v3286 = vsel %vm1773, %v3248, %v3206
        %v3288 = vsel %vm1773, %v3251, %v3208
        %v3290 = vsel %vm1773, %v3254, %v3210
        %v3292 = vsel %vm1773, %v3257, %v3212
        %v3294 = vsel %vm1773, %v3260, %v3214
        %v3296 = vsel %vm1773, %v3263, %v3216
        %v3298 = vsel %vm1773, %v3266, %v3218
        %s3299 = scalar_lea.vmem %s6, 96
        %v3300 = vld [vmem:[%s3299] sm:$0xf]
        %v3301 = vld [vmem:[%s3299 + $0x4] sm:$0xf]
        %v3302 = vld [vmem:[%s3299 + $0x8] sm:$0xf]
        %v3303 = vld [vmem:[%s3299 + $0xc] sm:$0xf]
        %v3304 = vld [vmem:[%s3299 + $0x10] sm:$0xf]
        %v3305 = vld [vmem:[%s3299 + $0x14] sm:$0xf]
        %v3306 = vld [vmem:[%s3299 + $0x18] sm:$0xf]
        %v3307 = vld [vmem:[%s3299 + $0x1c] sm:$0xf]
        %v3308 = vld [vmem:[%s3299 + $0x20] sm:$0xf]
        %v3309 = vld [vmem:[%s3299 + $0x24] sm:$0xf]
        %v3310 = vld [vmem:[%s3299 + $0x28] sm:$0xf]
        %v3311 = vld [vmem:[%s3299 + $0x2c] sm:$0xf]
        %v3324 = vunpack.c.l.b16 %v3300
        %v3325 = vunpack.c.l.b16 %v3301
        %v3326 = vunpack.c.l.b16 %v3302
        %v3327 = vunpack.c.l.b16 %v3303
        %v3328 = vunpack.c.l.b16 %v3304
        %v3329 = vunpack.c.l.b16 %v3305
        %v3330 = vunpack.c.l.b16 %v3306
        %v3331 = vunpack.c.l.b16 %v3307
        %v3332 = vunpack.c.l.b16 %v3308
        %v3333 = vunpack.c.l.b16 %v3309
        %v3334 = vunpack.c.l.b16 %v3310
        %v3335 = vunpack.c.l.b16 %v3311
        %v3336 = vpack.c.b16 %v3325, %v3324
        %v3337 = vpack.c.b16 %v3327, %v3326
        %v3338 = vpack.c.b16 %v3329, %v3328
        %v3339 = vpack.c.b16 %v3331, %v3330
        %v3340 = vpack.c.b16 %v3333, %v3332
        %v3341 = vpack.c.b16 %v3335, %v3334
        %v3348 = vsel %vm2443, %v3268, 0
        %v3350 = vsel %vm2443, %v3270, 0
        %v3352 = vsel %vm2443, %v3272, 0
        %v3354 = vsel %vm2443, %v3274, 0
        %v3356 = vsel %vm2443, %v3276, 0
        %v3358 = vsel %vm2443, %v3278, 0
        %v3360 = vsel %vm2443, %v3280, 0
        %v3362 = vsel %vm2443, %v3282, 0
        %v3364 = vsel %vm2443, %v3284, 0
        %v3366 = vsel %vm2443, %v3286, 0
        %v3368 = vsel %vm2443, %v3288, 0
        %v3370 = vsel %vm2443, %v3290, 0
        %v3372 = vsel %vm2443, %v3292, 0
        %v3374 = vsel %vm2443, %v3294, 0
        %v3376 = vsel %vm2443, %v3296, 0
        %v3378 = vsel %vm2443, %v3298, 0
        %3380 = vmatpush.bf16.msra.mxu0 0
        %3381 = vmatpush.bf16.msra.mxu0 0
        %3382 = vmatpush.bf16.msra.mxu0 %v3341
        %3383 = vmatpush.bf16.msra.mxu0 %v3340
        %3384 = vmatpush.bf16.msra.mxu0 %v3339
        %3385 = vmatpush.bf16.msra.mxu0 %v3338
        %3386 = vmatpush.bf16.msra.mxu0 %v3337
        %3387 = vmatpush.bf16.msra.mxu0 %v3336
        %3388 = vmatmul.bf16.gmra.mxu0 %v3348
        %v3389 = vpop.f32.mrf.mxu0
        %v3390 = vadd.f32 0.0, %v3389
        %v3391 = vpop.f32.mrf.mxu0
        %v3392 = vadd.f32 0.0, %v3391
        %3393 = vmatmul.bf16.gmra.mxu0 %v3350
        %v3394 = vpop.f32.mrf.mxu0
        %v3395 = vadd.f32 0.0, %v3394
        %v3396 = vpop.f32.mrf.mxu0
        %v3397 = vadd.f32 0.0, %v3396
        %3398 = vmatmul.bf16.gmra.mxu0 %v3352
        %v3399 = vpop.f32.mrf.mxu0
        %v3400 = vadd.f32 0.0, %v3399
        %v3401 = vpop.f32.mrf.mxu0
        %v3402 = vadd.f32 0.0, %v3401
        %3403 = vmatmul.bf16.gmra.mxu0 %v3354
        %v3404 = vpop.f32.mrf.mxu0
        %v3405 = vadd.f32 0.0, %v3404
        %v3406 = vpop.f32.mrf.mxu0
        %v3407 = vadd.f32 0.0, %v3406
        %3408 = vmatmul.bf16.gmra.mxu0 %v3356
        %v3409 = vpop.f32.mrf.mxu0
        %v3410 = vadd.f32 0.0, %v3409
        %v3411 = vpop.f32.mrf.mxu0
        %v3412 = vadd.f32 0.0, %v3411
        %3413 = vmatmul.bf16.gmra.mxu0 %v3358
        %v3414 = vpop.f32.mrf.mxu0
        %v3415 = vadd.f32 0.0, %v3414
        %v3416 = vpop.f32.mrf.mxu0
        %v3417 = vadd.f32 0.0, %v3416
        %3418 = vmatmul.bf16.gmra.mxu0 %v3360
        %v3419 = vpop.f32.mrf.mxu0
        %v3420 = vadd.f32 0.0, %v3419
        %v3421 = vpop.f32.mrf.mxu0
        %v3422 = vadd.f32 0.0, %v3421
        %3423 = vmatmul.bf16.gmra.mxu0 %v3362
        %v3424 = vpop.f32.mrf.mxu0
        %v3425 = vadd.f32 0.0, %v3424
        %v3426 = vpop.f32.mrf.mxu0
        %v3427 = vadd.f32 0.0, %v3426
        %3428 = vmatmul.bf16.gmra.mxu0 %v3364
        %v3429 = vpop.f32.mrf.mxu0
        %v3430 = vadd.f32 0.0, %v3429
        %v3431 = vpop.f32.mrf.mxu0
        %v3432 = vadd.f32 0.0, %v3431
        %3433 = vmatmul.bf16.gmra.mxu0 %v3366
        %v3434 = vpop.f32.mrf.mxu0
        %v3435 = vadd.f32 0.0, %v3434
        %v3436 = vpop.f32.mrf.mxu0
        %v3437 = vadd.f32 0.0, %v3436
        %3438 = vmatmul.bf16.gmra.mxu0 %v3368
        %v3439 = vpop.f32.mrf.mxu0
        %v3440 = vadd.f32 0.0, %v3439
        %v3441 = vpop.f32.mrf.mxu0
        %v3442 = vadd.f32 0.0, %v3441
        %3443 = vmatmul.bf16.gmra.mxu0 %v3370
        %v3444 = vpop.f32.mrf.mxu0
        %v3445 = vadd.f32 0.0, %v3444
        %v3446 = vpop.f32.mrf.mxu0
        %v3447 = vadd.f32 0.0, %v3446
        %3448 = vmatmul.bf16.gmra.mxu0 %v3372
        %v3449 = vpop.f32.mrf.mxu0
        %v3450 = vadd.f32 0.0, %v3449
        %v3451 = vpop.f32.mrf.mxu0
        %v3452 = vadd.f32 0.0, %v3451
        %3453 = vmatmul.bf16.gmra.mxu0 %v3374
        %v3454 = vpop.f32.mrf.mxu0
        %v3455 = vadd.f32 0.0, %v3454
        %v3456 = vpop.f32.mrf.mxu0
        %v3457 = vadd.f32 0.0, %v3456
        %3458 = vmatmul.bf16.gmra.mxu0 %v3376
        %v3459 = vpop.f32.mrf.mxu0
        %v3460 = vadd.f32 0.0, %v3459
        %v3461 = vpop.f32.mrf.mxu0
        %v3462 = vadd.f32 0.0, %v3461
        %3463 = vmatmul.bf16.gmra.mxu0 %v3378
        %v3464 = vpop.f32.mrf.mxu0
        %v3465 = vadd.f32 0.0, %v3464
        %v3466 = vpop.f32.mrf.mxu0
        %v3467 = vadd.f32 0.0, %v3466
        %3468 = vdwg.mxu0
        %v3469 = vadd.f32 %v2643, %v3390
        %v3470 = vadd.f32 %v2645, %v3392
        %v3471 = vadd.f32 %v2648, %v3395
        %v3472 = vadd.f32 %v2650, %v3397
        %v3473 = vadd.f32 %v2653, %v3400
        %v3474 = vadd.f32 %v2655, %v3402
        %v3475 = vadd.f32 %v2658, %v3405
        %v3476 = vadd.f32 %v2660, %v3407
        %v3477 = vadd.f32 %v2663, %v3410
        %v3478 = vadd.f32 %v2665, %v3412
        %v3479 = vadd.f32 %v2668, %v3415
        %v3480 = vadd.f32 %v2670, %v3417
        %v3481 = vadd.f32 %v2673, %v3420
        %v3482 = vadd.f32 %v2675, %v3422
        %v3483 = vadd.f32 %v2678, %v3425
        %v3484 = vadd.f32 %v2680, %v3427
        %v3485 = vadd.f32 %v2683, %v3430
        %v3486 = vadd.f32 %v2685, %v3432
        %v3487 = vadd.f32 %v2688, %v3435
        %v3488 = vadd.f32 %v2690, %v3437
        %v3489 = vadd.f32 %v2693, %v3440
        %v3490 = vadd.f32 %v2695, %v3442
        %v3491 = vadd.f32 %v2698, %v3445
        %v3492 = vadd.f32 %v2700, %v3447
        %v3493 = vadd.f32 %v2703, %v3450
        %v3494 = vadd.f32 %v2705, %v3452
        %v3495 = vadd.f32 %v2708, %v3455
        %v3496 = vadd.f32 %v2710, %v3457
        %v3497 = vadd.f32 %v2713, %v3460
        %v3498 = vadd.f32 %v2715, %v3462
        %v3499 = vadd.f32 %v2718, %v3465
        %v3500 = vadd.f32 %v2720, %v3467
        %v3501 = vld [vmem:[%s7] sm:$0x1]
        %v3503 = vperm.slane %v3501, 0
        %v3505 = vadd.f32 %v3469, %v3503
        %v3506 = vadd.f32 %v3470, %v3503
        %v3507 = vadd.f32 %v3471, %v3503
        %v3508 = vadd.f32 %v3472, %v3503
        %v3509 = vadd.f32 %v3473, %v3503
        %v3510 = vadd.f32 %v3474, %v3503
        %v3511 = vadd.f32 %v3475, %v3503
        %v3512 = vadd.f32 %v3476, %v3503
        %v3513 = vadd.f32 %v3477, %v3503
        %v3514 = vadd.f32 %v3478, %v3503
        %v3515 = vadd.f32 %v3479, %v3503
        %v3516 = vadd.f32 %v3480, %v3503
        %v3517 = vadd.f32 %v3481, %v3503
        %v3518 = vadd.f32 %v3482, %v3503
        %v3519 = vadd.f32 %v3483, %v3503
        %v3520 = vadd.f32 %v3484, %v3503
        %v3521 = vadd.f32 %v3485, %v3503
        %v3522 = vadd.f32 %v3486, %v3503
        %v3523 = vadd.f32 %v3487, %v3503
        %v3524 = vadd.f32 %v3488, %v3503
        %v3525 = vadd.f32 %v3489, %v3503
        %v3526 = vadd.f32 %v3490, %v3503
        %v3527 = vadd.f32 %v3491, %v3503
        %v3528 = vadd.f32 %v3492, %v3503
        %v3529 = vadd.f32 %v3493, %v3503
        %v3530 = vadd.f32 %v3494, %v3503
        %v3531 = vadd.f32 %v3495, %v3503
        %v3532 = vadd.f32 %v3496, %v3503
        %v3533 = vadd.f32 %v3497, %v3503
        %v3534 = vadd.f32 %v3498, %v3503
        %v3535 = vadd.f32 %v3499, %v3503
        %v3536 = vadd.f32 %v3500, %v3503
        %v3537 = vsel %vm467, %v3505, 0.0
        %v3538 = vsel %vm467, %v3506, 0.0
        %v3539 = vadd.f32 %v3537, %v3538
        %v3540 = vsel %vm467, %v3507, 0.0
        %v3541 = vadd.f32 %v3539, %v3540
        %v3542 = vsel %vm467, %v3508, 0.0
        %v3543 = vadd.f32 %v3541, %v3542
        %v3544 = vsel %vm467, %v3509, 0.0
        %v3545 = vadd.f32 %v3543, %v3544
        %v3546 = vsel %vm467, %v3510, 0.0
        %v3547 = vadd.f32 %v3545, %v3546
        %v3548 = vsel %vm467, %v3511, 0.0
        %v3549 = vadd.f32 %v3547, %v3548
        %v3550 = vsel %vm467, %v3512, 0.0
        %v3551 = vadd.f32 %v3549, %v3550
        %v3552 = vsel %vm467, %v3513, 0.0
        %v3553 = vadd.f32 %v3551, %v3552
        %v3554 = vsel %vm467, %v3514, 0.0
        %v3555 = vadd.f32 %v3553, %v3554
        %v3556 = vsel %vm467, %v3515, 0.0
        %v3557 = vadd.f32 %v3555, %v3556
        %v3558 = vsel %vm467, %v3516, 0.0
        %v3559 = vadd.f32 %v3557, %v3558
        %v3560 = vsel %vm467, %v3517, 0.0
        %v3561 = vadd.f32 %v3559, %v3560
        %v3562 = vsel %vm467, %v3518, 0.0
        %v3563 = vadd.f32 %v3561, %v3562
        %v3564 = vsel %vm467, %v3519, 0.0
        %v3565 = vadd.f32 %v3563, %v3564
        %v3566 = vsel %vm467, %v3520, 0.0
        %v3567 = vadd.f32 %v3565, %v3566
        %v3568 = vsel %vm467, %v3521, 0.0
        %v3569 = vadd.f32 %v3567, %v3568
        %v3570 = vsel %vm467, %v3522, 0.0
        %v3571 = vadd.f32 %v3569, %v3570
        %v3572 = vsel %vm467, %v3523, 0.0
        %v3573 = vadd.f32 %v3571, %v3572
        %v3574 = vsel %vm467, %v3524, 0.0
        %v3575 = vadd.f32 %v3573, %v3574
        %v3576 = vsel %vm467, %v3525, 0.0
        %v3577 = vadd.f32 %v3575, %v3576
        %v3578 = vsel %vm467, %v3526, 0.0
        %v3579 = vadd.f32 %v3577, %v3578
        %v3580 = vsel %vm467, %v3527, 0.0
        %v3581 = vadd.f32 %v3579, %v3580
        %v3582 = vsel %vm467, %v3528, 0.0
        %v3583 = vadd.f32 %v3581, %v3582
        %v3584 = vsel %vm467, %v3529, 0.0
        %v3585 = vadd.f32 %v3583, %v3584
        %v3586 = vsel %vm467, %v3530, 0.0
        %v3587 = vadd.f32 %v3585, %v3586
        %v3588 = vsel %vm467, %v3531, 0.0
        %v3589 = vadd.f32 %v3587, %v3588
        %v3590 = vsel %vm467, %v3532, 0.0
        %v3591 = vadd.f32 %v3589, %v3590
        %v3592 = vsel %vm467, %v3533, 0.0
        %v3593 = vadd.f32 %v3591, %v3592
        %v3594 = vsel %vm467, %v3534, 0.0
        %v3595 = vadd.f32 %v3593, %v3594
        %v3596 = vsel %vm467, %v3535, 0.0
        %v3597 = vadd.f32 %v3595, %v3596
        %v3598 = vsel %vm467, %v3536, 0.0
        %v3599 = vadd.f32 %v3597, %v3598
        %v3600 = vrot.slane %v3599, 4
        %v3601 = vadd.f32 %v3599, %v3600
        %v3602 = vrot.slane %v3601, 2
        %v3603 = vadd.f32 %v3601, %v3602
        %v3604 = vrot.slane %v3603, 1
        %v3605 = vadd.f32 %v3603, %v3604
        %v3606 = vmul.f32 %v3505, %v3505
        %v3607 = vmul.f32 %v3506, %v3506
        %v3608 = vmul.f32 %v3507, %v3507
        %v3609 = vmul.f32 %v3508, %v3508
        %v3610 = vmul.f32 %v3509, %v3509
        %v3611 = vmul.f32 %v3510, %v3510
        %v3612 = vmul.f32 %v3511, %v3511
        %v3613 = vmul.f32 %v3512, %v3512
        %v3614 = vmul.f32 %v3513, %v3513
        %v3615 = vmul.f32 %v3514, %v3514
        %v3616 = vmul.f32 %v3515, %v3515
        %v3617 = vmul.f32 %v3516, %v3516
        %v3618 = vmul.f32 %v3517, %v3517
        %v3619 = vmul.f32 %v3518, %v3518
        %v3620 = vmul.f32 %v3519, %v3519
        %v3621 = vmul.f32 %v3520, %v3520
        %v3622 = vmul.f32 %v3521, %v3521
        %v3623 = vmul.f32 %v3522, %v3522
        %v3624 = vmul.f32 %v3523, %v3523
        %v3625 = vmul.f32 %v3524, %v3524
        %v3626 = vmul.f32 %v3525, %v3525
        %v3627 = vmul.f32 %v3526, %v3526
        %v3628 = vmul.f32 %v3527, %v3527
        %v3629 = vmul.f32 %v3528, %v3528
        %v3630 = vmul.f32 %v3529, %v3529
        %v3631 = vmul.f32 %v3530, %v3530
        %v3632 = vmul.f32 %v3531, %v3531
        %v3633 = vmul.f32 %v3532, %v3532
        %v3634 = vmul.f32 %v3533, %v3533
        %v3635 = vmul.f32 %v3534, %v3534
        %v3636 = vmul.f32 %v3535, %v3535
        %v3637 = vmul.f32 %v3536, %v3536
        %v3638 = vsel %vm467, %v3606, 0.0
        %v3639 = vsel %vm467, %v3607, 0.0
        %v3640 = vadd.f32 %v3638, %v3639
        %v3641 = vsel %vm467, %v3608, 0.0
        %v3642 = vadd.f32 %v3640, %v3641
        %v3643 = vsel %vm467, %v3609, 0.0
        %v3644 = vadd.f32 %v3642, %v3643
        %v3645 = vsel %vm467, %v3610, 0.0
        %v3646 = vadd.f32 %v3644, %v3645
        %v3647 = vsel %vm467, %v3611, 0.0
        %v3648 = vadd.f32 %v3646, %v3647
        %v3649 = vsel %vm467, %v3612, 0.0
        %v3650 = vadd.f32 %v3648, %v3649
        %v3651 = vsel %vm467, %v3613, 0.0
        %v3652 = vadd.f32 %v3650, %v3651
        %v3653 = vsel %vm467, %v3614, 0.0
        %v3654 = vadd.f32 %v3652, %v3653
        %v3655 = vsel %vm467, %v3615, 0.0
        %v3656 = vadd.f32 %v3654, %v3655
        %v3657 = vsel %vm467, %v3616, 0.0
        %v3658 = vadd.f32 %v3656, %v3657
        %v3659 = vsel %vm467, %v3617, 0.0
        %v3660 = vadd.f32 %v3658, %v3659
        %v3661 = vsel %vm467, %v3618, 0.0
        %v3662 = vadd.f32 %v3660, %v3661
        %v3663 = vsel %vm467, %v3619, 0.0
        %v3664 = vadd.f32 %v3662, %v3663
        %v3665 = vsel %vm467, %v3620, 0.0
        %v3666 = vadd.f32 %v3664, %v3665
        %v3667 = vsel %vm467, %v3621, 0.0
        %v3668 = vadd.f32 %v3666, %v3667
        %v3669 = vsel %vm467, %v3622, 0.0
        %v3670 = vadd.f32 %v3668, %v3669
        %v3671 = vsel %vm467, %v3623, 0.0
        %v3672 = vadd.f32 %v3670, %v3671
        %v3673 = vsel %vm467, %v3624, 0.0
        %v3674 = vadd.f32 %v3672, %v3673
        %v3675 = vsel %vm467, %v3625, 0.0
        %v3676 = vadd.f32 %v3674, %v3675
        %v3677 = vsel %vm467, %v3626, 0.0
        %v3678 = vadd.f32 %v3676, %v3677
        %v3679 = vsel %vm467, %v3627, 0.0
        %v3680 = vadd.f32 %v3678, %v3679
        %v3681 = vsel %vm467, %v3628, 0.0
        %v3682 = vadd.f32 %v3680, %v3681
        %v3683 = vsel %vm467, %v3629, 0.0
        %v3684 = vadd.f32 %v3682, %v3683
        %v3685 = vsel %vm467, %v3630, 0.0
        %v3686 = vadd.f32 %v3684, %v3685
        %v3687 = vsel %vm467, %v3631, 0.0
        %v3688 = vadd.f32 %v3686, %v3687
        %v3689 = vsel %vm467, %v3632, 0.0
        %v3690 = vadd.f32 %v3688, %v3689
        %v3691 = vsel %vm467, %v3633, 0.0
        %v3692 = vadd.f32 %v3690, %v3691
        %v3693 = vsel %vm467, %v3634, 0.0
        %v3694 = vadd.f32 %v3692, %v3693
        %v3695 = vsel %vm467, %v3635, 0.0
        %v3696 = vadd.f32 %v3694, %v3695
        %v3697 = vsel %vm467, %v3636, 0.0
        %v3698 = vadd.f32 %v3696, %v3697
        %v3699 = vsel %vm467, %v3637, 0.0
        %v3700 = vadd.f32 %v3698, %v3699
        %v3701 = vrot.slane %v3700, 4
        %v3702 = vadd.f32 %v3700, %v3701
        %v3703 = vrot.slane %v3702, 2
        %v3704 = vadd.f32 %v3702, %v3703
        %v3705 = vrot.slane %v3704, 1
        %v3706 = vadd.f32 %v3704, %v3705
        %v3707 = vld [vmem:[%s1] sm:$0xff]
        %v3708 = vld [vmem:[%s1 + $0x8] sm:$0xff]
        %v3709 = vld [vmem:[%s1 + $0x10] sm:$0xff]
        %v3710 = vld [vmem:[%s1 + $0x18] sm:$0xff]
        %v3712 = vsel %vm467, %v3605, 0
        %3714 = vmatpush.msra.mxu0 0.0
        %3715 = vmatpush.msra.mxu0 0.0
        %3716 = vmatpush.msra.mxu0 0.0
        %3717 = vmatpush.msra.mxu0 0.0
        %3718 = vmatpush.msra.mxu0 0.0
        %3719 = vmatpush.msra.mxu0 0.0
        %3720 = vmatpush.msra.mxu0 0.0
        %3721 = vmatpush.msra.mxu0 0.0
        %3722 = vmatpush.msra.mxu0 0.0
        %3723 = vmatpush.msra.mxu0 0.0
        %3724 = vmatpush.msra.mxu0 0.0
        %3725 = vmatpush.msra.mxu0 0.0
        %3726 = vmatpush.msra.mxu0 %v3710
        %3727 = vmatpush.msra.mxu0 %v3709
        %3728 = vmatpush.msra.mxu0 %v3708
        %3729 = vmatpush.msra.mxu0 %v3707
        %3730 = vmatmul.f32.gmra.mxu0 %v3712
        %v3731 = vpop.f32.mrf.mxu0
        %v3732 = vadd.f32 0.0, %v3731
        %3733 = vdwg.mxu0
        %v3735 = vsel %vm467, %v3706, 0
        %3737 = vmatpush.msra.mxu0 0.0
        %3738 = vmatpush.msra.mxu0 0.0
        %3739 = vmatpush.msra.mxu0 0.0
        %3740 = vmatpush.msra.mxu0 0.0
        %3741 = vmatpush.msra.mxu0 0.0
        %3742 = vmatpush.msra.mxu0 0.0
        %3743 = vmatpush.msra.mxu0 0.0
        %3744 = vmatpush.msra.mxu0 0.0
        %3745 = vmatpush.msra.mxu0 0.0
        %3746 = vmatpush.msra.mxu0 0.0
        %3747 = vmatpush.msra.mxu0 0.0
        %3748 = vmatpush.msra.mxu0 0.0
        %3749 = vmatpush.msra.mxu0 %v3710
        %3750 = vmatpush.msra.mxu0 %v3709
        %3751 = vmatpush.msra.mxu0 %v3708
        %3752 = vmatpush.msra.mxu0 %v3707
        %3753 = vmatmul.f32.gmra.mxu0 %v3735
        %v3754 = vpop.f32.mrf.mxu0
        %v3755 = vadd.f32 0.0, %v3754
        %3756 = vdwg.mxu0
        %v3757 = vmul.f32 %v3732, %v3732
        %v3758 = vsub.f32 %v3755, %v3757
        %v3759 = vadd.f32 %v3758, 1e-05
        %v3760 = vrsqrt.pop %v3759
        %v3761 = vmul.f32 %v3760, %v3759
        %v3762 = vmul.f32 %v3761, %v3760
        %v3763 = vmul.f32 0.5, %v3762
        %v3764 = vsub.f32 1.5, %v3763
        %v3765 = vmul.f32 %v3760, %v3764
        %vm3766 = vweird.f32 %v3759
        %vm3767 = vweird.f32 %v3760
        %vm3768 = vmor %vm3766, %vm3767
        %v3769 = vsel %vm3768, %v3760, %v3765
        %v3770 = vperm.slane %v3732, 0
        %v3771 = vsub.f32 %v3505, %v3770
        %v3772 = vsub.f32 %v3506, %v3770
        %v3773 = vsub.f32 %v3507, %v3770
        %v3774 = vsub.f32 %v3508, %v3770
        %v3775 = vsub.f32 %v3509, %v3770
        %v3776 = vsub.f32 %v3510, %v3770
        %v3777 = vsub.f32 %v3511, %v3770
        %v3778 = vsub.f32 %v3512, %v3770
        %v3779 = vsub.f32 %v3513, %v3770
        %v3780 = vsub.f32 %v3514, %v3770
        %v3781 = vsub.f32 %v3515, %v3770
        %v3782 = vsub.f32 %v3516, %v3770
        %v3783 = vsub.f32 %v3517, %v3770
        %v3784 = vsub.f32 %v3518, %v3770
        %v3785 = vsub.f32 %v3519, %v3770
        %v3786 = vsub.f32 %v3520, %v3770
        %v3787 = vsub.f32 %v3521, %v3770
        %v3788 = vsub.f32 %v3522, %v3770
        %v3789 = vsub.f32 %v3523, %v3770
        %v3790 = vsub.f32 %v3524, %v3770
        %v3791 = vsub.f32 %v3525, %v3770
        %v3792 = vsub.f32 %v3526, %v3770
        %v3793 = vsub.f32 %v3527, %v3770
        %v3794 = vsub.f32 %v3528, %v3770
        %v3795 = vsub.f32 %v3529, %v3770
        %v3796 = vsub.f32 %v3530, %v3770
        %v3797 = vsub.f32 %v3531, %v3770
        %v3798 = vsub.f32 %v3532, %v3770
        %v3799 = vsub.f32 %v3533, %v3770
        %v3800 = vsub.f32 %v3534, %v3770
        %v3801 = vsub.f32 %v3535, %v3770
        %v3802 = vsub.f32 %v3536, %v3770
        %v3803 = vld [vmem:[%s8] sm:$0x1]
        %v3804 = vmul.f32 %v3769, %v3803
        %v3805 = vperm.slane %v3804, 0
        %v3806 = vmul.f32 %v3771, %v3805
        %v3807 = vmul.f32 %v3772, %v3805
        %v3808 = vmul.f32 %v3773, %v3805
        %v3809 = vmul.f32 %v3774, %v3805
        %v3810 = vmul.f32 %v3775, %v3805
        %v3811 = vmul.f32 %v3776, %v3805
        %v3812 = vmul.f32 %v3777, %v3805
        %v3813 = vmul.f32 %v3778, %v3805
        %v3814 = vmul.f32 %v3779, %v3805
        %v3815 = vmul.f32 %v3780, %v3805
        %v3816 = vmul.f32 %v3781, %v3805
        %v3817 = vmul.f32 %v3782, %v3805
        %v3818 = vmul.f32 %v3783, %v3805
        %v3819 = vmul.f32 %v3784, %v3805
        %v3820 = vmul.f32 %v3785, %v3805
        %v3821 = vmul.f32 %v3786, %v3805
        %v3822 = vmul.f32 %v3787, %v3805
        %v3823 = vmul.f32 %v3788, %v3805
        %v3824 = vmul.f32 %v3789, %v3805
        %v3825 = vmul.f32 %v3790, %v3805
        %v3826 = vmul.f32 %v3791, %v3805
        %v3827 = vmul.f32 %v3792, %v3805
        %v3828 = vmul.f32 %v3793, %v3805
        %v3829 = vmul.f32 %v3794, %v3805
        %v3830 = vmul.f32 %v3795, %v3805
        %v3831 = vmul.f32 %v3796, %v3805
        %v3832 = vmul.f32 %v3797, %v3805
        %v3833 = vmul.f32 %v3798, %v3805
        %v3834 = vmul.f32 %v3799, %v3805
        %v3835 = vmul.f32 %v3800, %v3805
        %v3836 = vmul.f32 %v3801, %v3805
        %v3837 = vmul.f32 %v3802, %v3805
        %v3838 = vld [vmem:[%s9] sm:$0x1]
        %v3840 = vperm.slane %v3838, 0
        %v3842 = vadd.f32 %v3806, %v3840
        %v3843 = vadd.f32 %v3807, %v3840
        %v3844 = vadd.f32 %v3808, %v3840
        %v3845 = vadd.f32 %v3809, %v3840
        %v3846 = vadd.f32 %v3810, %v3840
        %v3847 = vadd.f32 %v3811, %v3840
        %v3848 = vadd.f32 %v3812, %v3840
        %v3849 = vadd.f32 %v3813, %v3840
        %v3850 = vadd.f32 %v3814, %v3840
        %v3851 = vadd.f32 %v3815, %v3840
        %v3852 = vadd.f32 %v3816, %v3840
        %v3853 = vadd.f32 %v3817, %v3840
        %v3854 = vadd.f32 %v3818, %v3840
        %v3855 = vadd.f32 %v3819, %v3840
        %v3856 = vadd.f32 %v3820, %v3840
        %v3857 = vadd.f32 %v3821, %v3840
        %v3858 = vadd.f32 %v3822, %v3840
        %v3859 = vadd.f32 %v3823, %v3840
        %v3860 = vadd.f32 %v3824, %v3840
        %v3861 = vadd.f32 %v3825, %v3840
        %v3862 = vadd.f32 %v3826, %v3840
        %v3863 = vadd.f32 %v3827, %v3840
        %v3864 = vadd.f32 %v3828, %v3840
        %v3865 = vadd.f32 %v3829, %v3840
        %v3866 = vadd.f32 %v3830, %v3840
        %v3867 = vadd.f32 %v3831, %v3840
        %v3868 = vadd.f32 %v3832, %v3840
        %v3869 = vadd.f32 %v3833, %v3840
        %v3870 = vadd.f32 %v3834, %v3840
        %v3871 = vadd.f32 %v3835, %v3840
        %v3872 = vadd.f32 %v3836, %v3840
        %v3873 = vadd.f32 %v3837, %v3840
        %v3874 = vmax.f32 %v3842, 0.0
        %v3875 = vmax.f32 %v3843, 0.0
        %v3876 = vmax.f32 %v3844, 0.0
        %v3877 = vmax.f32 %v3845, 0.0
        %v3878 = vmax.f32 %v3846, 0.0
        %v3879 = vmax.f32 %v3847, 0.0
        %v3880 = vmax.f32 %v3848, 0.0
        %v3881 = vmax.f32 %v3849, 0.0
        %v3882 = vmax.f32 %v3850, 0.0
        %v3883 = vmax.f32 %v3851, 0.0
        %v3884 = vmax.f32 %v3852, 0.0
        %v3885 = vmax.f32 %v3853, 0.0
        %v3886 = vmax.f32 %v3854, 0.0
        %v3887 = vmax.f32 %v3855, 0.0
        %v3888 = vmax.f32 %v3856, 0.0
        %v3889 = vmax.f32 %v3857, 0.0
        %v3890 = vmax.f32 %v3858, 0.0
        %v3891 = vmax.f32 %v3859, 0.0
        %v3892 = vmax.f32 %v3860, 0.0
        %v3893 = vmax.f32 %v3861, 0.0
        %v3894 = vmax.f32 %v3862, 0.0
        %v3895 = vmax.f32 %v3863, 0.0
        %v3896 = vmax.f32 %v3864, 0.0
        %v3897 = vmax.f32 %v3865, 0.0
        %v3898 = vmax.f32 %v3866, 0.0
        %v3899 = vmax.f32 %v3867, 0.0
        %v3900 = vmax.f32 %v3868, 0.0
        %v3901 = vmax.f32 %v3869, 0.0
        %v3902 = vmax.f32 %v3870, 0.0
        %v3903 = vmax.f32 %v3871, 0.0
        %v3904 = vmax.f32 %v3872, 0.0
        %v3905 = vmax.f32 %v3873, 0.0
        %3906 = vst.msk [vmem:[%s517 + $0x8] sm:$0xff] %vm467, %v3874
        %3907 = vst.msk [vmem:[%s517 + $0x10] sm:$0xff] %vm467, %v3875
        %3908 = vst.msk [vmem:[%s517 + $0x28] sm:$0xff] %vm467, %v3876
        %3909 = vst.msk [vmem:[%s517 + $0x30] sm:$0xff] %vm467, %v3877
        %3910 = vst.msk [vmem:[%s517 + $0x48] sm:$0xff] %vm467, %v3878
        %3911 = vst.msk [vmem:[%s517 + $0x50] sm:$0xff] %vm467, %v3879
        %3912 = vst.msk [vmem:[%s517 + $0x68] sm:$0xff] %vm467, %v3880
        %3913 = vst.msk [vmem:[%s517 + $0x70] sm:$0xff] %vm467, %v3881
        %3914 = vst.msk [vmem:[%s517 + $0x88] sm:$0xff] %vm467, %v3882
        %3915 = vst.msk [vmem:[%s517 + $0x90] sm:$0xff] %vm467, %v3883
        %3916 = vst.msk [vmem:[%s517 + $0xa8] sm:$0xff] %vm467, %v3884
        %3917 = vst.msk [vmem:[%s517 + $0xb0] sm:$0xff] %vm467, %v3885
        %3918 = vst.msk [vmem:[%s517 + $0xc8] sm:$0xff] %vm467, %v3886
        %3919 = vst.msk [vmem:[%s517 + $0xd0] sm:$0xff] %vm467, %v3887
        %3920 = vst.msk [vmem:[%s517 + $0xe8] sm:$0xff] %vm467, %v3888
        %3921 = vst.msk [vmem:[%s517 + $0xf0] sm:$0xff] %vm467, %v3889
        %3922 = vst.msk [vmem:[%s517 + $0x108] sm:$0xff] %vm467, %v3890
        %3923 = vst.msk [vmem:[%s517 + $0x110] sm:$0xff] %vm467, %v3891
        %3924 = vst.msk [vmem:[%s517 + $0x128] sm:$0xff] %vm467, %v3892
        %3925 = vst.msk [vmem:[%s517 + $0x130] sm:$0xff] %vm467, %v3893
        %3926 = vst.msk [vmem:[%s517 + $0x148] sm:$0xff] %vm467, %v3894
        %3927 = vst.msk [vmem:[%s517 + $0x150] sm:$0xff] %vm467, %v3895
        %3928 = vst.msk [vmem:[%s517 + $0x168] sm:$0xff] %vm467, %v3896
        %3929 = vst.msk [vmem:[%s517 + $0x170] sm:$0xff] %vm467, %v3897
        %3930 = vst.msk [vmem:[%s517 + $0x188] sm:$0xff] %vm467, %v3898
        %3931 = vst.msk [vmem:[%s517 + $0x190] sm:$0xff] %vm467, %v3899
        %3932 = vst.msk [vmem:[%s517 + $0x1a8] sm:$0xff] %vm467, %v3900
        %3933 = vst.msk [vmem:[%s517 + $0x1b0] sm:$0xff] %vm467, %v3901
        %3934 = vst.msk [vmem:[%s517 + $0x1c8] sm:$0xff] %vm467, %v3902
        %3935 = vst.msk [vmem:[%s517 + $0x1d0] sm:$0xff] %vm467, %v3903
        %3936 = vst.msk [vmem:[%s517 + $0x1e8] sm:$0xff] %vm467, %v3904
        %3937 = vst.msk [vmem:[%s517 + $0x1f0] sm:$0xff] %vm467, %v3905
        %v3938 = vld [vmem:[#allocation3 + $0x7] sm:$0xff]
        %v3939 = vld [vmem:[#allocation3 + $0xf] sm:$0xff]
        %v3940 = vld [vmem:[#allocation3 + $0x27] sm:$0xff]
        %v3941 = vld [vmem:[#allocation3 + $0x2f] sm:$0xff]
        %v3942 = vld [vmem:[#allocation3 + $0x47] sm:$0xff]
        %v3943 = vld [vmem:[#allocation3 + $0x4f] sm:$0xff]
        %v3944 = vld [vmem:[#allocation3 + $0x67] sm:$0xff]
        %v3945 = vld [vmem:[#allocation3 + $0x6f] sm:$0xff]
        %v3946 = vld [vmem:[#allocation3 + $0x87] sm:$0xff]
        %v3947 = vld [vmem:[#allocation3 + $0x8f] sm:$0xff]
        %v3948 = vld [vmem:[#allocation3 + $0xa7] sm:$0xff]
        %v3949 = vld [vmem:[#allocation3 + $0xaf] sm:$0xff]
        %v3950 = vld [vmem:[#allocation3 + $0xc7] sm:$0xff]
        %v3951 = vld [vmem:[#allocation3 + $0xcf] sm:$0xff]
        %v3952 = vld [vmem:[#allocation3 + $0xe7] sm:$0xff]
        %v3953 = vld [vmem:[#allocation3 + $0xef] sm:$0xff]
        %v3954 = vld [vmem:[#allocation3 + $0x107] sm:$0xff]
        %v3955 = vld [vmem:[#allocation3 + $0x10f] sm:$0xff]
        %v3956 = vld [vmem:[#allocation3 + $0x127] sm:$0xff]
        %v3957 = vld [vmem:[#allocation3 + $0x12f] sm:$0xff]
        %v3958 = vld [vmem:[#allocation3 + $0x147] sm:$0xff]
        %v3959 = vld [vmem:[#allocation3 + $0x14f] sm:$0xff]
        %v3960 = vld [vmem:[#allocation3 + $0x167] sm:$0xff]
        %v3961 = vld [vmem:[#allocation3 + $0x16f] sm:$0xff]
        %v3962 = vld [vmem:[#allocation3 + $0x187] sm:$0xff]
        %v3963 = vld [vmem:[#allocation3 + $0x18f] sm:$0xff]
        %v3964 = vld [vmem:[#allocation3 + $0x1a7] sm:$0xff]
        %v3965 = vld [vmem:[#allocation3 + $0x1af] sm:$0xff]
        %v3966 = vld [vmem:[#allocation3 + $0x1c7] sm:$0xff]
        %v3967 = vld [vmem:[#allocation3 + $0x1cf] sm:$0xff]
        %v3968 = vld [vmem:[#allocation3 + $0x1e7] sm:$0xff]
        %v3969 = vld [vmem:[#allocation3 + $0x1ef] sm:$0xff]
        %v3970 = vpack.c.bf16 %v3938, %v3938
        %v3971 = vpack.c.bf16 %v3939, %v3939
        %v3972 = vpack.c.bf16 %v3940, %v3940
        %v3973 = vpack.c.bf16 %v3941, %v3941
        %v3974 = vpack.c.bf16 %v3942, %v3942
        %v3975 = vpack.c.bf16 %v3943, %v3943
        %v3976 = vpack.c.bf16 %v3944, %v3944
        %v3977 = vpack.c.bf16 %v3945, %v3945
        %v3978 = vpack.c.bf16 %v3946, %v3946
        %v3979 = vpack.c.bf16 %v3947, %v3947
        %v3980 = vpack.c.bf16 %v3948, %v3948
        %v3981 = vpack.c.bf16 %v3949, %v3949
        %v3982 = vpack.c.bf16 %v3950, %v3950
        %v3983 = vpack.c.bf16 %v3951, %v3951
        %v3984 = vpack.c.bf16 %v3952, %v3952
        %v3985 = vpack.c.bf16 %v3953, %v3953
        %v3986 = vpack.c.bf16 %v3954, %v3954
        %v3987 = vpack.c.bf16 %v3955, %v3955
        %v3988 = vpack.c.bf16 %v3956, %v3956
        %v3989 = vpack.c.bf16 %v3957, %v3957
        %v3990 = vpack.c.bf16 %v3958, %v3958
        %v3991 = vpack.c.bf16 %v3959, %v3959
        %v3992 = vpack.c.bf16 %v3960, %v3960
        %v3993 = vpack.c.bf16 %v3961, %v3961
        %v3994 = vpack.c.bf16 %v3962, %v3962
        %v3995 = vpack.c.bf16 %v3963, %v3963
        %v3996 = vpack.c.bf16 %v3964, %v3964
        %v3997 = vpack.c.bf16 %v3965, %v3965
        %v3998 = vpack.c.bf16 %v3966, %v3966
        %v3999 = vpack.c.bf16 %v3967, %v3967
        %v4000 = vpack.c.bf16 %v3968, %v3968
        %v4001 = vpack.c.bf16 %v3969, %v3969
        %v4002 = vld [vmem:[#allocation3 + $0x8] sm:$0xff]
        %v4003 = vld [vmem:[#allocation3 + $0x10] sm:$0xff]
        %v4004 = vld [vmem:[#allocation3 + $0x28] sm:$0xff]
        %v4005 = vld [vmem:[#allocation3 + $0x30] sm:$0xff]
        %v4006 = vld [vmem:[#allocation3 + $0x48] sm:$0xff]
        %v4007 = vld [vmem:[#allocation3 + $0x50] sm:$0xff]
        %v4008 = vld [vmem:[#allocation3 + $0x68] sm:$0xff]
        %v4009 = vld [vmem:[#allocation3 + $0x70] sm:$0xff]
        %v4010 = vld [vmem:[#allocation3 + $0x88] sm:$0xff]
        %v4011 = vld [vmem:[#allocation3 + $0x90] sm:$0xff]
        %v4012 = vld [vmem:[#allocation3 + $0xa8] sm:$0xff]
        %v4013 = vld [vmem:[#allocation3 + $0xb0] sm:$0xff]
        %v4014 = vld [vmem:[#allocation3 + $0xc8] sm:$0xff]
        %v4015 = vld [vmem:[#allocation3 + $0xd0] sm:$0xff]
        %v4016 = vld [vmem:[#allocation3 + $0xe8] sm:$0xff]
        %v4017 = vld [vmem:[#allocation3 + $0xf0] sm:$0xff]
        %v4018 = vld [vmem:[#allocation3 + $0x108] sm:$0xff]
        %v4019 = vld [vmem:[#allocation3 + $0x110] sm:$0xff]
        %v4020 = vld [vmem:[#allocation3 + $0x128] sm:$0xff]
        %v4021 = vld [vmem:[#allocation3 + $0x130] sm:$0xff]
        %v4022 = vld [vmem:[#allocation3 + $0x148] sm:$0xff]
        %v4023 = vld [vmem:[#allocation3 + $0x150] sm:$0xff]
        %v4024 = vld [vmem:[#allocation3 + $0x168] sm:$0xff]
        %v4025 = vld [vmem:[#allocation3 + $0x170] sm:$0xff]
        %v4026 = vld [vmem:[#allocation3 + $0x188] sm:$0xff]
        %v4027 = vld [vmem:[#allocation3 + $0x190] sm:$0xff]
        %v4028 = vld [vmem:[#allocation3 + $0x1a8] sm:$0xff]
        %v4029 = vld [vmem:[#allocation3 + $0x1b0] sm:$0xff]
        %v4030 = vld [vmem:[#allocation3 + $0x1c8] sm:$0xff]
        %v4031 = vld [vmem:[#allocation3 + $0x1d0] sm:$0xff]
        %v4032 = vld [vmem:[#allocation3 + $0x1e8] sm:$0xff]
        %v4033 = vld [vmem:[#allocation3 + $0x1f0] sm:$0xff]
        %v4034 = vpack.c.bf16 %v4002, %v4002
        %v4035 = vpack.c.bf16 %v4003, %v4003
        %v4036 = vpack.c.bf16 %v4004, %v4004
        %v4037 = vpack.c.bf16 %v4005, %v4005
        %v4038 = vpack.c.bf16 %v4006, %v4006
        %v4039 = vpack.c.bf16 %v4007, %v4007
        %v4040 = vpack.c.bf16 %v4008, %v4008
        %v4041 = vpack.c.bf16 %v4009, %v4009
        %v4042 = vpack.c.bf16 %v4010, %v4010
        %v4043 = vpack.c.bf16 %v4011, %v4011
        %v4044 = vpack.c.bf16 %v4012, %v4012
        %v4045 = vpack.c.bf16 %v4013, %v4013
        %v4046 = vpack.c.bf16 %v4014, %v4014
        %v4047 = vpack.c.bf16 %v4015, %v4015
        %v4048 = vpack.c.bf16 %v4016, %v4016
        %v4049 = vpack.c.bf16 %v4017, %v4017
        %v4050 = vpack.c.bf16 %v4018, %v4018
        %v4051 = vpack.c.bf16 %v4019, %v4019
        %v4052 = vpack.c.bf16 %v4020, %v4020
        %v4053 = vpack.c.bf16 %v4021, %v4021
        %v4054 = vpack.c.bf16 %v4022, %v4022
        %v4055 = vpack.c.bf16 %v4023, %v4023
        %v4056 = vpack.c.bf16 %v4024, %v4024
        %v4057 = vpack.c.bf16 %v4025, %v4025
        %v4058 = vpack.c.bf16 %v4026, %v4026
        %v4059 = vpack.c.bf16 %v4027, %v4027
        %v4060 = vpack.c.bf16 %v4028, %v4028
        %v4061 = vpack.c.bf16 %v4029, %v4029
        %v4062 = vpack.c.bf16 %v4030, %v4030
        %v4063 = vpack.c.bf16 %v4031, %v4031
        %v4064 = vpack.c.bf16 %v4032, %v4032
        %v4065 = vpack.c.bf16 %v4033, %v4033
        %v4066 = vld [vmem:[#allocation3 + $0x9] sm:$0xff]
        %v4067 = vld [vmem:[#allocation3 + $0x11] sm:$0xff]
        %v4068 = vld [vmem:[#allocation3 + $0x29] sm:$0xff]
        %v4069 = vld [vmem:[#allocation3 + $0x31] sm:$0xff]
        %v4070 = vld [vmem:[#allocation3 + $0x49] sm:$0xff]
        %v4071 = vld [vmem:[#allocation3 + $0x51] sm:$0xff]
        %v4072 = vld [vmem:[#allocation3 + $0x69] sm:$0xff]
        %v4073 = vld [vmem:[#allocation3 + $0x71] sm:$0xff]
        %v4074 = vld [vmem:[#allocation3 + $0x89] sm:$0xff]
        %v4075 = vld [vmem:[#allocation3 + $0x91] sm:$0xff]
        %v4076 = vld [vmem:[#allocation3 + $0xa9] sm:$0xff]
        %v4077 = vld [vmem:[#allocation3 + $0xb1] sm:$0xff]
        %v4078 = vld [vmem:[#allocation3 + $0xc9] sm:$0xff]
        %v4079 = vld [vmem:[#allocation3 + $0xd1] sm:$0xff]
        %v4080 = vld [vmem:[#allocation3 + $0xe9] sm:$0xff]
        %v4081 = vld [vmem:[#allocation3 + $0xf1] sm:$0xff]
        %v4082 = vld [vmem:[#allocation3 + $0x109] sm:$0xff]
        %v4083 = vld [vmem:[#allocation3 + $0x111] sm:$0xff]
        %v4084 = vld [vmem:[#allocation3 + $0x129] sm:$0xff]
        %v4085 = vld [vmem:[#allocation3 + $0x131] sm:$0xff]
        %v4086 = vld [vmem:[#allocation3 + $0x149] sm:$0xff]
        %v4087 = vld [vmem:[#allocation3 + $0x151] sm:$0xff]
        %v4088 = vld [vmem:[#allocation3 + $0x169] sm:$0xff]
        %v4089 = vld [vmem:[#allocation3 + $0x171] sm:$0xff]
        %v4090 = vld [vmem:[#allocation3 + $0x189] sm:$0xff]
        %v4091 = vld [vmem:[#allocation3 + $0x191] sm:$0xff]
        %v4092 = vld [vmem:[#allocation3 + $0x1a9] sm:$0xff]
        %v4093 = vld [vmem:[#allocation3 + $0x1b1] sm:$0xff]
        %v4094 = vld [vmem:[#allocation3 + $0x1c9] sm:$0xff]
        %v4095 = vld [vmem:[#allocation3 + $0x1d1] sm:$0xff]
        %v4096 = vld [vmem:[#allocation3 + $0x1e9] sm:$0xff]
        %v4097 = vld [vmem:[#allocation3 + $0x1f1] sm:$0xff]
        %v4098 = vpack.c.bf16 %v4066, %v4066
        %v4099 = vpack.c.bf16 %v4067, %v4067
        %v4100 = vpack.c.bf16 %v4068, %v4068
        %v4101 = vpack.c.bf16 %v4069, %v4069
        %v4102 = vpack.c.bf16 %v4070, %v4070
        %v4103 = vpack.c.bf16 %v4071, %v4071
        %v4104 = vpack.c.bf16 %v4072, %v4072
        %v4105 = vpack.c.bf16 %v4073, %v4073
        %v4106 = vpack.c.bf16 %v4074, %v4074
        %v4107 = vpack.c.bf16 %v4075, %v4075
        %v4108 = vpack.c.bf16 %v4076, %v4076
        %v4109 = vpack.c.bf16 %v4077, %v4077
        %v4110 = vpack.c.bf16 %v4078, %v4078
        %v4111 = vpack.c.bf16 %v4079, %v4079
        %v4112 = vpack.c.bf16 %v4080, %v4080
        %v4113 = vpack.c.bf16 %v4081, %v4081
        %v4114 = vpack.c.bf16 %v4082, %v4082
        %v4115 = vpack.c.bf16 %v4083, %v4083
        %v4116 = vpack.c.bf16 %v4084, %v4084
        %v4117 = vpack.c.bf16 %v4085, %v4085
        %v4118 = vpack.c.bf16 %v4086, %v4086
        %v4119 = vpack.c.bf16 %v4087, %v4087
        %v4120 = vpack.c.bf16 %v4088, %v4088
        %v4121 = vpack.c.bf16 %v4089, %v4089
        %v4122 = vpack.c.bf16 %v4090, %v4090
        %v4123 = vpack.c.bf16 %v4091, %v4091
        %v4124 = vpack.c.bf16 %v4092, %v4092
        %v4125 = vpack.c.bf16 %v4093, %v4093
        %v4126 = vpack.c.bf16 %v4094, %v4094
        %v4127 = vpack.c.bf16 %v4095, %v4095
        %v4128 = vpack.c.bf16 %v4096, %v4096
        %v4129 = vpack.c.bf16 %v4097, %v4097
        %v4162 = vunpack.c.l.b16 %v3970
        %v4163 = vunpack.c.l.b16 %v3971
        %v4164 = vunpack.c.l.b16 %v3972
        %v4165 = vunpack.c.l.b16 %v3973
        %v4166 = vunpack.c.l.b16 %v3974
        %v4167 = vunpack.c.l.b16 %v3975
        %v4168 = vunpack.c.l.b16 %v3976
        %v4169 = vunpack.c.l.b16 %v3977
        %v4170 = vunpack.c.l.b16 %v3978
        %v4171 = vunpack.c.l.b16 %v3979
        %v4172 = vunpack.c.l.b16 %v3980
        %v4173 = vunpack.c.l.b16 %v3981
        %v4174 = vunpack.c.l.b16 %v3982
        %v4175 = vunpack.c.l.b16 %v3983
        %v4176 = vunpack.c.l.b16 %v3984
        %v4177 = vunpack.c.l.b16 %v3985
        %v4178 = vunpack.c.l.b16 %v3986
        %v4179 = vunpack.c.l.b16 %v3987
        %v4180 = vunpack.c.l.b16 %v3988
        %v4181 = vunpack.c.l.b16 %v3989
        %v4182 = vunpack.c.l.b16 %v3990
        %v4183 = vunpack.c.l.b16 %v3991
        %v4184 = vunpack.c.l.b16 %v3992
        %v4185 = vunpack.c.l.b16 %v3993
        %v4186 = vunpack.c.l.b16 %v3994
        %v4187 = vunpack.c.l.b16 %v3995
        %v4188 = vunpack.c.l.b16 %v3996
        %v4189 = vunpack.c.l.b16 %v3997
        %v4190 = vunpack.c.l.b16 %v3998
        %v4191 = vunpack.c.l.b16 %v3999
        %v4192 = vunpack.c.l.b16 %v4000
        %v4193 = vunpack.c.l.b16 %v4001
        %v4194 = vpack.c.b16 %v4163, %v4162
        %v4195 = vpack.c.b16 %v4165, %v4164
        %v4196 = vpack.c.b16 %v4167, %v4166
        %v4197 = vpack.c.b16 %v4169, %v4168
        %v4198 = vpack.c.b16 %v4171, %v4170
        %v4199 = vpack.c.b16 %v4173, %v4172
        %v4200 = vpack.c.b16 %v4175, %v4174
        %v4201 = vpack.c.b16 %v4177, %v4176
        %v4202 = vpack.c.b16 %v4179, %v4178
        %v4203 = vpack.c.b16 %v4181, %v4180
        %v4204 = vpack.c.b16 %v4183, %v4182
        %v4205 = vpack.c.b16 %v4185, %v4184
        %v4206 = vpack.c.b16 %v4187, %v4186
        %v4207 = vpack.c.b16 %v4189, %v4188
        %v4208 = vpack.c.b16 %v4191, %v4190
        %v4209 = vpack.c.b16 %v4193, %v4192
        %v4242 = vunpack.c.l.b16 %v4034
        %v4243 = vunpack.c.l.b16 %v4035
        %v4244 = vunpack.c.l.b16 %v4036
        %v4245 = vunpack.c.l.b16 %v4037
        %v4246 = vunpack.c.l.b16 %v4038
        %v4247 = vunpack.c.l.b16 %v4039
        %v4248 = vunpack.c.l.b16 %v4040
        %v4249 = vunpack.c.l.b16 %v4041
        %v4250 = vunpack.c.l.b16 %v4042
        %v4251 = vunpack.c.l.b16 %v4043
        %v4252 = vunpack.c.l.b16 %v4044
        %v4253 = vunpack.c.l.b16 %v4045
        %v4254 = vunpack.c.l.b16 %v4046
        %v4255 = vunpack.c.l.b16 %v4047
        %v4256 = vunpack.c.l.b16 %v4048
        %v4257 = vunpack.c.l.b16 %v4049
        %v4258 = vunpack.c.l.b16 %v4050
        %v4259 = vunpack.c.l.b16 %v4051
        %v4260 = vunpack.c.l.b16 %v4052
        %v4261 = vunpack.c.l.b16 %v4053
        %v4262 = vunpack.c.l.b16 %v4054
        %v4263 = vunpack.c.l.b16 %v4055
        %v4264 = vunpack.c.l.b16 %v4056
        %v4265 = vunpack.c.l.b16 %v4057
        %v4266 = vunpack.c.l.b16 %v4058
        %v4267 = vunpack.c.l.b16 %v4059
        %v4268 = vunpack.c.l.b16 %v4060
        %v4269 = vunpack.c.l.b16 %v4061
        %v4270 = vunpack.c.l.b16 %v4062
        %v4271 = vunpack.c.l.b16 %v4063
        %v4272 = vunpack.c.l.b16 %v4064
        %v4273 = vunpack.c.l.b16 %v4065
        %v4274 = vpack.c.b16 %v4243, %v4242
        %v4275 = vpack.c.b16 %v4245, %v4244
        %v4276 = vpack.c.b16 %v4247, %v4246
        %v4277 = vpack.c.b16 %v4249, %v4248
        %v4278 = vpack.c.b16 %v4251, %v4250
        %v4279 = vpack.c.b16 %v4253, %v4252
        %v4280 = vpack.c.b16 %v4255, %v4254
        %v4281 = vpack.c.b16 %v4257, %v4256
        %v4282 = vpack.c.b16 %v4259, %v4258
        %v4283 = vpack.c.b16 %v4261, %v4260
        %v4284 = vpack.c.b16 %v4263, %v4262
        %v4285 = vpack.c.b16 %v4265, %v4264
        %v4286 = vpack.c.b16 %v4267, %v4266
        %v4287 = vpack.c.b16 %v4269, %v4268
        %v4288 = vpack.c.b16 %v4271, %v4270
        %v4289 = vpack.c.b16 %v4273, %v4272
        %4290 = vrot.lane.b32.xlu0 %v4274, 32
        %v4291 = vpop.permute.xlu0 %4290
        %4292 = vrot.lane.b32.xlu0 %v4275, 32
        %v4293 = vpop.permute.xlu0 %4292
        %4294 = vrot.lane.b32.xlu0 %v4276, 32
        %v4295 = vpop.permute.xlu0 %4294
        %4296 = vrot.lane.b32.xlu0 %v4277, 32
        %v4297 = vpop.permute.xlu0 %4296
        %4298 = vrot.lane.b32.xlu0 %v4278, 32
        %v4299 = vpop.permute.xlu0 %4298
        %4300 = vrot.lane.b32.xlu0 %v4279, 32
        %v4301 = vpop.permute.xlu0 %4300
        %4302 = vrot.lane.b32.xlu0 %v4280, 32
        %v4303 = vpop.permute.xlu0 %4302
        %4304 = vrot.lane.b32.xlu0 %v4281, 32
        %v4305 = vpop.permute.xlu0 %4304
        %4306 = vrot.lane.b32.xlu0 %v4282, 32
        %v4307 = vpop.permute.xlu0 %4306
        %4308 = vrot.lane.b32.xlu0 %v4283, 32
        %v4309 = vpop.permute.xlu0 %4308
        %4310 = vrot.lane.b32.xlu0 %v4284, 32
        %v4311 = vpop.permute.xlu0 %4310
        %4312 = vrot.lane.b32.xlu0 %v4285, 32
        %v4313 = vpop.permute.xlu0 %4312
        %4314 = vrot.lane.b32.xlu0 %v4286, 32
        %v4315 = vpop.permute.xlu0 %4314
        %4316 = vrot.lane.b32.xlu0 %v4287, 32
        %v4317 = vpop.permute.xlu0 %4316
        %4318 = vrot.lane.b32.xlu0 %v4288, 32
        %v4319 = vpop.permute.xlu0 %4318
        %4320 = vrot.lane.b32.xlu0 %v4289, 32
        %v4321 = vpop.permute.xlu0 %4320
        %v4354 = vunpack.c.l.b16 %v4098
        %v4355 = vunpack.c.l.b16 %v4099
        %v4356 = vunpack.c.l.b16 %v4100
        %v4357 = vunpack.c.l.b16 %v4101
        %v4358 = vunpack.c.l.b16 %v4102
        %v4359 = vunpack.c.l.b16 %v4103
        %v4360 = vunpack.c.l.b16 %v4104
        %v4361 = vunpack.c.l.b16 %v4105
        %v4362 = vunpack.c.l.b16 %v4106
        %v4363 = vunpack.c.l.b16 %v4107
        %v4364 = vunpack.c.l.b16 %v4108
        %v4365 = vunpack.c.l.b16 %v4109
        %v4366 = vunpack.c.l.b16 %v4110
        %v4367 = vunpack.c.l.b16 %v4111
        %v4368 = vunpack.c.l.b16 %v4112
        %v4369 = vunpack.c.l.b16 %v4113
        %v4370 = vunpack.c.l.b16 %v4114
        %v4371 = vunpack.c.l.b16 %v4115
        %v4372 = vunpack.c.l.b16 %v4116
        %v4373 = vunpack.c.l.b16 %v4117
        %v4374 = vunpack.c.l.b16 %v4118
        %v4375 = vunpack.c.l.b16 %v4119
        %v4376 = vunpack.c.l.b16 %v4120
        %v4377 = vunpack.c.l.b16 %v4121
        %v4378 = vunpack.c.l.b16 %v4122
        %v4379 = vunpack.c.l.b16 %v4123
        %v4380 = vunpack.c.l.b16 %v4124
        %v4381 = vunpack.c.l.b16 %v4125
        %v4382 = vunpack.c.l.b16 %v4126
        %v4383 = vunpack.c.l.b16 %v4127
        %v4384 = vunpack.c.l.b16 %v4128
        %v4385 = vunpack.c.l.b16 %v4129
        %v4386 = vpack.c.b16 %v4355, %v4354
        %v4387 = vpack.c.b16 %v4357, %v4356
        %v4388 = vpack.c.b16 %v4359, %v4358
        %v4389 = vpack.c.b16 %v4361, %v4360
        %v4390 = vpack.c.b16 %v4363, %v4362
        %v4391 = vpack.c.b16 %v4365, %v4364
        %v4392 = vpack.c.b16 %v4367, %v4366
        %v4393 = vpack.c.b16 %v4369, %v4368
        %v4394 = vpack.c.b16 %v4371, %v4370
        %v4395 = vpack.c.b16 %v4373, %v4372
        %v4396 = vpack.c.b16 %v4375, %v4374
        %v4397 = vpack.c.b16 %v4377, %v4376
        %v4398 = vpack.c.b16 %v4379, %v4378
        %v4399 = vpack.c.b16 %v4381, %v4380
        %v4400 = vpack.c.b16 %v4383, %v4382
        %v4401 = vpack.c.b16 %v4385, %v4384
        %4402 = vrot.lane.b32.xlu0 %v4386, 64
        %v4403 = vpop.permute.xlu0 %4402
        %4404 = vrot.lane.b32.xlu0 %v4387, 64
        %v4405 = vpop.permute.xlu0 %4404
        %4406 = vrot.lane.b32.xlu0 %v4388, 64
        %v4407 = vpop.permute.xlu0 %4406
        %4408 = vrot.lane.b32.xlu0 %v4389, 64
        %v4409 = vpop.permute.xlu0 %4408
        %4410 = vrot.lane.b32.xlu0 %v4390, 64
        %v4411 = vpop.permute.xlu0 %4410
        %4412 = vrot.lane.b32.xlu0 %v4391, 64
        %v4413 = vpop.permute.xlu0 %4412
        %4414 = vrot.lane.b32.xlu0 %v4392, 64
        %v4415 = vpop.permute.xlu0 %4414
        %4416 = vrot.lane.b32.xlu0 %v4393, 64
        %v4417 = vpop.permute.xlu0 %4416
        %4418 = vrot.lane.b32.xlu0 %v4394, 64
        %v4419 = vpop.permute.xlu0 %4418
        %4420 = vrot.lane.b32.xlu0 %v4395, 64
        %v4421 = vpop.permute.xlu0 %4420
        %4422 = vrot.lane.b32.xlu0 %v4396, 64
        %v4423 = vpop.permute.xlu0 %4422
        %4424 = vrot.lane.b32.xlu0 %v4397, 64
        %v4425 = vpop.permute.xlu0 %4424
        %4426 = vrot.lane.b32.xlu0 %v4398, 64
        %v4427 = vpop.permute.xlu0 %4426
        %4428 = vrot.lane.b32.xlu0 %v4399, 64
        %v4429 = vpop.permute.xlu0 %4428
        %4430 = vrot.lane.b32.xlu0 %v4400, 64
        %v4431 = vpop.permute.xlu0 %4430
        %4432 = vrot.lane.b32.xlu0 %v4401, 64
        %v4433 = vpop.permute.xlu0 %4432
        %v4436 = vsel %vm467, %v4194, %v4291
        %v4439 = vsel %vm467, %v4195, %v4293
        %v4442 = vsel %vm467, %v4196, %v4295
        %v4445 = vsel %vm467, %v4197, %v4297
        %v4448 = vsel %vm467, %v4198, %v4299
        %v4451 = vsel %vm467, %v4199, %v4301
        %v4454 = vsel %vm467, %v4200, %v4303
        %v4457 = vsel %vm467, %v4201, %v4305
        %v4460 = vsel %vm467, %v4202, %v4307
        %v4463 = vsel %vm467, %v4203, %v4309
        %v4466 = vsel %vm467, %v4204, %v4311
        %v4469 = vsel %vm467, %v4205, %v4313
        %v4472 = vsel %vm467, %v4206, %v4315
        %v4475 = vsel %vm467, %v4207, %v4317
        %v4478 = vsel %vm467, %v4208, %v4319
        %v4481 = vsel %vm467, %v4209, %v4321
        %v4483 = vsel %vm1773, %v4436, %v4403
        %v4485 = vsel %vm1773, %v4439, %v4405
        %v4487 = vsel %vm1773, %v4442, %v4407
        %v4489 = vsel %vm1773, %v4445, %v4409
        %v4491 = vsel %vm1773, %v4448, %v4411
        %v4493 = vsel %vm1773, %v4451, %v4413
        %v4495 = vsel %vm1773, %v4454, %v4415
        %v4497 = vsel %vm1773, %v4457, %v4417
        %v4499 = vsel %vm1773, %v4460, %v4419
        %v4501 = vsel %vm1773, %v4463, %v4421
        %v4503 = vsel %vm1773, %v4466, %v4423
        %v4505 = vsel %vm1773, %v4469, %v4425
        %v4507 = vsel %vm1773, %v4472, %v4427
        %v4509 = vsel %vm1773, %v4475, %v4429
        %v4511 = vsel %vm1773, %v4478, %v4431
        %v4513 = vsel %vm1773, %v4481, %v4433
        %v4514 = vld [vmem:[%s10] sm:$0xf]
        %v4515 = vld [vmem:[%s10 + $0x4] sm:$0xf]
        %v4516 = vld [vmem:[%s10 + $0x8] sm:$0xf]
        %v4517 = vld [vmem:[%s10 + $0xc] sm:$0xf]
        %v4518 = vld [vmem:[%s10 + $0x10] sm:$0xf]
        %v4519 = vld [vmem:[%s10 + $0x14] sm:$0xf]
        %v4520 = vld [vmem:[%s10 + $0x18] sm:$0xf]
        %v4521 = vld [vmem:[%s10 + $0x1c] sm:$0xf]
        %v4522 = vld [vmem:[%s10 + $0x20] sm:$0xf]
        %v4523 = vld [vmem:[%s10 + $0x24] sm:$0xf]
        %v4524 = vld [vmem:[%s10 + $0x28] sm:$0xf]
        %v4525 = vld [vmem:[%s10 + $0x2c] sm:$0xf]
        %v4526 = vld [vmem:[%s517 + $0x7] sm:$0xff]
        %v4527 = vld [vmem:[%s517 + $0xf] sm:$0xff]
        %v4528 = vld [vmem:[%s517 + $0x27] sm:$0xff]
        %v4529 = vld [vmem:[%s517 + $0x2f] sm:$0xff]
        %v4530 = vld [vmem:[%s517 + $0x47] sm:$0xff]
        %v4531 = vld [vmem:[%s517 + $0x4f] sm:$0xff]
        %v4532 = vld [vmem:[%s517 + $0x67] sm:$0xff]
        %v4533 = vld [vmem:[%s517 + $0x6f] sm:$0xff]
        %v4534 = vld [vmem:[%s517 + $0x87] sm:$0xff]
        %v4535 = vld [vmem:[%s517 + $0x8f] sm:$0xff]
        %v4536 = vld [vmem:[%s517 + $0xa7] sm:$0xff]
        %v4537 = vld [vmem:[%s517 + $0xaf] sm:$0xff]
        %v4538 = vld [vmem:[%s517 + $0xc7] sm:$0xff]
        %v4539 = vld [vmem:[%s517 + $0xcf] sm:$0xff]
        %v4540 = vld [vmem:[%s517 + $0xe7] sm:$0xff]
        %v4541 = vld [vmem:[%s517 + $0xef] sm:$0xff]
        %v4542 = vld [vmem:[%s517 + $0x107] sm:$0xff]
        %v4543 = vld [vmem:[%s517 + $0x10f] sm:$0xff]
        %v4544 = vld [vmem:[%s517 + $0x127] sm:$0xff]
        %v4545 = vld [vmem:[%s517 + $0x12f] sm:$0xff]
        %v4546 = vld [vmem:[%s517 + $0x147] sm:$0xff]
        %v4547 = vld [vmem:[%s517 + $0x14f] sm:$0xff]
        %v4548 = vld [vmem:[%s517 + $0x167] sm:$0xff]
        %v4549 = vld [vmem:[%s517 + $0x16f] sm:$0xff]
        %v4550 = vld [vmem:[%s517 + $0x187] sm:$0xff]
        %v4551 = vld [vmem:[%s517 + $0x18f] sm:$0xff]
        %v4552 = vld [vmem:[%s517 + $0x1a7] sm:$0xff]
        %v4553 = vld [vmem:[%s517 + $0x1af] sm:$0xff]
        %v4554 = vld [vmem:[%s517 + $0x1c7] sm:$0xff]
        %v4555 = vld [vmem:[%s517 + $0x1cf] sm:$0xff]
        %v4556 = vld [vmem:[%s517 + $0x1e7] sm:$0xff]
        %v4557 = vld [vmem:[%s517 + $0x1ef] sm:$0xff]
        %v4558 = vpack.c.bf16 %v4526, %v4526
        %v4559 = vpack.c.bf16 %v4527, %v4527
        %v4560 = vpack.c.bf16 %v4528, %v4528
        %v4561 = vpack.c.bf16 %v4529, %v4529
        %v4562 = vpack.c.bf16 %v4530, %v4530
        %v4563 = vpack.c.bf16 %v4531, %v4531
        %v4564 = vpack.c.bf16 %v4532, %v4532
        %v4565 = vpack.c.bf16 %v4533, %v4533
        %v4566 = vpack.c.bf16 %v4534, %v4534
        %v4567 = vpack.c.bf16 %v4535, %v4535
        %v4568 = vpack.c.bf16 %v4536, %v4536
        %v4569 = vpack.c.bf16 %v4537, %v4537
        %v4570 = vpack.c.bf16 %v4538, %v4538
        %v4571 = vpack.c.bf16 %v4539, %v4539
        %v4572 = vpack.c.bf16 %v4540, %v4540
        %v4573 = vpack.c.bf16 %v4541, %v4541
        %v4574 = vpack.c.bf16 %v4542, %v4542
        %v4575 = vpack.c.bf16 %v4543, %v4543
        %v4576 = vpack.c.bf16 %v4544, %v4544
        %v4577 = vpack.c.bf16 %v4545, %v4545
        %v4578 = vpack.c.bf16 %v4546, %v4546
        %v4579 = vpack.c.bf16 %v4547, %v4547
        %v4580 = vpack.c.bf16 %v4548, %v4548
        %v4581 = vpack.c.bf16 %v4549, %v4549
        %v4582 = vpack.c.bf16 %v4550, %v4550
        %v4583 = vpack.c.bf16 %v4551, %v4551
        %v4584 = vpack.c.bf16 %v4552, %v4552
        %v4585 = vpack.c.bf16 %v4553, %v4553
        %v4586 = vpack.c.bf16 %v4554, %v4554
        %v4587 = vpack.c.bf16 %v4555, %v4555
        %v4588 = vpack.c.bf16 %v4556, %v4556
        %v4589 = vpack.c.bf16 %v4557, %v4557
        %v4590 = vld [vmem:[%s517 + $0x8] sm:$0xff]
        %v4591 = vld [vmem:[%s517 + $0x10] sm:$0xff]
        %v4592 = vld [vmem:[%s517 + $0x28] sm:$0xff]
        %v4593 = vld [vmem:[%s517 + $0x30] sm:$0xff]
        %v4594 = vld [vmem:[%s517 + $0x48] sm:$0xff]
        %v4595 = vld [vmem:[%s517 + $0x50] sm:$0xff]
        %v4596 = vld [vmem:[%s517 + $0x68] sm:$0xff]
        %v4597 = vld [vmem:[%s517 + $0x70] sm:$0xff]
        %v4598 = vld [vmem:[%s517 + $0x88] sm:$0xff]
        %v4599 = vld [vmem:[%s517 + $0x90] sm:$0xff]
        %v4600 = vld [vmem:[%s517 + $0xa8] sm:$0xff]
        %v4601 = vld [vmem:[%s517 + $0xb0] sm:$0xff]
        %v4602 = vld [vmem:[%s517 + $0xc8] sm:$0xff]
        %v4603 = vld [vmem:[%s517 + $0xd0] sm:$0xff]
        %v4604 = vld [vmem:[%s517 + $0xe8] sm:$0xff]
        %v4605 = vld [vmem:[%s517 + $0xf0] sm:$0xff]
        %v4606 = vld [vmem:[%s517 + $0x108] sm:$0xff]
        %v4607 = vld [vmem:[%s517 + $0x110] sm:$0xff]
        %v4608 = vld [vmem:[%s517 + $0x128] sm:$0xff]
        %v4609 = vld [vmem:[%s517 + $0x130] sm:$0xff]
        %v4610 = vld [vmem:[%s517 + $0x148] sm:$0xff]
        %v4611 = vld [vmem:[%s517 + $0x150] sm:$0xff]
        %v4612 = vld [vmem:[%s517 + $0x168] sm:$0xff]
        %v4613 = vld [vmem:[%s517 + $0x170] sm:$0xff]
        %v4614 = vld [vmem:[%s517 + $0x188] sm:$0xff]
        %v4615 = vld [vmem:[%s517 + $0x190] sm:$0xff]
        %v4616 = vld [vmem:[%s517 + $0x1a8] sm:$0xff]
        %v4617 = vld [vmem:[%s517 + $0x1b0] sm:$0xff]
        %v4618 = vld [vmem:[%s517 + $0x1c8] sm:$0xff]
        %v4619 = vld [vmem:[%s517 + $0x1d0] sm:$0xff]
        %v4620 = vld [vmem:[%s517 + $0x1e8] sm:$0xff]
        %v4621 = vld [vmem:[%s517 + $0x1f0] sm:$0xff]
        %v4622 = vpack.c.bf16 %v4590, %v4590
        %v4623 = vpack.c.bf16 %v4591, %v4591
        %v4624 = vpack.c.bf16 %v4592, %v4592
        %v4625 = vpack.c.bf16 %v4593, %v4593
        %v4626 = vpack.c.bf16 %v4594, %v4594
        %v4627 = vpack.c.bf16 %v4595, %v4595
        %v4628 = vpack.c.bf16 %v4596, %v4596
        %v4629 = vpack.c.bf16 %v4597, %v4597
        %v4630 = vpack.c.bf16 %v4598, %v4598
        %v4631 = vpack.c.bf16 %v4599, %v4599
        %v4632 = vpack.c.bf16 %v4600, %v4600
        %v4633 = vpack.c.bf16 %v4601, %v4601
        %v4634 = vpack.c.bf16 %v4602, %v4602
        %v4635 = vpack.c.bf16 %v4603, %v4603
        %v4636 = vpack.c.bf16 %v4604, %v4604
        %v4637 = vpack.c.bf16 %v4605, %v4605
        %v4638 = vpack.c.bf16 %v4606, %v4606
        %v4639 = vpack.c.bf16 %v4607, %v4607
        %v4640 = vpack.c.bf16 %v4608, %v4608
        %v4641 = vpack.c.bf16 %v4609, %v4609
        %v4642 = vpack.c.bf16 %v4610, %v4610
        %v4643 = vpack.c.bf16 %v4611, %v4611
        %v4644 = vpack.c.bf16 %v4612, %v4612
        %v4645 = vpack.c.bf16 %v4613, %v4613
        %v4646 = vpack.c.bf16 %v4614, %v4614
        %v4647 = vpack.c.bf16 %v4615, %v4615
        %v4648 = vpack.c.bf16 %v4616, %v4616
        %v4649 = vpack.c.bf16 %v4617, %v4617
        %v4650 = vpack.c.bf16 %v4618, %v4618
        %v4651 = vpack.c.bf16 %v4619, %v4619
        %v4652 = vpack.c.bf16 %v4620, %v4620
        %v4653 = vpack.c.bf16 %v4621, %v4621
        %v4654 = vld [vmem:[%s517 + $0x9] sm:$0xff]
        %v4655 = vld [vmem:[%s517 + $0x11] sm:$0xff]
        %v4656 = vld [vmem:[%s517 + $0x29] sm:$0xff]
        %v4657 = vld [vmem:[%s517 + $0x31] sm:$0xff]
        %v4658 = vld [vmem:[%s517 + $0x49] sm:$0xff]
        %v4659 = vld [vmem:[%s517 + $0x51] sm:$0xff]
        %v4660 = vld [vmem:[%s517 + $0x69] sm:$0xff]
        %v4661 = vld [vmem:[%s517 + $0x71] sm:$0xff]
        %v4662 = vld [vmem:[%s517 + $0x89] sm:$0xff]
        %v4663 = vld [vmem:[%s517 + $0x91] sm:$0xff]
        %v4664 = vld [vmem:[%s517 + $0xa9] sm:$0xff]
        %v4665 = vld [vmem:[%s517 + $0xb1] sm:$0xff]
        %v4666 = vld [vmem:[%s517 + $0xc9] sm:$0xff]
        %v4667 = vld [vmem:[%s517 + $0xd1] sm:$0xff]
        %v4668 = vld [vmem:[%s517 + $0xe9] sm:$0xff]
        %v4669 = vld [vmem:[%s517 + $0xf1] sm:$0xff]
        %v4670 = vld [vmem:[%s517 + $0x109] sm:$0xff]
        %v4671 = vld [vmem:[%s517 + $0x111] sm:$0xff]
        %v4672 = vld [vmem:[%s517 + $0x129] sm:$0xff]
        %v4673 = vld [vmem:[%s517 + $0x131] sm:$0xff]
        %v4674 = vld [vmem:[%s517 + $0x149] sm:$0xff]
        %v4675 = vld [vmem:[%s517 + $0x151] sm:$0xff]
        %v4676 = vld [vmem:[%s517 + $0x169] sm:$0xff]
        %v4677 = vld [vmem:[%s517 + $0x171] sm:$0xff]
        %v4678 = vld [vmem:[%s517 + $0x189] sm:$0xff]
        %v4679 = vld [vmem:[%s517 + $0x191] sm:$0xff]
        %v4680 = vld [vmem:[%s517 + $0x1a9] sm:$0xff]
        %v4681 = vld [vmem:[%s517 + $0x1b1] sm:$0xff]
        %v4682 = vld [vmem:[%s517 + $0x1c9] sm:$0xff]
        %v4683 = vld [vmem:[%s517 + $0x1d1] sm:$0xff]
        %v4684 = vld [vmem:[%s517 + $0x1e9] sm:$0xff]
        %v4685 = vld [vmem:[%s517 + $0x1f1] sm:$0xff]
        %v4686 = vpack.c.bf16 %v4654, %v4654
        %v4687 = vpack.c.bf16 %v4655, %v4655
        %v4688 = vpack.c.bf16 %v4656, %v4656
        %v4689 = vpack.c.bf16 %v4657, %v4657
        %v4690 = vpack.c.bf16 %v4658, %v4658
        %v4691 = vpack.c.bf16 %v4659, %v4659
        %v4692 = vpack.c.bf16 %v4660, %v4660
        %v4693 = vpack.c.bf16 %v4661, %v4661
        %v4694 = vpack.c.bf16 %v4662, %v4662
        %v4695 = vpack.c.bf16 %v4663, %v4663
        %v4696 = vpack.c.bf16 %v4664, %v4664
        %v4697 = vpack.c.bf16 %v4665, %v4665
        %v4698 = vpack.c.bf16 %v4666, %v4666
        %v4699 = vpack.c.bf16 %v4667, %v4667
        %v4700 = vpack.c.bf16 %v4668, %v4668
        %v4701 = vpack.c.bf16 %v4669, %v4669
        %v4702 = vpack.c.bf16 %v4670, %v4670
        %v4703 = vpack.c.bf16 %v4671, %v4671
        %v4704 = vpack.c.bf16 %v4672, %v4672
        %v4705 = vpack.c.bf16 %v4673, %v4673
        %v4706 = vpack.c.bf16 %v4674, %v4674
        %v4707 = vpack.c.bf16 %v4675, %v4675
        %v4708 = vpack.c.bf16 %v4676, %v4676
        %v4709 = vpack.c.bf16 %v4677, %v4677
        %v4710 = vpack.c.bf16 %v4678, %v4678
        %v4711 = vpack.c.bf16 %v4679, %v4679
        %v4712 = vpack.c.bf16 %v4680, %v4680
        %v4713 = vpack.c.bf16 %v4681, %v4681
        %v4714 = vpack.c.bf16 %v4682, %v4682
        %v4715 = vpack.c.bf16 %v4683, %v4683
        %v4716 = vpack.c.bf16 %v4684, %v4684
        %v4717 = vpack.c.bf16 %v4685, %v4685
        %v4750 = vunpack.c.l.b16 %v4558
        %v4751 = vunpack.c.l.b16 %v4559
        %v4752 = vunpack.c.l.b16 %v4560
        %v4753 = vunpack.c.l.b16 %v4561
        %v4754 = vunpack.c.l.b16 %v4562
        %v4755 = vunpack.c.l.b16 %v4563
        %v4756 = vunpack.c.l.b16 %v4564
        %v4757 = vunpack.c.l.b16 %v4565
        %v4758 = vunpack.c.l.b16 %v4566
        %v4759 = vunpack.c.l.b16 %v4567
        %v4760 = vunpack.c.l.b16 %v4568
        %v4761 = vunpack.c.l.b16 %v4569
        %v4762 = vunpack.c.l.b16 %v4570
        %v4763 = vunpack.c.l.b16 %v4571
        %v4764 = vunpack.c.l.b16 %v4572
        %v4765 = vunpack.c.l.b16 %v4573
        %v4766 = vunpack.c.l.b16 %v4574
        %v4767 = vunpack.c.l.b16 %v4575
        %v4768 = vunpack.c.l.b16 %v4576
        %v4769 = vunpack.c.l.b16 %v4577
        %v4770 = vunpack.c.l.b16 %v4578
        %v4771 = vunpack.c.l.b16 %v4579
        %v4772 = vunpack.c.l.b16 %v4580
        %v4773 = vunpack.c.l.b16 %v4581
        %v4774 = vunpack.c.l.b16 %v4582
        %v4775 = vunpack.c.l.b16 %v4583
        %v4776 = vunpack.c.l.b16 %v4584
        %v4777 = vunpack.c.l.b16 %v4585
        %v4778 = vunpack.c.l.b16 %v4586
        %v4779 = vunpack.c.l.b16 %v4587
        %v4780 = vunpack.c.l.b16 %v4588
        %v4781 = vunpack.c.l.b16 %v4589
        %v4782 = vpack.c.b16 %v4751, %v4750
        %v4783 = vpack.c.b16 %v4753, %v4752
        %v4784 = vpack.c.b16 %v4755, %v4754
        %v4785 = vpack.c.b16 %v4757, %v4756
        %v4786 = vpack.c.b16 %v4759, %v4758
        %v4787 = vpack.c.b16 %v4761, %v4760
        %v4788 = vpack.c.b16 %v4763, %v4762
        %v4789 = vpack.c.b16 %v4765, %v4764
        %v4790 = vpack.c.b16 %v4767, %v4766
        %v4791 = vpack.c.b16 %v4769, %v4768
        %v4792 = vpack.c.b16 %v4771, %v4770
        %v4793 = vpack.c.b16 %v4773, %v4772
        %v4794 = vpack.c.b16 %v4775, %v4774
        %v4795 = vpack.c.b16 %v4777, %v4776
        %v4796 = vpack.c.b16 %v4779, %v4778
        %v4797 = vpack.c.b16 %v4781, %v4780
        %v4830 = vunpack.c.l.b16 %v4622
        %v4831 = vunpack.c.l.b16 %v4623
        %v4832 = vunpack.c.l.b16 %v4624
        %v4833 = vunpack.c.l.b16 %v4625
        %v4834 = vunpack.c.l.b16 %v4626
        %v4835 = vunpack.c.l.b16 %v4627
        %v4836 = vunpack.c.l.b16 %v4628
        %v4837 = vunpack.c.l.b16 %v4629
        %v4838 = vunpack.c.l.b16 %v4630
        %v4839 = vunpack.c.l.b16 %v4631
        %v4840 = vunpack.c.l.b16 %v4632
        %v4841 = vunpack.c.l.b16 %v4633
        %v4842 = vunpack.c.l.b16 %v4634
        %v4843 = vunpack.c.l.b16 %v4635
        %v4844 = vunpack.c.l.b16 %v4636
        %v4845 = vunpack.c.l.b16 %v4637
        %v4846 = vunpack.c.l.b16 %v4638
        %v4847 = vunpack.c.l.b16 %v4639
        %v4848 = vunpack.c.l.b16 %v4640
        %v4849 = vunpack.c.l.b16 %v4641
        %v4850 = vunpack.c.l.b16 %v4642
        %v4851 = vunpack.c.l.b16 %v4643
        %v4852 = vunpack.c.l.b16 %v4644
        %v4853 = vunpack.c.l.b16 %v4645
        %v4854 = vunpack.c.l.b16 %v4646
        %v4855 = vunpack.c.l.b16 %v4647
        %v4856 = vunpack.c.l.b16 %v4648
        %v4857 = vunpack.c.l.b16 %v4649
        %v4858 = vunpack.c.l.b16 %v4650
        %v4859 = vunpack.c.l.b16 %v4651
        %v4860 = vunpack.c.l.b16 %v4652
        %v4861 = vunpack.c.l.b16 %v4653
        %v4862 = vpack.c.b16 %v4831, %v4830
        %v4863 = vpack.c.b16 %v4833, %v4832
        %v4864 = vpack.c.b16 %v4835, %v4834
        %v4865 = vpack.c.b16 %v4837, %v4836
        %v4866 = vpack.c.b16 %v4839, %v4838
        %v4867 = vpack.c.b16 %v4841, %v4840
        %v4868 = vpack.c.b16 %v4843, %v4842
        %v4869 = vpack.c.b16 %v4845, %v4844
        %v4870 = vpack.c.b16 %v4847, %v4846
        %v4871 = vpack.c.b16 %v4849, %v4848
        %v4872 = vpack.c.b16 %v4851, %v4850
        %v4873 = vpack.c.b16 %v4853, %v4852
        %v4874 = vpack.c.b16 %v4855, %v4854
        %v4875 = vpack.c.b16 %v4857, %v4856
        %v4876 = vpack.c.b16 %v4859, %v4858
        %v4877 = vpack.c.b16 %v4861, %v4860
        %4878 = vrot.lane.b32.xlu0 %v4862, 32
        %v4879 = vpop.permute.xlu0 %4878
        %4880 = vrot.lane.b32.xlu0 %v4863, 32
        %v4881 = vpop.permute.xlu0 %4880
        %4882 = vrot.lane.b32.xlu0 %v4864, 32
        %v4883 = vpop.permute.xlu0 %4882
        %4884 = vrot.lane.b32.xlu0 %v4865, 32
        %v4885 = vpop.permute.xlu0 %4884
        %4886 = vrot.lane.b32.xlu0 %v4866, 32
        %v4887 = vpop.permute.xlu0 %4886
        %4888 = vrot.lane.b32.xlu0 %v4867, 32
        %v4889 = vpop.permute.xlu0 %4888
        %4890 = vrot.lane.b32.xlu0 %v4868, 32
        %v4891 = vpop.permute.xlu0 %4890
        %4892 = vrot.lane.b32.xlu0 %v4869, 32
        %v4893 = vpop.permute.xlu0 %4892
        %4894 = vrot.lane.b32.xlu0 %v4870, 32
        %v4895 = vpop.permute.xlu0 %4894
        %4896 = vrot.lane.b32.xlu0 %v4871, 32
        %v4897 = vpop.permute.xlu0 %4896
        %4898 = vrot.lane.b32.xlu0 %v4872, 32
        %v4899 = vpop.permute.xlu0 %4898
        %4900 = vrot.lane.b32.xlu0 %v4873, 32
        %v4901 = vpop.permute.xlu0 %4900
        %4902 = vrot.lane.b32.xlu0 %v4874, 32
        %v4903 = vpop.permute.xlu0 %4902
        %4904 = vrot.lane.b32.xlu0 %v4875, 32
        %v4905 = vpop.permute.xlu0 %4904
        %4906 = vrot.lane.b32.xlu0 %v4876, 32
        %v4907 = vpop.permute.xlu0 %4906
        %4908 = vrot.lane.b32.xlu0 %v4877, 32
        %v4909 = vpop.permute.xlu0 %4908
        %v4942 = vunpack.c.l.b16 %v4686
        %v4943 = vunpack.c.l.b16 %v4687
        %v4944 = vunpack.c.l.b16 %v4688
        %v4945 = vunpack.c.l.b16 %v4689
        %v4946 = vunpack.c.l.b16 %v4690
        %v4947 = vunpack.c.l.b16 %v4691
        %v4948 = vunpack.c.l.b16 %v4692
        %v4949 = vunpack.c.l.b16 %v4693
        %v4950 = vunpack.c.l.b16 %v4694
        %v4951 = vunpack.c.l.b16 %v4695
        %v4952 = vunpack.c.l.b16 %v4696
        %v4953 = vunpack.c.l.b16 %v4697
        %v4954 = vunpack.c.l.b16 %v4698
        %v4955 = vunpack.c.l.b16 %v4699
        %v4956 = vunpack.c.l.b16 %v4700
        %v4957 = vunpack.c.l.b16 %v4701
        %v4958 = vunpack.c.l.b16 %v4702
        %v4959 = vunpack.c.l.b16 %v4703
        %v4960 = vunpack.c.l.b16 %v4704
        %v4961 = vunpack.c.l.b16 %v4705
        %v4962 = vunpack.c.l.b16 %v4706
        %v4963 = vunpack.c.l.b16 %v4707
        %v4964 = vunpack.c.l.b16 %v4708
        %v4965 = vunpack.c.l.b16 %v4709
        %v4966 = vunpack.c.l.b16 %v4710
        %v4967 = vunpack.c.l.b16 %v4711
        %v4968 = vunpack.c.l.b16 %v4712
        %v4969 = vunpack.c.l.b16 %v4713
        %v4970 = vunpack.c.l.b16 %v4714
        %v4971 = vunpack.c.l.b16 %v4715
        %v4972 = vunpack.c.l.b16 %v4716
        %v4973 = vunpack.c.l.b16 %v4717
        %v4974 = vpack.c.b16 %v4943, %v4942
        %v4975 = vpack.c.b16 %v4945, %v4944
        %v4976 = vpack.c.b16 %v4947, %v4946
        %v4977 = vpack.c.b16 %v4949, %v4948
        %v4978 = vpack.c.b16 %v4951, %v4950
        %v4979 = vpack.c.b16 %v4953, %v4952
        %v4980 = vpack.c.b16 %v4955, %v4954
        %v4981 = vpack.c.b16 %v4957, %v4956
        %v4982 = vpack.c.b16 %v4959, %v4958
        %v4983 = vpack.c.b16 %v4961, %v4960
        %v4984 = vpack.c.b16 %v4963, %v4962
        %v4985 = vpack.c.b16 %v4965, %v4964
        %v4986 = vpack.c.b16 %v4967, %v4966
        %v4987 = vpack.c.b16 %v4969, %v4968
        %v4988 = vpack.c.b16 %v4971, %v4970
        %v4989 = vpack.c.b16 %v4973, %v4972
        %4990 = vrot.lane.b32.xlu0 %v4974, 64
        %v4991 = vpop.permute.xlu0 %4990
        %4992 = vrot.lane.b32.xlu0 %v4975, 64
        %v4993 = vpop.permute.xlu0 %4992
        %4994 = vrot.lane.b32.xlu0 %v4976, 64
        %v4995 = vpop.permute.xlu0 %4994
        %4996 = vrot.lane.b32.xlu0 %v4977, 64
        %v4997 = vpop.permute.xlu0 %4996
        %4998 = vrot.lane.b32.xlu0 %v4978, 64
        %v4999 = vpop.permute.xlu0 %4998
        %5000 = vrot.lane.b32.xlu0 %v4979, 64
        %v5001 = vpop.permute.xlu0 %5000
        %5002 = vrot.lane.b32.xlu0 %v4980, 64
        %v5003 = vpop.permute.xlu0 %5002
        %5004 = vrot.lane.b32.xlu0 %v4981, 64
        %v5005 = vpop.permute.xlu0 %5004
        %5006 = vrot.lane.b32.xlu0 %v4982, 64
        %v5007 = vpop.permute.xlu0 %5006
        %5008 = vrot.lane.b32.xlu0 %v4983, 64
        %v5009 = vpop.permute.xlu0 %5008
        %5010 = vrot.lane.b32.xlu0 %v4984, 64
        %v5011 = vpop.permute.xlu0 %5010
        %5012 = vrot.lane.b32.xlu0 %v4985, 64
        %v5013 = vpop.permute.xlu0 %5012
        %5014 = vrot.lane.b32.xlu0 %v4986, 64
        %v5015 = vpop.permute.xlu0 %5014
        %5016 = vrot.lane.b32.xlu0 %v4987, 64
        %v5017 = vpop.permute.xlu0 %5016
        %5018 = vrot.lane.b32.xlu0 %v4988, 64
        %v5019 = vpop.permute.xlu0 %5018
        %5020 = vrot.lane.b32.xlu0 %v4989, 64
        %v5021 = vpop.permute.xlu0 %5020
        %v5024 = vsel %vm467, %v4782, %v4879
        %v5027 = vsel %vm467, %v4783, %v4881
        %v5030 = vsel %vm467, %v4784, %v4883
        %v5033 = vsel %vm467, %v4785, %v4885
        %v5036 = vsel %vm467, %v4786, %v4887
        %v5039 = vsel %vm467, %v4787, %v4889
        %v5042 = vsel %vm467, %v4788, %v4891
        %v5045 = vsel %vm467, %v4789, %v4893
        %v5048 = vsel %vm467, %v4790, %v4895
        %v5051 = vsel %vm467, %v4791, %v4897
        %v5054 = vsel %vm467, %v4792, %v4899
        %v5057 = vsel %vm467, %v4793, %v4901
        %v5060 = vsel %vm467, %v4794, %v4903
        %v5063 = vsel %vm467, %v4795, %v4905
        %v5066 = vsel %vm467, %v4796, %v4907
        %v5069 = vsel %vm467, %v4797, %v4909
        %v5071 = vsel %vm1773, %v5024, %v4991
        %v5073 = vsel %vm1773, %v5027, %v4993
        %v5075 = vsel %vm1773, %v5030, %v4995
        %v5077 = vsel %vm1773, %v5033, %v4997
        %v5079 = vsel %vm1773, %v5036, %v4999
        %v5081 = vsel %vm1773, %v5039, %v5001
        %v5083 = vsel %vm1773, %v5042, %v5003
        %v5085 = vsel %vm1773, %v5045, %v5005
        %v5087 = vsel %vm1773, %v5048, %v5007
        %v5089 = vsel %vm1773, %v5051, %v5009
        %v5091 = vsel %vm1773, %v5054, %v5011
        %v5093 = vsel %vm1773, %v5057, %v5013
        %v5095 = vsel %vm1773, %v5060, %v5015
        %v5097 = vsel %vm1773, %v5063, %v5017
        %v5099 = vsel %vm1773, %v5066, %v5019
        %v5101 = vsel %vm1773, %v5069, %v5021
        %s5102 = scalar_lea.vmem %s10, 48
        %v5103 = vld [vmem:[%s5102] sm:$0xf]
        %v5104 = vld [vmem:[%s5102 + $0x4] sm:$0xf]
        %v5105 = vld [vmem:[%s5102 + $0x8] sm:$0xf]
        %v5106 = vld [vmem:[%s5102 + $0xc] sm:$0xf]
        %v5107 = vld [vmem:[%s5102 + $0x10] sm:$0xf]
        %v5108 = vld [vmem:[%s5102 + $0x14] sm:$0xf]
        %v5109 = vld [vmem:[%s5102 + $0x18] sm:$0xf]
        %v5110 = vld [vmem:[%s5102 + $0x1c] sm:$0xf]
        %v5111 = vld [vmem:[%s5102 + $0x20] sm:$0xf]
        %v5112 = vld [vmem:[%s5102 + $0x24] sm:$0xf]
        %v5113 = vld [vmem:[%s5102 + $0x28] sm:$0xf]
        %v5114 = vld [vmem:[%s5102 + $0x2c] sm:$0xf]
        %v5127 = vunpack.c.l.b16 %v5103
        %v5128 = vunpack.c.l.b16 %v5104
        %v5129 = vunpack.c.l.b16 %v5105
        %v5130 = vunpack.c.l.b16 %v5106
        %v5131 = vunpack.c.l.b16 %v5107
        %v5132 = vunpack.c.l.b16 %v5108
        %v5133 = vunpack.c.l.b16 %v5109
        %v5134 = vunpack.c.l.b16 %v5110
        %v5135 = vunpack.c.l.b16 %v5111
        %v5136 = vunpack.c.l.b16 %v5112
        %v5137 = vunpack.c.l.b16 %v5113
        %v5138 = vunpack.c.l.b16 %v5114
        %v5139 = vpack.c.b16 %v5128, %v5127
        %v5140 = vpack.c.b16 %v5130, %v5129
        %v5141 = vpack.c.b16 %v5132, %v5131
        %v5142 = vpack.c.b16 %v5134, %v5133
        %v5143 = vpack.c.b16 %v5136, %v5135
        %v5144 = vpack.c.b16 %v5138, %v5137
        %v5151 = vsel %vm2443, %v5071, 0
        %v5153 = vsel %vm2443, %v5073, 0
        %v5155 = vsel %vm2443, %v5075, 0
        %v5157 = vsel %vm2443, %v5077, 0
        %v5159 = vsel %vm2443, %v5079, 0
        %v5161 = vsel %vm2443, %v5081, 0
        %v5163 = vsel %vm2443, %v5083, 0
        %v5165 = vsel %vm2443, %v5085, 0
        %v5167 = vsel %vm2443, %v5087, 0
        %v5169 = vsel %vm2443, %v5089, 0
        %v5171 = vsel %vm2443, %v5091, 0
        %v5173 = vsel %vm2443, %v5093, 0
        %v5175 = vsel %vm2443, %v5095, 0
        %v5177 = vsel %vm2443, %v5097, 0
        %v5179 = vsel %vm2443, %v5099, 0
        %v5181 = vsel %vm2443, %v5101, 0
        %5183 = vmatpush.bf16.msra.mxu0 0
        %5184 = vmatpush.bf16.msra.mxu0 0
        %5185 = vmatpush.bf16.msra.mxu0 %v5144
        %5186 = vmatpush.bf16.msra.mxu0 %v5143
        %5187 = vmatpush.bf16.msra.mxu0 %v5142
        %5188 = vmatpush.bf16.msra.mxu0 %v5141
        %5189 = vmatpush.bf16.msra.mxu0 %v5140
        %5190 = vmatpush.bf16.msra.mxu0 %v5139
        %5191 = vmatmul.bf16.gmra.mxu0 %v5151
        %v5192 = vpop.f32.mrf.mxu0
        %v5193 = vadd.f32 0.0, %v5192
        %v5194 = vpop.f32.mrf.mxu0
        %v5195 = vadd.f32 0.0, %v5194
        %5196 = vmatmul.bf16.gmra.mxu0 %v5153
        %v5197 = vpop.f32.mrf.mxu0
        %v5198 = vadd.f32 0.0, %v5197
        %v5199 = vpop.f32.mrf.mxu0
        %v5200 = vadd.f32 0.0, %v5199
        %5201 = vmatmul.bf16.gmra.mxu0 %v5155
        %v5202 = vpop.f32.mrf.mxu0
        %v5203 = vadd.f32 0.0, %v5202
        %v5204 = vpop.f32.mrf.mxu0
        %v5205 = vadd.f32 0.0, %v5204
        %5206 = vmatmul.bf16.gmra.mxu0 %v5157
        %v5207 = vpop.f32.mrf.mxu0
        %v5208 = vadd.f32 0.0, %v5207
        %v5209 = vpop.f32.mrf.mxu0
        %v5210 = vadd.f32 0.0, %v5209
        %5211 = vmatmul.bf16.gmra.mxu0 %v5159
        %v5212 = vpop.f32.mrf.mxu0
        %v5213 = vadd.f32 0.0, %v5212
        %v5214 = vpop.f32.mrf.mxu0
        %v5215 = vadd.f32 0.0, %v5214
        %5216 = vmatmul.bf16.gmra.mxu0 %v5161
        %v5217 = vpop.f32.mrf.mxu0
        %v5218 = vadd.f32 0.0, %v5217
        %v5219 = vpop.f32.mrf.mxu0
        %v5220 = vadd.f32 0.0, %v5219
        %5221 = vmatmul.bf16.gmra.mxu0 %v5163
        %v5222 = vpop.f32.mrf.mxu0
        %v5223 = vadd.f32 0.0, %v5222
        %v5224 = vpop.f32.mrf.mxu0
        %v5225 = vadd.f32 0.0, %v5224
        %5226 = vmatmul.bf16.gmra.mxu0 %v5165
        %v5227 = vpop.f32.mrf.mxu0
        %v5228 = vadd.f32 0.0, %v5227
        %v5229 = vpop.f32.mrf.mxu0
        %v5230 = vadd.f32 0.0, %v5229
        %5231 = vmatmul.bf16.gmra.mxu0 %v5167
        %v5232 = vpop.f32.mrf.mxu0
        %v5233 = vadd.f32 0.0, %v5232
        %v5234 = vpop.f32.mrf.mxu0
        %v5235 = vadd.f32 0.0, %v5234
        %5236 = vmatmul.bf16.gmra.mxu0 %v5169
        %v5237 = vpop.f32.mrf.mxu0
        %v5238 = vadd.f32 0.0, %v5237
        %v5239 = vpop.f32.mrf.mxu0
        %v5240 = vadd.f32 0.0, %v5239
        %5241 = vmatmul.bf16.gmra.mxu0 %v5171
        %v5242 = vpop.f32.mrf.mxu0
        %v5243 = vadd.f32 0.0, %v5242
        %v5244 = vpop.f32.mrf.mxu0
        %v5245 = vadd.f32 0.0, %v5244
        %5246 = vmatmul.bf16.gmra.mxu0 %v5173
        %v5247 = vpop.f32.mrf.mxu0
        %v5248 = vadd.f32 0.0, %v5247
        %v5249 = vpop.f32.mrf.mxu0
        %v5250 = vadd.f32 0.0, %v5249
        %5251 = vmatmul.bf16.gmra.mxu0 %v5175
        %v5252 = vpop.f32.mrf.mxu0
        %v5253 = vadd.f32 0.0, %v5252
        %v5254 = vpop.f32.mrf.mxu0
        %v5255 = vadd.f32 0.0, %v5254
        %5256 = vmatmul.bf16.gmra.mxu0 %v5177
        %v5257 = vpop.f32.mrf.mxu0
        %v5258 = vadd.f32 0.0, %v5257
        %v5259 = vpop.f32.mrf.mxu0
        %v5260 = vadd.f32 0.0, %v5259
        %5261 = vmatmul.bf16.gmra.mxu0 %v5179
        %v5262 = vpop.f32.mrf.mxu0
        %v5263 = vadd.f32 0.0, %v5262
        %v5264 = vpop.f32.mrf.mxu0
        %v5265 = vadd.f32 0.0, %v5264
        %5266 = vmatmul.bf16.gmra.mxu0 %v5181
        %v5267 = vpop.f32.mrf.mxu0
        %v5268 = vadd.f32 0.0, %v5267
        %v5269 = vpop.f32.mrf.mxu0
        %v5270 = vadd.f32 0.0, %v5269
        %5271 = vdwg.mxu0
        %v5284 = vunpack.c.l.b16 %v4514
        %v5285 = vunpack.c.l.b16 %v4515
        %v5286 = vunpack.c.l.b16 %v4516
        %v5287 = vunpack.c.l.b16 %v4517
        %v5288 = vunpack.c.l.b16 %v4518
        %v5289 = vunpack.c.l.b16 %v4519
        %v5290 = vunpack.c.l.b16 %v4520
        %v5291 = vunpack.c.l.b16 %v4521
        %v5292 = vunpack.c.l.b16 %v4522
        %v5293 = vunpack.c.l.b16 %v4523
        %v5294 = vunpack.c.l.b16 %v4524
        %v5295 = vunpack.c.l.b16 %v4525
        %v5296 = vpack.c.b16 %v5285, %v5284
        %v5297 = vpack.c.b16 %v5287, %v5286
        %v5298 = vpack.c.b16 %v5289, %v5288
        %v5299 = vpack.c.b16 %v5291, %v5290
        %v5300 = vpack.c.b16 %v5293, %v5292
        %v5301 = vpack.c.b16 %v5295, %v5294
        %v5308 = vsel %vm2443, %v4483, 0
        %v5310 = vsel %vm2443, %v4485, 0
        %v5312 = vsel %vm2443, %v4487, 0
        %v5314 = vsel %vm2443, %v4489, 0
        %v5316 = vsel %vm2443, %v4491, 0
        %v5318 = vsel %vm2443, %v4493, 0
        %v5320 = vsel %vm2443, %v4495, 0
        %v5322 = vsel %vm2443, %v4497, 0
        %v5324 = vsel %vm2443, %v4499, 0
        %v5326 = vsel %vm2443, %v4501, 0
        %v5328 = vsel %vm2443, %v4503, 0
        %v5330 = vsel %vm2443, %v4505, 0
        %v5332 = vsel %vm2443, %v4507, 0
        %v5334 = vsel %vm2443, %v4509, 0
        %v5336 = vsel %vm2443, %v4511, 0
        %v5338 = vsel %vm2443, %v4513, 0
        %5340 = vmatpush.bf16.msra.mxu0 0
        %5341 = vmatpush.bf16.msra.mxu0 0
        %5342 = vmatpush.bf16.msra.mxu0 %v5301
        %5343 = vmatpush.bf16.msra.mxu0 %v5300
        %5344 = vmatpush.bf16.msra.mxu0 %v5299
        %5345 = vmatpush.bf16.msra.mxu0 %v5298
        %5346 = vmatpush.bf16.msra.mxu0 %v5297
        %5347 = vmatpush.bf16.msra.mxu0 %v5296
        %5348 = vmatmul.bf16.gmra.mxu0 %v5308
        %v5349 = vpop.f32.mrf.mxu0
        %v5350 = vadd.f32 %v5193, %v5349
        %v5351 = vpop.f32.mrf.mxu0
        %v5352 = vadd.f32 %v5195, %v5351
        %5353 = vmatmul.bf16.gmra.mxu0 %v5310
        %v5354 = vpop.f32.mrf.mxu0
        %v5355 = vadd.f32 %v5198, %v5354
        %v5356 = vpop.f32.mrf.mxu0
        %v5357 = vadd.f32 %v5200, %v5356
        %5358 = vmatmul.bf16.gmra.mxu0 %v5312
        %v5359 = vpop.f32.mrf.mxu0
        %v5360 = vadd.f32 %v5203, %v5359
        %v5361 = vpop.f32.mrf.mxu0
        %v5362 = vadd.f32 %v5205, %v5361
        %5363 = vmatmul.bf16.gmra.mxu0 %v5314
        %v5364 = vpop.f32.mrf.mxu0
        %v5365 = vadd.f32 %v5208, %v5364
        %v5366 = vpop.f32.mrf.mxu0
        %v5367 = vadd.f32 %v5210, %v5366
        %5368 = vmatmul.bf16.gmra.mxu0 %v5316
        %v5369 = vpop.f32.mrf.mxu0
        %v5370 = vadd.f32 %v5213, %v5369
        %v5371 = vpop.f32.mrf.mxu0
        %v5372 = vadd.f32 %v5215, %v5371
        %5373 = vmatmul.bf16.gmra.mxu0 %v5318
        %v5374 = vpop.f32.mrf.mxu0
        %v5375 = vadd.f32 %v5218, %v5374
        %v5376 = vpop.f32.mrf.mxu0
        %v5377 = vadd.f32 %v5220, %v5376
        %5378 = vmatmul.bf16.gmra.mxu0 %v5320
        %v5379 = vpop.f32.mrf.mxu0
        %v5380 = vadd.f32 %v5223, %v5379
        %v5381 = vpop.f32.mrf.mxu0
        %v5382 = vadd.f32 %v5225, %v5381
        %5383 = vmatmul.bf16.gmra.mxu0 %v5322
        %v5384 = vpop.f32.mrf.mxu0
        %v5385 = vadd.f32 %v5228, %v5384
        %v5386 = vpop.f32.mrf.mxu0
        %v5387 = vadd.f32 %v5230, %v5386
        %5388 = vmatmul.bf16.gmra.mxu0 %v5324
        %v5389 = vpop.f32.mrf.mxu0
        %v5390 = vadd.f32 %v5233, %v5389
        %v5391 = vpop.f32.mrf.mxu0
        %v5392 = vadd.f32 %v5235, %v5391
        %5393 = vmatmul.bf16.gmra.mxu0 %v5326
        %v5394 = vpop.f32.mrf.mxu0
        %v5395 = vadd.f32 %v5238, %v5394
        %v5396 = vpop.f32.mrf.mxu0
        %v5397 = vadd.f32 %v5240, %v5396
        %5398 = vmatmul.bf16.gmra.mxu0 %v5328
        %v5399 = vpop.f32.mrf.mxu0
        %v5400 = vadd.f32 %v5243, %v5399
        %v5401 = vpop.f32.mrf.mxu0
        %v5402 = vadd.f32 %v5245, %v5401
        %5403 = vmatmul.bf16.gmra.mxu0 %v5330
        %v5404 = vpop.f32.mrf.mxu0
        %v5405 = vadd.f32 %v5248, %v5404
        %v5406 = vpop.f32.mrf.mxu0
        %v5407 = vadd.f32 %v5250, %v5406
        %5408 = vmatmul.bf16.gmra.mxu0 %v5332
        %v5409 = vpop.f32.mrf.mxu0
        %v5410 = vadd.f32 %v5253, %v5409
        %v5411 = vpop.f32.mrf.mxu0
        %v5412 = vadd.f32 %v5255, %v5411
        %5413 = vmatmul.bf16.gmra.mxu0 %v5334
        %v5414 = vpop.f32.mrf.mxu0
        %v5415 = vadd.f32 %v5258, %v5414
        %v5416 = vpop.f32.mrf.mxu0
        %v5417 = vadd.f32 %v5260, %v5416
        %5418 = vmatmul.bf16.gmra.mxu0 %v5336
        %v5419 = vpop.f32.mrf.mxu0
        %v5420 = vadd.f32 %v5263, %v5419
        %v5421 = vpop.f32.mrf.mxu0
        %v5422 = vadd.f32 %v5265, %v5421
        %5423 = vmatmul.bf16.gmra.mxu0 %v5338
        %v5424 = vpop.f32.mrf.mxu0
        %v5425 = vadd.f32 %v5268, %v5424
        %v5426 = vpop.f32.mrf.mxu0
        %v5427 = vadd.f32 %v5270, %v5426
        %5428 = vdwg.mxu0
        %s5429 = scalar_lea.vmem [#allocation3], 64
        %v5430 = vld [vmem:[%s5429 + $0x7] sm:$0xff]
        %v5431 = vld [vmem:[%s5429 + $0xf] sm:$0xff]
        %v5432 = vld [vmem:[%s5429 + $0x27] sm:$0xff]
        %v5433 = vld [vmem:[%s5429 + $0x2f] sm:$0xff]
        %v5434 = vld [vmem:[%s5429 + $0x47] sm:$0xff]
        %v5435 = vld [vmem:[%s5429 + $0x4f] sm:$0xff]
        %v5436 = vld [vmem:[%s5429 + $0x67] sm:$0xff]
        %v5437 = vld [vmem:[%s5429 + $0x6f] sm:$0xff]
        %v5438 = vld [vmem:[%s5429 + $0x87] sm:$0xff]
        %v5439 = vld [vmem:[%s5429 + $0x8f] sm:$0xff]
        %v5440 = vld [vmem:[%s5429 + $0xa7] sm:$0xff]
        %v5441 = vld [vmem:[%s5429 + $0xaf] sm:$0xff]
        %v5442 = vld [vmem:[%s5429 + $0xc7] sm:$0xff]
        %v5443 = vld [vmem:[%s5429 + $0xcf] sm:$0xff]
        %v5444 = vld [vmem:[%s5429 + $0xe7] sm:$0xff]
        %v5445 = vld [vmem:[%s5429 + $0xef] sm:$0xff]
        %v5446 = vld [vmem:[%s5429 + $0x107] sm:$0xff]
        %v5447 = vld [vmem:[%s5429 + $0x10f] sm:$0xff]
        %v5448 = vld [vmem:[%s5429 + $0x127] sm:$0xff]
        %v5449 = vld [vmem:[%s5429 + $0x12f] sm:$0xff]
        %v5450 = vld [vmem:[%s5429 + $0x147] sm:$0xff]
        %v5451 = vld [vmem:[%s5429 + $0x14f] sm:$0xff]
        %v5452 = vld [vmem:[%s5429 + $0x167] sm:$0xff]
        %v5453 = vld [vmem:[%s5429 + $0x16f] sm:$0xff]
        %v5454 = vld [vmem:[%s5429 + $0x187] sm:$0xff]
        %v5455 = vld [vmem:[%s5429 + $0x18f] sm:$0xff]
        %v5456 = vld [vmem:[%s5429 + $0x1a7] sm:$0xff]
        %v5457 = vld [vmem:[%s5429 + $0x1af] sm:$0xff]
        %v5458 = vld [vmem:[%s5429 + $0x1c7] sm:$0xff]
        %v5459 = vld [vmem:[%s5429 + $0x1cf] sm:$0xff]
        %v5460 = vld [vmem:[%s5429 + $0x1e7] sm:$0xff]
        %v5461 = vld [vmem:[%s5429 + $0x1ef] sm:$0xff]
        %v5462 = vpack.c.bf16 %v5430, %v5430
        %v5463 = vpack.c.bf16 %v5431, %v5431
        %v5464 = vpack.c.bf16 %v5432, %v5432
        %v5465 = vpack.c.bf16 %v5433, %v5433
        %v5466 = vpack.c.bf16 %v5434, %v5434
        %v5467 = vpack.c.bf16 %v5435, %v5435
        %v5468 = vpack.c.bf16 %v5436, %v5436
        %v5469 = vpack.c.bf16 %v5437, %v5437
        %v5470 = vpack.c.bf16 %v5438, %v5438
        %v5471 = vpack.c.bf16 %v5439, %v5439
        %v5472 = vpack.c.bf16 %v5440, %v5440
        %v5473 = vpack.c.bf16 %v5441, %v5441
        %v5474 = vpack.c.bf16 %v5442, %v5442
        %v5475 = vpack.c.bf16 %v5443, %v5443
        %v5476 = vpack.c.bf16 %v5444, %v5444
        %v5477 = vpack.c.bf16 %v5445, %v5445
        %v5478 = vpack.c.bf16 %v5446, %v5446
        %v5479 = vpack.c.bf16 %v5447, %v5447
        %v5480 = vpack.c.bf16 %v5448, %v5448
        %v5481 = vpack.c.bf16 %v5449, %v5449
        %v5482 = vpack.c.bf16 %v5450, %v5450
        %v5483 = vpack.c.bf16 %v5451, %v5451
        %v5484 = vpack.c.bf16 %v5452, %v5452
        %v5485 = vpack.c.bf16 %v5453, %v5453
        %v5486 = vpack.c.bf16 %v5454, %v5454
        %v5487 = vpack.c.bf16 %v5455, %v5455
        %v5488 = vpack.c.bf16 %v5456, %v5456
        %v5489 = vpack.c.bf16 %v5457, %v5457
        %v5490 = vpack.c.bf16 %v5458, %v5458
        %v5491 = vpack.c.bf16 %v5459, %v5459
        %v5492 = vpack.c.bf16 %v5460, %v5460
        %v5493 = vpack.c.bf16 %v5461, %v5461
        %v5494 = vld [vmem:[%s5429 + $0x8] sm:$0xff]
        %v5495 = vld [vmem:[%s5429 + $0x10] sm:$0xff]
        %v5496 = vld [vmem:[%s5429 + $0x28] sm:$0xff]
        %v5497 = vld [vmem:[%s5429 + $0x30] sm:$0xff]
        %v5498 = vld [vmem:[%s5429 + $0x48] sm:$0xff]
        %v5499 = vld [vmem:[%s5429 + $0x50] sm:$0xff]
        %v5500 = vld [vmem:[%s5429 + $0x68] sm:$0xff]
        %v5501 = vld [vmem:[%s5429 + $0x70] sm:$0xff]
        %v5502 = vld [vmem:[%s5429 + $0x88] sm:$0xff]
        %v5503 = vld [vmem:[%s5429 + $0x90] sm:$0xff]
        %v5504 = vld [vmem:[%s5429 + $0xa8] sm:$0xff]
        %v5505 = vld [vmem:[%s5429 + $0xb0] sm:$0xff]
        %v5506 = vld [vmem:[%s5429 + $0xc8] sm:$0xff]
        %v5507 = vld [vmem:[%s5429 + $0xd0] sm:$0xff]
        %v5508 = vld [vmem:[%s5429 + $0xe8] sm:$0xff]
        %v5509 = vld [vmem:[%s5429 + $0xf0] sm:$0xff]
        %v5510 = vld [vmem:[%s5429 + $0x108] sm:$0xff]
        %v5511 = vld [vmem:[%s5429 + $0x110] sm:$0xff]
        %v5512 = vld [vmem:[%s5429 + $0x128] sm:$0xff]
        %v5513 = vld [vmem:[%s5429 + $0x130] sm:$0xff]
        %v5514 = vld [vmem:[%s5429 + $0x148] sm:$0xff]
        %v5515 = vld [vmem:[%s5429 + $0x150] sm:$0xff]
        %v5516 = vld [vmem:[%s5429 + $0x168] sm:$0xff]
        %v5517 = vld [vmem:[%s5429 + $0x170] sm:$0xff]
        %v5518 = vld [vmem:[%s5429 + $0x188] sm:$0xff]
        %v5519 = vld [vmem:[%s5429 + $0x190] sm:$0xff]
        %v5520 = vld [vmem:[%s5429 + $0x1a8] sm:$0xff]
        %v5521 = vld [vmem:[%s5429 + $0x1b0] sm:$0xff]
        %v5522 = vld [vmem:[%s5429 + $0x1c8] sm:$0xff]
        %v5523 = vld [vmem:[%s5429 + $0x1d0] sm:$0xff]
        %v5524 = vld [vmem:[%s5429 + $0x1e8] sm:$0xff]
        %v5525 = vld [vmem:[%s5429 + $0x1f0] sm:$0xff]
        %v5526 = vpack.c.bf16 %v5494, %v5494
        %v5527 = vpack.c.bf16 %v5495, %v5495
        %v5528 = vpack.c.bf16 %v5496, %v5496
        %v5529 = vpack.c.bf16 %v5497, %v5497
        %v5530 = vpack.c.bf16 %v5498, %v5498
        %v5531 = vpack.c.bf16 %v5499, %v5499
        %v5532 = vpack.c.bf16 %v5500, %v5500
        %v5533 = vpack.c.bf16 %v5501, %v5501
        %v5534 = vpack.c.bf16 %v5502, %v5502
        %v5535 = vpack.c.bf16 %v5503, %v5503
        %v5536 = vpack.c.bf16 %v5504, %v5504
        %v5537 = vpack.c.bf16 %v5505, %v5505
        %v5538 = vpack.c.bf16 %v5506, %v5506
        %v5539 = vpack.c.bf16 %v5507, %v5507
        %v5540 = vpack.c.bf16 %v5508, %v5508
        %v5541 = vpack.c.bf16 %v5509, %v5509
        %v5542 = vpack.c.bf16 %v5510, %v5510
        %v5543 = vpack.c.bf16 %v5511, %v5511
        %v5544 = vpack.c.bf16 %v5512, %v5512
        %v5545 = vpack.c.bf16 %v5513, %v5513
        %v5546 = vpack.c.bf16 %v5514, %v5514
        %v5547 = vpack.c.bf16 %v5515, %v5515
        %v5548 = vpack.c.bf16 %v5516, %v5516
        %v5549 = vpack.c.bf16 %v5517, %v5517
        %v5550 = vpack.c.bf16 %v5518, %v5518
        %v5551 = vpack.c.bf16 %v5519, %v5519
        %v5552 = vpack.c.bf16 %v5520, %v5520
        %v5553 = vpack.c.bf16 %v5521, %v5521
        %v5554 = vpack.c.bf16 %v5522, %v5522
        %v5555 = vpack.c.bf16 %v5523, %v5523
        %v5556 = vpack.c.bf16 %v5524, %v5524
        %v5557 = vpack.c.bf16 %v5525, %v5525
        %v5558 = vld [vmem:[%s5429 + $0x9] sm:$0xff]
        %v5559 = vld [vmem:[%s5429 + $0x11] sm:$0xff]
        %v5560 = vld [vmem:[%s5429 + $0x29] sm:$0xff]
        %v5561 = vld [vmem:[%s5429 + $0x31] sm:$0xff]
        %v5562 = vld [vmem:[%s5429 + $0x49] sm:$0xff]
        %v5563 = vld [vmem:[%s5429 + $0x51] sm:$0xff]
        %v5564 = vld [vmem:[%s5429 + $0x69] sm:$0xff]
        %v5565 = vld [vmem:[%s5429 + $0x71] sm:$0xff]
        %v5566 = vld [vmem:[%s5429 + $0x89] sm:$0xff]
        %v5567 = vld [vmem:[%s5429 + $0x91] sm:$0xff]
        %v5568 = vld [vmem:[%s5429 + $0xa9] sm:$0xff]
        %v5569 = vld [vmem:[%s5429 + $0xb1] sm:$0xff]
        %v5570 = vld [vmem:[%s5429 + $0xc9] sm:$0xff]
        %v5571 = vld [vmem:[%s5429 + $0xd1] sm:$0xff]
        %v5572 = vld [vmem:[%s5429 + $0xe9] sm:$0xff]
        %v5573 = vld [vmem:[%s5429 + $0xf1] sm:$0xff]
        %v5574 = vld [vmem:[%s5429 + $0x109] sm:$0xff]
        %v5575 = vld [vmem:[%s5429 + $0x111] sm:$0xff]
        %v5576 = vld [vmem:[%s5429 + $0x129] sm:$0xff]
        %v5577 = vld [vmem:[%s5429 + $0x131] sm:$0xff]
        %v5578 = vld [vmem:[%s5429 + $0x149] sm:$0xff]
        %v5579 = vld [vmem:[%s5429 + $0x151] sm:$0xff]
        %v5580 = vld [vmem:[%s5429 + $0x169] sm:$0xff]
        %v5581 = vld [vmem:[%s5429 + $0x171] sm:$0xff]
        %v5582 = vld [vmem:[%s5429 + $0x189] sm:$0xff]
        %v5583 = vld [vmem:[%s5429 + $0x191] sm:$0xff]
        %v5584 = vld [vmem:[%s5429 + $0x1a9] sm:$0xff]
        %v5585 = vld [vmem:[%s5429 + $0x1b1] sm:$0xff]
        %v5586 = vld [vmem:[%s5429 + $0x1c9] sm:$0xff]
        %v5587 = vld [vmem:[%s5429 + $0x1d1] sm:$0xff]
        %v5588 = vld [vmem:[%s5429 + $0x1e9] sm:$0xff]
        %v5589 = vld [vmem:[%s5429 + $0x1f1] sm:$0xff]
        %v5590 = vpack.c.bf16 %v5558, %v5558
        %v5591 = vpack.c.bf16 %v5559, %v5559
        %v5592 = vpack.c.bf16 %v5560, %v5560
        %v5593 = vpack.c.bf16 %v5561, %v5561
        %v5594 = vpack.c.bf16 %v5562, %v5562
        %v5595 = vpack.c.bf16 %v5563, %v5563
        %v5596 = vpack.c.bf16 %v5564, %v5564
        %v5597 = vpack.c.bf16 %v5565, %v5565
        %v5598 = vpack.c.bf16 %v5566, %v5566
        %v5599 = vpack.c.bf16 %v5567, %v5567
        %v5600 = vpack.c.bf16 %v5568, %v5568
        %v5601 = vpack.c.bf16 %v5569, %v5569
        %v5602 = vpack.c.bf16 %v5570, %v5570
        %v5603 = vpack.c.bf16 %v5571, %v5571
        %v5604 = vpack.c.bf16 %v5572, %v5572
        %v5605 = vpack.c.bf16 %v5573, %v5573
        %v5606 = vpack.c.bf16 %v5574, %v5574
        %v5607 = vpack.c.bf16 %v5575, %v5575
        %v5608 = vpack.c.bf16 %v5576, %v5576
        %v5609 = vpack.c.bf16 %v5577, %v5577
        %v5610 = vpack.c.bf16 %v5578, %v5578
        %v5611 = vpack.c.bf16 %v5579, %v5579
        %v5612 = vpack.c.bf16 %v5580, %v5580
        %v5613 = vpack.c.bf16 %v5581, %v5581
        %v5614 = vpack.c.bf16 %v5582, %v5582
        %v5615 = vpack.c.bf16 %v5583, %v5583
        %v5616 = vpack.c.bf16 %v5584, %v5584
        %v5617 = vpack.c.bf16 %v5585, %v5585
        %v5618 = vpack.c.bf16 %v5586, %v5586
        %v5619 = vpack.c.bf16 %v5587, %v5587
        %v5620 = vpack.c.bf16 %v5588, %v5588
        %v5621 = vpack.c.bf16 %v5589, %v5589
        %v5654 = vunpack.c.l.b16 %v5462
        %v5655 = vunpack.c.l.b16 %v5463
        %v5656 = vunpack.c.l.b16 %v5464
        %v5657 = vunpack.c.l.b16 %v5465
        %v5658 = vunpack.c.l.b16 %v5466
        %v5659 = vunpack.c.l.b16 %v5467
        %v5660 = vunpack.c.l.b16 %v5468
        %v5661 = vunpack.c.l.b16 %v5469
        %v5662 = vunpack.c.l.b16 %v5470
        %v5663 = vunpack.c.l.b16 %v5471
        %v5664 = vunpack.c.l.b16 %v5472
        %v5665 = vunpack.c.l.b16 %v5473
        %v5666 = vunpack.c.l.b16 %v5474
        %v5667 = vunpack.c.l.b16 %v5475
        %v5668 = vunpack.c.l.b16 %v5476
        %v5669 = vunpack.c.l.b16 %v5477
        %v5670 = vunpack.c.l.b16 %v5478
        %v5671 = vunpack.c.l.b16 %v5479
        %v5672 = vunpack.c.l.b16 %v5480
        %v5673 = vunpack.c.l.b16 %v5481
        %v5674 = vunpack.c.l.b16 %v5482
        %v5675 = vunpack.c.l.b16 %v5483
        %v5676 = vunpack.c.l.b16 %v5484
        %v5677 = vunpack.c.l.b16 %v5485
        %v5678 = vunpack.c.l.b16 %v5486
        %v5679 = vunpack.c.l.b16 %v5487
        %v5680 = vunpack.c.l.b16 %v5488
        %v5681 = vunpack.c.l.b16 %v5489
        %v5682 = vunpack.c.l.b16 %v5490
        %v5683 = vunpack.c.l.b16 %v5491
        %v5684 = vunpack.c.l.b16 %v5492
        %v5685 = vunpack.c.l.b16 %v5493
        %v5686 = vpack.c.b16 %v5655, %v5654
        %v5687 = vpack.c.b16 %v5657, %v5656
        %v5688 = vpack.c.b16 %v5659, %v5658
        %v5689 = vpack.c.b16 %v5661, %v5660
        %v5690 = vpack.c.b16 %v5663, %v5662
        %v5691 = vpack.c.b16 %v5665, %v5664
        %v5692 = vpack.c.b16 %v5667, %v5666
        %v5693 = vpack.c.b16 %v5669, %v5668
        %v5694 = vpack.c.b16 %v5671, %v5670
        %v5695 = vpack.c.b16 %v5673, %v5672
        %v5696 = vpack.c.b16 %v5675, %v5674
        %v5697 = vpack.c.b16 %v5677, %v5676
        %v5698 = vpack.c.b16 %v5679, %v5678
        %v5699 = vpack.c.b16 %v5681, %v5680
        %v5700 = vpack.c.b16 %v5683, %v5682
        %v5701 = vpack.c.b16 %v5685, %v5684
        %v5734 = vunpack.c.l.b16 %v5526
        %v5735 = vunpack.c.l.b16 %v5527
        %v5736 = vunpack.c.l.b16 %v5528
        %v5737 = vunpack.c.l.b16 %v5529
        %v5738 = vunpack.c.l.b16 %v5530
        %v5739 = vunpack.c.l.b16 %v5531
        %v5740 = vunpack.c.l.b16 %v5532
        %v5741 = vunpack.c.l.b16 %v5533
        %v5742 = vunpack.c.l.b16 %v5534
        %v5743 = vunpack.c.l.b16 %v5535
        %v5744 = vunpack.c.l.b16 %v5536
        %v5745 = vunpack.c.l.b16 %v5537
        %v5746 = vunpack.c.l.b16 %v5538
        %v5747 = vunpack.c.l.b16 %v5539
        %v5748 = vunpack.c.l.b16 %v5540
        %v5749 = vunpack.c.l.b16 %v5541
        %v5750 = vunpack.c.l.b16 %v5542
        %v5751 = vunpack.c.l.b16 %v5543
        %v5752 = vunpack.c.l.b16 %v5544
        %v5753 = vunpack.c.l.b16 %v5545
        %v5754 = vunpack.c.l.b16 %v5546
        %v5755 = vunpack.c.l.b16 %v5547
        %v5756 = vunpack.c.l.b16 %v5548
        %v5757 = vunpack.c.l.b16 %v5549
        %v5758 = vunpack.c.l.b16 %v5550
        %v5759 = vunpack.c.l.b16 %v5551
        %v5760 = vunpack.c.l.b16 %v5552
        %v5761 = vunpack.c.l.b16 %v5553
        %v5762 = vunpack.c.l.b16 %v5554
        %v5763 = vunpack.c.l.b16 %v5555
        %v5764 = vunpack.c.l.b16 %v5556
        %v5765 = vunpack.c.l.b16 %v5557
        %v5766 = vpack.c.b16 %v5735, %v5734
        %v5767 = vpack.c.b16 %v5737, %v5736
        %v5768 = vpack.c.b16 %v5739, %v5738
        %v5769 = vpack.c.b16 %v5741, %v5740
        %v5770 = vpack.c.b16 %v5743, %v5742
        %v5771 = vpack.c.b16 %v5745, %v5744
        %v5772 = vpack.c.b16 %v5747, %v5746
        %v5773 = vpack.c.b16 %v5749, %v5748
        %v5774 = vpack.c.b16 %v5751, %v5750
        %v5775 = vpack.c.b16 %v5753, %v5752
        %v5776 = vpack.c.b16 %v5755, %v5754
        %v5777 = vpack.c.b16 %v5757, %v5756
        %v5778 = vpack.c.b16 %v5759, %v5758
        %v5779 = vpack.c.b16 %v5761, %v5760
        %v5780 = vpack.c.b16 %v5763, %v5762
        %v5781 = vpack.c.b16 %v5765, %v5764
        %5782 = vrot.lane.b32.xlu0 %v5766, 32
        %v5783 = vpop.permute.xlu0 %5782
        %5784 = vrot.lane.b32.xlu0 %v5767, 32
        %v5785 = vpop.permute.xlu0 %5784
        %5786 = vrot.lane.b32.xlu0 %v5768, 32
        %v5787 = vpop.permute.xlu0 %5786
        %5788 = vrot.lane.b32.xlu0 %v5769, 32
        %v5789 = vpop.permute.xlu0 %5788
        %5790 = vrot.lane.b32.xlu0 %v5770, 32
        %v5791 = vpop.permute.xlu0 %5790
        %5792 = vrot.lane.b32.xlu0 %v5771, 32
        %v5793 = vpop.permute.xlu0 %5792
        %5794 = vrot.lane.b32.xlu0 %v5772, 32
        %v5795 = vpop.permute.xlu0 %5794
        %5796 = vrot.lane.b32.xlu0 %v5773, 32
        %v5797 = vpop.permute.xlu0 %5796
        %5798 = vrot.lane.b32.xlu0 %v5774, 32
        %v5799 = vpop.permute.xlu0 %5798
        %5800 = vrot.lane.b32.xlu0 %v5775, 32
        %v5801 = vpop.permute.xlu0 %5800
        %5802 = vrot.lane.b32.xlu0 %v5776, 32
        %v5803 = vpop.permute.xlu0 %5802
        %5804 = vrot.lane.b32.xlu0 %v5777, 32
        %v5805 = vpop.permute.xlu0 %5804
        %5806 = vrot.lane.b32.xlu0 %v5778, 32
        %v5807 = vpop.permute.xlu0 %5806
        %5808 = vrot.lane.b32.xlu0 %v5779, 32
        %v5809 = vpop.permute.xlu0 %5808
        %5810 = vrot.lane.b32.xlu0 %v5780, 32
        %v5811 = vpop.permute.xlu0 %5810
        %5812 = vrot.lane.b32.xlu0 %v5781, 32
        %v5813 = vpop.permute.xlu0 %5812
        %v5846 = vunpack.c.l.b16 %v5590
        %v5847 = vunpack.c.l.b16 %v5591
        %v5848 = vunpack.c.l.b16 %v5592
        %v5849 = vunpack.c.l.b16 %v5593
        %v5850 = vunpack.c.l.b16 %v5594
        %v5851 = vunpack.c.l.b16 %v5595
        %v5852 = vunpack.c.l.b16 %v5596
        %v5853 = vunpack.c.l.b16 %v5597
        %v5854 = vunpack.c.l.b16 %v5598
        %v5855 = vunpack.c.l.b16 %v5599
        %v5856 = vunpack.c.l.b16 %v5600
        %v5857 = vunpack.c.l.b16 %v5601
        %v5858 = vunpack.c.l.b16 %v5602
        %v5859 = vunpack.c.l.b16 %v5603
        %v5860 = vunpack.c.l.b16 %v5604
        %v5861 = vunpack.c.l.b16 %v5605
        %v5862 = vunpack.c.l.b16 %v5606
        %v5863 = vunpack.c.l.b16 %v5607
        %v5864 = vunpack.c.l.b16 %v5608
        %v5865 = vunpack.c.l.b16 %v5609
        %v5866 = vunpack.c.l.b16 %v5610
        %v5867 = vunpack.c.l.b16 %v5611
        %v5868 = vunpack.c.l.b16 %v5612
        %v5869 = vunpack.c.l.b16 %v5613
        %v5870 = vunpack.c.l.b16 %v5614
        %v5871 = vunpack.c.l.b16 %v5615
        %v5872 = vunpack.c.l.b16 %v5616
        %v5873 = vunpack.c.l.b16 %v5617
        %v5874 = vunpack.c.l.b16 %v5618
        %v5875 = vunpack.c.l.b16 %v5619
        %v5876 = vunpack.c.l.b16 %v5620
        %v5877 = vunpack.c.l.b16 %v5621
        %v5878 = vpack.c.b16 %v5847, %v5846
        %v5879 = vpack.c.b16 %v5849, %v5848
        %v5880 = vpack.c.b16 %v5851, %v5850
        %v5881 = vpack.c.b16 %v5853, %v5852
        %v5882 = vpack.c.b16 %v5855, %v5854
        %v5883 = vpack.c.b16 %v5857, %v5856
        %v5884 = vpack.c.b16 %v5859, %v5858
        %v5885 = vpack.c.b16 %v5861, %v5860
        %v5886 = vpack.c.b16 %v5863, %v5862
        %v5887 = vpack.c.b16 %v5865, %v5864
        %v5888 = vpack.c.b16 %v5867, %v5866
        %v5889 = vpack.c.b16 %v5869, %v5868
        %v5890 = vpack.c.b16 %v5871, %v5870
        %v5891 = vpack.c.b16 %v5873, %v5872
        %v5892 = vpack.c.b16 %v5875, %v5874
        %v5893 = vpack.c.b16 %v5877, %v5876
        %5894 = vrot.lane.b32.xlu0 %v5878, 64
        %v5895 = vpop.permute.xlu0 %5894
        %5896 = vrot.lane.b32.xlu0 %v5879, 64
        %v5897 = vpop.permute.xlu0 %5896
        %5898 = vrot.lane.b32.xlu0 %v5880, 64
        %v5899 = vpop.permute.xlu0 %5898
        %5900 = vrot.lane.b32.xlu0 %v5881, 64
        %v5901 = vpop.permute.xlu0 %5900
        %5902 = vrot.lane.b32.xlu0 %v5882, 64
        %v5903 = vpop.permute.xlu0 %5902
        %5904 = vrot.lane.b32.xlu0 %v5883, 64
        %v5905 = vpop.permute.xlu0 %5904
        %5906 = vrot.lane.b32.xlu0 %v5884, 64
        %v5907 = vpop.permute.xlu0 %5906
        %5908 = vrot.lane.b32.xlu0 %v5885, 64
        %v5909 = vpop.permute.xlu0 %5908
        %5910 = vrot.lane.b32.xlu0 %v5886, 64
        %v5911 = vpop.permute.xlu0 %5910
        %5912 = vrot.lane.b32.xlu0 %v5887, 64
        %v5913 = vpop.permute.xlu0 %5912
        %5914 = vrot.lane.b32.xlu0 %v5888, 64
        %v5915 = vpop.permute.xlu0 %5914
        %5916 = vrot.lane.b32.xlu0 %v5889, 64
        %v5917 = vpop.permute.xlu0 %5916
        %5918 = vrot.lane.b32.xlu0 %v5890, 64
        %v5919 = vpop.permute.xlu0 %5918
        %5920 = vrot.lane.b32.xlu0 %v5891, 64
        %v5921 = vpop.permute.xlu0 %5920
        %5922 = vrot.lane.b32.xlu0 %v5892, 64
        %v5923 = vpop.permute.xlu0 %5922
        %5924 = vrot.lane.b32.xlu0 %v5893, 64
        %v5925 = vpop.permute.xlu0 %5924
        %v5928 = vsel %vm467, %v5686, %v5783
        %v5931 = vsel %vm467, %v5687, %v5785
        %v5934 = vsel %vm467, %v5688, %v5787
        %v5937 = vsel %vm467, %v5689, %v5789
        %v5940 = vsel %vm467, %v5690, %v5791
        %v5943 = vsel %vm467, %v5691, %v5793
        %v5946 = vsel %vm467, %v5692, %v5795
        %v5949 = vsel %vm467, %v5693, %v5797
        %v5952 = vsel %vm467, %v5694, %v5799
        %v5955 = vsel %vm467, %v5695, %v5801
        %v5958 = vsel %vm467, %v5696, %v5803
        %v5961 = vsel %vm467, %v5697, %v5805
        %v5964 = vsel %vm467, %v5698, %v5807
        %v5967 = vsel %vm467, %v5699, %v5809
        %v5970 = vsel %vm467, %v5700, %v5811
        %v5973 = vsel %vm467, %v5701, %v5813
        %v5975 = vsel %vm1773, %v5928, %v5895
        %v5977 = vsel %vm1773, %v5931, %v5897
        %v5979 = vsel %vm1773, %v5934, %v5899
        %v5981 = vsel %vm1773, %v5937, %v5901
        %v5983 = vsel %vm1773, %v5940, %v5903
        %v5985 = vsel %vm1773, %v5943, %v5905
        %v5987 = vsel %vm1773, %v5946, %v5907
        %v5989 = vsel %vm1773, %v5949, %v5909
        %v5991 = vsel %vm1773, %v5952, %v5911
        %v5993 = vsel %vm1773, %v5955, %v5913
        %v5995 = vsel %vm1773, %v5958, %v5915
        %v5997 = vsel %vm1773, %v5961, %v5917
        %v5999 = vsel %vm1773, %v5964, %v5919
        %v6001 = vsel %vm1773, %v5967, %v5921
        %v6003 = vsel %vm1773, %v5970, %v5923
        %v6005 = vsel %vm1773, %v5973, %v5925
        %s6006 = scalar_lea.vmem %s10, 96
        %v6007 = vld [vmem:[%s6006] sm:$0xf]
        %v6008 = vld [vmem:[%s6006 + $0x4] sm:$0xf]
        %v6009 = vld [vmem:[%s6006 + $0x8] sm:$0xf]
        %v6010 = vld [vmem:[%s6006 + $0xc] sm:$0xf]
        %v6011 = vld [vmem:[%s6006 + $0x10] sm:$0xf]
        %v6012 = vld [vmem:[%s6006 + $0x14] sm:$0xf]
        %v6013 = vld [vmem:[%s6006 + $0x18] sm:$0xf]
        %v6014 = vld [vmem:[%s6006 + $0x1c] sm:$0xf]
        %v6015 = vld [vmem:[%s6006 + $0x20] sm:$0xf]
        %v6016 = vld [vmem:[%s6006 + $0x24] sm:$0xf]
        %v6017 = vld [vmem:[%s6006 + $0x28] sm:$0xf]
        %v6018 = vld [vmem:[%s6006 + $0x2c] sm:$0xf]
        %v6031 = vunpack.c.l.b16 %v6007
        %v6032 = vunpack.c.l.b16 %v6008
        %v6033 = vunpack.c.l.b16 %v6009
        %v6034 = vunpack.c.l.b16 %v6010
        %v6035 = vunpack.c.l.b16 %v6011
        %v6036 = vunpack.c.l.b16 %v6012
        %v6037 = vunpack.c.l.b16 %v6013
        %v6038 = vunpack.c.l.b16 %v6014
        %v6039 = vunpack.c.l.b16 %v6015
        %v6040 = vunpack.c.l.b16 %v6016
        %v6041 = vunpack.c.l.b16 %v6017
        %v6042 = vunpack.c.l.b16 %v6018
        %v6043 = vpack.c.b16 %v6032, %v6031
        %v6044 = vpack.c.b16 %v6034, %v6033
        %v6045 = vpack.c.b16 %v6036, %v6035
        %v6046 = vpack.c.b16 %v6038, %v6037
        %v6047 = vpack.c.b16 %v6040, %v6039
        %v6048 = vpack.c.b16 %v6042, %v6041
        %v6055 = vsel %vm2443, %v5975, 0
        %v6057 = vsel %vm2443, %v5977, 0
        %v6059 = vsel %vm2443, %v5979, 0
        %v6061 = vsel %vm2443, %v5981, 0
        %v6063 = vsel %vm2443, %v5983, 0
        %v6065 = vsel %vm2443, %v5985, 0
        %v6067 = vsel %vm2443, %v5987, 0
        %v6069 = vsel %vm2443, %v5989, 0
        %v6071 = vsel %vm2443, %v5991, 0
        %v6073 = vsel %vm2443, %v5993, 0
        %v6075 = vsel %vm2443, %v5995, 0
        %v6077 = vsel %vm2443, %v5997, 0
        %v6079 = vsel %vm2443, %v5999, 0
        %v6081 = vsel %vm2443, %v6001, 0
        %v6083 = vsel %vm2443, %v6003, 0
        %v6085 = vsel %vm2443, %v6005, 0
        %6087 = vmatpush.bf16.msra.mxu0 0
        %6088 = vmatpush.bf16.msra.mxu0 0
        %6089 = vmatpush.bf16.msra.mxu0 %v6048
        %6090 = vmatpush.bf16.msra.mxu0 %v6047
        %6091 = vmatpush.bf16.msra.mxu0 %v6046
        %6092 = vmatpush.bf16.msra.mxu0 %v6045
        %6093 = vmatpush.bf16.msra.mxu0 %v6044
        %6094 = vmatpush.bf16.msra.mxu0 %v6043
        %6095 = vmatmul.bf16.gmra.mxu0 %v6055
        %v6096 = vpop.f32.mrf.mxu0
        %v6097 = vadd.f32 0.0, %v6096
        %v6098 = vpop.f32.mrf.mxu0
        %v6099 = vadd.f32 0.0, %v6098
        %6100 = vmatmul.bf16.gmra.mxu0 %v6057
        %v6101 = vpop.f32.mrf.mxu0
        %v6102 = vadd.f32 0.0, %v6101
        %v6103 = vpop.f32.mrf.mxu0
        %v6104 = vadd.f32 0.0, %v6103
        %6105 = vmatmul.bf16.gmra.mxu0 %v6059
        %v6106 = vpop.f32.mrf.mxu0
        %v6107 = vadd.f32 0.0, %v6106
        %v6108 = vpop.f32.mrf.mxu0
        %v6109 = vadd.f32 0.0, %v6108
        %6110 = vmatmul.bf16.gmra.mxu0 %v6061
        %v6111 = vpop.f32.mrf.mxu0
        %v6112 = vadd.f32 0.0, %v6111
        %v6113 = vpop.f32.mrf.mxu0
        %v6114 = vadd.f32 0.0, %v6113
        %6115 = vmatmul.bf16.gmra.mxu0 %v6063
        %v6116 = vpop.f32.mrf.mxu0
        %v6117 = vadd.f32 0.0, %v6116
        %v6118 = vpop.f32.mrf.mxu0
        %v6119 = vadd.f32 0.0, %v6118
        %6120 = vmatmul.bf16.gmra.mxu0 %v6065
        %v6121 = vpop.f32.mrf.mxu0
        %v6122 = vadd.f32 0.0, %v6121
        %v6123 = vpop.f32.mrf.mxu0
        %v6124 = vadd.f32 0.0, %v6123
        %6125 = vmatmul.bf16.gmra.mxu0 %v6067
        %v6126 = vpop.f32.mrf.mxu0
        %v6127 = vadd.f32 0.0, %v6126
        %v6128 = vpop.f32.mrf.mxu0
        %v6129 = vadd.f32 0.0, %v6128
        %6130 = vmatmul.bf16.gmra.mxu0 %v6069
        %v6131 = vpop.f32.mrf.mxu0
        %v6132 = vadd.f32 0.0, %v6131
        %v6133 = vpop.f32.mrf.mxu0
        %v6134 = vadd.f32 0.0, %v6133
        %6135 = vmatmul.bf16.gmra.mxu0 %v6071
        %v6136 = vpop.f32.mrf.mxu0
        %v6137 = vadd.f32 0.0, %v6136
        %v6138 = vpop.f32.mrf.mxu0
        %v6139 = vadd.f32 0.0, %v6138
        %6140 = vmatmul.bf16.gmra.mxu0 %v6073
        %v6141 = vpop.f32.mrf.mxu0
        %v6142 = vadd.f32 0.0, %v6141
        %v6143 = vpop.f32.mrf.mxu0
        %v6144 = vadd.f32 0.0, %v6143
        %6145 = vmatmul.bf16.gmra.mxu0 %v6075
        %v6146 = vpop.f32.mrf.mxu0
        %v6147 = vadd.f32 0.0, %v6146
        %v6148 = vpop.f32.mrf.mxu0
        %v6149 = vadd.f32 0.0, %v6148
        %6150 = vmatmul.bf16.gmra.mxu0 %v6077
        %v6151 = vpop.f32.mrf.mxu0
        %v6152 = vadd.f32 0.0, %v6151
        %v6153 = vpop.f32.mrf.mxu0
        %v6154 = vadd.f32 0.0, %v6153
        %6155 = vmatmul.bf16.gmra.mxu0 %v6079
        %v6156 = vpop.f32.mrf.mxu0
        %v6157 = vadd.f32 0.0, %v6156
        %v6158 = vpop.f32.mrf.mxu0
        %v6159 = vadd.f32 0.0, %v6158
        %6160 = vmatmul.bf16.gmra.mxu0 %v6081
        %v6161 = vpop.f32.mrf.mxu0
        %v6162 = vadd.f32 0.0, %v6161
        %v6163 = vpop.f32.mrf.mxu0
        %v6164 = vadd.f32 0.0, %v6163
        %6165 = vmatmul.bf16.gmra.mxu0 %v6083
        %v6166 = vpop.f32.mrf.mxu0
        %v6167 = vadd.f32 0.0, %v6166
        %v6168 = vpop.f32.mrf.mxu0
        %v6169 = vadd.f32 0.0, %v6168
        %6170 = vmatmul.bf16.gmra.mxu0 %v6085
        %v6171 = vpop.f32.mrf.mxu0
        %v6172 = vadd.f32 0.0, %v6171
        %v6173 = vpop.f32.mrf.mxu0
        %v6174 = vadd.f32 0.0, %v6173
        %6175 = vdwg.mxu0
        %v6176 = vadd.f32 %v5350, %v6097
        %v6177 = vadd.f32 %v5352, %v6099
        %v6178 = vadd.f32 %v5355, %v6102
        %v6179 = vadd.f32 %v5357, %v6104
        %v6180 = vadd.f32 %v5360, %v6107
        %v6181 = vadd.f32 %v5362, %v6109
        %v6182 = vadd.f32 %v5365, %v6112
        %v6183 = vadd.f32 %v5367, %v6114
        %v6184 = vadd.f32 %v5370, %v6117
        %v6185 = vadd.f32 %v5372, %v6119
        %v6186 = vadd.f32 %v5375, %v6122
        %v6187 = vadd.f32 %v5377, %v6124
        %v6188 = vadd.f32 %v5380, %v6127
        %v6189 = vadd.f32 %v5382, %v6129
        %v6190 = vadd.f32 %v5385, %v6132
        %v6191 = vadd.f32 %v5387, %v6134
        %v6192 = vadd.f32 %v5390, %v6137
        %v6193 = vadd.f32 %v5392, %v6139
        %v6194 = vadd.f32 %v5395, %v6142
        %v6195 = vadd.f32 %v5397, %v6144
        %v6196 = vadd.f32 %v5400, %v6147
        %v6197 = vadd.f32 %v5402, %v6149
        %v6198 = vadd.f32 %v5405, %v6152
        %v6199 = vadd.f32 %v5407, %v6154
        %v6200 = vadd.f32 %v5410, %v6157
        %v6201 = vadd.f32 %v5412, %v6159
        %v6202 = vadd.f32 %v5415, %v6162
        %v6203 = vadd.f32 %v5417, %v6164
        %v6204 = vadd.f32 %v5420, %v6167
        %v6205 = vadd.f32 %v5422, %v6169
        %v6206 = vadd.f32 %v5425, %v6172
        %v6207 = vadd.f32 %v5427, %v6174
        %v6208 = vld [vmem:[%s11] sm:$0x1]
        %v6210 = vperm.slane %v6208, 0
        %v6212 = vadd.f32 %v6176, %v6210
        %v6213 = vadd.f32 %v6177, %v6210
        %v6214 = vadd.f32 %v6178, %v6210
        %v6215 = vadd.f32 %v6179, %v6210
        %v6216 = vadd.f32 %v6180, %v6210
        %v6217 = vadd.f32 %v6181, %v6210
        %v6218 = vadd.f32 %v6182, %v6210
        %v6219 = vadd.f32 %v6183, %v6210
        %v6220 = vadd.f32 %v6184, %v6210
        %v6221 = vadd.f32 %v6185, %v6210
        %v6222 = vadd.f32 %v6186, %v6210
        %v6223 = vadd.f32 %v6187, %v6210
        %v6224 = vadd.f32 %v6188, %v6210
        %v6225 = vadd.f32 %v6189, %v6210
        %v6226 = vadd.f32 %v6190, %v6210
        %v6227 = vadd.f32 %v6191, %v6210
        %v6228 = vadd.f32 %v6192, %v6210
        %v6229 = vadd.f32 %v6193, %v6210
        %v6230 = vadd.f32 %v6194, %v6210
        %v6231 = vadd.f32 %v6195, %v6210
        %v6232 = vadd.f32 %v6196, %v6210
        %v6233 = vadd.f32 %v6197, %v6210
        %v6234 = vadd.f32 %v6198, %v6210
        %v6235 = vadd.f32 %v6199, %v6210
        %v6236 = vadd.f32 %v6200, %v6210
        %v6237 = vadd.f32 %v6201, %v6210
        %v6238 = vadd.f32 %v6202, %v6210
        %v6239 = vadd.f32 %v6203, %v6210
        %v6240 = vadd.f32 %v6204, %v6210
        %v6241 = vadd.f32 %v6205, %v6210
        %v6242 = vadd.f32 %v6206, %v6210
        %v6243 = vadd.f32 %v6207, %v6210
        %v6244 = vsel %vm467, %v6212, 0.0
        %v6245 = vsel %vm467, %v6213, 0.0
        %v6246 = vadd.f32 %v6244, %v6245
        %v6247 = vsel %vm467, %v6214, 0.0
        %v6248 = vadd.f32 %v6246, %v6247
        %v6249 = vsel %vm467, %v6215, 0.0
        %v6250 = vadd.f32 %v6248, %v6249
        %v6251 = vsel %vm467, %v6216, 0.0
        %v6252 = vadd.f32 %v6250, %v6251
        %v6253 = vsel %vm467, %v6217, 0.0
        %v6254 = vadd.f32 %v6252, %v6253
        %v6255 = vsel %vm467, %v6218, 0.0
        %v6256 = vadd.f32 %v6254, %v6255
        %v6257 = vsel %vm467, %v6219, 0.0
        %v6258 = vadd.f32 %v6256, %v6257
        %v6259 = vsel %vm467, %v6220, 0.0
        %v6260 = vadd.f32 %v6258, %v6259
        %v6261 = vsel %vm467, %v6221, 0.0
        %v6262 = vadd.f32 %v6260, %v6261
        %v6263 = vsel %vm467, %v6222, 0.0
        %v6264 = vadd.f32 %v6262, %v6263
        %v6265 = vsel %vm467, %v6223, 0.0
        %v6266 = vadd.f32 %v6264, %v6265
        %v6267 = vsel %vm467, %v6224, 0.0
        %v6268 = vadd.f32 %v6266, %v6267
        %v6269 = vsel %vm467, %v6225, 0.0
        %v6270 = vadd.f32 %v6268, %v6269
        %v6271 = vsel %vm467, %v6226, 0.0
        %v6272 = vadd.f32 %v6270, %v6271
        %v6273 = vsel %vm467, %v6227, 0.0
        %v6274 = vadd.f32 %v6272, %v6273
        %v6275 = vsel %vm467, %v6228, 0.0
        %v6276 = vadd.f32 %v6274, %v6275
        %v6277 = vsel %vm467, %v6229, 0.0
        %v6278 = vadd.f32 %v6276, %v6277
        %v6279 = vsel %vm467, %v6230, 0.0
        %v6280 = vadd.f32 %v6278, %v6279
        %v6281 = vsel %vm467, %v6231, 0.0
        %v6282 = vadd.f32 %v6280, %v6281
        %v6283 = vsel %vm467, %v6232, 0.0
        %v6284 = vadd.f32 %v6282, %v6283
        %v6285 = vsel %vm467, %v6233, 0.0
        %v6286 = vadd.f32 %v6284, %v6285
        %v6287 = vsel %vm467, %v6234, 0.0
        %v6288 = vadd.f32 %v6286, %v6287
        %v6289 = vsel %vm467, %v6235, 0.0
        %v6290 = vadd.f32 %v6288, %v6289
        %v6291 = vsel %vm467, %v6236, 0.0
        %v6292 = vadd.f32 %v6290, %v6291
        %v6293 = vsel %vm467, %v6237, 0.0
        %v6294 = vadd.f32 %v6292, %v6293
        %v6295 = vsel %vm467, %v6238, 0.0
        %v6296 = vadd.f32 %v6294, %v6295
        %v6297 = vsel %vm467, %v6239, 0.0
        %v6298 = vadd.f32 %v6296, %v6297
        %v6299 = vsel %vm467, %v6240, 0.0
        %v6300 = vadd.f32 %v6298, %v6299
        %v6301 = vsel %vm467, %v6241, 0.0
        %v6302 = vadd.f32 %v6300, %v6301
        %v6303 = vsel %vm467, %v6242, 0.0
        %v6304 = vadd.f32 %v6302, %v6303
        %v6305 = vsel %vm467, %v6243, 0.0
        %v6306 = vadd.f32 %v6304, %v6305
        %v6307 = vrot.slane %v6306, 4
        %v6308 = vadd.f32 %v6306, %v6307
        %v6309 = vrot.slane %v6308, 2
        %v6310 = vadd.f32 %v6308, %v6309
        %v6311 = vrot.slane %v6310, 1
        %v6312 = vadd.f32 %v6310, %v6311
        %v6313 = vmul.f32 %v6212, %v6212
        %v6314 = vmul.f32 %v6213, %v6213
        %v6315 = vmul.f32 %v6214, %v6214
        %v6316 = vmul.f32 %v6215, %v6215
        %v6317 = vmul.f32 %v6216, %v6216
        %v6318 = vmul.f32 %v6217, %v6217
        %v6319 = vmul.f32 %v6218, %v6218
        %v6320 = vmul.f32 %v6219, %v6219
        %v6321 = vmul.f32 %v6220, %v6220
        %v6322 = vmul.f32 %v6221, %v6221
        %v6323 = vmul.f32 %v6222, %v6222
        %v6324 = vmul.f32 %v6223, %v6223
        %v6325 = vmul.f32 %v6224, %v6224
        %v6326 = vmul.f32 %v6225, %v6225
        %v6327 = vmul.f32 %v6226, %v6226
        %v6328 = vmul.f32 %v6227, %v6227
        %v6329 = vmul.f32 %v6228, %v6228
        %v6330 = vmul.f32 %v6229, %v6229
        %v6331 = vmul.f32 %v6230, %v6230
        %v6332 = vmul.f32 %v6231, %v6231
        %v6333 = vmul.f32 %v6232, %v6232
        %v6334 = vmul.f32 %v6233, %v6233
        %v6335 = vmul.f32 %v6234, %v6234
        %v6336 = vmul.f32 %v6235, %v6235
        %v6337 = vmul.f32 %v6236, %v6236
        %v6338 = vmul.f32 %v6237, %v6237
        %v6339 = vmul.f32 %v6238, %v6238
        %v6340 = vmul.f32 %v6239, %v6239
        %v6341 = vmul.f32 %v6240, %v6240
        %v6342 = vmul.f32 %v6241, %v6241
        %v6343 = vmul.f32 %v6242, %v6242
        %v6344 = vmul.f32 %v6243, %v6243
        %v6345 = vsel %vm467, %v6313, 0.0
        %v6346 = vsel %vm467, %v6314, 0.0
        %v6347 = vadd.f32 %v6345, %v6346
        %v6348 = vsel %vm467, %v6315, 0.0
        %v6349 = vadd.f32 %v6347, %v6348
        %v6350 = vsel %vm467, %v6316, 0.0
        %v6351 = vadd.f32 %v6349, %v6350
        %v6352 = vsel %vm467, %v6317, 0.0
        %v6353 = vadd.f32 %v6351, %v6352
        %v6354 = vsel %vm467, %v6318, 0.0
        %v6355 = vadd.f32 %v6353, %v6354
        %v6356 = vsel %vm467, %v6319, 0.0
        %v6357 = vadd.f32 %v6355, %v6356
        %v6358 = vsel %vm467, %v6320, 0.0
        %v6359 = vadd.f32 %v6357, %v6358
        %v6360 = vsel %vm467, %v6321, 0.0
        %v6361 = vadd.f32 %v6359, %v6360
        %v6362 = vsel %vm467, %v6322, 0.0
        %v6363 = vadd.f32 %v6361, %v6362
        %v6364 = vsel %vm467, %v6323, 0.0
        %v6365 = vadd.f32 %v6363, %v6364
        %v6366 = vsel %vm467, %v6324, 0.0
        %v6367 = vadd.f32 %v6365, %v6366
        %v6368 = vsel %vm467, %v6325, 0.0
        %v6369 = vadd.f32 %v6367, %v6368
        %v6370 = vsel %vm467, %v6326, 0.0
        %v6371 = vadd.f32 %v6369, %v6370
        %v6372 = vsel %vm467, %v6327, 0.0
        %v6373 = vadd.f32 %v6371, %v6372
        %v6374 = vsel %vm467, %v6328, 0.0
        %v6375 = vadd.f32 %v6373, %v6374
        %v6376 = vsel %vm467, %v6329, 0.0
        %v6377 = vadd.f32 %v6375, %v6376
        %v6378 = vsel %vm467, %v6330, 0.0
        %v6379 = vadd.f32 %v6377, %v6378
        %v6380 = vsel %vm467, %v6331, 0.0
        %v6381 = vadd.f32 %v6379, %v6380
        %v6382 = vsel %vm467, %v6332, 0.0
        %v6383 = vadd.f32 %v6381, %v6382
        %v6384 = vsel %vm467, %v6333, 0.0
        %v6385 = vadd.f32 %v6383, %v6384
        %v6386 = vsel %vm467, %v6334, 0.0
        %v6387 = vadd.f32 %v6385, %v6386
        %v6388 = vsel %vm467, %v6335, 0.0
        %v6389 = vadd.f32 %v6387, %v6388
        %v6390 = vsel %vm467, %v6336, 0.0
        %v6391 = vadd.f32 %v6389, %v6390
        %v6392 = vsel %vm467, %v6337, 0.0
        %v6393 = vadd.f32 %v6391, %v6392
        %v6394 = vsel %vm467, %v6338, 0.0
        %v6395 = vadd.f32 %v6393, %v6394
        %v6396 = vsel %vm467, %v6339, 0.0
        %v6397 = vadd.f32 %v6395, %v6396
        %v6398 = vsel %vm467, %v6340, 0.0
        %v6399 = vadd.f32 %v6397, %v6398
        %v6400 = vsel %vm467, %v6341, 0.0
        %v6401 = vadd.f32 %v6399, %v6400
        %v6402 = vsel %vm467, %v6342, 0.0
        %v6403 = vadd.f32 %v6401, %v6402
        %v6404 = vsel %vm467, %v6343, 0.0
        %v6405 = vadd.f32 %v6403, %v6404
        %v6406 = vsel %vm467, %v6344, 0.0
        %v6407 = vadd.f32 %v6405, %v6406
        %v6408 = vrot.slane %v6407, 4
        %v6409 = vadd.f32 %v6407, %v6408
        %v6410 = vrot.slane %v6409, 2
        %v6411 = vadd.f32 %v6409, %v6410
        %v6412 = vrot.slane %v6411, 1
        %v6413 = vadd.f32 %v6411, %v6412
        %v6414 = vld [vmem:[%s1] sm:$0xff]
        %v6415 = vld [vmem:[%s1 + $0x8] sm:$0xff]
        %v6416 = vld [vmem:[%s1 + $0x10] sm:$0xff]
        %v6417 = vld [vmem:[%s1 + $0x18] sm:$0xff]
        %v6419 = vsel %vm467, %v6312, 0
        %6421 = vmatpush.msra.mxu0 0.0
        %6422 = vmatpush.msra.mxu0 0.0
        %6423 = vmatpush.msra.mxu0 0.0
        %6424 = vmatpush.msra.mxu0 0.0
        %6425 = vmatpush.msra.mxu0 0.0
        %6426 = vmatpush.msra.mxu0 0.0
        %6427 = vmatpush.msra.mxu0 0.0
        %6428 = vmatpush.msra.mxu0 0.0
        %6429 = vmatpush.msra.mxu0 0.0
        %6430 = vmatpush.msra.mxu0 0.0
        %6431 = vmatpush.msra.mxu0 0.0
        %6432 = vmatpush.msra.mxu0 0.0
        %6433 = vmatpush.msra.mxu0 %v6417
        %6434 = vmatpush.msra.mxu0 %v6416
        %6435 = vmatpush.msra.mxu0 %v6415
        %6436 = vmatpush.msra.mxu0 %v6414
        %6437 = vmatmul.f32.gmra.mxu0 %v6419
        %v6438 = vpop.f32.mrf.mxu0
        %v6439 = vadd.f32 0.0, %v6438
        %6440 = vdwg.mxu0
        %v6442 = vsel %vm467, %v6413, 0
        %6444 = vmatpush.msra.mxu0 0.0
        %6445 = vmatpush.msra.mxu0 0.0
        %6446 = vmatpush.msra.mxu0 0.0
        %6447 = vmatpush.msra.mxu0 0.0
        %6448 = vmatpush.msra.mxu0 0.0
        %6449 = vmatpush.msra.mxu0 0.0
        %6450 = vmatpush.msra.mxu0 0.0
        %6451 = vmatpush.msra.mxu0 0.0
        %6452 = vmatpush.msra.mxu0 0.0
        %6453 = vmatpush.msra.mxu0 0.0
        %6454 = vmatpush.msra.mxu0 0.0
        %6455 = vmatpush.msra.mxu0 0.0
        %6456 = vmatpush.msra.mxu0 %v6417
        %6457 = vmatpush.msra.mxu0 %v6416
        %6458 = vmatpush.msra.mxu0 %v6415
        %6459 = vmatpush.msra.mxu0 %v6414
        %6460 = vmatmul.f32.gmra.mxu0 %v6442
        %v6461 = vpop.f32.mrf.mxu0
        %v6462 = vadd.f32 0.0, %v6461
        %6463 = vdwg.mxu0
        %v6464 = vmul.f32 %v6439, %v6439
        %v6465 = vsub.f32 %v6462, %v6464
        %v6466 = vadd.f32 %v6465, 1e-05
        %v6467 = vrsqrt.pop %v6466
        %v6468 = vmul.f32 %v6467, %v6466
        %v6469 = vmul.f32 %v6468, %v6467
        %v6470 = vmul.f32 0.5, %v6469
        %v6471 = vsub.f32 1.5, %v6470
        %v6472 = vmul.f32 %v6467, %v6471
        %vm6473 = vweird.f32 %v6466
        %vm6474 = vweird.f32 %v6467
        %vm6475 = vmor %vm6473, %vm6474
        %v6476 = vsel %vm6475, %v6467, %v6472
        %v6477 = vperm.slane %v6439, 0
        %v6478 = vsub.f32 %v6212, %v6477
        %v6479 = vsub.f32 %v6213, %v6477
        %v6480 = vsub.f32 %v6214, %v6477
        %v6481 = vsub.f32 %v6215, %v6477
        %v6482 = vsub.f32 %v6216, %v6477
        %v6483 = vsub.f32 %v6217, %v6477
        %v6484 = vsub.f32 %v6218, %v6477
        %v6485 = vsub.f32 %v6219, %v6477
        %v6486 = vsub.f32 %v6220, %v6477
        %v6487 = vsub.f32 %v6221, %v6477
        %v6488 = vsub.f32 %v6222, %v6477
        %v6489 = vsub.f32 %v6223, %v6477
        %v6490 = vsub.f32 %v6224, %v6477
        %v6491 = vsub.f32 %v6225, %v6477
        %v6492 = vsub.f32 %v6226, %v6477
        %v6493 = vsub.f32 %v6227, %v6477
        %v6494 = vsub.f32 %v6228, %v6477
        %v6495 = vsub.f32 %v6229, %v6477
        %v6496 = vsub.f32 %v6230, %v6477
        %v6497 = vsub.f32 %v6231, %v6477
        %v6498 = vsub.f32 %v6232, %v6477
        %v6499 = vsub.f32 %v6233, %v6477
        %v6500 = vsub.f32 %v6234, %v6477
        %v6501 = vsub.f32 %v6235, %v6477
        %v6502 = vsub.f32 %v6236, %v6477
        %v6503 = vsub.f32 %v6237, %v6477
        %v6504 = vsub.f32 %v6238, %v6477
        %v6505 = vsub.f32 %v6239, %v6477
        %v6506 = vsub.f32 %v6240, %v6477
        %v6507 = vsub.f32 %v6241, %v6477
        %v6508 = vsub.f32 %v6242, %v6477
        %v6509 = vsub.f32 %v6243, %v6477
        %v6510 = vld [vmem:[%s12] sm:$0x1]
        %v6511 = vmul.f32 %v6476, %v6510
        %v6512 = vperm.slane %v6511, 0
        %v6513 = vmul.f32 %v6478, %v6512
        %v6514 = vmul.f32 %v6479, %v6512
        %v6515 = vmul.f32 %v6480, %v6512
        %v6516 = vmul.f32 %v6481, %v6512
        %v6517 = vmul.f32 %v6482, %v6512
        %v6518 = vmul.f32 %v6483, %v6512
        %v6519 = vmul.f32 %v6484, %v6512
        %v6520 = vmul.f32 %v6485, %v6512
        %v6521 = vmul.f32 %v6486, %v6512
        %v6522 = vmul.f32 %v6487, %v6512
        %v6523 = vmul.f32 %v6488, %v6512
        %v6524 = vmul.f32 %v6489, %v6512
        %v6525 = vmul.f32 %v6490, %v6512
        %v6526 = vmul.f32 %v6491, %v6512
        %v6527 = vmul.f32 %v6492, %v6512
        %v6528 = vmul.f32 %v6493, %v6512
        %v6529 = vmul.f32 %v6494, %v6512
        %v6530 = vmul.f32 %v6495, %v6512
        %v6531 = vmul.f32 %v6496, %v6512
        %v6532 = vmul.f32 %v6497, %v6512
        %v6533 = vmul.f32 %v6498, %v6512
        %v6534 = vmul.f32 %v6499, %v6512
        %v6535 = vmul.f32 %v6500, %v6512
        %v6536 = vmul.f32 %v6501, %v6512
        %v6537 = vmul.f32 %v6502, %v6512
        %v6538 = vmul.f32 %v6503, %v6512
        %v6539 = vmul.f32 %v6504, %v6512
        %v6540 = vmul.f32 %v6505, %v6512
        %v6541 = vmul.f32 %v6506, %v6512
        %v6542 = vmul.f32 %v6507, %v6512
        %v6543 = vmul.f32 %v6508, %v6512
        %v6544 = vmul.f32 %v6509, %v6512
        %v6545 = vld [vmem:[%s13] sm:$0x1]
        %v6547 = vperm.slane %v6545, 0
        %v6549 = vadd.f32 %v6513, %v6547
        %v6550 = vadd.f32 %v6514, %v6547
        %v6551 = vadd.f32 %v6515, %v6547
        %v6552 = vadd.f32 %v6516, %v6547
        %v6553 = vadd.f32 %v6517, %v6547
        %v6554 = vadd.f32 %v6518, %v6547
        %v6555 = vadd.f32 %v6519, %v6547
        %v6556 = vadd.f32 %v6520, %v6547
        %v6557 = vadd.f32 %v6521, %v6547
        %v6558 = vadd.f32 %v6522, %v6547
        %v6559 = vadd.f32 %v6523, %v6547
        %v6560 = vadd.f32 %v6524, %v6547
        %v6561 = vadd.f32 %v6525, %v6547
        %v6562 = vadd.f32 %v6526, %v6547
        %v6563 = vadd.f32 %v6527, %v6547
        %v6564 = vadd.f32 %v6528, %v6547
        %v6565 = vadd.f32 %v6529, %v6547
        %v6566 = vadd.f32 %v6530, %v6547
        %v6567 = vadd.f32 %v6531, %v6547
        %v6568 = vadd.f32 %v6532, %v6547
        %v6569 = vadd.f32 %v6533, %v6547
        %v6570 = vadd.f32 %v6534, %v6547
        %v6571 = vadd.f32 %v6535, %v6547
        %v6572 = vadd.f32 %v6536, %v6547
        %v6573 = vadd.f32 %v6537, %v6547
        %v6574 = vadd.f32 %v6538, %v6547
        %v6575 = vadd.f32 %v6539, %v6547
        %v6576 = vadd.f32 %v6540, %v6547
        %v6577 = vadd.f32 %v6541, %v6547
        %v6578 = vadd.f32 %v6542, %v6547
        %v6579 = vadd.f32 %v6543, %v6547
        %v6580 = vadd.f32 %v6544, %v6547
        %v6581 = vmax.f32 %v6549, 0.0
        %v6582 = vmax.f32 %v6550, 0.0
        %v6583 = vmax.f32 %v6551, 0.0
        %v6584 = vmax.f32 %v6552, 0.0
        %v6585 = vmax.f32 %v6553, 0.0
        %v6586 = vmax.f32 %v6554, 0.0
        %v6587 = vmax.f32 %v6555, 0.0
        %v6588 = vmax.f32 %v6556, 0.0
        %v6589 = vmax.f32 %v6557, 0.0
        %v6590 = vmax.f32 %v6558, 0.0
        %v6591 = vmax.f32 %v6559, 0.0
        %v6592 = vmax.f32 %v6560, 0.0
        %v6593 = vmax.f32 %v6561, 0.0
        %v6594 = vmax.f32 %v6562, 0.0
        %v6595 = vmax.f32 %v6563, 0.0
        %v6596 = vmax.f32 %v6564, 0.0
        %v6597 = vmax.f32 %v6565, 0.0
        %v6598 = vmax.f32 %v6566, 0.0
        %v6599 = vmax.f32 %v6567, 0.0
        %v6600 = vmax.f32 %v6568, 0.0
        %v6601 = vmax.f32 %v6569, 0.0
        %v6602 = vmax.f32 %v6570, 0.0
        %v6603 = vmax.f32 %v6571, 0.0
        %v6604 = vmax.f32 %v6572, 0.0
        %v6605 = vmax.f32 %v6573, 0.0
        %v6606 = vmax.f32 %v6574, 0.0
        %v6607 = vmax.f32 %v6575, 0.0
        %v6608 = vmax.f32 %v6576, 0.0
        %v6609 = vmax.f32 %v6577, 0.0
        %v6610 = vmax.f32 %v6578, 0.0
        %v6611 = vmax.f32 %v6579, 0.0
        %v6612 = vmax.f32 %v6580, 0.0
        %6613 = vst.msk [vmem:[%s460] sm:$0xff] %vm467, %v6581
        %6614 = vst.msk [vmem:[%s460 + $0x8] sm:$0xff] %vm467, %v6582
        %6615 = vst.msk [vmem:[%s460 + $0x10] sm:$0xff] %vm467, %v6583
        %6616 = vst.msk [vmem:[%s460 + $0x18] sm:$0xff] %vm467, %v6584
        %6617 = vst.msk [vmem:[%s460 + $0x20] sm:$0xff] %vm467, %v6585
        %6618 = vst.msk [vmem:[%s460 + $0x28] sm:$0xff] %vm467, %v6586
        %6619 = vst.msk [vmem:[%s460 + $0x30] sm:$0xff] %vm467, %v6587
        %6620 = vst.msk [vmem:[%s460 + $0x38] sm:$0xff] %vm467, %v6588
        %6621 = vst.msk [vmem:[%s460 + $0x40] sm:$0xff] %vm467, %v6589
        %6622 = vst.msk [vmem:[%s460 + $0x48] sm:$0xff] %vm467, %v6590
        %6623 = vst.msk [vmem:[%s460 + $0x50] sm:$0xff] %vm467, %v6591
        %6624 = vst.msk [vmem:[%s460 + $0x58] sm:$0xff] %vm467, %v6592
        %6625 = vst.msk [vmem:[%s460 + $0x60] sm:$0xff] %vm467, %v6593
        %6626 = vst.msk [vmem:[%s460 + $0x68] sm:$0xff] %vm467, %v6594
        %6627 = vst.msk [vmem:[%s460 + $0x70] sm:$0xff] %vm467, %v6595
        %6628 = vst.msk [vmem:[%s460 + $0x78] sm:$0xff] %vm467, %v6596
        %6629 = vst.msk [vmem:[%s460 + $0x80] sm:$0xff] %vm467, %v6597
        %6630 = vst.msk [vmem:[%s460 + $0x88] sm:$0xff] %vm467, %v6598
        %6631 = vst.msk [vmem:[%s460 + $0x90] sm:$0xff] %vm467, %v6599
        %6632 = vst.msk [vmem:[%s460 + $0x98] sm:$0xff] %vm467, %v6600
        %6633 = vst.msk [vmem:[%s460 + $0xa0] sm:$0xff] %vm467, %v6601
        %6634 = vst.msk [vmem:[%s460 + $0xa8] sm:$0xff] %vm467, %v6602
        %6635 = vst.msk [vmem:[%s460 + $0xb0] sm:$0xff] %vm467, %v6603
        %6636 = vst.msk [vmem:[%s460 + $0xb8] sm:$0xff] %vm467, %v6604
        %6637 = vst.msk [vmem:[%s460 + $0xc0] sm:$0xff] %vm467, %v6605
        %6638 = vst.msk [vmem:[%s460 + $0xc8] sm:$0xff] %vm467, %v6606
        %6639 = vst.msk [vmem:[%s460 + $0xd0] sm:$0xff] %vm467, %v6607
        %6640 = vst.msk [vmem:[%s460 + $0xd8] sm:$0xff] %vm467, %v6608
        %6641 = vst.msk [vmem:[%s460 + $0xe0] sm:$0xff] %vm467, %v6609
        %6642 = vst.msk [vmem:[%s460 + $0xe8] sm:$0xff] %vm467, %v6610
        %6643 = vst.msk [vmem:[%s460 + $0xf0] sm:$0xff] %vm467, %v6611
        %6644 = vst.msk [vmem:[%s460 + $0xf8] sm:$0xff] %vm467, %v6612
        %s6645 = sand.u32 %s335, 1
        %s6646 = scalar_lea.sflag [#allocation5], %s6645
        %s6647 = sand.u32 %s335, 1
        %s6648 = smul.addr %s6647, 256
        %s6649 = scalar_lea.vmem [#allocation4], %s6648
        // Predicated region
        $region77: #{conv3_pallas.1} parent=75 // pred_check
          %p6650 = pneg %p345
        $region78: #{conv3_pallas.1} parent=75 // pred_check_branch
          %6652 = sbr.rel (%p6650) target = $region80
        $region79: #{conv3_pallas.1} parent=75 // pred_region
          %6654 = vsyncadd %s6646, 0
          %s6655 = smul.addr %s28, 32
          %s6656 = smul.addr %s6655, 8
          %s6657 = scalar_lea.hbm %s14, %s6656
          %s6658 = sshll.u32 %s6649, 4
          %s6659 = int_to_ptr.vmem [resolvable:$true] %s6658
          %s6660 = sshll.u32 %s6657, 4
          %s6661 = int_to_ptr.hbm [resolvable:$true] %s6660
          %6666 = dma.vmem_to_hbm [thread:$0]  %s6659, 4096, %s6661, %s6646, 128, 128, 8
        $region80: #{conv3_pallas.1} parent=75 // pred_fallthru
          _
      $region76: #{conv3_pallas.1} parent=5 // pred_fallthru
        _
      %p6667 = scmp.le.s32.totalorder 2, %s23
      // Predicated region
      $region81: #{conv3_pallas.1} parent=5 // pred_check
        %p6668 = pneg %p6667
      $region82: #{conv3_pallas.1} parent=5 // pred_check_branch
        %6670 = sbr.rel (%p6668) target = $region84
      $region83: #{conv3_pallas.1} parent=5 // pred_region
        %s6671 = ssub.s32 %s23, 2
        // Predicated region
        $region85: #{conv3_pallas.1} parent=83 // pred_check
          %p6672 = pneg %p351
        $region86: #{conv3_pallas.1} parent=83 // pred_check_branch
          %6674 = sbr.rel (%p6672) target = $region88
        $region87: #{conv3_pallas.1} parent=83 // pred_region
          %s6675 = sand.u32 %s336, 1
          %s6676 = scalar_lea.sflag [#allocation5], %s6675
          %s6677 = sand.u32 %s336, 1
          %s6678 = smul.addr %s6677, 256
          %s6679 = scalar_lea.vmem [#allocation4], %s6678
          %6681 = dma.done %s6676, 4096
        $region88: #{conv3_pallas.1} parent=83 // pred_fallthru
          _
      $region84: #{conv3_pallas.1} parent=5 // pred_fallthru
        _
    $region6: #{conv3_pallas.1} parent=1 // loop_footer
      %s27 = sadd.s32 1, %s23
    $region7: #{conv3_pallas.1} parent=1 // loop_footer_branch
      %22 = sbr.rel target = $region3
    $region8: #{conv3_pallas.1} parent=1 // loop_exit
      _
    %6682 = vsyncpa [#allocation5], 1
    %s6683 = scalar_lea.sflag [#allocation5], 1
    %6684 = vsyncpa %s6683, 1

</llo_original>
